<compile_context>
chip_gen: v7x
topology: tpu7x:2x2x1
jax: 0.10.0
libtpu: 0.0.40
codegen_flags: <defaults>
</compile_context>

<pallas_src>
import functools
import math

import jax
import jax.numpy as jnp
from jax.experimental import pallas as pl
from jax.experimental.pallas import tpu as pltpu

MXU_DTYPE = jnp.bfloat16      # set to jnp.float32 for exact-precision matmuls
_BN_EPS = 1e-5
_LEAKY_SLOPE = 0.01           # nn.LeakyReLU() default
_CD_EPS = 1e-7


def _vmem_limit_bytes():
    try:
        cap = pltpu.get_tpu_info().vmem_capacity_bytes
    except Exception:
        return None
    if cap <= 64 * 1024 * 1024:          # v7x-class: leave Mosaic scratch headroom
        return int(cap * 0.60)
    return min(int(cap * 3 // 4), 96 * 1024 * 1024)


_VMEM_LIMIT = _vmem_limit_bytes()
_TILE_BUDGET = (_VMEM_LIMIT or 64 * 1024 * 1024) // 3


def _pick_row_tile(h_out, w_out, wp_max, cin_max, cout, vmem_budget):
    """Largest TR with Hout % TR == 0, TR % 4 == 0 (max halo), per-tile
    working set within the VMEM budget, preferring P = TR*Wout % 128 == 0."""
    if h_out % 4:
        raise ValueError("output height must be a multiple of 4")
    halo = 4

    def tile_bytes(t):
        p = t * w_out
        return (2 * (t + halo) * wp_max * cin_max * 2   # double-buffered bf16 input
                + (t + halo) * wp_max * cin_max * 2     # in-kernel halo concat copy
                + 2 * p * cout * 2                      # double-buffered bf16 output
                + p * cin_max * 4 + 2 * p * cout * 4)   # tap / acc / z f32 temps

    cands = [t for t in range(4, h_out + 1, 4) if h_out % t == 0]
    fitting = [t for t in cands if tile_bytes(t) <= vmem_budget] or cands[:1]
    aligned = [t for t in fitting if (t * w_out) % 128 == 0]
    return max(aligned) if aligned else max(fitting)


# ----------------------------------------------------------------------------
# Pallas kernel 1: conv2d (stride 1, dilation, pre-padded bf16 input) + bias
#                  + LeakyReLU, emitting per-(image, row-tile) BN statistics.
# ----------------------------------------------------------------------------
def _conv_act_stats_kernel(x_lo_ref, x_hi_ref, w_ref, b_ref, y_ref, stats_ref,
                           *, KH, KW, dil, TR, Wout):
    # x_lo_ref  : (1, TR,   Wp, Cin) bf16   row block of the padded input
    # x_hi_ref  : (1, halo, Wp, Cin) bf16   halo rows just below the block
    # w_ref     : (KH*KW, Cin, Cout) bf16   per-tap weights
    # b_ref     : (1, Cout)          f32
    # y_ref     : (1, P, Cout)       bf16   pre-BN activation tile
    # stats_ref : (1, 1, 2, Cout)    f32    per-(image, row-tile) [sum, sum_sq]
    Cin = x_lo_ref.shape[-1]
    Cout = w_ref.shape[-1]
    P = TR * Wout

    # Row tile + halo rows (major-axis concat: plain copies, no relayout).
    xx = jnp.concatenate([x_lo_ref[0], x_hi_ref[0]], axis=0)   # (TR+halo, Wp, Cin)

    # Per-tap accumulation: KH*KW matmuls with K = Cin into one f32 accumulator
    # (no im2col lane concatenation, no duplicated patch).
    acc = jnp.zeros((P, Cout), jnp.float32)
    for kh in range(KH):
        rows = xx[kh * dil: kh * dil + TR]                      # (TR, Wp, Cin)
        for kw in range(KW):
            tap = rows[:, kw * dil: kw * dil + Wout, :].reshape(P, Cin)
            acc = acc + jnp.dot(tap, w_ref[kh * KW + kw],
                                preferred_element_type=jnp.float32)

    z = acc + b_ref[...]                                        # bias (f32)
    z = jnp.where(z > 0, z, _LEAKY_SLOPE * z)                   # LeakyReLU(0.01)

    part = jnp.concatenate([jnp.sum(z, axis=0, keepdims=True),
                            jnp.sum(z * z, axis=0, keepdims=True)], axis=0)
    stats_ref[...] = part[None, None]
    y_ref[0] = z.astype(y_ref.dtype)


def conv_act_stats(xpad, w_taps, bias, *, KH, KW, dil, TR):
    """conv (pre-padded bf16 input) + bias + LeakyReLU.

    xpad:   (N, Hp, Wp, Cin) bf16, zero-padded.
    w_taps: (KH*KW, Cin, Cout) bf16.
    Returns
      y     : (N, Hout*Wout, Cout) bf16  pre-BatchNorm activation
      stats : (N, R, 2, Cout) f32        per-(image, row-tile) [sum, sum_sq]
    """
    N, Hp, Wp, Cin = xpad.shape
    halo = (KH - 1) * dil
    assert halo >= 1
    Hout, Wout = Hp - halo, Wp - (KW - 1) * dil
    Cout = w_taps.shape[-1]
    assert Hout % TR == 0 and TR % halo == 0
    R = Hout // TR
    P = TR * Wout
    hi_blocks = TR // halo          # halo-row block index stride

    kernel = functools.partial(_conv_act_stats_kernel, KH=KH, KW=KW, dil=dil,
                               TR=TR, Wout=Wout)
    flops = 2 * N * Hout * Wout * KH * KW * Cin * Cout
    bytes_accessed = (N * Hp * Wp * Cin * 2 + w_taps.size * 2 + Cout * 4
                      + N * Hout * Wout * Cout * 2 + N * R * 2 * Cout * 4)

    y, stats = pl.pallas_call(
        kernel,
        grid=(N, R),
        in_specs=[
            pl.BlockSpec((1, TR, Wp, Cin), lambda n, r: (n, r, 0, 0)),
            pl.BlockSpec((1, halo, Wp, Cin),
                         lambda n, r, hb=hi_blocks: (n, (r + 1) * hb, 0, 0)),
            pl.BlockSpec((KH * KW, Cin, Cout), lambda n, r: (0, 0, 0)),
            pl.BlockSpec((1, Cout), lambda n, r: (0, 0)),
        ],
        out_specs=[
            pl.BlockSpec((1, P, Cout), lambda n, r: (n, r, 0)),
            pl.BlockSpec((1, 1, 2, Cout), lambda n, r: (n, r, 0, 0)),
        ],
        out_shape=[
            jax.ShapeDtypeStruct((N, Hout * Wout, Cout), jnp.bfloat16),
            jax.ShapeDtypeStruct((N, R, 2, Cout), jnp.float32),
        ],
        compiler_params=pltpu.CompilerParams(
            dimension_semantics=("parallel", "parallel"),
            vmem_limit_bytes=_VMEM_LIMIT),
        cost_estimate=pl.CostEstimate(flops=flops, transcendentals=0,
                                      bytes_accessed=bytes_accessed),
    )(xpad, xpad, w_taps, bias.reshape(1, Cout).astype(jnp.float32))
    return y, stats


# ----------------------------------------------------------------------------
# Pallas kernel 2: conv4 (1x1) fused with the [E1|E2|E3] channel concat, the
#   three per-branch BatchNorm affines and the (channel-wise) ConcreteDropout
#   whose keep factor is pre-folded into the per-image scale/shift.
# ----------------------------------------------------------------------------
def _conv4_fused_kernel(y1_ref, y2_ref, y3_ref, sc_ref, sh_ref, w4_ref, b4_ref,
                        y_ref, stats_ref):
    P, Cout = y1_ref.shape[1], y1_ref.shape[2]
    sc = sc_ref[0]                         # (3, Cout) = BN scale * dropout keep
    sh = sh_ref[0]                         # (3, Cout) = BN shift * dropout keep

    acc = jnp.zeros((P, Cout), jnp.float32)
    for g, yg_ref in enumerate((y1_ref, y2_ref, y3_ref)):
        e = yg_ref[0].astype(jnp.float32) * sc[g:g + 1, :] + sh[g:g + 1, :]
        acc = acc + jnp.dot(e.astype(w4_ref.dtype), w4_ref[g],
                            preferred_element_type=jnp.float32)

    z = acc + b4_ref[...]
    z = jnp.where(z > 0, z, _LEAKY_SLOPE * z)

    part = jnp.concatenate([jnp.sum(z, axis=0, keepdims=True),
                            jnp.sum(z * z, axis=0, keepdims=True)], axis=0)
    stats_ref[...] = part[None, None]
    y_ref[0] = z


def conv4_fused(y1, y2, y3, sc, sh, w4, b4, *, row_tile_pixels):
    N, HW, Cout = y1.shape
    P = row_tile_pixels
    assert HW % P == 0
    R = HW // P

    act_spec = pl.BlockSpec((1, P, Cout), lambda n, r: (n, r, 0))
    flops = 2 * N * HW * 3 * Cout * Cout
    bytes_accessed = (3 * N * HW * Cout * 2 + N * HW * Cout * 4
                      + 3 * Cout * Cout * 2 + 2 * N * 3 * Cout * 4
                      + Cout * 4 + N * R * 2 * Cout * 4)

    y4, stats = pl.pallas_call(
        _conv4_fused_kernel,
        grid=(N, R),
        in_specs=[
            act_spec, act_spec, act_spec,
            pl.BlockSpec((1, 3, Cout), lambda n, r: (n, 0, 0)),
            pl.BlockSpec((1, 3, Cout), lambda n, r: (n, 0, 0)),
            pl.BlockSpec((3, Cout, Cout), lambda n, r: (0, 0, 0)),
            pl.BlockSpec((1, Cout), lambda n, r: (0, 0)),
        ],
        out_specs=[
            act_spec,
            pl.BlockSpec((1, 1, 2, Cout), lambda n, r: (n, r, 0, 0)),
        ],
        out_shape=[
            jax.ShapeDtypeStruct((N, HW, Cout), jnp.float32),
            jax.ShapeDtypeStruct((N, R, 2, Cout), jnp.float32),
        ],
        compiler_params=pltpu.CompilerParams(
            dimension_semantics=("parallel", "parallel"),
            vmem_limit_bytes=_VMEM_LIMIT),
        cost_estimate=pl.CostEstimate(flops=flops, transcendentals=0,
                                      bytes_accessed=bytes_accessed),
    )(y1, y2, y3, sc.astype(jnp.float32), sh.astype(jnp.float32),
      w4.astype(MXU_DTYPE), b4.reshape(1, Cout).astype(jnp.float32))
    return y4, stats


# ----------------------------------------------------------------------------
# Plain-JAX glue (PixelShuffle, channel-wise ConcreteDropout, BN finalize).
# ----------------------------------------------------------------------------
def pixel_shuffle(x_nchw, r):
    N, C, H, W = x_nchw.shape
    c = C // (r * r)
    x = x_nchw.reshape(N, c, r, r, H, W)
    x = x.transpose(0, 1, 4, 2, 5, 3)
    return x.reshape(N, c, H * r, W * r)


# TODO(synk): exact ConcreteDropoutConvolutional hyperparameters (learned p,
# init range, weight/dropout regularizer coeffs) are not in the snippet;
# channel-wise (feature-map) concrete noise with fixed p=0.1 and
# dropout_reg=1e-5 is used (Identity layer => weight-regularizer term is 0).
def _concrete_keep(key, p, temp, shape):
    u = jax.random.uniform(key, shape, dtype=jnp.float32)
    logit = (math.log(p + _CD_EPS) - math.log(1.0 - p + _CD_EPS)
             + jnp.log(u + _CD_EPS) - jnp.log(1.0 - u + _CD_EPS))
    drop = jax.nn.sigmoid(logit / temp)
    return (1.0 - drop) / (1.0 - p)


def concrete_dropout_reg(p, input_dim, dropout_regularizer=1e-5):
    return jnp.float32((p * math.log(p) + (1.0 - p) * math.log(1.0 - p))
                       * dropout_regularizer * input_dim)


def bn_affine_from_stats(stats, gamma, beta, count, eps=_BN_EPS):
    """Fold training-mode BatchNorm batch statistics into a per-channel affine."""
    s = jnp.sum(stats, axis=(0, 1))                         # (2, C)
    mean = s[0] / count
    # TODO(synk): E[x^2]-E[x]^2 in f32 can cancel when |mean| >> std; clamp
    # avoids NaN but a compensated/centred finalize would be more robust.
    var = jnp.maximum(s[1] / count - mean * mean, 0.0)
    scale = gamma * jax.lax.rsqrt(var + eps)
    shift = beta - mean * scale
    # TODO(synk): PyTorch training BN also updates running_mean/var (module
    # state); a pure functional forward has nowhere to store them.
    return scale, shift


def bn_pad_bf16(y_flat, scale, shift, H, W, pad):
    """BN affine fused with the (unavoidable) zero-padding pass; bf16 output."""
    N, HW, C = y_flat.shape
    y = (y_flat.reshape(N, H, W, C).astype(jnp.float32) * scale + shift)
    y = y.astype(jnp.bfloat16)
    return jnp.pad(y, ((0, 0), (pad, pad), (pad, pad), (0, 0)))


# ----------------------------------------------------------------------------
# UpBlock parameters + forward
# ----------------------------------------------------------------------------
def init_upblock_params(key, in_filters, out_filters):
    c1_in = in_filters // 4 + 2 * out_filters
    specs = {
        "conv1": (c1_in, out_filters, 3, 3),
        "conv2": (out_filters, out_filters, 3, 3),
        "conv3": (out_filters, out_filters, 2, 2),
        "conv4": (out_filters * 3, out_filters, 1, 1),
    }
    params = {}
    for name, (cin, cout, kh, kw) in specs.items():
        key, k_w, k_b = jax.random.split(key, 3)
        fan_in = cin * kh * kw
        bound = 1.0 / math.sqrt(fan_in)
        w = jax.random.uniform(k_w, (kh * kw, cin, cout),
                               minval=-bound, maxval=bound, dtype=jnp.float32)
        b = jax.random.uniform(k_b, (cout,), minval=-bound, maxval=bound,
                               dtype=jnp.float32)
        params[name] = dict(w=w, b=b,
                            gamma=jnp.ones((cout,), jnp.float32),
                            beta=jnp.zeros((cout,), jnp.float32))
    return params


def upblock_forward(params, x_nchw, skip_nchw, *, drop_out=True, p_drop=0.1,
                    temp=2.0 / 3.0, rng=None, row_tile=None):
    if rng is None:
        rng = jax.random.PRNGKey(42)
    k1, k2, k3, k4 = jax.random.split(rng, 4)
    reg_total = jnp.float32(0.0)
    F = params["conv1"]["w"].shape[-1]

    # --- PixelShuffle + ConcreteDropout 1 / 2 + skip concat (JAX glue) -------
    upA = pixel_shuffle(x_nchw, 2)                              # (N, Cin/4, 2H, 2W)
    N, CA, H2, W2 = upA.shape
    if drop_out:
        upA = upA * _concrete_keep(k1, p_drop, temp, (N, CA))[:, :, None, None]
        reg_total += concrete_dropout_reg(p_drop, CA)
    upB = jnp.concatenate([upA, skip_nchw], axis=1)
    CB = upB.shape[1]
    if drop_out:
        upB = upB * _concrete_keep(k2, p_drop, temp, (N, CB))[:, :, None, None]
        reg_total += concrete_dropout_reg(p_drop, CB)

    upB_h = jnp.transpose(upB, (0, 2, 3, 1))                    # NCHW -> NHWC
    count = N * H2 * W2

    if row_tile is None:
        TR = _pick_row_tile(H2, W2, W2 + 4, max(CB, F), F, _TILE_BUDGET)
    else:
        TR = row_tile
    assert H2 % TR == 0 and TR % 4 == 0          # 4 = max halo (conv2, dil=2)

    def w_taps(p):
        return p["w"].astype(MXU_DTYPE)          # (KH*KW, Cin, Cout)

    # --- conv1 (3x3, pad 1) + LeakyReLU (+ BN1 stats) ------------------------
    p1 = params["conv1"]
    x1 = jnp.pad(upB_h.astype(jnp.bfloat16), ((0, 0), (1, 1), (1, 1), (0, 0)))
    y1, st1 = conv_act_stats(x1, w_taps(p1), p1["b"], KH=3, KW=3, dil=1, TR=TR)
    s1, t1 = bn_affine_from_stats(st1, p1["gamma"], p1["beta"], count)

    # --- conv2 (3x3, dilation 2, pad 2) --------------------------------------
    p2 = params["conv2"]
    y2, st2 = conv_act_stats(bn_pad_bf16(y1, s1, t1, H2, W2, 2),
                             w_taps(p2), p2["b"], KH=3, KW=3, dil=2, TR=TR)
    s2, t2 = bn_affine_from_stats(st2, p2["gamma"], p2["beta"], count)

    # --- conv3 (2x2, dilation 2, pad 1) --------------------------------------
    p3 = params["conv3"]
    y3, st3 = conv_act_stats(bn_pad_bf16(y2, s2, t2, H2, W2, 1),
                             w_taps(p3), p3["b"], KH=2, KW=2, dil=2, TR=TR)
    s3, t3 = bn_affine_from_stats(st3, p3["gamma"], p3["beta"], count)

    # --- conv4 (1x1) fused with concat + branch BNs + ConcreteDropout #3 -----
    # Channel-wise dropout keep factors are folded into the per-image BN
    # affine, so the kernel does no PRNG / transcendental work.
    p4 = params["conv4"]
    s_stack = jnp.stack([s1, s2, s3])                           # (3, F)
    t_stack = jnp.stack([t1, t2, t3])
    if drop_out:
        keep3 = _concrete_keep(k3, p_drop, temp, (N, 3, F))
        reg_total += concrete_dropout_reg(p_drop, 3 * F)
    else:
        keep3 = jnp.ones((N, 3, F), jnp.float32)
    sc = s_stack[None] * keep3                                  # (N, 3, F)
    sh = t_stack[None] * keep3
    w4 = p4["w"].reshape(3, F, F)                # channel groups [E1 | E2 | E3]
    y4, st4 = conv4_fused(y1, y2, y3, sc, sh, w4, p4["b"],
                          row_tile_pixels=TR * W2)
    s4, t4 = bn_affine_from_stats(st4, p4["gamma"], p4["beta"], count)

    # --- BN4 + final ConcreteDropout (dropout3 applied a second time, as in
    #     the reference forward) ----------------------------------------------
    out = y4.reshape(N, H2, W2, F) * s4 + t4
    if drop_out:
        out = out * _concrete_keep(k4, p_drop, temp, (N, F))[:, None, None, :]
        reg_total += concrete_dropout_reg(p_drop, F)

    return jnp.transpose(out, (0, 3, 1, 2)), reg_total          # back to NCHW


# ----------------------------------------------------------------------------
if __name__ == "__main__":
    key = jax.random.PRNGKey(0)
    k_param, k_x, k_skip, k_drop = jax.random.split(key, 4)

    N = 2
    in_filters = 16
    out_filters = 8
    H = W = 8                                    # x spatial; skip is 2H x 2W

    x = jax.random.normal(k_x, (N, in_filters, H, W), dtype=jnp.float32)
    skip = jax.random.normal(k_skip, (N, 2 * out_filters, 2 * H, 2 * W),
                             dtype=jnp.float32)
    params = init_upblock_params(k_param, in_filters, out_filters)

    fwd = jax.jit(functools.partial(upblock_forward, drop_out=True))
    out, reg = fwd(params, x, skip, rng=k_drop)
    out = jax.block_until_ready(out)
    reg = jax.block_until_ready(reg)

    assert out.shape == (N, out_filters, 2 * H, 2 * W), out.shape
    assert bool(jnp.all(jnp.isfinite(out))) and bool(jnp.isfinite(reg))
    print("KERNEL_OK")
</pallas_src>

<mosaic_0001>
module attributes {stable_mosaic.version = 11 : i64} {
  func.func @_conv_act_stats_kernel(%arg0: i32, %arg1: i32, %arg2: memref<1x16x18x20xbf16, #tpu.memory_space<vmem>>, %arg3: memref<1x2x18x20xbf16, #tpu.memory_space<vmem>>, %arg4: memref<9x20x8xbf16, #tpu.memory_space<vmem>>, %arg5: memref<1x8xf32, #tpu.memory_space<vmem>>, %arg6: memref<1x256x8xbf16, #tpu.memory_space<vmem>>, %arg7: memref<1x1x2x8xf32, #tpu.memory_space<vmem>>) attributes {dimension_semantics = [#tpu.dimension_semantics<parallel>, #tpu.dimension_semantics<parallel>], iteration_bounds = array<i64: 2, 1>, scalar_prefetch = 0 : i64, scratch_operands = 0 : i64, tpu.core_type = #tpu.core_type<tc>, window_params = [{transform_indices = @transform_0, window_bounds = array<i64: 1, 16, 18, 20>}, {transform_indices = @transform_1, window_bounds = array<i64: 1, 2, 18, 20>}, {pipeline_mode = #tpu.pipeline_mode<synchronous>, transform_indices = @transform_2, window_bounds = array<i64: 9, 20, 8>}, {pipeline_mode = #tpu.pipeline_mode<synchronous>, transform_indices = @transform_3, window_bounds = array<i64: 1, 8>}, {transform_indices = @transform_4, window_bounds = array<i64: 1, 256, 8>}, {transform_indices = @transform_5, window_bounds = array<i64: 1, 1, 2, 8>}]} {
    %c0 = arith.constant 0 : index
    %c0_0 = arith.constant 0 : index
    %c0_1 = arith.constant 0 : index
    %c0_2 = arith.constant 0 : index
    %0 = vector.load %arg2[%c0, %c0_0, %c0_1, %c0_2] : memref<1x16x18x20xbf16, #tpu.memory_space<vmem>>, vector<1x16x18x20xbf16>
    %1 = vector.shape_cast %0 : vector<1x16x18x20xbf16> to vector<16x18x20xbf16>
    %c0_3 = arith.constant 0 : index
    %c0_4 = arith.constant 0 : index
    %c0_5 = arith.constant 0 : index
    %c0_6 = arith.constant 0 : index
    %2 = vector.load %arg3[%c0_3, %c0_4, %c0_5, %c0_6] : memref<1x2x18x20xbf16, #tpu.memory_space<vmem>>, vector<1x2x18x20xbf16>
    %3 = vector.shape_cast %2 : vector<1x2x18x20xbf16> to vector<2x18x20xbf16>
    %4 = tpu.concatenate %1, %3 in 0 : vector<16x18x20xbf16>, vector<2x18x20xbf16> -> vector<18x18x20xbf16>
    %cst = arith.constant 0.000000e+00 : f32
    %5 = vector.broadcast %cst : f32 to vector<256x8xf32>
    %6 = vector.extract_strided_slice %4 {offsets = [0, 0, 0], sizes = [16, 18, 20], strides = [1, 1, 1]} : vector<18x18x20xbf16> to vector<16x18x20xbf16>
    %7 = vector.extract_strided_slice %6 {offsets = [0, 0, 0], sizes = [16, 16, 20], strides = [1, 1, 1]} : vector<16x18x20xbf16> to vector<16x16x20xbf16>
    %8 = vector.shape_cast %7 : vector<16x16x20xbf16> to vector<256x20xbf16>
    %c0_7 = arith.constant 0 : index
    %c0_8 = arith.constant 0 : index
    %c0_9 = arith.constant 0 : index
    %9 = vector.load %arg4[%c0_7, %c0_8, %c0_9] : memref<9x20x8xbf16, #tpu.memory_space<vmem>>, vector<1x20x8xbf16>
    %10 = vector.shape_cast %9 : vector<1x20x8xbf16> to vector<20x8xbf16>
    %cst_10 = arith.constant dense<0.000000e+00> : vector<256x8xf32>
    %11 = tpu.matmul %8, %10, %cst_10 {dimension_numbers = #tpu.dot_dimension_numbers<[1], [0], [0], [1], [0, 0, 1, 1], [], []>} : vector<256x20xbf16>, vector<20x8xbf16>, vector<256x8xf32> -> vector<256x8xf32>
    %12 = arith.addf %5, %11 : vector<256x8xf32>
    %13 = vector.extract_strided_slice %6 {offsets = [0, 1, 0], sizes = [16, 16, 20], strides = [1, 1, 1]} : vector<16x18x20xbf16> to vector<16x16x20xbf16>
    %14 = vector.shape_cast %13 : vector<16x16x20xbf16> to vector<256x20xbf16>
    %c1 = arith.constant 1 : index
    %c0_11 = arith.constant 0 : index
    %c0_12 = arith.constant 0 : index
    %15 = vector.load %arg4[%c1, %c0_11, %c0_12] : memref<9x20x8xbf16, #tpu.memory_space<vmem>>, vector<1x20x8xbf16>
    %16 = vector.shape_cast %15 : vector<1x20x8xbf16> to vector<20x8xbf16>
    %cst_13 = arith.constant dense<0.000000e+00> : vector<256x8xf32>
    %17 = tpu.matmul %14, %16, %cst_13 {dimension_numbers = #tpu.dot_dimension_numbers<[1], [0], [0], [1], [0, 0, 1, 1], [], []>} : vector<256x20xbf16>, vector<20x8xbf16>, vector<256x8xf32> -> vector<256x8xf32>
    %18 = arith.addf %12, %17 : vector<256x8xf32>
    %19 = vector.extract_strided_slice %6 {offsets = [0, 2, 0], sizes = [16, 16, 20], strides = [1, 1, 1]} : vector<16x18x20xbf16> to vector<16x16x20xbf16>
    %20 = vector.shape_cast %19 : vector<16x16x20xbf16> to vector<256x20xbf16>
    %c2 = arith.constant 2 : index
    %c0_14 = arith.constant 0 : index
    %c0_15 = arith.constant 0 : index
    %21 = vector.load %arg4[%c2, %c0_14, %c0_15] : memref<9x20x8xbf16, #tpu.memory_space<vmem>>, vector<1x20x8xbf16>
    %22 = vector.shape_cast %21 : vector<1x20x8xbf16> to vector<20x8xbf16>
    %cst_16 = arith.constant dense<0.000000e+00> : vector<256x8xf32>
    %23 = tpu.matmul %20, %22, %cst_16 {dimension_numbers = #tpu.dot_dimension_numbers<[1], [0], [0], [1], [0, 0, 1, 1], [], []>} : vector<256x20xbf16>, vector<20x8xbf16>, vector<256x8xf32> -> vector<256x8xf32>
    %24 = arith.addf %18, %23 : vector<256x8xf32>
    %25 = vector.extract_strided_slice %4 {offsets = [1, 0, 0], sizes = [16, 18, 20], strides = [1, 1, 1]} : vector<18x18x20xbf16> to vector<16x18x20xbf16>
    %26 = vector.extract_strided_slice %25 {offsets = [0, 0, 0], sizes = [16, 16, 20], strides = [1, 1, 1]} : vector<16x18x20xbf16> to vector<16x16x20xbf16>
    %27 = vector.shape_cast %26 : vector<16x16x20xbf16> to vector<256x20xbf16>
    %c3 = arith.constant 3 : index
    %c0_17 = arith.constant 0 : index
    %c0_18 = arith.constant 0 : index
    %28 = vector.load %arg4[%c3, %c0_17, %c0_18] : memref<9x20x8xbf16, #tpu.memory_space<vmem>>, vector<1x20x8xbf16>
    %29 = vector.shape_cast %28 : vector<1x20x8xbf16> to vector<20x8xbf16>
    %cst_19 = arith.constant dense<0.000000e+00> : vector<256x8xf32>
    %30 = tpu.matmul %27, %29, %cst_19 {dimension_numbers = #tpu.dot_dimension_numbers<[1], [0], [0], [1], [0, 0, 1, 1], [], []>} : vector<256x20xbf16>, vector<20x8xbf16>, vector<256x8xf32> -> vector<256x8xf32>
    %31 = arith.addf %24, %30 : vector<256x8xf32>
    %32 = vector.extract_strided_slice %25 {offsets = [0, 1, 0], sizes = [16, 16, 20], strides = [1, 1, 1]} : vector<16x18x20xbf16> to vector<16x16x20xbf16>
    %33 = vector.shape_cast %32 : vector<16x16x20xbf16> to vector<256x20xbf16>
    %c4 = arith.constant 4 : index
    %c0_20 = arith.constant 0 : index
    %c0_21 = arith.constant 0 : index
    %34 = vector.load %arg4[%c4, %c0_20, %c0_21] : memref<9x20x8xbf16, #tpu.memory_space<vmem>>, vector<1x20x8xbf16>
    %35 = vector.shape_cast %34 : vector<1x20x8xbf16> to vector<20x8xbf16>
    %cst_22 = arith.constant dense<0.000000e+00> : vector<256x8xf32>
    %36 = tpu.matmul %33, %35, %cst_22 {dimension_numbers = #tpu.dot_dimension_numbers<[1], [0], [0], [1], [0, 0, 1, 1], [], []>} : vector<256x20xbf16>, vector<20x8xbf16>, vector<256x8xf32> -> vector<256x8xf32>
    %37 = arith.addf %31, %36 : vector<256x8xf32>
    %38 = vector.extract_strided_slice %25 {offsets = [0, 2, 0], sizes = [16, 16, 20], strides = [1, 1, 1]} : vector<16x18x20xbf16> to vector<16x16x20xbf16>
    %39 = vector.shape_cast %38 : vector<16x16x20xbf16> to vector<256x20xbf16>
    %c5 = arith.constant 5 : index
    %c0_23 = arith.constant 0 : index
    %c0_24 = arith.constant 0 : index
    %40 = vector.load %arg4[%c5, %c0_23, %c0_24] : memref<9x20x8xbf16, #tpu.memory_space<vmem>>, vector<1x20x8xbf16>
    %41 = vector.shape_cast %40 : vector<1x20x8xbf16> to vector<20x8xbf16>
    %cst_25 = arith.constant dense<0.000000e+00> : vector<256x8xf32>
    %42 = tpu.matmul %39, %41, %cst_25 {dimension_numbers = #tpu.dot_dimension_numbers<[1], [0], [0], [1], [0, 0, 1, 1], [], []>} : vector<256x20xbf16>, vector<20x8xbf16>, vector<256x8xf32> -> vector<256x8xf32>
    %43 = arith.addf %37, %42 : vector<256x8xf32>
    %44 = vector.extract_strided_slice %4 {offsets = [2, 0, 0], sizes = [16, 18, 20], strides = [1, 1, 1]} : vector<18x18x20xbf16> to vector<16x18x20xbf16>
    %45 = vector.extract_strided_slice %44 {offsets = [0, 0, 0], sizes = [16, 16, 20], strides = [1, 1, 1]} : vector<16x18x20xbf16> to vector<16x16x20xbf16>
    %46 = vector.shape_cast %45 : vector<16x16x20xbf16> to vector<256x20xbf16>
    %c6 = arith.constant 6 : index
    %c0_26 = arith.constant 0 : index
    %c0_27 = arith.constant 0 : index
    %47 = vector.load %arg4[%c6, %c0_26, %c0_27] : memref<9x20x8xbf16, #tpu.memory_space<vmem>>, vector<1x20x8xbf16>
    %48 = vector.shape_cast %47 : vector<1x20x8xbf16> to vector<20x8xbf16>
    %cst_28 = arith.constant dense<0.000000e+00> : vector<256x8xf32>
    %49 = tpu.matmul %46, %48, %cst_28 {dimension_numbers = #tpu.dot_dimension_numbers<[1], [0], [0], [1], [0, 0, 1, 1], [], []>} : vector<256x20xbf16>, vector<20x8xbf16>, vector<256x8xf32> -> vector<256x8xf32>
    %50 = arith.addf %43, %49 : vector<256x8xf32>
    %51 = vector.extract_strided_slice %44 {offsets = [0, 1, 0], sizes = [16, 16, 20], strides = [1, 1, 1]} : vector<16x18x20xbf16> to vector<16x16x20xbf16>
    %52 = vector.shape_cast %51 : vector<16x16x20xbf16> to vector<256x20xbf16>
    %c7 = arith.constant 7 : index
    %c0_29 = arith.constant 0 : index
    %c0_30 = arith.constant 0 : index
    %53 = vector.load %arg4[%c7, %c0_29, %c0_30] : memref<9x20x8xbf16, #tpu.memory_space<vmem>>, vector<1x20x8xbf16>
    %54 = vector.shape_cast %53 : vector<1x20x8xbf16> to vector<20x8xbf16>
    %cst_31 = arith.constant dense<0.000000e+00> : vector<256x8xf32>
    %55 = tpu.matmul %52, %54, %cst_31 {dimension_numbers = #tpu.dot_dimension_numbers<[1], [0], [0], [1], [0, 0, 1, 1], [], []>} : vector<256x20xbf16>, vector<20x8xbf16>, vector<256x8xf32> -> vector<256x8xf32>
    %56 = arith.addf %50, %55 : vector<256x8xf32>
    %57 = vector.extract_strided_slice %44 {offsets = [0, 2, 0], sizes = [16, 16, 20], strides = [1, 1, 1]} : vector<16x18x20xbf16> to vector<16x16x20xbf16>
    %58 = vector.shape_cast %57 : vector<16x16x20xbf16> to vector<256x20xbf16>
    %c8 = arith.constant 8 : index
    %c0_32 = arith.constant 0 : index
    %c0_33 = arith.constant 0 : index
    %59 = vector.load %arg4[%c8, %c0_32, %c0_33] : memref<9x20x8xbf16, #tpu.memory_space<vmem>>, vector<1x20x8xbf16>
    %60 = vector.shape_cast %59 : vector<1x20x8xbf16> to vector<20x8xbf16>
    %cst_34 = arith.constant dense<0.000000e+00> : vector<256x8xf32>
    %61 = tpu.matmul %58, %60, %cst_34 {dimension_numbers = #tpu.dot_dimension_numbers<[1], [0], [0], [1], [0, 0, 1, 1], [], []>} : vector<256x20xbf16>, vector<20x8xbf16>, vector<256x8xf32> -> vector<256x8xf32>
    %62 = arith.addf %56, %61 : vector<256x8xf32>
    %c0_35 = arith.constant 0 : index
    %c0_36 = arith.constant 0 : index
    %63 = vector.load %arg5[%c0_35, %c0_36] : memref<1x8xf32, #tpu.memory_space<vmem>>, vector<1x8xf32>
    %64 = vector.broadcast %63 : vector<1x8xf32> to vector<256x8xf32>
    %65 = arith.addf %62, %64 : vector<256x8xf32>
    %cst_37 = arith.constant 0.000000e+00 : f32
    %66 = vector.broadcast %cst_37 : f32 to vector<256x8xf32>
    %67 = arith.cmpf ogt, %65, %66 : vector<256x8xf32>
    %cst_38 = arith.constant 0.00999999977 : f32
    %68 = vector.broadcast %cst_38 : f32 to vector<256x8xf32>
    %69 = arith.mulf %68, %65 : vector<256x8xf32>
    %70 = arith.select %67, %65, %69 : vector<256x8xi1>, vector<256x8xf32>
    %cst_39 = arith.constant dense<0.000000e+00> : vector<8xf32>
    %71 = vector.multi_reduction <add>, %70, %cst_39 [0] : vector<256x8xf32> to vector<8xf32>
    %72 = vector.shape_cast %71 : vector<8xf32> to vector<1x8xf32>
    %73 = arith.mulf %70, %70 : vector<256x8xf32>
    %cst_40 = arith.constant dense<0.000000e+00> : vector<8xf32>
    %74 = vector.multi_reduction <add>, %73, %cst_40 [0] : vector<256x8xf32> to vector<8xf32>
    %75 = vector.shape_cast %74 : vector<8xf32> to vector<1x8xf32>
    %76 = tpu.concatenate %72, %75 in 0 : vector<1x8xf32>, vector<1x8xf32> -> vector<2x8xf32>
    %77 = vector.shape_cast %76 : vector<2x8xf32> to vector<1x1x2x8xf32>
    %c0_41 = arith.constant 0 : index
    %c0_42 = arith.constant 0 : index
    %c0_43 = arith.constant 0 : index
    %c0_44 = arith.constant 0 : index
    %78 = vector.load %arg7[%c0_41, %c0_42, %c0_43, %c0_44] : memref<1x1x2x8xf32, #tpu.memory_space<vmem>>, vector<1x1x2x8xf32>
    tpu.vector_store %arg7[%c0_41, %c0_42, %c0_43, %c0_44], %77 {strides = array<i32>} : memref<1x1x2x8xf32, #tpu.memory_space<vmem>>, vector<1x1x2x8xf32>,
    %79 = arith.truncf %70 : vector<256x8xf32> to vector<256x8xbf16>
    %c0_45 = arith.constant 0 : index
    %c0_46 = arith.constant 0 : index
    %c0_47 = arith.constant 0 : index
    %80 = vector.load %arg6[%c0_45, %c0_46, %c0_47] : memref<1x256x8xbf16, #tpu.memory_space<vmem>>, vector<1x256x8xbf16>
    %81 = vector.shape_cast %80 : vector<1x256x8xbf16> to vector<256x8xbf16>
    %82 = vector.shape_cast %79 : vector<256x8xbf16> to vector<1x256x8xbf16>
    tpu.vector_store %arg6[%c0_45, %c0_46, %c0_47], %82 {strides = array<i32>} : memref<1x256x8xbf16, #tpu.memory_space<vmem>>, vector<1x256x8xbf16>,
    return
  }
  func.func @transform_0(%arg0: i32, %arg1: i32) -> (i32, i32, i32, i32) {
    %c0_i32 = arith.constant 0 : i32
    %c0_i32_0 = arith.constant 0 : i32
    %c0_i32_1 = arith.constant 0 : i32
    return %arg0, %arg1, %c0_i32, %c0_i32_0 : i32, i32, i32, i32
  }
  func.func @transform_1(%arg0: i32, %arg1: i32) -> (i32, i32, i32, i32) {
    %c1_i32 = arith.constant 1 : i32
    %0 = arith.addi %arg1, %c1_i32 : i32
    %c8_i32 = arith.constant 8 : i32
    %1 = arith.muli %0, %c8_i32 : i32
    %c0_i32 = arith.constant 0 : i32
    %c0_i32_0 = arith.constant 0 : i32
    %c0_i32_1 = arith.constant 0 : i32
    return %arg0, %1, %c0_i32, %c0_i32_0 : i32, i32, i32, i32
  }
  func.func @transform_2(%arg0: i32, %arg1: i32) -> (i32, i32, i32) {
    %c0_i32 = arith.constant 0 : i32
    %c0_i32_0 = arith.constant 0 : i32
    %c0_i32_1 = arith.constant 0 : i32
    %c0_i32_2 = arith.constant 0 : i32
    return %c0_i32, %c0_i32_0, %c0_i32_1 : i32, i32, i32
  }
  func.func @transform_3(%arg0: i32, %arg1: i32) -> (i32, i32) {
    %c0_i32 = arith.constant 0 : i32
    %c0_i32_0 = arith.constant 0 : i32
    %c0_i32_1 = arith.constant 0 : i32
    return %c0_i32, %c0_i32_0 : i32, i32
  }
  func.func @transform_4(%arg0: i32, %arg1: i32) -> (i32, i32, i32) {
    %c0_i32 = arith.constant 0 : i32
    %c0_i32_0 = arith.constant 0 : i32
    return %arg0, %arg1, %c0_i32 : i32, i32, i32
  }
  func.func @transform_5(%arg0: i32, %arg1: i32) -> (i32, i32, i32, i32) {
    %c0_i32 = arith.constant 0 : i32
    %c0_i32_0 = arith.constant 0 : i32
    %c0_i32_1 = arith.constant 0 : i32
    return %arg0, %arg1, %c0_i32, %c0_i32_0 : i32, i32, i32, i32
  }
}

module attributes {stable_mosaic.version = 11 : i64} {
  func.func @_conv_act_stats_kernel(%arg0: i32, %arg1: i32, %arg2: memref<1x16x20x8xbf16, #tpu.memory_space<vmem>>, %arg3: memref<1x4x20x8xbf16, #tpu.memory_space<vmem>>, %arg4: memref<9x8x8xbf16, #tpu.memory_space<vmem>>, %arg5: memref<1x8xf32, #tpu.memory_space<vmem>>, %arg6: memref<1x256x8xbf16, #tpu.memory_space<vmem>>, %arg7: memref<1x1x2x8xf32, #tpu.memory_space<vmem>>) attributes {dimension_semantics = [#tpu.dimension_semantics<parallel>, #tpu.dimension_semantics<parallel>], iteration_bounds = array<i64: 2, 1>, scalar_prefetch = 0 : i64, scratch_operands = 0 : i64, tpu.core_type = #tpu.core_type<tc>, window_params = [{transform_indices = @transform_0, window_bounds = array<i64: 1, 16, 20, 8>}, {transform_indices = @transform_1, window_bounds = array<i64: 1, 4, 20, 8>}, {pipeline_mode = #tpu.pipeline_mode<synchronous>, transform_indices = @transform_2, window_bounds = array<i64: 9, 8, 8>}, {pipeline_mode = #tpu.pipeline_mode<synchronous>, transform_indices = @transform_3, window_bounds = array<i64: 1, 8>}, {transform_indices = @transform_4, window_bounds = array<i64: 1, 256, 8>}, {transform_indices = @transform_5, window_bounds = array<i64: 1, 1, 2, 8>}]} {
    %c0 = arith.constant 0 : index
    %c0_0 = arith.constant 0 : index
    %c0_1 = arith.constant 0 : index
    %c0_2 = arith.constant 0 : index
    %0 = vector.load %arg2[%c0, %c0_0, %c0_1, %c0_2] : memref<1x16x20x8xbf16, #tpu.memory_space<vmem>>, vector<1x16x20x8xbf16>
    %1 = vector.shape_cast %0 : vector<1x16x20x8xbf16> to vector<16x20x8xbf16>
    %c0_3 = arith.constant 0 : index
    %c0_4 = arith.constant 0 : index
    %c0_5 = arith.constant 0 : index
    %c0_6 = arith.constant 0 : index
    %2 = vector.load %arg3[%c0_3, %c0_4, %c0_5, %c0_6] : memref<1x4x20x8xbf16, #tpu.memory_space<vmem>>, vector<1x4x20x8xbf16>
    %3 = vector.shape_cast %2 : vector<1x4x20x8xbf16> to vector<4x20x8xbf16>
    %4 = tpu.concatenate %1, %3 in 0 : vector<16x20x8xbf16>, vector<4x20x8xbf16> -> vector<20x20x8xbf16>
    %cst = arith.constant 0.000000e+00 : f32
    %5 = vector.broadcast %cst : f32 to vector<256x8xf32>
    %6 = vector.extract_strided_slice %4 {offsets = [0, 0, 0], sizes = [16, 20, 8], strides = [1, 1, 1]} : vector<20x20x8xbf16> to vector<16x20x8xbf16>
    %7 = vector.extract_strided_slice %6 {offsets = [0, 0, 0], sizes = [16, 16, 8], strides = [1, 1, 1]} : vector<16x20x8xbf16> to vector<16x16x8xbf16>
    %8 = vector.shape_cast %7 : vector<16x16x8xbf16> to vector<256x8xbf16>
    %c0_7 = arith.constant 0 : index
    %c0_8 = arith.constant 0 : index
    %c0_9 = arith.constant 0 : index
    %9 = vector.load %arg4[%c0_7, %c0_8, %c0_9] : memref<9x8x8xbf16, #tpu.memory_space<vmem>>, vector<1x8x8xbf16>
    %10 = vector.shape_cast %9 : vector<1x8x8xbf16> to vector<8x8xbf16>
    %cst_10 = arith.constant dense<0.000000e+00> : vector<256x8xf32>
    %11 = tpu.matmul %8, %10, %cst_10 {dimension_numbers = #tpu.dot_dimension_numbers<[1], [0], [0], [1], [0, 0, 1, 1], [], []>} : vector<256x8xbf16>, vector<8x8xbf16>, vector<256x8xf32> -> vector<256x8xf32>
    %12 = arith.addf %5, %11 : vector<256x8xf32>
    %13 = vector.extract_strided_slice %6 {offsets = [0, 2, 0], sizes = [16, 16, 8], strides = [1, 1, 1]} : vector<16x20x8xbf16> to vector<16x16x8xbf16>
    %14 = vector.shape_cast %13 : vector<16x16x8xbf16> to vector<256x8xbf16>
    %c1 = arith.constant 1 : index
    %c0_11 = arith.constant 0 : index
    %c0_12 = arith.constant 0 : index
    %15 = vector.load %arg4[%c1, %c0_11, %c0_12] : memref<9x8x8xbf16, #tpu.memory_space<vmem>>, vector<1x8x8xbf16>
    %16 = vector.shape_cast %15 : vector<1x8x8xbf16> to vector<8x8xbf16>
    %cst_13 = arith.constant dense<0.000000e+00> : vector<256x8xf32>
    %17 = tpu.matmul %14, %16, %cst_13 {dimension_numbers = #tpu.dot_dimension_numbers<[1], [0], [0], [1], [0, 0, 1, 1], [], []>} : vector<256x8xbf16>, vector<8x8xbf16>, vector<256x8xf32> -> vector<256x8xf32>
    %18 = arith.addf %12, %17 : vector<256x8xf32>
    %19 = vector.extract_strided_slice %6 {offsets = [0, 4, 0], sizes = [16, 16, 8], strides = [1, 1, 1]} : vector<16x20x8xbf16> to vector<16x16x8xbf16>
    %20 = vector.shape_cast %19 : vector<16x16x8xbf16> to vector<256x8xbf16>
    %c2 = arith.constant 2 : index
    %c0_14 = arith.constant 0 : index
    %c0_15 = arith.constant 0 : index
    %21 = vector.load %arg4[%c2, %c0_14, %c0_15] : memref<9x8x8xbf16, #tpu.memory_space<vmem>>, vector<1x8x8xbf16>
    %22 = vector.shape_cast %21 : vector<1x8x8xbf16> to vector<8x8xbf16>
    %cst_16 = arith.constant dense<0.000000e+00> : vector<256x8xf32>
    %23 = tpu.matmul %20, %22, %cst_16 {dimension_numbers = #tpu.dot_dimension_numbers<[1], [0], [0], [1], [0, 0, 1, 1], [], []>} : vector<256x8xbf16>, vector<8x8xbf16>, vector<256x8xf32> -> vector<256x8xf32>
    %24 = arith.addf %18, %23 : vector<256x8xf32>
    %25 = vector.extract_strided_slice %4 {offsets = [2, 0, 0], sizes = [16, 20, 8], strides = [1, 1, 1]} : vector<20x20x8xbf16> to vector<16x20x8xbf16>
    %26 = vector.extract_strided_slice %25 {offsets = [0, 0, 0], sizes = [16, 16, 8], strides = [1, 1, 1]} : vector<16x20x8xbf16> to vector<16x16x8xbf16>
    %27 = vector.shape_cast %26 : vector<16x16x8xbf16> to vector<256x8xbf16>
    %c3 = arith.constant 3 : index
    %c0_17 = arith.constant 0 : index
    %c0_18 = arith.constant 0 : index
    %28 = vector.load %arg4[%c3, %c0_17, %c0_18] : memref<9x8x8xbf16, #tpu.memory_space<vmem>>, vector<1x8x8xbf16>
    %29 = vector.shape_cast %28 : vector<1x8x8xbf16> to vector<8x8xbf16>
    %cst_19 = arith.constant dense<0.000000e+00> : vector<256x8xf32>
    %30 = tpu.matmul %27, %29, %cst_19 {dimension_numbers = #tpu.dot_dimension_numbers<[1], [0], [0], [1], [0, 0, 1, 1], [], []>} : vector<256x8xbf16>, vector<8x8xbf16>, vector<256x8xf32> -> vector<256x8xf32>
    %31 = arith.addf %24, %30 : vector<256x8xf32>
    %32 = vector.extract_strided_slice %25 {offsets = [0, 2, 0], sizes = [16, 16, 8], strides = [1, 1, 1]} : vector<16x20x8xbf16> to vector<16x16x8xbf16>
    %33 = vector.shape_cast %32 : vector<16x16x8xbf16> to vector<256x8xbf16>
    %c4 = arith.constant 4 : index
    %c0_20 = arith.constant 0 : index
    %c0_21 = arith.constant 0 : index
    %34 = vector.load %arg4[%c4, %c0_20, %c0_21] : memref<9x8x8xbf16, #tpu.memory_space<vmem>>, vector<1x8x8xbf16>
    %35 = vector.shape_cast %34 : vector<1x8x8xbf16> to vector<8x8xbf16>
    %cst_22 = arith.constant dense<0.000000e+00> : vector<256x8xf32>
    %36 = tpu.matmul %33, %35, %cst_22 {dimension_numbers = #tpu.dot_dimension_numbers<[1], [0], [0], [1], [0, 0, 1, 1], [], []>} : vector<256x8xbf16>, vector<8x8xbf16>, vector<256x8xf32> -> vector<256x8xf32>
    %37 = arith.addf %31, %36 : vector<256x8xf32>
    %38 = vector.extract_strided_slice %25 {offsets = [0, 4, 0], sizes = [16, 16, 8], strides = [1, 1, 1]} : vector<16x20x8xbf16> to vector<16x16x8xbf16>
    %39 = vector.shape_cast %38 : vector<16x16x8xbf16> to vector<256x8xbf16>
    %c5 = arith.constant 5 : index
    %c0_23 = arith.constant 0 : index
    %c0_24 = arith.constant 0 : index
    %40 = vector.load %arg4[%c5, %c0_23, %c0_24] : memref<9x8x8xbf16, #tpu.memory_space<vmem>>, vector<1x8x8xbf16>
    %41 = vector.shape_cast %40 : vector<1x8x8xbf16> to vector<8x8xbf16>
    %cst_25 = arith.constant dense<0.000000e+00> : vector<256x8xf32>
    %42 = tpu.matmul %39, %41, %cst_25 {dimension_numbers = #tpu.dot_dimension_numbers<[1], [0], [0], [1], [0, 0, 1, 1], [], []>} : vector<256x8xbf16>, vector<8x8xbf16>, vector<256x8xf32> -> vector<256x8xf32>
    %43 = arith.addf %37, %42 : vector<256x8xf32>
    %44 = vector.extract_strided_slice %4 {offsets = [4, 0, 0], sizes = [16, 20, 8], strides = [1, 1, 1]} : vector<20x20x8xbf16> to vector<16x20x8xbf16>
    %45 = vector.extract_strided_slice %44 {offsets = [0, 0, 0], sizes = [16, 16, 8], strides = [1, 1, 1]} : vector<16x20x8xbf16> to vector<16x16x8xbf16>
    %46 = vector.shape_cast %45 : vector<16x16x8xbf16> to vector<256x8xbf16>
    %c6 = arith.constant 6 : index
    %c0_26 = arith.constant 0 : index
    %c0_27 = arith.constant 0 : index
    %47 = vector.load %arg4[%c6, %c0_26, %c0_27] : memref<9x8x8xbf16, #tpu.memory_space<vmem>>, vector<1x8x8xbf16>
    %48 = vector.shape_cast %47 : vector<1x8x8xbf16> to vector<8x8xbf16>
    %cst_28 = arith.constant dense<0.000000e+00> : vector<256x8xf32>
    %49 = tpu.matmul %46, %48, %cst_28 {dimension_numbers = #tpu.dot_dimension_numbers<[1], [0], [0], [1], [0, 0, 1, 1], [], []>} : vector<256x8xbf16>, vector<8x8xbf16>, vector<256x8xf32> -> vector<256x8xf32>
    %50 = arith.addf %43, %49 : vector<256x8xf32>
    %51 = vector.extract_strided_slice %44 {offsets = [0, 2, 0], sizes = [16, 16, 8], strides = [1, 1, 1]} : vector<16x20x8xbf16> to vector<16x16x8xbf16>
    %52 = vector.shape_cast %51 : vector<16x16x8xbf16> to vector<256x8xbf16>
    %c7 = arith.constant 7 : index
    %c0_29 = arith.constant 0 : index
    %c0_30 = arith.constant 0 : index
    %53 = vector.load %arg4[%c7, %c0_29, %c0_30] : memref<9x8x8xbf16, #tpu.memory_space<vmem>>, vector<1x8x8xbf16>
    %54 = vector.shape_cast %53 : vector<1x8x8xbf16> to vector<8x8xbf16>
    %cst_31 = arith.constant dense<0.000000e+00> : vector<256x8xf32>
    %55 = tpu.matmul %52, %54, %cst_31 {dimension_numbers = #tpu.dot_dimension_numbers<[1], [0], [0], [1], [0, 0, 1, 1], [], []>} : vector<256x8xbf16>, vector<8x8xbf16>, vector<256x8xf32> -> vector<256x8xf32>
    %56 = arith.addf %50, %55 : vector<256x8xf32>
    %57 = vector.extract_strided_slice %44 {offsets = [0, 4, 0], sizes = [16, 16, 8], strides = [1, 1, 1]} : vector<16x20x8xbf16> to vector<16x16x8xbf16>
    %58 = vector.shape_cast %57 : vector<16x16x8xbf16> to vector<256x8xbf16>
    %c8 = arith.constant 8 : index
    %c0_32 = arith.constant 0 : index
    %c0_33 = arith.constant 0 : index
    %59 = vector.load %arg4[%c8, %c0_32, %c0_33] : memref<9x8x8xbf16, #tpu.memory_space<vmem>>, vector<1x8x8xbf16>
    %60 = vector.shape_cast %59 : vector<1x8x8xbf16> to vector<8x8xbf16>
    %cst_34 = arith.constant dense<0.000000e+00> : vector<256x8xf32>
    %61 = tpu.matmul %58, %60, %cst_34 {dimension_numbers = #tpu.dot_dimension_numbers<[1], [0], [0], [1], [0, 0, 1, 1], [], []>} : vector<256x8xbf16>, vector<8x8xbf16>, vector<256x8xf32> -> vector<256x8xf32>
    %62 = arith.addf %56, %61 : vector<256x8xf32>
    %c0_35 = arith.constant 0 : index
    %c0_36 = arith.constant 0 : index
    %63 = vector.load %arg5[%c0_35, %c0_36] : memref<1x8xf32, #tpu.memory_space<vmem>>, vector<1x8xf32>
    %64 = vector.broadcast %63 : vector<1x8xf32> to vector<256x8xf32>
    %65 = arith.addf %62, %64 : vector<256x8xf32>
    %cst_37 = arith.constant 0.000000e+00 : f32
    %66 = vector.broadcast %cst_37 : f32 to vector<256x8xf32>
    %67 = arith.cmpf ogt, %65, %66 : vector<256x8xf32>
    %cst_38 = arith.constant 0.00999999977 : f32
    %68 = vector.broadcast %cst_38 : f32 to vector<256x8xf32>
    %69 = arith.mulf %68, %65 : vector<256x8xf32>
    %70 = arith.select %67, %65, %69 : vector<256x8xi1>, vector<256x8xf32>
    %cst_39 = arith.constant dense<0.000000e+00> : vector<8xf32>
    %71 = vector.multi_reduction <add>, %70, %cst_39 [0] : vector<256x8xf32> to vector<8xf32>
    %72 = vector.shape_cast %71 : vector<8xf32> to vector<1x8xf32>
    %73 = arith.mulf %70, %70 : vector<256x8xf32>
    %cst_40 = arith.constant dense<0.000000e+00> : vector<8xf32>
    %74 = vector.multi_reduction <add>, %73, %cst_40 [0] : vector<256x8xf32> to vector<8xf32>
    %75 = vector.shape_cast %74 : vector<8xf32> to vector<1x8xf32>
    %76 = tpu.concatenate %72, %75 in 0 : vector<1x8xf32>, vector<1x8xf32> -> vector<2x8xf32>
    %77 = vector.shape_cast %76 : vector<2x8xf32> to vector<1x1x2x8xf32>
    %c0_41 = arith.constant 0 : index
    %c0_42 = arith.constant 0 : index
    %c0_43 = arith.constant 0 : index
    %c0_44 = arith.constant 0 : index
    %78 = vector.load %arg7[%c0_41, %c0_42, %c0_43, %c0_44] : memref<1x1x2x8xf32, #tpu.memory_space<vmem>>, vector<1x1x2x8xf32>
    tpu.vector_store %arg7[%c0_41, %c0_42, %c0_43, %c0_44], %77 {strides = array<i32>} : memref<1x1x2x8xf32, #tpu.memory_space<vmem>>, vector<1x1x2x8xf32>,
    %79 = arith.truncf %70 : vector<256x8xf32> to vector<256x8xbf16>
    %c0_45 = arith.constant 0 : index
    %c0_46 = arith.constant 0 : index
    %c0_47 = arith.constant 0 : index
    %80 = vector.load %arg6[%c0_45, %c0_46, %c0_47] : memref<1x256x8xbf16, #tpu.memory_space<vmem>>, vector<1x256x8xbf16>
    %81 = vector.shape_cast %80 : vector<1x256x8xbf16> to vector<256x8xbf16>
    %82 = vector.shape_cast %79 : vector<256x8xbf16> to vector<1x256x8xbf16>
    tpu.vector_store %arg6[%c0_45, %c0_46, %c0_47], %82 {strides = array<i32>} : memref<1x256x8xbf16, #tpu.memory_space<vmem>>, vector<1x256x8xbf16>,
    return
  }
  func.func @transform_0(%arg0: i32, %arg1: i32) -> (i32, i32, i32, i32) {
    %c0_i32 = arith.constant 0 : i32
    %c0_i32_0 = arith.constant 0 : i32
    %c0_i32_1 = arith.constant 0 : i32
    return %arg0, %arg1, %c0_i32, %c0_i32_0 : i32, i32, i32, i32
  }
  func.func @transform_1(%arg0: i32, %arg1: i32) -> (i32, i32, i32, i32) {
    %c1_i32 = arith.constant 1 : i32
    %0 = arith.addi %arg1, %c1_i32 : i32
    %c4_i32 = arith.constant 4 : i32
    %1 = arith.muli %0, %c4_i32 : i32
    %c0_i32 = arith.constant 0 : i32
    %c0_i32_0 = arith.constant 0 : i32
    %c0_i32_1 = arith.constant 0 : i32
    return %arg0, %1, %c0_i32, %c0_i32_0 : i32, i32, i32, i32
  }
  func.func @transform_2(%arg0: i32, %arg1: i32) -> (i32, i32, i32) {
    %c0_i32 = arith.constant 0 : i32
    %c0_i32_0 = arith.constant 0 : i32
    %c0_i32_1 = arith.constant 0 : i32
    %c0_i32_2 = arith.constant 0 : i32
    return %c0_i32, %c0_i32_0, %c0_i32_1 : i32, i32, i32
  }
  func.func @transform_3(%arg0: i32, %arg1: i32) -> (i32, i32) {
    %c0_i32 = arith.constant 0 : i32
    %c0_i32_0 = arith.constant 0 : i32
    %c0_i32_1 = arith.constant 0 : i32
    return %c0_i32, %c0_i32_0 : i32, i32
  }
  func.func @transform_4(%arg0: i32, %arg1: i32) -> (i32, i32, i32) {
    %c0_i32 = arith.constant 0 : i32
    %c0_i32_0 = arith.constant 0 : i32
    return %arg0, %arg1, %c0_i32 : i32, i32, i32
  }
  func.func @transform_5(%arg0: i32, %arg1: i32) -> (i32, i32, i32, i32) {
    %c0_i32 = arith.constant 0 : i32
    %c0_i32_0 = arith.constant 0 : i32
    %c0_i32_1 = arith.constant 0 : i32
    return %arg0, %arg1, %c0_i32, %c0_i32_0 : i32, i32, i32, i32
  }
}

module attributes {stable_mosaic.version = 11 : i64} {
  func.func @_conv_act_stats_kernel(%arg0: i32, %arg1: i32, %arg2: memref<1x16x18x8xbf16, #tpu.memory_space<vmem>>, %arg3: memref<1x2x18x8xbf16, #tpu.memory_space<vmem>>, %arg4: memref<4x8x8xbf16, #tpu.memory_space<vmem>>, %arg5: memref<1x8xf32, #tpu.memory_space<vmem>>, %arg6: memref<1x256x8xbf16, #tpu.memory_space<vmem>>, %arg7: memref<1x1x2x8xf32, #tpu.memory_space<vmem>>) attributes {dimension_semantics = [#tpu.dimension_semantics<parallel>, #tpu.dimension_semantics<parallel>], iteration_bounds = array<i64: 2, 1>, scalar_prefetch = 0 : i64, scratch_operands = 0 : i64, tpu.core_type = #tpu.core_type<tc>, window_params = [{transform_indices = @transform_0, window_bounds = array<i64: 1, 16, 18, 8>}, {transform_indices = @transform_1, window_bounds = array<i64: 1, 2, 18, 8>}, {pipeline_mode = #tpu.pipeline_mode<synchronous>, transform_indices = @transform_2, window_bounds = array<i64: 4, 8, 8>}, {pipeline_mode = #tpu.pipeline_mode<synchronous>, transform_indices = @transform_3, window_bounds = array<i64: 1, 8>}, {transform_indices = @transform_4, window_bounds = array<i64: 1, 256, 8>}, {transform_indices = @transform_5, window_bounds = array<i64: 1, 1, 2, 8>}]} {
    %c0 = arith.constant 0 : index
    %c0_0 = arith.constant 0 : index
    %c0_1 = arith.constant 0 : index
    %c0_2 = arith.constant 0 : index
    %0 = vector.load %arg2[%c0, %c0_0, %c0_1, %c0_2] : memref<1x16x18x8xbf16, #tpu.memory_space<vmem>>, vector<1x16x18x8xbf16>
    %1 = vector.shape_cast %0 : vector<1x16x18x8xbf16> to vector<16x18x8xbf16>
    %c0_3 = arith.constant 0 : index
    %c0_4 = arith.constant 0 : index
    %c0_5 = arith.constant 0 : index
    %c0_6 = arith.constant 0 : index
    %2 = vector.load %arg3[%c0_3, %c0_4, %c0_5, %c0_6] : memref<1x2x18x8xbf16, #tpu.memory_space<vmem>>, vector<1x2x18x8xbf16>
    %3 = vector.shape_cast %2 : vector<1x2x18x8xbf16> to vector<2x18x8xbf16>
    %4 = tpu.concatenate %1, %3 in 0 : vector<16x18x8xbf16>, vector<2x18x8xbf16> -> vector<18x18x8xbf16>
    %cst = arith.constant 0.000000e+00 : f32
    %5 = vector.broadcast %cst : f32 to vector<256x8xf32>
    %6 = vector.extract_strided_slice %4 {offsets = [0, 0, 0], sizes = [16, 18, 8], strides = [1, 1, 1]} : vector<18x18x8xbf16> to vector<16x18x8xbf16>
    %7 = vector.extract_strided_slice %6 {offsets = [0, 0, 0], sizes = [16, 16, 8], strides = [1, 1, 1]} : vector<16x18x8xbf16> to vector<16x16x8xbf16>
    %8 = vector.shape_cast %7 : vector<16x16x8xbf16> to vector<256x8xbf16>
    %c0_7 = arith.constant 0 : index
    %c0_8 = arith.constant 0 : index
    %c0_9 = arith.constant 0 : index
    %9 = vector.load %arg4[%c0_7, %c0_8, %c0_9] : memref<4x8x8xbf16, #tpu.memory_space<vmem>>, vector<1x8x8xbf16>
    %10 = vector.shape_cast %9 : vector<1x8x8xbf16> to vector<8x8xbf16>
    %cst_10 = arith.constant dense<0.000000e+00> : vector<256x8xf32>
    %11 = tpu.matmul %8, %10, %cst_10 {dimension_numbers = #tpu.dot_dimension_numbers<[1], [0], [0], [1], [0, 0, 1, 1], [], []>} : vector<256x8xbf16>, vector<8x8xbf16>, vector<256x8xf32> -> vector<256x8xf32>
    %12 = arith.addf %5, %11 : vector<256x8xf32>
    %13 = vector.extract_strided_slice %6 {offsets = [0, 2, 0], sizes = [16, 16, 8], strides = [1, 1, 1]} : vector<16x18x8xbf16> to vector<16x16x8xbf16>
    %14 = vector.shape_cast %13 : vector<16x16x8xbf16> to vector<256x8xbf16>
    %c1 = arith.constant 1 : index
    %c0_11 = arith.constant 0 : index
    %c0_12 = arith.constant 0 : index
    %15 = vector.load %arg4[%c1, %c0_11, %c0_12] : memref<4x8x8xbf16, #tpu.memory_space<vmem>>, vector<1x8x8xbf16>
    %16 = vector.shape_cast %15 : vector<1x8x8xbf16> to vector<8x8xbf16>
    %cst_13 = arith.constant dense<0.000000e+00> : vector<256x8xf32>
    %17 = tpu.matmul %14, %16, %cst_13 {dimension_numbers = #tpu.dot_dimension_numbers<[1], [0], [0], [1], [0, 0, 1, 1], [], []>} : vector<256x8xbf16>, vector<8x8xbf16>, vector<256x8xf32> -> vector<256x8xf32>
    %18 = arith.addf %12, %17 : vector<256x8xf32>
    %19 = vector.extract_strided_slice %4 {offsets = [2, 0, 0], sizes = [16, 18, 8], strides = [1, 1, 1]} : vector<18x18x8xbf16> to vector<16x18x8xbf16>
    %20 = vector.extract_strided_slice %19 {offsets = [0, 0, 0], sizes = [16, 16, 8], strides = [1, 1, 1]} : vector<16x18x8xbf16> to vector<16x16x8xbf16>
    %21 = vector.shape_cast %20 : vector<16x16x8xbf16> to vector<256x8xbf16>
    %c2 = arith.constant 2 : index
    %c0_14 = arith.constant 0 : index
    %c0_15 = arith.constant 0 : index
    %22 = vector.load %arg4[%c2, %c0_14, %c0_15] : memref<4x8x8xbf16, #tpu.memory_space<vmem>>, vector<1x8x8xbf16>
    %23 = vector.shape_cast %22 : vector<1x8x8xbf16> to vector<8x8xbf16>
    %cst_16 = arith.constant dense<0.000000e+00> : vector<256x8xf32>
    %24 = tpu.matmul %21, %23, %cst_16 {dimension_numbers = #tpu.dot_dimension_numbers<[1], [0], [0], [1], [0, 0, 1, 1], [], []>} : vector<256x8xbf16>, vector<8x8xbf16>, vector<256x8xf32> -> vector<256x8xf32>
    %25 = arith.addf %18, %24 : vector<256x8xf32>
    %26 = vector.extract_strided_slice %19 {offsets = [0, 2, 0], sizes = [16, 16, 8], strides = [1, 1, 1]} : vector<16x18x8xbf16> to vector<16x16x8xbf16>
    %27 = vector.shape_cast %26 : vector<16x16x8xbf16> to vector<256x8xbf16>
    %c3 = arith.constant 3 : index
    %c0_17 = arith.constant 0 : index
    %c0_18 = arith.constant 0 : index
    %28 = vector.load %arg4[%c3, %c0_17, %c0_18] : memref<4x8x8xbf16, #tpu.memory_space<vmem>>, vector<1x8x8xbf16>
    %29 = vector.shape_cast %28 : vector<1x8x8xbf16> to vector<8x8xbf16>
    %cst_19 = arith.constant dense<0.000000e+00> : vector<256x8xf32>
    %30 = tpu.matmul %27, %29, %cst_19 {dimension_numbers = #tpu.dot_dimension_numbers<[1], [0], [0], [1], [0, 0, 1, 1], [], []>} : vector<256x8xbf16>, vector<8x8xbf16>, vector<256x8xf32> -> vector<256x8xf32>
    %31 = arith.addf %25, %30 : vector<256x8xf32>
    %c0_20 = arith.constant 0 : index
    %c0_21 = arith.constant 0 : index
    %32 = vector.load %arg5[%c0_20, %c0_21] : memref<1x8xf32, #tpu.memory_space<vmem>>, vector<1x8xf32>
    %33 = vector.broadcast %32 : vector<1x8xf32> to vector<256x8xf32>
    %34 = arith.addf %31, %33 : vector<256x8xf32>
    %cst_22 = arith.constant 0.000000e+00 : f32
    %35 = vector.broadcast %cst_22 : f32 to vector<256x8xf32>
    %36 = arith.cmpf ogt, %34, %35 : vector<256x8xf32>
    %cst_23 = arith.constant 0.00999999977 : f32
    %37 = vector.broadcast %cst_23 : f32 to vector<256x8xf32>
    %38 = arith.mulf %37, %34 : vector<256x8xf32>
    %39 = arith.select %36, %34, %38 : vector<256x8xi1>, vector<256x8xf32>
    %cst_24 = arith.constant dense<0.000000e+00> : vector<8xf32>
    %40 = vector.multi_reduction <add>, %39, %cst_24 [0] : vector<256x8xf32> to vector<8xf32>
    %41 = vector.shape_cast %40 : vector<8xf32> to vector<1x8xf32>
    %42 = arith.mulf %39, %39 : vector<256x8xf32>
    %cst_25 = arith.constant dense<0.000000e+00> : vector<8xf32>
    %43 = vector.multi_reduction <add>, %42, %cst_25 [0] : vector<256x8xf32> to vector<8xf32>
    %44 = vector.shape_cast %43 : vector<8xf32> to vector<1x8xf32>
    %45 = tpu.concatenate %41, %44 in 0 : vector<1x8xf32>, vector<1x8xf32> -> vector<2x8xf32>
    %46 = vector.shape_cast %45 : vector<2x8xf32> to vector<1x1x2x8xf32>
    %c0_26 = arith.constant 0 : index
    %c0_27 = arith.constant 0 : index
    %c0_28 = arith.constant 0 : index
    %c0_29 = arith.constant 0 : index
    %47 = vector.load %arg7[%c0_26, %c0_27, %c0_28, %c0_29] : memref<1x1x2x8xf32, #tpu.memory_space<vmem>>, vector<1x1x2x8xf32>
    tpu.vector_store %arg7[%c0_26, %c0_27, %c0_28, %c0_29], %46 {strides = array<i32>} : memref<1x1x2x8xf32, #tpu.memory_space<vmem>>, vector<1x1x2x8xf32>,
    %48 = arith.truncf %39 : vector<256x8xf32> to vector<256x8xbf16>
    %c0_30 = arith.constant 0 : index
    %c0_31 = arith.constant 0 : index
    %c0_32 = arith.constant 0 : index
    %49 = vector.load %arg6[%c0_30, %c0_31, %c0_32] : memref<1x256x8xbf16, #tpu.memory_space<vmem>>, vector<1x256x8xbf16>
    %50 = vector.shape_cast %49 : vector<1x256x8xbf16> to vector<256x8xbf16>
    %51 = vector.shape_cast %48 : vector<256x8xbf16> to vector<1x256x8xbf16>
    tpu.vector_store %arg6[%c0_30, %c0_31, %c0_32], %51 {strides = array<i32>} : memref<1x256x8xbf16, #tpu.memory_space<vmem>>, vector<1x256x8xbf16>,
    return
  }
  func.func @transform_0(%arg0: i32, %arg1: i32) -> (i32, i32, i32, i32) {
    %c0_i32 = arith.constant 0 : i32
    %c0_i32_0 = arith.constant 0 : i32
    %c0_i32_1 = arith.constant 0 : i32
    return %arg0, %arg1, %c0_i32, %c0_i32_0 : i32, i32, i32, i32
  }
  func.func @transform_1(%arg0: i32, %arg1: i32) -> (i32, i32, i32, i32) {
    %c1_i32 = arith.constant 1 : i32
    %0 = arith.addi %arg1, %c1_i32 : i32
    %c8_i32 = arith.constant 8 : i32
    %1 = arith.muli %0, %c8_i32 : i32
    %c0_i32 = arith.constant 0 : i32
    %c0_i32_0 = arith.constant 0 : i32
    %c0_i32_1 = arith.constant 0 : i32
    return %arg0, %1, %c0_i32, %c0_i32_0 : i32, i32, i32, i32
  }
  func.func @transform_2(%arg0: i32, %arg1: i32) -> (i32, i32, i32) {
    %c0_i32 = arith.constant 0 : i32
    %c0_i32_0 = arith.constant 0 : i32
    %c0_i32_1 = arith.constant 0 : i32
    %c0_i32_2 = arith.constant 0 : i32
    return %c0_i32, %c0_i32_0, %c0_i32_1 : i32, i32, i32
  }
  func.func @transform_3(%arg0: i32, %arg1: i32) -> (i32, i32) {
    %c0_i32 = arith.constant 0 : i32
    %c0_i32_0 = arith.constant 0 : i32
    %c0_i32_1 = arith.constant 0 : i32
    return %c0_i32, %c0_i32_0 : i32, i32
  }
  func.func @transform_4(%arg0: i32, %arg1: i32) -> (i32, i32, i32) {
    %c0_i32 = arith.constant 0 : i32
    %c0_i32_0 = arith.constant 0 : i32
    return %arg0, %arg1, %c0_i32 : i32, i32, i32
  }
  func.func @transform_5(%arg0: i32, %arg1: i32) -> (i32, i32, i32, i32) {
    %c0_i32 = arith.constant 0 : i32
    %c0_i32_0 = arith.constant 0 : i32
    %c0_i32_1 = arith.constant 0 : i32
    return %arg0, %arg1, %c0_i32, %c0_i32_0 : i32, i32, i32, i32
  }
}

module attributes {stable_mosaic.version = 11 : i64} {
  func.func @_conv4_fused_kernel(%arg0: i32, %arg1: i32, %arg2: memref<1x256x8xbf16, #tpu.memory_space<vmem>>, %arg3: memref<1x256x8xbf16, #tpu.memory_space<vmem>>, %arg4: memref<1x256x8xbf16, #tpu.memory_space<vmem>>, %arg5: memref<1x3x8xf32, #tpu.memory_space<vmem>>, %arg6: memref<1x3x8xf32, #tpu.memory_space<vmem>>, %arg7: memref<3x8x8xbf16, #tpu.memory_space<vmem>>, %arg8: memref<1x8xf32, #tpu.memory_space<vmem>>, %arg9: memref<1x256x8xf32, #tpu.memory_space<vmem>>, %arg10: memref<1x1x2x8xf32, #tpu.memory_space<vmem>>) attributes {dimension_semantics = [#tpu.dimension_semantics<parallel>, #tpu.dimension_semantics<parallel>], iteration_bounds = array<i64: 2, 1>, scalar_prefetch = 0 : i64, scratch_operands = 0 : i64, tpu.core_type = #tpu.core_type<tc>, window_params = [{transform_indices = @transform_0, window_bounds = array<i64: 1, 256, 8>}, {transform_indices = @transform_1, window_bounds = array<i64: 1, 256, 8>}, {transform_indices = @transform_2, window_bounds = array<i64: 1, 256, 8>}, {transform_indices = @transform_3, window_bounds = array<i64: 1, 3, 8>}, {transform_indices = @transform_4, window_bounds = array<i64: 1, 3, 8>}, {pipeline_mode = #tpu.pipeline_mode<synchronous>, transform_indices = @transform_5, window_bounds = array<i64: 3, 8, 8>}, {pipeline_mode = #tpu.pipeline_mode<synchronous>, transform_indices = @transform_6, window_bounds = array<i64: 1, 8>}, {transform_indices = @transform_7, window_bounds = array<i64: 1, 256, 8>}, {transform_indices = @transform_8, window_bounds = array<i64: 1, 1, 2, 8>}]} {
    %c0 = arith.constant 0 : index
    %c0_0 = arith.constant 0 : index
    %c0_1 = arith.constant 0 : index
    %0 = vector.load %arg5[%c0, %c0_0, %c0_1] : memref<1x3x8xf32, #tpu.memory_space<vmem>>, vector<1x3x8xf32>
    %1 = vector.shape_cast %0 : vector<1x3x8xf32> to vector<3x8xf32>
    %c0_2 = arith.constant 0 : index
    %c0_3 = arith.constant 0 : index
    %c0_4 = arith.constant 0 : index
    %2 = vector.load %arg6[%c0_2, %c0_3, %c0_4] : memref<1x3x8xf32, #tpu.memory_space<vmem>>, vector<1x3x8xf32>
    %3 = vector.shape_cast %2 : vector<1x3x8xf32> to vector<3x8xf32>
    %cst = arith.constant 0.000000e+00 : f32
    %4 = vector.broadcast %cst : f32 to vector<256x8xf32>
    %c0_5 = arith.constant 0 : index
    %c0_6 = arith.constant 0 : index
    %c0_7 = arith.constant 0 : index
    %5 = vector.load %arg2[%c0_5, %c0_6, %c0_7] : memref<1x256x8xbf16, #tpu.memory_space<vmem>>, vector<1x256x8xbf16>
    %6 = vector.shape_cast %5 : vector<1x256x8xbf16> to vector<256x8xbf16>
    %7 = arith.extf %6 : vector<256x8xbf16> to vector<256x8xf32>
    %8 = vector.extract_strided_slice %1 {offsets = [0, 0], sizes = [1, 8], strides = [1, 1]} : vector<3x8xf32> to vector<1x8xf32>
    %9 = vector.broadcast %8 : vector<1x8xf32> to vector<256x8xf32>
    %10 = arith.mulf %7, %9 : vector<256x8xf32>
    %11 = vector.extract_strided_slice %3 {offsets = [0, 0], sizes = [1, 8], strides = [1, 1]} : vector<3x8xf32> to vector<1x8xf32>
    %12 = vector.broadcast %11 : vector<1x8xf32> to vector<256x8xf32>
    %13 = arith.addf %10, %12 : vector<256x8xf32>
    %14 = arith.truncf %13 : vector<256x8xf32> to vector<256x8xbf16>
    %c0_8 = arith.constant 0 : index
    %c0_9 = arith.constant 0 : index
    %c0_10 = arith.constant 0 : index
    %15 = vector.load %arg7[%c0_8, %c0_9, %c0_10] : memref<3x8x8xbf16, #tpu.memory_space<vmem>>, vector<1x8x8xbf16>
    %16 = vector.shape_cast %15 : vector<1x8x8xbf16> to vector<8x8xbf16>
    %cst_11 = arith.constant dense<0.000000e+00> : vector<256x8xf32>
    %17 = tpu.matmul %14, %16, %cst_11 {dimension_numbers = #tpu.dot_dimension_numbers<[1], [0], [0], [1], [0, 0, 1, 1], [], []>} : vector<256x8xbf16>, vector<8x8xbf16>, vector<256x8xf32> -> vector<256x8xf32>
    %18 = arith.addf %4, %17 : vector<256x8xf32>
    %c0_12 = arith.constant 0 : index
    %c0_13 = arith.constant 0 : index
    %c0_14 = arith.constant 0 : index
    %19 = vector.load %arg3[%c0_12, %c0_13, %c0_14] : memref<1x256x8xbf16, #tpu.memory_space<vmem>>, vector<1x256x8xbf16>
    %20 = vector.shape_cast %19 : vector<1x256x8xbf16> to vector<256x8xbf16>
    %21 = arith.extf %20 : vector<256x8xbf16> to vector<256x8xf32>
    %22 = vector.extract_strided_slice %1 {offsets = [1, 0], sizes = [1, 8], strides = [1, 1]} : vector<3x8xf32> to vector<1x8xf32>
    %23 = vector.broadcast %22 : vector<1x8xf32> to vector<256x8xf32>
    %24 = arith.mulf %21, %23 : vector<256x8xf32>
    %25 = vector.extract_strided_slice %3 {offsets = [1, 0], sizes = [1, 8], strides = [1, 1]} : vector<3x8xf32> to vector<1x8xf32>
    %26 = vector.broadcast %25 : vector<1x8xf32> to vector<256x8xf32>
    %27 = arith.addf %24, %26 : vector<256x8xf32>
    %28 = arith.truncf %27 : vector<256x8xf32> to vector<256x8xbf16>
    %c1 = arith.constant 1 : index
    %c0_15 = arith.constant 0 : index
    %c0_16 = arith.constant 0 : index
    %29 = vector.load %arg7[%c1, %c0_15, %c0_16] : memref<3x8x8xbf16, #tpu.memory_space<vmem>>, vector<1x8x8xbf16>
    %30 = vector.shape_cast %29 : vector<1x8x8xbf16> to vector<8x8xbf16>
    %cst_17 = arith.constant dense<0.000000e+00> : vector<256x8xf32>
    %31 = tpu.matmul %28, %30, %cst_17 {dimension_numbers = #tpu.dot_dimension_numbers<[1], [0], [0], [1], [0, 0, 1, 1], [], []>} : vector<256x8xbf16>, vector<8x8xbf16>, vector<256x8xf32> -> vector<256x8xf32>
    %32 = arith.addf %18, %31 : vector<256x8xf32>
    %c0_18 = arith.constant 0 : index
    %c0_19 = arith.constant 0 : index
    %c0_20 = arith.constant 0 : index
    %33 = vector.load %arg4[%c0_18, %c0_19, %c0_20] : memref<1x256x8xbf16, #tpu.memory_space<vmem>>, vector<1x256x8xbf16>
    %34 = vector.shape_cast %33 : vector<1x256x8xbf16> to vector<256x8xbf16>
    %35 = arith.extf %34 : vector<256x8xbf16> to vector<256x8xf32>
    %36 = vector.extract_strided_slice %1 {offsets = [2, 0], sizes = [1, 8], strides = [1, 1]} : vector<3x8xf32> to vector<1x8xf32>
    %37 = vector.broadcast %36 : vector<1x8xf32> to vector<256x8xf32>
    %38 = arith.mulf %35, %37 : vector<256x8xf32>
    %39 = vector.extract_strided_slice %3 {offsets = [2, 0], sizes = [1, 8], strides = [1, 1]} : vector<3x8xf32> to vector<1x8xf32>
    %40 = vector.broadcast %39 : vector<1x8xf32> to vector<256x8xf32>
    %41 = arith.addf %38, %40 : vector<256x8xf32>
    %42 = arith.truncf %41 : vector<256x8xf32> to vector<256x8xbf16>
    %c2 = arith.constant 2 : index
    %c0_21 = arith.constant 0 : index
    %c0_22 = arith.constant 0 : index
    %43 = vector.load %arg7[%c2, %c0_21, %c0_22] : memref<3x8x8xbf16, #tpu.memory_space<vmem>>, vector<1x8x8xbf16>
    %44 = vector.shape_cast %43 : vector<1x8x8xbf16> to vector<8x8xbf16>
    %cst_23 = arith.constant dense<0.000000e+00> : vector<256x8xf32>
    %45 = tpu.matmul %42, %44, %cst_23 {dimension_numbers = #tpu.dot_dimension_numbers<[1], [0], [0], [1], [0, 0, 1, 1], [], []>} : vector<256x8xbf16>, vector<8x8xbf16>, vector<256x8xf32> -> vector<256x8xf32>
    %46 = arith.addf %32, %45 : vector<256x8xf32>
    %c0_24 = arith.constant 0 : index
    %c0_25 = arith.constant 0 : index
    %47 = vector.load %arg8[%c0_24, %c0_25] : memref<1x8xf32, #tpu.memory_space<vmem>>, vector<1x8xf32>
    %48 = vector.broadcast %47 : vector<1x8xf32> to vector<256x8xf32>
    %49 = arith.addf %46, %48 : vector<256x8xf32>
    %cst_26 = arith.constant 0.000000e+00 : f32
    %50 = vector.broadcast %cst_26 : f32 to vector<256x8xf32>
    %51 = arith.cmpf ogt, %49, %50 : vector<256x8xf32>
    %cst_27 = arith.constant 0.00999999977 : f32
    %52 = vector.broadcast %cst_27 : f32 to vector<256x8xf32>
    %53 = arith.mulf %52, %49 : vector<256x8xf32>
    %54 = arith.select %51, %49, %53 : vector<256x8xi1>, vector<256x8xf32>
    %cst_28 = arith.constant dense<0.000000e+00> : vector<8xf32>
    %55 = vector.multi_reduction <add>, %54, %cst_28 [0] : vector<256x8xf32> to vector<8xf32>
    %56 = vector.shape_cast %55 : vector<8xf32> to vector<1x8xf32>
    %57 = arith.mulf %54, %54 : vector<256x8xf32>
    %cst_29 = arith.constant dense<0.000000e+00> : vector<8xf32>
    %58 = vector.multi_reduction <add>, %57, %cst_29 [0] : vector<256x8xf32> to vector<8xf32>
    %59 = vector.shape_cast %58 : vector<8xf32> to vector<1x8xf32>
    %60 = tpu.concatenate %56, %59 in 0 : vector<1x8xf32>, vector<1x8xf32> -> vector<2x8xf32>
    %61 = vector.shape_cast %60 : vector<2x8xf32> to vector<1x1x2x8xf32>
    %c0_30 = arith.constant 0 : index
    %c0_31 = arith.constant 0 : index
    %c0_32 = arith.constant 0 : index
    %c0_33 = arith.constant 0 : index
    %62 = vector.load %arg10[%c0_30, %c0_31, %c0_32, %c0_33] : memref<1x1x2x8xf32, #tpu.memory_space<vmem>>, vector<1x1x2x8xf32>
    tpu.vector_store %arg10[%c0_30, %c0_31, %c0_32, %c0_33], %61 {strides = array<i32>} : memref<1x1x2x8xf32, #tpu.memory_space<vmem>>, vector<1x1x2x8xf32>,
    %c0_34 = arith.constant 0 : index
    %c0_35 = arith.constant 0 : index
    %c0_36 = arith.constant 0 : index
    %63 = vector.load %arg9[%c0_34, %c0_35, %c0_36] : memref<1x256x8xf32, #tpu.memory_space<vmem>>, vector<1x256x8xf32>
    %64 = vector.shape_cast %63 : vector<1x256x8xf32> to vector<256x8xf32>
    %65 = vector.shape_cast %54 : vector<256x8xf32> to vector<1x256x8xf32>
    tpu.vector_store %arg9[%c0_34, %c0_35, %c0_36], %65 {strides = array<i32>} : memref<1x256x8xf32, #tpu.memory_space<vmem>>, vector<1x256x8xf32>,
    return
  }
  func.func @transform_0(%arg0: i32, %arg1: i32) -> (i32, i32, i32) {
    %c0_i32 = arith.constant 0 : i32
    %c0_i32_0 = arith.constant 0 : i32
    return %arg0, %arg1, %c0_i32 : i32, i32, i32
  }
  func.func @transform_1(%arg0: i32, %arg1: i32) -> (i32, i32, i32) {
    %c0_i32 = arith.constant 0 : i32
    %c0_i32_0 = arith.constant 0 : i32
    return %arg0, %arg1, %c0_i32 : i32, i32, i32
  }
  func.func @transform_2(%arg0: i32, %arg1: i32) -> (i32, i32, i32) {
    %c0_i32 = arith.constant 0 : i32
    %c0_i32_0 = arith.constant 0 : i32
    return %arg0, %arg1, %c0_i32 : i32, i32, i32
  }
  func.func @transform_3(%arg0: i32, %arg1: i32) -> (i32, i32, i32) {
    %c0_i32 = arith.constant 0 : i32
    %c0_i32_0 = arith.constant 0 : i32
    %c0_i32_1 = arith.constant 0 : i32
    return %arg0, %c0_i32, %c0_i32_0 : i32, i32, i32
  }
  func.func @transform_4(%arg0: i32, %arg1: i32) -> (i32, i32, i32) {
    %c0_i32 = arith.constant 0 : i32
    %c0_i32_0 = arith.constant 0 : i32
    %c0_i32_1 = arith.constant 0 : i32
    return %arg0, %c0_i32, %c0_i32_0 : i32, i32, i32
  }
  func.func @transform_5(%arg0: i32, %arg1: i32) -> (i32, i32, i32) {
    %c0_i32 = arith.constant 0 : i32
    %c0_i32_0 = arith.constant 0 : i32
    %c0_i32_1 = arith.constant 0 : i32
    %c0_i32_2 = arith.constant 0 : i32
    return %c0_i32, %c0_i32_0, %c0_i32_1 : i32, i32, i32
  }
  func.func @transform_6(%arg0: i32, %arg1: i32) -> (i32, i32) {
    %c0_i32 = arith.constant 0 : i32
    %c0_i32_0 = arith.constant 0 : i32
    %c0_i32_1 = arith.constant 0 : i32
    return %c0_i32, %c0_i32_0 : i32, i32
  }
  func.func @transform_7(%arg0: i32, %arg1: i32) -> (i32, i32, i32) {
    %c0_i32 = arith.constant 0 : i32
    %c0_i32_0 = arith.constant 0 : i32
    return %arg0, %arg1, %c0_i32 : i32, i32, i32
  }
  func.func @transform_8(%arg0: i32, %arg1: i32) -> (i32, i32, i32, i32) {
    %c0_i32 = arith.constant 0 : i32
    %c0_i32_0 = arith.constant 0 : i32
    %c0_i32_1 = arith.constant 0 : i32
    return %arg0, %arg1, %c0_i32, %c0_i32_0 : i32, i32, i32, i32
  }
}

</mosaic_0001>

<llo_original>
// kernel: upblock_forward.6
$region0: #{upblock_forward.6}
  #allocation0 [shape = 'u32[]', space=smem, size = 0x4, offset = 0x4, fixed_abs, tag = 'smem constant byte address 0x4 - core index']
  #allocation1 [shape = 'u32[144,128]{1,0:T(1,128)}', space=vmem, size = 0x12000, scoped, tag = 'internal scratch']
  %s0 = inlined_call_operand.vmem [shape: bf16[2,18,18,20], index: 0, kind: input, shape index: {}, may-alias: {0,1}]
  %s1 = inlined_call_operand.vmem [shape: bf16[2,18,18,20], index: 1, kind: input, shape index: {}, may-alias: {0,1}]
  %s2 = inlined_call_operand.vmem [shape: bf16[9,20,8], index: 2, kind: input, shape index: {}]
  %s3 = inlined_call_operand.vmem [shape: f32[1,8], index: 3, kind: input, shape index: {}]
  %s4 = inlined_call_operand.vmem [shape: bf16[2,256,8], index: 4, kind: output, shape index: {0}]
  %s5 = inlined_call_operand.vmem [shape: f32[2,1,2,8], index: 5, kind: output, shape index: {1}]
  %6 = xla_tuple %s4, %s5
  %s7 = sld [smem:[#allocation0]]
  $region57: #{upblock_forward.6} parent=0
    _
  %s9 = ssub.s32 1, %s7
  %s10 = scalar_select 0, %s9, %s7
  loop: start=0, step=1, limit=4
  $region2: #{upblock_forward.6} parent=0 // loop_pre_header
    _
  $region3: #{upblock_forward.6} parent=0 // loop_header
    %s12 = sphi 0, %s16
    %p13 = scmp.ge.s32.totalorder %s12, 4
    %s19 = sphi 0, %s31
    %s20 = sphi 0, %s27
    %s21 = sphi 0, %s19
    %s22 = sphi 0, %s20
    %s23 = sphi 0, %s21
    %s24 = sphi 0, %s22
    %s36 = sphi 0, %s38
    %s39 = sphi 0, %s36
    %s40 = sphi 0, %s39
    %s56 = sphi 0, %s40
    %s68 = sphi 0, %s70
    %s71 = sphi 0, %s68
    %s72 = sphi 0, %s71
    %s88 = sphi 0, %s72
    %s92 = sphi 0, %s92
    %s94 = sphi 0, %s92
    %s95 = sphi 0, %s94
    %s109 = sphi 0, %s95
    %s113 = sphi 0, %s113
    %s115 = sphi 0, %s113
    %s116 = sphi 0, %s115
    %s130 = sphi 0, %s116
    %s138 = sphi 0, %s140
    %s141 = sphi 0, %s138
    %s142 = sphi 0, %s141
    %s158 = sphi 0, %s142
    %s166 = sphi 0, %s168
    %s169 = sphi 0, %s166
    %s170 = sphi 0, %s169
    %s186 = sphi 0, %s170
  $region4: #{upblock_forward.6} parent=0 // loop_header_branch
    %15 = sbr.rel (%p13) target = $region8
  $region5: #{upblock_forward.6} parent=0 // loop_body
    %s17 = ssub.s32 %s12, 1
    %s18 = ssub.s32 %s12, 2
    %s25 = sadd.s32 1, %s20
    %p26 = scmp.ge.s32.totalorder %s25, 1
    %s27 = scalar_select %p26, 0, %s25
    %s28 = sadd.s32 1, %s19
    %s29 = scalar_select %p26, %s28, %s19
    %p30 = scmp.ge.s32.totalorder %s29, 2
    %s31 = scalar_select %p30, 0, %s29
    %s32 = ssub.s32 %s19, %s31
    %s33 = ssub.s32 %s20, %s27
    %s34 = sor.u32 %s32, %s33
    %p35 = scmp.eq.s32.totalorder %s34, 0
    %s37 = sadd.s32 %s36, 1
    %s38 = scalar_select %p35, %s36, %s37
    %p41 = pneg %p35
    %p42 = scmp.eq.s32.totalorder %s12, 1
    %p43 = por %p41, %p42
    %p44 = scmp.ne.s32.totalorder %s36, %s39
    %p45 = scmp.eq.s32.totalorder %s12, 0
    %p46 = por %p44, %p45
    %p47 = scmp.ne.s32.totalorder %s36, %s39
    %p48 = scmp.eq.s32.totalorder %s17, 1
    %p49 = por %p47, %p48
    %p50 = scmp.ne.s32.totalorder %s39, %s40
    %p51 = scmp.eq.s32.totalorder %s17, 0
    %p52 = por %p50, %p51
    %p53 = scmp.ne.s32.totalorder %s39, %s40
    %p54 = scmp.eq.s32.totalorder %s18, 1
    %p55 = por %p53, %p54
    %p57 = scmp.ne.s32.totalorder %s40, %s56
    %p58 = scmp.eq.s32.totalorder %s18, 0
    %p59 = por %p57, %p58
    %s60 = sadd.s32 %s20, 1
    %s61 = smul.u32 %s60, 8
    %s62 = sadd.s32 %s27, 1
    %s63 = smul.u32 %s62, 8
    %s64 = ssub.s32 %s19, %s31
    %s65 = ssub.s32 %s61, %s63
    %s66 = sor.u32 %s64, %s65
    %p67 = scmp.eq.s32.totalorder %s66, 0
    %s69 = sadd.s32 %s68, 1
    %s70 = scalar_select %p67, %s68, %s69
    %p73 = pneg %p67
    %p74 = scmp.eq.s32.totalorder %s12, 1
    %p75 = por %p73, %p74
    %p76 = scmp.ne.s32.totalorder %s68, %s71
    %p77 = scmp.eq.s32.totalorder %s12, 0
    %p78 = por %p76, %p77
    %p79 = scmp.ne.s32.totalorder %s68, %s71
    %p80 = scmp.eq.s32.totalorder %s17, 1
    %p81 = por %p79, %p80
    %p82 = scmp.ne.s32.totalorder %s71, %s72
    %p83 = scmp.eq.s32.totalorder %s17, 0
    %p84 = por %p82, %p83
    %p85 = scmp.ne.s32.totalorder %s71, %s72
    %p86 = scmp.eq.s32.totalorder %s18, 1
    %p87 = por %p85, %p86
    %p89 = scmp.ne.s32.totalorder %s72, %s88
    %p90 = scmp.eq.s32.totalorder %s18, 0
    %p91 = por %p89, %p90
    %s93 = sadd.s32 %s92, 1
    %p96 = scmp.eq.s32.totalorder %s12, 1
    %p97 = scmp.ne.s32.totalorder %s92, %s94
    %p98 = scmp.eq.s32.totalorder %s12, 0
    %p99 = por %p97, %p98
    %p100 = scmp.ne.s32.totalorder %s92, %s94
    %p101 = scmp.eq.s32.totalorder %s17, 1
    %p102 = por %p100, %p101
    %p103 = scmp.ne.s32.totalorder %s94, %s95
    %p104 = scmp.eq.s32.totalorder %s17, 0
    %p105 = por %p103, %p104
    %p106 = scmp.ne.s32.totalorder %s94, %s95
    %p107 = scmp.eq.s32.totalorder %s18, 1
    %p108 = por %p106, %p107
    %p110 = scmp.ne.s32.totalorder %s95, %s109
    %p111 = scmp.eq.s32.totalorder %s18, 0
    %p112 = por %p110, %p111
    %s114 = sadd.s32 %s113, 1
    %p117 = scmp.eq.s32.totalorder %s12, 1
    %p118 = scmp.ne.s32.totalorder %s113, %s115
    %p119 = scmp.eq.s32.totalorder %s12, 0
    %p120 = por %p118, %p119
    %p121 = scmp.ne.s32.totalorder %s113, %s115
    %p122 = scmp.eq.s32.totalorder %s17, 1
    %p123 = por %p121, %p122
    %p124 = scmp.ne.s32.totalorder %s115, %s116
    %p125 = scmp.eq.s32.totalorder %s17, 0
    %p126 = por %p124, %p125
    %p127 = scmp.ne.s32.totalorder %s115, %s116
    %p128 = scmp.eq.s32.totalorder %s18, 1
    %p129 = por %p127, %p128
    %p131 = scmp.ne.s32.totalorder %s116, %s130
    %p132 = scmp.eq.s32.totalorder %s18, 0
    %p133 = por %p131, %p132
    %s134 = ssub.s32 %s19, %s31
    %s135 = ssub.s32 %s20, %s27
    %s136 = sor.u32 %s134, %s135
    %p137 = scmp.eq.s32.totalorder %s136, 0
    %s139 = sadd.s32 %s138, 1
    %s140 = scalar_select %p137, %s138, %s139
    %p143 = pneg %p137
    %p144 = scmp.eq.s32.totalorder %s12, 1
    %p145 = por %p143, %p144
    %p146 = scmp.ne.s32.totalorder %s138, %s141
    %p147 = scmp.eq.s32.totalorder %s12, 0
    %p148 = por %p146, %p147
    %p149 = scmp.ne.s32.totalorder %s138, %s141
    %p150 = scmp.eq.s32.totalorder %s17, 1
    %p151 = por %p149, %p150
    %p152 = scmp.ne.s32.totalorder %s141, %s142
    %p153 = scmp.eq.s32.totalorder %s17, 0
    %p154 = por %p152, %p153
    %p155 = scmp.ne.s32.totalorder %s141, %s142
    %p156 = scmp.eq.s32.totalorder %s18, 1
    %p157 = por %p155, %p156
    %p159 = scmp.ne.s32.totalorder %s142, %s158
    %p160 = scmp.eq.s32.totalorder %s18, 0
    %p161 = por %p159, %p160
    %s162 = ssub.s32 %s19, %s31
    %s163 = ssub.s32 %s20, %s27
    %s164 = sor.u32 %s162, %s163
    %p165 = scmp.eq.s32.totalorder %s164, 0
    %s167 = sadd.s32 %s166, 1
    %s168 = scalar_select %p165, %s166, %s167
    %p171 = pneg %p165
    %p172 = scmp.eq.s32.totalorder %s12, 1
    %p173 = por %p171, %p172
    %p174 = scmp.ne.s32.totalorder %s166, %s169
    %p175 = scmp.eq.s32.totalorder %s12, 0
    %p176 = por %p174, %p175
    %p177 = scmp.ne.s32.totalorder %s166, %s169
    %p178 = scmp.eq.s32.totalorder %s17, 1
    %p179 = por %p177, %p178
    %p180 = scmp.ne.s32.totalorder %s169, %s170
    %p181 = scmp.eq.s32.totalorder %s17, 0
    %p182 = por %p180, %p181
    %p183 = scmp.ne.s32.totalorder %s169, %s170
    %p184 = scmp.eq.s32.totalorder %s18, 1
    %p185 = por %p183, %p184
    %p187 = scmp.ne.s32.totalorder %s170, %s186
    %p188 = scmp.eq.s32.totalorder %s18, 0
    %p189 = por %p187, %p188
    %p190 = scmp.le.s32.totalorder 1, %s12
    %p191 = scmp.lt.s32.totalorder %s12, 3
    %p192 = pnand %p190, %p191
    %p193 = pneg %p192
    // Predicated region
    $region9: #{upblock_forward.6} parent=5 // pred_check
      _
    $region10: #{upblock_forward.6} parent=5 // pred_check_branch
      %195 = sbr.rel (%p192) target = $region12
    $region11: #{upblock_forward.6} parent=5 // pred_region
      %s196 = ssub.s32 %s12, 1
      // Predicated region
      $region13: #{upblock_forward.6} parent=11 // pred_check
        %p197 = pneg %p105
      $region14: #{upblock_forward.6} parent=11 // pred_check_branch
        %199 = sbr.rel (%p197) target = $region16
      $region15: #{upblock_forward.6} parent=11 // pred_region
        _
      $region16: #{upblock_forward.6} parent=11 // pred_fallthru
        _
      // Predicated region
      $region17: #{upblock_forward.6} parent=11 // pred_check
        %p200 = pneg %p126
      $region18: #{upblock_forward.6} parent=11 // pred_check_branch
        %202 = sbr.rel (%p200) target = $region20
      $region19: #{upblock_forward.6} parent=11 // pred_region
        _
      $region20: #{upblock_forward.6} parent=11 // pred_fallthru
        _
    $region12: #{upblock_forward.6} parent=5 // pred_fallthru
      _
    %p203 = scmp.lt.s32.totalorder %s12, 2
    // Predicated region
    $region21: #{upblock_forward.6} parent=5 // pred_check
      %p204 = pneg %p203
    $region22: #{upblock_forward.6} parent=5 // pred_check_branch
      %206 = sbr.rel (%p204) target = $region24
    $region23: #{upblock_forward.6} parent=5 // pred_region
      // Predicated region
      $region25: #{upblock_forward.6} parent=23 // pred_check
        %p207 = pneg %p46
      $region26: #{upblock_forward.6} parent=23 // pred_check_branch
        %209 = sbr.rel (%p207) target = $region28
      $region27: #{upblock_forward.6} parent=23 // pred_region
        %s210 = smul.u32 16, %s20
        %s211 = ssub.s32 18, %s210
        %p212 = scmp.lt.s32.totalorder %s211, 16
        %s213 = scalar_select %p212, %s211, 16
        %s214 = smul.u32 64, %s213
        %s215 = smul.u32 %s214, 3
        %p216 = scmp.lt.s32.totalorder %s19, 1
        %s217 = scalar_select %p216, %s19, 1
        %p218 = scmp.lt.s32.totalorder %s210, 17
        %s219 = scalar_select %p218, %s210, 17
        %s220 = smul.addr %s219, 3
        %s221 = smul.addr %s217, 54
        %s222 = sadd.s32 %s220, %s221
        %s223 = smul.addr %s222, 4
        %s224 = scalar_lea.vmem %s0, %s223
        %s225 = smul.u32 16, %s20
        %s226 = ssub.s32 18, %s225
        %p227 = scmp.lt.s32.totalorder %s226, 16
        %s228 = scalar_select %p227, %s226, 16
        %s229 = smul.u32 64, %s228
        %s230 = smul.u32 %s229, 3
      $region28: #{upblock_forward.6} parent=23 // pred_fallthru
        _
      // Predicated region
      $region29: #{upblock_forward.6} parent=23 // pred_check
        %p231 = pneg %p78
      $region30: #{upblock_forward.6} parent=23 // pred_check_branch
        %233 = sbr.rel (%p231) target = $region32
      $region31: #{upblock_forward.6} parent=23 // pred_region
        %s234 = sadd.s32 %s20, 1
        %s235 = smul.u32 %s234, 8
        %s236 = smul.u32 2, %s235
        %p237 = scmp.lt.s32.totalorder %s19, 1
        %s238 = scalar_select %p237, %s19, 1
        %p239 = scmp.lt.s32.totalorder %s236, 17
        %s240 = scalar_select %p239, %s236, 17
        %s241 = smul.addr %s240, 3
        %s242 = smul.addr %s238, 54
        %s243 = sadd.s32 %s241, %s242
        %s244 = smul.addr %s243, 4
        %s245 = scalar_lea.vmem %s1, %s244
        %s246 = sadd.s32 %s20, 1
        %s247 = smul.u32 %s246, 8
        %s248 = smul.u32 2, %s247
      $region32: #{upblock_forward.6} parent=23 // pred_fallthru
        _
    $region24: #{upblock_forward.6} parent=5 // pred_fallthru
      _
    %p249 = scmp.le.s32.totalorder 1, %s12
    %p250 = scmp.lt.s32.totalorder %s12, 3
    %p251 = pnand %p249, %p250
    %p252 = pneg %p251
    // Predicated region
    $region33: #{upblock_forward.6} parent=5 // pred_check
      _
    $region34: #{upblock_forward.6} parent=5 // pred_check_branch
      %254 = sbr.rel (%p251) target = $region36
    $region35: #{upblock_forward.6} parent=5 // pred_region
      %s255 = ssub.s32 %s12, 1
      %s256 = smul.u32 16, %s22
      %s257 = ssub.s32 18, %s256
      %p258 = scmp.lt.s32.totalorder %s257, 16
      %s259 = scalar_select %p258, %s257, 16
      %s260 = smul.u32 64, %s259
      %s261 = smul.u32 %s260, 3
      %p262 = scmp.lt.s32.totalorder %s21, 1
      %s263 = scalar_select %p262, %s21, 1
      %p264 = scmp.lt.s32.totalorder %s256, 17
      %s265 = scalar_select %p264, %s256, 17
      %s266 = smul.addr %s265, 3
      %s267 = smul.addr %s263, 54
      %s268 = sadd.s32 %s266, %s267
      %s269 = smul.addr %s268, 4
      %s270 = scalar_lea.vmem %s0, %s269
      %p271 = pneg %p52
      %p272 = pneg %p49
      %s273 = sadd.s32 %s22, 1
      %s274 = smul.u32 %s273, 8
      %s275 = smul.u32 2, %s274
      %p276 = scmp.lt.s32.totalorder %s21, 1
      %s277 = scalar_select %p276, %s21, 1
      %p278 = scmp.lt.s32.totalorder %s275, 17
      %s279 = scalar_select %p278, %s275, 17
      %s280 = smul.addr %s279, 3
      %s281 = smul.addr %s277, 54
      %s282 = sadd.s32 %s280, %s281
      %s283 = smul.addr %s282, 4
      %s284 = scalar_lea.vmem %s1, %s283
      %p285 = pneg %p84
      %p286 = pneg %p81
      %p287 = pneg %p105
      %p288 = pneg %p102
      %p289 = pneg %p126
      %p290 = pneg %p123
      %p291 = pneg %p154
      %p292 = pneg %p151
      %s293 = smul.u32 32, %s22
      %p294 = scmp.lt.s32.totalorder %s21, 1
      %s295 = scalar_select %p294, %s21, 1
      %p296 = scmp.lt.s32.totalorder %s293, 31
      %s297 = scalar_select %p296, %s293, 31
      %s298 = smul.addr %s295, 32
      %s299 = sadd.s32 %s297, %s298
      %s300 = smul.addr %s299, 4
      %s301 = scalar_lea.vmem %s4, %s300
      %p302 = pneg %p182
      %p303 = pneg %p179
      %p304 = scmp.lt.s32.totalorder %s21, 1
      %s305 = scalar_select %p304, %s21, 1
      %p306 = scmp.lt.s32.totalorder %s22, 0
      %s307 = scalar_select %p306, %s22, 0
      %s308 = sadd.s32 %s307, %s305
      %s309 = smul.addr %s308, 2
      %s310 = scalar_lea.vmem %s5, %s309
      %s311 = smul.u32 16, %s22
      %s312 = ssub.s32 18, %s311
      %p313 = scmp.lt.s32.totalorder %s312, 16
      %s314 = scalar_select %p313, %s312, 16
      %s315 = smul.u32 64, %s314
      %s316 = smul.u32 %s315, 3
      %p317 = scmp.lt.s32.totalorder %s21, 1
      %s318 = scalar_select %p317, %s21, 1
      %p319 = scmp.lt.s32.totalorder %s311, 17
      %s320 = scalar_select %p319, %s311, 17
      %s321 = smul.addr %s320, 3
      %s322 = smul.addr %s318, 54
      %s323 = sadd.s32 %s321, %s322
      %s324 = smul.addr %s323, 4
      %s325 = scalar_lea.vmem %s0, %s324
      %s326 = smul.u32 16, %s22
      %s327 = ssub.s32 18, %s326
      %p328 = scmp.lt.s32.totalorder %s327, 16
      %s329 = scalar_select %p328, %s327, 16
      %s330 = smul.u32 64, %s329
      %s331 = smul.u32 %s330, 3
      %s332 = sadd.s32 %s22, 1
      %s333 = smul.u32 %s332, 8
      %s334 = smul.u32 2, %s333
      %p335 = scmp.lt.s32.totalorder %s21, 1
      %s336 = scalar_select %p335, %s21, 1
      %p337 = scmp.lt.s32.totalorder %s334, 17
      %s338 = scalar_select %p337, %s334, 17
      %s339 = smul.addr %s338, 3
      %s340 = smul.addr %s336, 54
      %s341 = sadd.s32 %s339, %s340
      %s342 = smul.addr %s341, 4
      %s343 = scalar_lea.vmem %s1, %s342
      %s344 = sadd.s32 %s22, 1
      %s345 = smul.u32 %s344, 8
      %s346 = smul.u32 2, %s345
      %s347 = smul.u32 32, %s22
      %p348 = scmp.lt.s32.totalorder %s21, 1
      %s349 = scalar_select %p348, %s21, 1
      %p350 = scmp.lt.s32.totalorder %s347, 31
      %s351 = scalar_select %p350, %s347, 31
      %s352 = smul.addr %s349, 32
      %s353 = sadd.s32 %s351, %s352
      %s354 = smul.addr %s353, 4
      %s355 = scalar_lea.vmem %s4, %s354
      %s356 = smul.u32 32, %s22
      %p357 = scmp.lt.s32.totalorder %s21, 1
      %s358 = scalar_select %p357, %s21, 1
      %p359 = scmp.lt.s32.totalorder %s22, 0
      %s360 = scalar_select %p359, %s22, 0
      %s361 = sadd.s32 %s360, %s358
      %s362 = smul.addr %s361, 2
      %s363 = scalar_lea.vmem %s5, %s362
      %v365 = vld [vmem:[%s325] sm:$0xf]
      %v366 = vld [vmem:[%s325 + $0x4] sm:$0xf]
      %v367 = vld [vmem:[%s325 + $0x8] sm:$0x1]
      %v368 = vld [vmem:[%s325 + $0xc] sm:$0xf]
      %v369 = vld [vmem:[%s325 + $0x10] sm:$0xf]
      %v370 = vld [vmem:[%s325 + $0x14] sm:$0x1]
      %v371 = vld [vmem:[%s325 + $0x18] sm:$0xf]
      %v372 = vld [vmem:[%s325 + $0x1c] sm:$0xf]
      %v373 = vld [vmem:[%s325 + $0x20] sm:$0x1]
      %v374 = vld [vmem:[%s325 + $0x24] sm:$0xf]
      %v375 = vld [vmem:[%s325 + $0x28] sm:$0xf]
      %v376 = vld [vmem:[%s325 + $0x2c] sm:$0x1]
      %v377 = vld [vmem:[%s325 + $0x30] sm:$0xf]
      %v378 = vld [vmem:[%s325 + $0x34] sm:$0xf]
      %v379 = vld [vmem:[%s325 + $0x38] sm:$0x1]
      %v380 = vld [vmem:[%s325 + $0x3c] sm:$0xf]
      %v381 = vld [vmem:[%s325 + $0x40] sm:$0xf]
      %v382 = vld [vmem:[%s325 + $0x44] sm:$0x1]
      %v383 = vld [vmem:[%s325 + $0x48] sm:$0xf]
      %v384 = vld [vmem:[%s325 + $0x4c] sm:$0xf]
      %v385 = vld [vmem:[%s325 + $0x50] sm:$0x1]
      %v386 = vld [vmem:[%s325 + $0x54] sm:$0xf]
      %v387 = vld [vmem:[%s325 + $0x58] sm:$0xf]
      %v388 = vld [vmem:[%s325 + $0x5c] sm:$0x1]
      %v389 = vld [vmem:[%s325 + $0x60] sm:$0xf]
      %v390 = vld [vmem:[%s325 + $0x64] sm:$0xf]
      %v391 = vld [vmem:[%s325 + $0x68] sm:$0x1]
      %v392 = vld [vmem:[%s325 + $0x6c] sm:$0xf]
      %v393 = vld [vmem:[%s325 + $0x70] sm:$0xf]
      %v394 = vld [vmem:[%s325 + $0x74] sm:$0x1]
      %v395 = vld [vmem:[%s325 + $0x78] sm:$0xf]
      %v396 = vld [vmem:[%s325 + $0x7c] sm:$0xf]
      %v397 = vld [vmem:[%s325 + $0x80] sm:$0x1]
      %v398 = vld [vmem:[%s325 + $0x84] sm:$0xf]
      %v399 = vld [vmem:[%s325 + $0x88] sm:$0xf]
      %v400 = vld [vmem:[%s325 + $0x8c] sm:$0x1]
      %v401 = vld [vmem:[%s325 + $0x90] sm:$0xf]
      %v402 = vld [vmem:[%s325 + $0x94] sm:$0xf]
      %v403 = vld [vmem:[%s325 + $0x98] sm:$0x1]
      %v404 = vld [vmem:[%s325 + $0x9c] sm:$0xf]
      %v405 = vld [vmem:[%s325 + $0xa0] sm:$0xf]
      %v406 = vld [vmem:[%s325 + $0xa4] sm:$0x1]
      %v407 = vld [vmem:[%s325 + $0xa8] sm:$0xf]
      %v408 = vld [vmem:[%s325 + $0xac] sm:$0xf]
      %v409 = vld [vmem:[%s325 + $0xb0] sm:$0x1]
      %v410 = vld [vmem:[%s325 + $0xb4] sm:$0xf]
      %v411 = vld [vmem:[%s325 + $0xb8] sm:$0xf]
      %v412 = vld [vmem:[%s325 + $0xbc] sm:$0x1]
      %v413 = vld [vmem:[%s343] sm:$0xf]
      %v414 = vld [vmem:[%s343 + $0x4] sm:$0xf]
      %v415 = vld [vmem:[%s343 + $0x8] sm:$0x1]
      %v416 = vld [vmem:[%s343 + $0xc] sm:$0xf]
      %v417 = vld [vmem:[%s343 + $0x10] sm:$0xf]
      %v418 = vld [vmem:[%s343 + $0x14] sm:$0x1]
      %v419 = vld [vmem:[%s2] sm:$0xf]
      %v420 = vld [vmem:[%s2 + $0x4] sm:$0xf]
      %v421 = vld [vmem:[%s2 + $0x8] sm:$0x3]
      %vm422 = vsmask.f32 3328
      %vm423 = vsmask.f32 7440
      %vm424 = vmor %vm422, %vm423
      %v426 = vshrl.u32 %v365, 16
      %v428 = vrot.slane %v426, 4
      %v429 = vshll.u32 %v365, 16
      %v431 = vrot.slane %v429, 5
      %v432 = vor.u32 %v428, %v431
      %v433 = vrot.slane %v432, 4
      %v435 = vshll.u32 %v366, 16
      %v437 = vrot.slane %v435, 5
      %v438 = vsel %vm424, %v433, %v437
      %v439 = vshrl.u32 %v366, 16
      %v441 = vrot.slane %v439, 4
      %v442 = vor.u32 %v441, %v437
      %v443 = vrot.slane %v442, 4
      %v445 = vshll.u32 %v367, 16
      %v447 = vrot.slane %v445, 5
      %v448 = vsel %vm424, %v443, %v447
      %v450 = vshrl.u32 %v368, 16
      %v452 = vrot.slane %v450, 4
      %v453 = vshll.u32 %v368, 16
      %v455 = vrot.slane %v453, 5
      %v456 = vor.u32 %v452, %v455
      %v457 = vrot.slane %v456, 4
      %v459 = vshll.u32 %v369, 16
      %v461 = vrot.slane %v459, 5
      %v462 = vsel %vm424, %v457, %v461
      %v463 = vshrl.u32 %v369, 16
      %v465 = vrot.slane %v463, 4
      %v466 = vor.u32 %v465, %v461
      %v467 = vrot.slane %v466, 4
      %v469 = vshll.u32 %v370, 16
      %v471 = vrot.slane %v469, 5
      %v472 = vsel %vm424, %v467, %v471
      %v474 = vshrl.u32 %v371, 16
      %v476 = vrot.slane %v474, 4
      %v477 = vshll.u32 %v371, 16
      %v479 = vrot.slane %v477, 5
      %v480 = vor.u32 %v476, %v479
      %v481 = vrot.slane %v480, 4
      %v483 = vshll.u32 %v372, 16
      %v485 = vrot.slane %v483, 5
      %v486 = vsel %vm424, %v481, %v485
      %v487 = vshrl.u32 %v372, 16
      %v489 = vrot.slane %v487, 4
      %v490 = vor.u32 %v489, %v485
      %v491 = vrot.slane %v490, 4
      %v493 = vshll.u32 %v373, 16
      %v495 = vrot.slane %v493, 5
      %v496 = vsel %vm424, %v491, %v495
      %v498 = vshrl.u32 %v374, 16
      %v500 = vrot.slane %v498, 4
      %v501 = vshll.u32 %v374, 16
      %v503 = vrot.slane %v501, 5
      %v504 = vor.u32 %v500, %v503
      %v505 = vrot.slane %v504, 4
      %v507 = vshll.u32 %v375, 16
      %v509 = vrot.slane %v507, 5
      %v510 = vsel %vm424, %v505, %v509
      %v511 = vshrl.u32 %v375, 16
      %v513 = vrot.slane %v511, 4
      %v514 = vor.u32 %v513, %v509
      %v515 = vrot.slane %v514, 4
      %v517 = vshll.u32 %v376, 16
      %v519 = vrot.slane %v517, 5
      %v520 = vsel %vm424, %v515, %v519
      %v522 = vshrl.u32 %v377, 16
      %v524 = vrot.slane %v522, 4
      %v525 = vshll.u32 %v377, 16
      %v527 = vrot.slane %v525, 5
      %v528 = vor.u32 %v524, %v527
      %v529 = vrot.slane %v528, 4
      %v531 = vshll.u32 %v378, 16
      %v533 = vrot.slane %v531, 5
      %v534 = vsel %vm424, %v529, %v533
      %v535 = vshrl.u32 %v378, 16
      %v537 = vrot.slane %v535, 4
      %v538 = vor.u32 %v537, %v533
      %v539 = vrot.slane %v538, 4
      %v541 = vshll.u32 %v379, 16
      %v543 = vrot.slane %v541, 5
      %v544 = vsel %vm424, %v539, %v543
      %v546 = vshrl.u32 %v380, 16
      %v548 = vrot.slane %v546, 4
      %v549 = vshll.u32 %v380, 16
      %v551 = vrot.slane %v549, 5
      %v552 = vor.u32 %v548, %v551
      %v553 = vrot.slane %v552, 4
      %v555 = vshll.u32 %v381, 16
      %v557 = vrot.slane %v555, 5
      %v558 = vsel %vm424, %v553, %v557
      %v559 = vshrl.u32 %v381, 16
      %v561 = vrot.slane %v559, 4
      %v562 = vor.u32 %v561, %v557
      %v563 = vrot.slane %v562, 4
      %v565 = vshll.u32 %v382, 16
      %v567 = vrot.slane %v565, 5
      %v568 = vsel %vm424, %v563, %v567
      %v570 = vshrl.u32 %v383, 16
      %v572 = vrot.slane %v570, 4
      %v573 = vshll.u32 %v383, 16
      %v575 = vrot.slane %v573, 5
      %v576 = vor.u32 %v572, %v575
      %v577 = vrot.slane %v576, 4
      %v579 = vshll.u32 %v384, 16
      %v581 = vrot.slane %v579, 5
      %v582 = vsel %vm424, %v577, %v581
      %v583 = vshrl.u32 %v384, 16
      %v585 = vrot.slane %v583, 4
      %v586 = vor.u32 %v585, %v581
      %v587 = vrot.slane %v586, 4
      %v589 = vshll.u32 %v385, 16
      %v591 = vrot.slane %v589, 5
      %v592 = vsel %vm424, %v587, %v591
      %v594 = vshrl.u32 %v386, 16
      %v596 = vrot.slane %v594, 4
      %v597 = vshll.u32 %v386, 16
      %v599 = vrot.slane %v597, 5
      %v600 = vor.u32 %v596, %v599
      %v601 = vrot.slane %v600, 4
      %v603 = vshll.u32 %v387, 16
      %v605 = vrot.slane %v603, 5
      %v606 = vsel %vm424, %v601, %v605
      %v607 = vshrl.u32 %v387, 16
      %v609 = vrot.slane %v607, 4
      %v610 = vor.u32 %v609, %v605
      %v611 = vrot.slane %v610, 4
      %v613 = vshll.u32 %v388, 16
      %v615 = vrot.slane %v613, 5
      %v616 = vsel %vm424, %v611, %v615
      %v618 = vshrl.u32 %v389, 16
      %v620 = vrot.slane %v618, 4
      %v621 = vshll.u32 %v389, 16
      %v623 = vrot.slane %v621, 5
      %v624 = vor.u32 %v620, %v623
      %v625 = vrot.slane %v624, 4
      %v627 = vshll.u32 %v390, 16
      %v629 = vrot.slane %v627, 5
      %v630 = vsel %vm424, %v625, %v629
      %v631 = vshrl.u32 %v390, 16
      %v633 = vrot.slane %v631, 4
      %v634 = vor.u32 %v633, %v629
      %v635 = vrot.slane %v634, 4
      %v637 = vshll.u32 %v391, 16
      %v639 = vrot.slane %v637, 5
      %v640 = vsel %vm424, %v635, %v639
      %v642 = vshrl.u32 %v392, 16
      %v644 = vrot.slane %v642, 4
      %v645 = vshll.u32 %v392, 16
      %v647 = vrot.slane %v645, 5
      %v648 = vor.u32 %v644, %v647
      %v649 = vrot.slane %v648, 4
      %v651 = vshll.u32 %v393, 16
      %v653 = vrot.slane %v651, 5
      %v654 = vsel %vm424, %v649, %v653
      %v655 = vshrl.u32 %v393, 16
      %v657 = vrot.slane %v655, 4
      %v658 = vor.u32 %v657, %v653
      %v659 = vrot.slane %v658, 4
      %v661 = vshll.u32 %v394, 16
      %v663 = vrot.slane %v661, 5
      %v664 = vsel %vm424, %v659, %v663
      %v666 = vshrl.u32 %v395, 16
      %v668 = vrot.slane %v666, 4
      %v669 = vshll.u32 %v395, 16
      %v671 = vrot.slane %v669, 5
      %v672 = vor.u32 %v668, %v671
      %v673 = vrot.slane %v672, 4
      %v675 = vshll.u32 %v396, 16
      %v677 = vrot.slane %v675, 5
      %v678 = vsel %vm424, %v673, %v677
      %v679 = vshrl.u32 %v396, 16
      %v681 = vrot.slane %v679, 4
      %v682 = vor.u32 %v681, %v677
      %v683 = vrot.slane %v682, 4
      %v685 = vshll.u32 %v397, 16
      %v687 = vrot.slane %v685, 5
      %v688 = vsel %vm424, %v683, %v687
      %v690 = vshrl.u32 %v398, 16
      %v692 = vrot.slane %v690, 4
      %v693 = vshll.u32 %v398, 16
      %v695 = vrot.slane %v693, 5
      %v696 = vor.u32 %v692, %v695
      %v697 = vrot.slane %v696, 4
      %v699 = vshll.u32 %v399, 16
      %v701 = vrot.slane %v699, 5
      %v702 = vsel %vm424, %v697, %v701
      %v703 = vshrl.u32 %v399, 16
      %v705 = vrot.slane %v703, 4
      %v706 = vor.u32 %v705, %v701
      %v707 = vrot.slane %v706, 4
      %v709 = vshll.u32 %v400, 16
      %v711 = vrot.slane %v709, 5
      %v712 = vsel %vm424, %v707, %v711
      %v714 = vshrl.u32 %v401, 16
      %v716 = vrot.slane %v714, 4
      %v717 = vshll.u32 %v401, 16
      %v719 = vrot.slane %v717, 5
      %v720 = vor.u32 %v716, %v719
      %v721 = vrot.slane %v720, 4
      %v723 = vshll.u32 %v402, 16
      %v725 = vrot.slane %v723, 5
      %v726 = vsel %vm424, %v721, %v725
      %v727 = vshrl.u32 %v402, 16
      %v729 = vrot.slane %v727, 4
      %v730 = vor.u32 %v729, %v725
      %v731 = vrot.slane %v730, 4
      %v733 = vshll.u32 %v403, 16
      %v735 = vrot.slane %v733, 5
      %v736 = vsel %vm424, %v731, %v735
      %v738 = vshrl.u32 %v404, 16
      %v740 = vrot.slane %v738, 4
      %v741 = vshll.u32 %v404, 16
      %v743 = vrot.slane %v741, 5
      %v744 = vor.u32 %v740, %v743
      %v745 = vrot.slane %v744, 4
      %v747 = vshll.u32 %v405, 16
      %v749 = vrot.slane %v747, 5
      %v750 = vsel %vm424, %v745, %v749
      %v751 = vshrl.u32 %v405, 16
      %v753 = vrot.slane %v751, 4
      %v754 = vor.u32 %v753, %v749
      %v755 = vrot.slane %v754, 4
      %v757 = vshll.u32 %v406, 16
      %v759 = vrot.slane %v757, 5
      %v760 = vsel %vm424, %v755, %v759
      %v762 = vshrl.u32 %v407, 16
      %v764 = vrot.slane %v762, 4
      %v765 = vshll.u32 %v407, 16
      %v767 = vrot.slane %v765, 5
      %v768 = vor.u32 %v764, %v767
      %v769 = vrot.slane %v768, 4
      %v771 = vshll.u32 %v408, 16
      %v773 = vrot.slane %v771, 5
      %v774 = vsel %vm424, %v769, %v773
      %v775 = vshrl.u32 %v408, 16
      %v777 = vrot.slane %v775, 4
      %v778 = vor.u32 %v777, %v773
      %v779 = vrot.slane %v778, 4
      %v781 = vshll.u32 %v409, 16
      %v783 = vrot.slane %v781, 5
      %v784 = vsel %vm424, %v779, %v783
      %v786 = vshrl.u32 %v410, 16
      %v788 = vrot.slane %v786, 4
      %v789 = vshll.u32 %v410, 16
      %v791 = vrot.slane %v789, 5
      %v792 = vor.u32 %v788, %v791
      %v793 = vrot.slane %v792, 4
      %v795 = vshll.u32 %v411, 16
      %v797 = vrot.slane %v795, 5
      %v798 = vsel %vm424, %v793, %v797
      %v799 = vshrl.u32 %v411, 16
      %v801 = vrot.slane %v799, 4
      %v802 = vor.u32 %v801, %v797
      %v803 = vrot.slane %v802, 4
      %v805 = vshll.u32 %v412, 16
      %v807 = vrot.slane %v805, 5
      %v808 = vsel %vm424, %v803, %v807
      %s809 = scalar_lea.vmem %s2, 12
      %v810 = vld [vmem:[%s809] sm:$0xf]
      %v811 = vld [vmem:[%s809 + $0x4] sm:$0xf]
      %v812 = vld [vmem:[%s809 + $0x8] sm:$0x3]
      %v813 = vunpack.c.l.b16 %v438
      %v814 = vunpack.c.l.b16 %v448
      %v815 = vunpack.c.l.b16 %v462
      %v816 = vunpack.c.l.b16 %v472
      %v817 = vunpack.c.l.b16 %v486
      %v818 = vunpack.c.l.b16 %v496
      %v819 = vunpack.c.l.b16 %v510
      %v820 = vunpack.c.l.b16 %v520
      %v821 = vunpack.c.l.b16 %v534
      %v822 = vunpack.c.l.b16 %v544
      %v823 = vunpack.c.l.b16 %v558
      %v824 = vunpack.c.l.b16 %v568
      %v825 = vunpack.c.l.b16 %v582
      %v826 = vunpack.c.l.b16 %v592
      %v827 = vunpack.c.l.b16 %v606
      %v828 = vunpack.c.l.b16 %v616
      %v829 = vunpack.c.l.b16 %v630
      %v830 = vunpack.c.l.b16 %v640
      %v831 = vunpack.c.l.b16 %v654
      %v832 = vunpack.c.l.b16 %v664
      %v833 = vunpack.c.l.b16 %v678
      %v834 = vunpack.c.l.b16 %v688
      %v835 = vunpack.c.l.b16 %v702
      %v836 = vunpack.c.l.b16 %v712
      %v837 = vunpack.c.l.b16 %v726
      %v838 = vunpack.c.l.b16 %v736
      %v839 = vunpack.c.l.b16 %v750
      %v840 = vunpack.c.l.b16 %v760
      %v841 = vunpack.c.l.b16 %v774
      %v842 = vunpack.c.l.b16 %v784
      %v843 = vunpack.c.l.b16 %v798
      %v844 = vunpack.c.l.b16 %v808
      %v845 = vpack.c.b16 %v814, %v813
      %v846 = vpack.c.b16 %v816, %v815
      %v847 = vpack.c.b16 %v818, %v817
      %v848 = vpack.c.b16 %v820, %v819
      %v849 = vpack.c.b16 %v822, %v821
      %v850 = vpack.c.b16 %v824, %v823
      %v851 = vpack.c.b16 %v826, %v825
      %v852 = vpack.c.b16 %v828, %v827
      %v853 = vpack.c.b16 %v830, %v829
      %v854 = vpack.c.b16 %v832, %v831
      %v855 = vpack.c.b16 %v834, %v833
      %v856 = vpack.c.b16 %v836, %v835
      %v857 = vpack.c.b16 %v838, %v837
      %v858 = vpack.c.b16 %v840, %v839
      %v859 = vpack.c.b16 %v842, %v841
      %v860 = vpack.c.b16 %v844, %v843
      %v864 = vunpack.c.l.b16 %v810
      %v865 = vunpack.c.l.b16 %v811
      %v866 = vunpack.c.l.b16 %v812
      %v867 = vpack.c.b16 %v865, %v864
      %v868 = vpack.c.b16 %v866, %v866
      %vm870 = vcmask 162816
      %v872 = vsel %vm870, %v845, 0
      %v875 = vsel %vm870, %v846, 0
      %v878 = vsel %vm870, %v847, 0
      %v881 = vsel %vm870, %v848, 0
      %v884 = vsel %vm870, %v849, 0
      %v887 = vsel %vm870, %v850, 0
      %v890 = vsel %vm870, %v851, 0
      %v893 = vsel %vm870, %v852, 0
      %v896 = vsel %vm870, %v853, 0
      %v899 = vsel %vm870, %v854, 0
      %v902 = vsel %vm870, %v855, 0
      %v905 = vsel %vm870, %v856, 0
      %v908 = vsel %vm870, %v857, 0
      %v911 = vsel %vm870, %v858, 0
      %v914 = vsel %vm870, %v859, 0
      %v917 = vsel %vm870, %v860, 0
      %vm919 = vcmask 1041408
      %v921 = vsel %vm919, %v868, 0
      %923 = vmatprep.subr.bf16.mxu0 0
      %924 = vmatpush1.bf16.msra.mxu0 %v867
      %925 = vmatprep.subr.bf16.mxu0 0
      %926 = vmatpush1.bf16.msra.mxu0 %v921
      %927 = vmatprep.subr.bf16.mxu0 0
      %928 = vmatpush1.bf16.msra.mxu0 0
      %929 = vmatprep.subr.bf16.mxu0 0
      %930 = vmatpush1.bf16.msra.mxu0 0
      %931 = vmatprep.subr.bf16.mxu0 0
      %932 = vmatpush1.bf16.msra.mxu0 0
      %933 = vmatprep.subr.bf16.mxu0 0
      %934 = vmatpush1.bf16.msra.mxu0 0
      %935 = vmatprep.subr.bf16.mxu0 0
      %936 = vmatpush1.bf16.msra.mxu0 0
      %937 = vmatprep.subr.bf16.mxu0 0
      %938 = vmatpush1.bf16.msra.mxu0 0
      %939 = vmatprep.subr.bf16.mxu0 0
      %940 = vmatpush1.bf16.msra.mxu0 0
      %941 = vmatprep.subr.bf16.mxu0 0
      %942 = vmatpush1.bf16.msra.mxu0 0
      %943 = vmatprep.subr.bf16.mxu0 0
      %944 = vmatpush1.bf16.msra.mxu0 0
      %945 = vmatprep.subr.bf16.mxu0 0
      %946 = vmatpush1.bf16.msra.mxu0 0
      %947 = vmatprep.subr.bf16.mxu0 0
      %948 = vmatpush1.bf16.msra.mxu0 0
      %949 = vmatprep.subr.bf16.mxu0 0
      %950 = vmatpush1.bf16.msra.mxu0 0
      %951 = vmatprep.subr.bf16.mxu0 0
      %952 = vmatpush1.bf16.msra.mxu0 0
      %953 = vmatprep.subr.bf16.mxu0 0
      %954 = vmatpush1.bf16.msra.mxu0 0
      %955 = vmatprep.mubr.bf16.mxu0 0
      %956 = vmatmul.mubr.bf16.gmra.mrb[0].mxu0 %v872
      %v957 = vpop.f32.mrb[0].mxu0
      %v958 = vadd.f32 0.0, %v957
      %v959 = vpop.f32.mrb[0].mxu0
      %v960 = vpop.f32.mrb[0].mxu0
      %v961 = vadd.f32 0.0, %v960
      %v962 = vpop.f32.mrb[0].mxu0
      %963 = vmatprep.mubr.bf16.mxu0 0
      %964 = vmatmul.mubr.bf16.gmra.mrb[0].mxu0 %v875
      %v965 = vpop.f32.mrb[0].mxu0
      %v966 = vadd.f32 0.0, %v965
      %v967 = vpop.f32.mrb[0].mxu0
      %v968 = vpop.f32.mrb[0].mxu0
      %v969 = vadd.f32 0.0, %v968
      %v970 = vpop.f32.mrb[0].mxu0
      %971 = vmatprep.mubr.bf16.mxu0 0
      %972 = vmatmul.mubr.bf16.gmra.mrb[0].mxu0 %v878
      %v973 = vpop.f32.mrb[0].mxu0
      %v974 = vadd.f32 0.0, %v973
      %v975 = vpop.f32.mrb[0].mxu0
      %v976 = vpop.f32.mrb[0].mxu0
      %v977 = vadd.f32 0.0, %v976
      %v978 = vpop.f32.mrb[0].mxu0
      %979 = vmatprep.mubr.bf16.mxu0 0
      %980 = vmatmul.mubr.bf16.gmra.mrb[0].mxu0 %v881
      %v981 = vpop.f32.mrb[0].mxu0
      %v982 = vadd.f32 0.0, %v981
      %v983 = vpop.f32.mrb[0].mxu0
      %v984 = vpop.f32.mrb[0].mxu0
      %v985 = vadd.f32 0.0, %v984
      %v986 = vpop.f32.mrb[0].mxu0
      %987 = vmatprep.mubr.bf16.mxu0 0
      %988 = vmatmul.mubr.bf16.gmra.mrb[0].mxu0 %v884
      %v989 = vpop.f32.mrb[0].mxu0
      %v990 = vadd.f32 0.0, %v989
      %v991 = vpop.f32.mrb[0].mxu0
      %v992 = vpop.f32.mrb[0].mxu0
      %v993 = vadd.f32 0.0, %v992
      %v994 = vpop.f32.mrb[0].mxu0
      %995 = vmatprep.mubr.bf16.mxu0 0
      %996 = vmatmul.mubr.bf16.gmra.mrb[0].mxu0 %v887
      %v997 = vpop.f32.mrb[0].mxu0
      %v998 = vadd.f32 0.0, %v997
      %v999 = vpop.f32.mrb[0].mxu0
      %v1000 = vpop.f32.mrb[0].mxu0
      %v1001 = vadd.f32 0.0, %v1000
      %v1002 = vpop.f32.mrb[0].mxu0
      %1003 = vmatprep.mubr.bf16.mxu0 0
      %1004 = vmatmul.mubr.bf16.gmra.mrb[0].mxu0 %v890
      %v1005 = vpop.f32.mrb[0].mxu0
      %v1006 = vadd.f32 0.0, %v1005
      %v1007 = vpop.f32.mrb[0].mxu0
      %v1008 = vpop.f32.mrb[0].mxu0
      %v1009 = vadd.f32 0.0, %v1008
      %v1010 = vpop.f32.mrb[0].mxu0
      %1011 = vmatprep.mubr.bf16.mxu0 0
      %1012 = vmatmul.mubr.bf16.gmra.mrb[0].mxu0 %v893
      %v1013 = vpop.f32.mrb[0].mxu0
      %v1014 = vadd.f32 0.0, %v1013
      %v1015 = vpop.f32.mrb[0].mxu0
      %v1016 = vpop.f32.mrb[0].mxu0
      %v1017 = vadd.f32 0.0, %v1016
      %v1018 = vpop.f32.mrb[0].mxu0
      %1019 = vmatprep.mubr.bf16.mxu0 0
      %1020 = vmatmul.mubr.bf16.gmra.mrb[0].mxu0 %v896
      %v1021 = vpop.f32.mrb[0].mxu0
      %v1022 = vadd.f32 0.0, %v1021
      %v1023 = vpop.f32.mrb[0].mxu0
      %v1024 = vpop.f32.mrb[0].mxu0
      %v1025 = vadd.f32 0.0, %v1024
      %v1026 = vpop.f32.mrb[0].mxu0
      %1027 = vmatprep.mubr.bf16.mxu0 0
      %1028 = vmatmul.mubr.bf16.gmra.mrb[0].mxu0 %v899
      %v1029 = vpop.f32.mrb[0].mxu0
      %v1030 = vadd.f32 0.0, %v1029
      %v1031 = vpop.f32.mrb[0].mxu0
      %v1032 = vpop.f32.mrb[0].mxu0
      %v1033 = vadd.f32 0.0, %v1032
      %v1034 = vpop.f32.mrb[0].mxu0
      %1035 = vmatprep.mubr.bf16.mxu0 0
      %1036 = vmatmul.mubr.bf16.gmra.mrb[0].mxu0 %v902
      %v1037 = vpop.f32.mrb[0].mxu0
      %v1038 = vadd.f32 0.0, %v1037
      %v1039 = vpop.f32.mrb[0].mxu0
      %v1040 = vpop.f32.mrb[0].mxu0
      %v1041 = vadd.f32 0.0, %v1040
      %v1042 = vpop.f32.mrb[0].mxu0
      %1043 = vmatprep.mubr.bf16.mxu0 0
      %1044 = vmatmul.mubr.bf16.gmra.mrb[0].mxu0 %v905
      %v1045 = vpop.f32.mrb[0].mxu0
      %v1046 = vadd.f32 0.0, %v1045
      %v1047 = vpop.f32.mrb[0].mxu0
      %v1048 = vpop.f32.mrb[0].mxu0
      %v1049 = vadd.f32 0.0, %v1048
      %v1050 = vpop.f32.mrb[0].mxu0
      %1051 = vmatprep.mubr.bf16.mxu0 0
      %1052 = vmatmul.mubr.bf16.gmra.mrb[0].mxu0 %v908
      %v1053 = vpop.f32.mrb[0].mxu0
      %v1054 = vadd.f32 0.0, %v1053
      %v1055 = vpop.f32.mrb[0].mxu0
      %v1056 = vpop.f32.mrb[0].mxu0
      %v1057 = vadd.f32 0.0, %v1056
      %v1058 = vpop.f32.mrb[0].mxu0
      %1059 = vmatprep.mubr.bf16.mxu0 0
      %1060 = vmatmul.mubr.bf16.gmra.mrb[0].mxu0 %v911
      %v1061 = vpop.f32.mrb[0].mxu0
      %v1062 = vadd.f32 0.0, %v1061
      %v1063 = vpop.f32.mrb[0].mxu0
      %v1064 = vpop.f32.mrb[0].mxu0
      %v1065 = vadd.f32 0.0, %v1064
      %v1066 = vpop.f32.mrb[0].mxu0
      %1067 = vmatprep.mubr.bf16.mxu0 0
      %1068 = vmatmul.mubr.bf16.gmra.mrb[0].mxu0 %v914
      %v1069 = vpop.f32.mrb[0].mxu0
      %v1070 = vadd.f32 0.0, %v1069
      %v1071 = vpop.f32.mrb[0].mxu0
      %v1072 = vpop.f32.mrb[0].mxu0
      %v1073 = vadd.f32 0.0, %v1072
      %v1074 = vpop.f32.mrb[0].mxu0
      %1075 = vmatprep.mubr.bf16.mxu0 0
      %1076 = vmatmul.mubr.bf16.gmra.mrb[0].mxu0 %v917
      %v1077 = vpop.f32.mrb[0].mxu0
      %v1078 = vadd.f32 0.0, %v1077
      %v1079 = vpop.f32.mrb[0].mxu0
      %v1080 = vpop.f32.mrb[0].mxu0
      %v1081 = vadd.f32 0.0, %v1080
      %v1082 = vpop.f32.mrb[0].mxu0
      %1083 = vdwg.mxu0
      %v1116 = vunpack.c.l.b16 %v365
      %v1117 = vunpack.c.l.b16 %v366
      %v1118 = vunpack.c.l.b16 %v368
      %v1119 = vunpack.c.l.b16 %v369
      %v1120 = vunpack.c.l.b16 %v371
      %v1121 = vunpack.c.l.b16 %v372
      %v1122 = vunpack.c.l.b16 %v374
      %v1123 = vunpack.c.l.b16 %v375
      %v1124 = vunpack.c.l.b16 %v377
      %v1125 = vunpack.c.l.b16 %v378
      %v1126 = vunpack.c.l.b16 %v380
      %v1127 = vunpack.c.l.b16 %v381
      %v1128 = vunpack.c.l.b16 %v383
      %v1129 = vunpack.c.l.b16 %v384
      %v1130 = vunpack.c.l.b16 %v386
      %v1131 = vunpack.c.l.b16 %v387
      %v1132 = vunpack.c.l.b16 %v389
      %v1133 = vunpack.c.l.b16 %v390
      %v1134 = vunpack.c.l.b16 %v392
      %v1135 = vunpack.c.l.b16 %v393
      %v1136 = vunpack.c.l.b16 %v395
      %v1137 = vunpack.c.l.b16 %v396
      %v1138 = vunpack.c.l.b16 %v398
      %v1139 = vunpack.c.l.b16 %v399
      %v1140 = vunpack.c.l.b16 %v401
      %v1141 = vunpack.c.l.b16 %v402
      %v1142 = vunpack.c.l.b16 %v404
      %v1143 = vunpack.c.l.b16 %v405
      %v1144 = vunpack.c.l.b16 %v407
      %v1145 = vunpack.c.l.b16 %v408
      %v1146 = vunpack.c.l.b16 %v410
      %v1147 = vunpack.c.l.b16 %v411
      %v1148 = vpack.c.b16 %v1117, %v1116
      %v1149 = vpack.c.b16 %v1119, %v1118
      %v1150 = vpack.c.b16 %v1121, %v1120
      %v1151 = vpack.c.b16 %v1123, %v1122
      %v1152 = vpack.c.b16 %v1125, %v1124
      %v1153 = vpack.c.b16 %v1127, %v1126
      %v1154 = vpack.c.b16 %v1129, %v1128
      %v1155 = vpack.c.b16 %v1131, %v1130
      %v1156 = vpack.c.b16 %v1133, %v1132
      %v1157 = vpack.c.b16 %v1135, %v1134
      %v1158 = vpack.c.b16 %v1137, %v1136
      %v1159 = vpack.c.b16 %v1139, %v1138
      %v1160 = vpack.c.b16 %v1141, %v1140
      %v1161 = vpack.c.b16 %v1143, %v1142
      %v1162 = vpack.c.b16 %v1145, %v1144
      %v1163 = vpack.c.b16 %v1147, %v1146
      %v1167 = vunpack.c.l.b16 %v419
      %v1168 = vunpack.c.l.b16 %v420
      %v1169 = vunpack.c.l.b16 %v421
      %v1170 = vpack.c.b16 %v1168, %v1167
      %v1171 = vpack.c.b16 %v1169, %v1169
      %v1174 = vsel %vm870, %v1148, 0
      %v1177 = vsel %vm870, %v1149, 0
      %v1180 = vsel %vm870, %v1150, 0
      %v1183 = vsel %vm870, %v1151, 0
      %v1186 = vsel %vm870, %v1152, 0
      %v1189 = vsel %vm870, %v1153, 0
      %v1192 = vsel %vm870, %v1154, 0
      %v1195 = vsel %vm870, %v1155, 0
      %v1198 = vsel %vm870, %v1156, 0
      %v1201 = vsel %vm870, %v1157, 0
      %v1204 = vsel %vm870, %v1158, 0
      %v1207 = vsel %vm870, %v1159, 0
      %v1210 = vsel %vm870, %v1160, 0
      %v1213 = vsel %vm870, %v1161, 0
      %v1216 = vsel %vm870, %v1162, 0
      %v1219 = vsel %vm870, %v1163, 0
      %v1222 = vsel %vm919, %v1171, 0
      %1224 = vmatprep.subr.bf16.mxu0 0
      %1225 = vmatpush1.bf16.msra.mxu0 %v1170
      %1226 = vmatprep.subr.bf16.mxu0 0
      %1227 = vmatpush1.bf16.msra.mxu0 %v1222
      %1228 = vmatprep.subr.bf16.mxu0 0
      %1229 = vmatpush1.bf16.msra.mxu0 0
      %1230 = vmatprep.subr.bf16.mxu0 0
      %1231 = vmatpush1.bf16.msra.mxu0 0
      %1232 = vmatprep.subr.bf16.mxu0 0
      %1233 = vmatpush1.bf16.msra.mxu0 0
      %1234 = vmatprep.subr.bf16.mxu0 0
      %1235 = vmatpush1.bf16.msra.mxu0 0
      %1236 = vmatprep.subr.bf16.mxu0 0
      %1237 = vmatpush1.bf16.msra.mxu0 0
      %1238 = vmatprep.subr.bf16.mxu0 0
      %1239 = vmatpush1.bf16.msra.mxu0 0
      %1240 = vmatprep.subr.bf16.mxu0 0
      %1241 = vmatpush1.bf16.msra.mxu0 0
      %1242 = vmatprep.subr.bf16.mxu0 0
      %1243 = vmatpush1.bf16.msra.mxu0 0
      %1244 = vmatprep.subr.bf16.mxu0 0
      %1245 = vmatpush1.bf16.msra.mxu0 0
      %1246 = vmatprep.subr.bf16.mxu0 0
      %1247 = vmatpush1.bf16.msra.mxu0 0
      %1248 = vmatprep.subr.bf16.mxu0 0
      %1249 = vmatpush1.bf16.msra.mxu0 0
      %1250 = vmatprep.subr.bf16.mxu0 0
      %1251 = vmatpush1.bf16.msra.mxu0 0
      %1252 = vmatprep.subr.bf16.mxu0 0
      %1253 = vmatpush1.bf16.msra.mxu0 0
      %1254 = vmatprep.subr.bf16.mxu0 0
      %1255 = vmatpush1.bf16.msra.mxu0 0
      %1256 = vmatprep.mubr.bf16.mxu0 0
      %1257 = vmatmul.mubr.bf16.gmra.mrb[0].mxu0 %v1174
      %v1258 = vpop.f32.mrb[0].mxu0
      %v1259 = vadd.f32 %v958, %v1258
      %v1260 = vpop.f32.mrb[0].mxu0
      %v1261 = vpop.f32.mrb[0].mxu0
      %v1262 = vadd.f32 %v961, %v1261
      %v1263 = vpop.f32.mrb[0].mxu0
      %1264 = vmatprep.mubr.bf16.mxu0 0
      %1265 = vmatmul.mubr.bf16.gmra.mrb[0].mxu0 %v1177
      %v1266 = vpop.f32.mrb[0].mxu0
      %v1267 = vadd.f32 %v966, %v1266
      %v1268 = vpop.f32.mrb[0].mxu0
      %v1269 = vpop.f32.mrb[0].mxu0
      %v1270 = vadd.f32 %v969, %v1269
      %v1271 = vpop.f32.mrb[0].mxu0
      %1272 = vmatprep.mubr.bf16.mxu0 0
      %1273 = vmatmul.mubr.bf16.gmra.mrb[0].mxu0 %v1180
      %v1274 = vpop.f32.mrb[0].mxu0
      %v1275 = vadd.f32 %v974, %v1274
      %v1276 = vpop.f32.mrb[0].mxu0
      %v1277 = vpop.f32.mrb[0].mxu0
      %v1278 = vadd.f32 %v977, %v1277
      %v1279 = vpop.f32.mrb[0].mxu0
      %1280 = vmatprep.mubr.bf16.mxu0 0
      %1281 = vmatmul.mubr.bf16.gmra.mrb[0].mxu0 %v1183
      %v1282 = vpop.f32.mrb[0].mxu0
      %v1283 = vadd.f32 %v982, %v1282
      %v1284 = vpop.f32.mrb[0].mxu0
      %v1285 = vpop.f32.mrb[0].mxu0
      %v1286 = vadd.f32 %v985, %v1285
      %v1287 = vpop.f32.mrb[0].mxu0
      %1288 = vmatprep.mubr.bf16.mxu0 0
      %1289 = vmatmul.mubr.bf16.gmra.mrb[0].mxu0 %v1186
      %v1290 = vpop.f32.mrb[0].mxu0
      %v1291 = vadd.f32 %v990, %v1290
      %v1292 = vpop.f32.mrb[0].mxu0
      %v1293 = vpop.f32.mrb[0].mxu0
      %v1294 = vadd.f32 %v993, %v1293
      %v1295 = vpop.f32.mrb[0].mxu0
      %1296 = vmatprep.mubr.bf16.mxu0 0
      %1297 = vmatmul.mubr.bf16.gmra.mrb[0].mxu0 %v1189
      %v1298 = vpop.f32.mrb[0].mxu0
      %v1299 = vadd.f32 %v998, %v1298
      %v1300 = vpop.f32.mrb[0].mxu0
      %v1301 = vpop.f32.mrb[0].mxu0
      %v1302 = vadd.f32 %v1001, %v1301
      %v1303 = vpop.f32.mrb[0].mxu0
      %1304 = vmatprep.mubr.bf16.mxu0 0
      %1305 = vmatmul.mubr.bf16.gmra.mrb[0].mxu0 %v1192
      %v1306 = vpop.f32.mrb[0].mxu0
      %v1307 = vadd.f32 %v1006, %v1306
      %v1308 = vpop.f32.mrb[0].mxu0
      %v1309 = vpop.f32.mrb[0].mxu0
      %v1310 = vadd.f32 %v1009, %v1309
      %v1311 = vpop.f32.mrb[0].mxu0
      %1312 = vmatprep.mubr.bf16.mxu0 0
      %1313 = vmatmul.mubr.bf16.gmra.mrb[0].mxu0 %v1195
      %v1314 = vpop.f32.mrb[0].mxu0
      %v1315 = vadd.f32 %v1014, %v1314
      %v1316 = vpop.f32.mrb[0].mxu0
      %v1317 = vpop.f32.mrb[0].mxu0
      %v1318 = vadd.f32 %v1017, %v1317
      %v1319 = vpop.f32.mrb[0].mxu0
      %1320 = vmatprep.mubr.bf16.mxu0 0
      %1321 = vmatmul.mubr.bf16.gmra.mrb[0].mxu0 %v1198
      %v1322 = vpop.f32.mrb[0].mxu0
      %v1323 = vadd.f32 %v1022, %v1322
      %v1324 = vpop.f32.mrb[0].mxu0
      %v1325 = vpop.f32.mrb[0].mxu0
      %v1326 = vadd.f32 %v1025, %v1325
      %v1327 = vpop.f32.mrb[0].mxu0
      %1328 = vmatprep.mubr.bf16.mxu0 0
      %1329 = vmatmul.mubr.bf16.gmra.mrb[0].mxu0 %v1201
      %v1330 = vpop.f32.mrb[0].mxu0
      %v1331 = vadd.f32 %v1030, %v1330
      %v1332 = vpop.f32.mrb[0].mxu0
      %v1333 = vpop.f32.mrb[0].mxu0
      %v1334 = vadd.f32 %v1033, %v1333
      %v1335 = vpop.f32.mrb[0].mxu0
      %1336 = vmatprep.mubr.bf16.mxu0 0
      %1337 = vmatmul.mubr.bf16.gmra.mrb[0].mxu0 %v1204
      %v1338 = vpop.f32.mrb[0].mxu0
      %v1339 = vadd.f32 %v1038, %v1338
      %v1340 = vpop.f32.mrb[0].mxu0
      %v1341 = vpop.f32.mrb[0].mxu0
      %v1342 = vadd.f32 %v1041, %v1341
      %v1343 = vpop.f32.mrb[0].mxu0
      %1344 = vmatprep.mubr.bf16.mxu0 0
      %1345 = vmatmul.mubr.bf16.gmra.mrb[0].mxu0 %v1207
      %v1346 = vpop.f32.mrb[0].mxu0
      %v1347 = vadd.f32 %v1046, %v1346
      %v1348 = vpop.f32.mrb[0].mxu0
      %v1349 = vpop.f32.mrb[0].mxu0
      %v1350 = vadd.f32 %v1049, %v1349
      %v1351 = vpop.f32.mrb[0].mxu0
      %1352 = vmatprep.mubr.bf16.mxu0 0
      %1353 = vmatmul.mubr.bf16.gmra.mrb[0].mxu0 %v1210
      %v1354 = vpop.f32.mrb[0].mxu0
      %v1355 = vadd.f32 %v1054, %v1354
      %v1356 = vpop.f32.mrb[0].mxu0
      %v1357 = vpop.f32.mrb[0].mxu0
      %v1358 = vadd.f32 %v1057, %v1357
      %v1359 = vpop.f32.mrb[0].mxu0
      %1360 = vmatprep.mubr.bf16.mxu0 0
      %1361 = vmatmul.mubr.bf16.gmra.mrb[0].mxu0 %v1213
      %v1362 = vpop.f32.mrb[0].mxu0
      %v1363 = vadd.f32 %v1062, %v1362
      %v1364 = vpop.f32.mrb[0].mxu0
      %v1365 = vpop.f32.mrb[0].mxu0
      %v1366 = vadd.f32 %v1065, %v1365
      %v1367 = vpop.f32.mrb[0].mxu0
      %1368 = vmatprep.mubr.bf16.mxu0 0
      %1369 = vmatmul.mubr.bf16.gmra.mrb[0].mxu0 %v1216
      %v1370 = vpop.f32.mrb[0].mxu0
      %v1371 = vadd.f32 %v1070, %v1370
      %v1372 = vpop.f32.mrb[0].mxu0
      %v1373 = vpop.f32.mrb[0].mxu0
      %v1374 = vadd.f32 %v1073, %v1373
      %v1375 = vpop.f32.mrb[0].mxu0
      %1376 = vmatprep.mubr.bf16.mxu0 0
      %1377 = vmatmul.mubr.bf16.gmra.mrb[0].mxu0 %v1219
      %v1378 = vpop.f32.mrb[0].mxu0
      %v1379 = vadd.f32 %v1078, %v1378
      %v1380 = vpop.f32.mrb[0].mxu0
      %v1381 = vpop.f32.mrb[0].mxu0
      %v1382 = vadd.f32 %v1081, %v1381
      %v1383 = vpop.f32.mrb[0].mxu0
      %1384 = vdwg.mxu0
      %vm1401 = vcmask 1042432
      %vm1402 = vcmask 1046532
      %vm1403 = vmor %vm1401, %vm1402
      %v1404 = vrot.slane %v365, 5
      %v1405 = vrot.slane %v1404, 4
      %v1406 = vrot.slane %v366, 5
      %v1407 = vsel %vm1403, %v1405, %v1406
      %v1408 = vrot.slane %v1406, 4
      %v1409 = vrot.slane %v367, 5
      %v1410 = vsel %vm1403, %v1408, %v1409
      %v1411 = vrot.slane %v368, 5
      %v1412 = vrot.slane %v1411, 4
      %v1413 = vrot.slane %v369, 5
      %v1414 = vsel %vm1403, %v1412, %v1413
      %v1415 = vrot.slane %v1413, 4
      %v1416 = vrot.slane %v370, 5
      %v1417 = vsel %vm1403, %v1415, %v1416
      %v1418 = vrot.slane %v371, 5
      %v1419 = vrot.slane %v1418, 4
      %v1420 = vrot.slane %v372, 5
      %v1421 = vsel %vm1403, %v1419, %v1420
      %v1422 = vrot.slane %v1420, 4
      %v1423 = vrot.slane %v373, 5
      %v1424 = vsel %vm1403, %v1422, %v1423
      %v1425 = vrot.slane %v374, 5
      %v1426 = vrot.slane %v1425, 4
      %v1427 = vrot.slane %v375, 5
      %v1428 = vsel %vm1403, %v1426, %v1427
      %v1429 = vrot.slane %v1427, 4
      %v1430 = vrot.slane %v376, 5
      %v1431 = vsel %vm1403, %v1429, %v1430
      %v1432 = vrot.slane %v377, 5
      %v1433 = vrot.slane %v1432, 4
      %v1434 = vrot.slane %v378, 5
      %v1435 = vsel %vm1403, %v1433, %v1434
      %v1436 = vrot.slane %v1434, 4
      %v1437 = vrot.slane %v379, 5
      %v1438 = vsel %vm1403, %v1436, %v1437
      %v1439 = vrot.slane %v380, 5
      %v1440 = vrot.slane %v1439, 4
      %v1441 = vrot.slane %v381, 5
      %v1442 = vsel %vm1403, %v1440, %v1441
      %v1443 = vrot.slane %v1441, 4
      %v1444 = vrot.slane %v382, 5
      %v1445 = vsel %vm1403, %v1443, %v1444
      %v1446 = vrot.slane %v383, 5
      %v1447 = vrot.slane %v1446, 4
      %v1448 = vrot.slane %v384, 5
      %v1449 = vsel %vm1403, %v1447, %v1448
      %v1450 = vrot.slane %v1448, 4
      %v1451 = vrot.slane %v385, 5
      %v1452 = vsel %vm1403, %v1450, %v1451
      %v1453 = vrot.slane %v386, 5
      %v1454 = vrot.slane %v1453, 4
      %v1455 = vrot.slane %v387, 5
      %v1456 = vsel %vm1403, %v1454, %v1455
      %v1457 = vrot.slane %v1455, 4
      %v1458 = vrot.slane %v388, 5
      %v1459 = vsel %vm1403, %v1457, %v1458
      %v1460 = vrot.slane %v389, 5
      %v1461 = vrot.slane %v1460, 4
      %v1462 = vrot.slane %v390, 5
      %v1463 = vsel %vm1403, %v1461, %v1462
      %v1464 = vrot.slane %v1462, 4
      %v1465 = vrot.slane %v391, 5
      %v1466 = vsel %vm1403, %v1464, %v1465
      %v1467 = vrot.slane %v392, 5
      %v1468 = vrot.slane %v1467, 4
      %v1469 = vrot.slane %v393, 5
      %v1470 = vsel %vm1403, %v1468, %v1469
      %v1471 = vrot.slane %v1469, 4
      %v1472 = vrot.slane %v394, 5
      %v1473 = vsel %vm1403, %v1471, %v1472
      %v1474 = vrot.slane %v395, 5
      %v1475 = vrot.slane %v1474, 4
      %v1476 = vrot.slane %v396, 5
      %v1477 = vsel %vm1403, %v1475, %v1476
      %v1478 = vrot.slane %v1476, 4
      %v1479 = vrot.slane %v397, 5
      %v1480 = vsel %vm1403, %v1478, %v1479
      %v1481 = vrot.slane %v398, 5
      %v1482 = vrot.slane %v1481, 4
      %v1483 = vrot.slane %v399, 5
      %v1484 = vsel %vm1403, %v1482, %v1483
      %v1485 = vrot.slane %v1483, 4
      %v1486 = vrot.slane %v400, 5
      %v1487 = vsel %vm1403, %v1485, %v1486
      %v1488 = vrot.slane %v401, 5
      %v1489 = vrot.slane %v1488, 4
      %v1490 = vrot.slane %v402, 5
      %v1491 = vsel %vm1403, %v1489, %v1490
      %v1492 = vrot.slane %v1490, 4
      %v1493 = vrot.slane %v403, 5
      %v1494 = vsel %vm1403, %v1492, %v1493
      %v1495 = vrot.slane %v404, 5
      %v1496 = vrot.slane %v1495, 4
      %v1497 = vrot.slane %v405, 5
      %v1498 = vsel %vm1403, %v1496, %v1497
      %v1499 = vrot.slane %v1497, 4
      %v1500 = vrot.slane %v406, 5
      %v1501 = vsel %vm1403, %v1499, %v1500
      %v1502 = vrot.slane %v407, 5
      %v1503 = vrot.slane %v1502, 4
      %v1504 = vrot.slane %v408, 5
      %v1505 = vsel %vm1403, %v1503, %v1504
      %v1506 = vrot.slane %v1504, 4
      %v1507 = vrot.slane %v409, 5
      %v1508 = vsel %vm1403, %v1506, %v1507
      %v1509 = vrot.slane %v410, 5
      %v1510 = vrot.slane %v1509, 4
      %v1511 = vrot.slane %v411, 5
      %v1512 = vsel %vm1403, %v1510, %v1511
      %v1513 = vrot.slane %v1511, 4
      %v1514 = vrot.slane %v412, 5
      %v1515 = vsel %vm1403, %v1513, %v1514
      %s1516 = scalar_lea.vmem %s2, 24
      %v1517 = vld [vmem:[%s1516] sm:$0xf]
      %v1518 = vld [vmem:[%s1516 + $0x4] sm:$0xf]
      %v1519 = vld [vmem:[%s1516 + $0x8] sm:$0x3]
      %v1520 = vunpack.c.l.b16 %v1407
      %v1521 = vunpack.c.l.b16 %v1410
      %v1522 = vunpack.c.l.b16 %v1414
      %v1523 = vunpack.c.l.b16 %v1417
      %v1524 = vunpack.c.l.b16 %v1421
      %v1525 = vunpack.c.l.b16 %v1424
      %v1526 = vunpack.c.l.b16 %v1428
      %v1527 = vunpack.c.l.b16 %v1431
      %v1528 = vunpack.c.l.b16 %v1435
      %v1529 = vunpack.c.l.b16 %v1438
      %v1530 = vunpack.c.l.b16 %v1442
      %v1531 = vunpack.c.l.b16 %v1445
      %v1532 = vunpack.c.l.b16 %v1449
      %v1533 = vunpack.c.l.b16 %v1452
      %v1534 = vunpack.c.l.b16 %v1456
      %v1535 = vunpack.c.l.b16 %v1459
      %v1536 = vunpack.c.l.b16 %v1463
      %v1537 = vunpack.c.l.b16 %v1466
      %v1538 = vunpack.c.l.b16 %v1470
      %v1539 = vunpack.c.l.b16 %v1473
      %v1540 = vunpack.c.l.b16 %v1477
      %v1541 = vunpack.c.l.b16 %v1480
      %v1542 = vunpack.c.l.b16 %v1484
      %v1543 = vunpack.c.l.b16 %v1487
      %v1544 = vunpack.c.l.b16 %v1491
      %v1545 = vunpack.c.l.b16 %v1494
      %v1546 = vunpack.c.l.b16 %v1498
      %v1547 = vunpack.c.l.b16 %v1501
      %v1548 = vunpack.c.l.b16 %v1505
      %v1549 = vunpack.c.l.b16 %v1508
      %v1550 = vunpack.c.l.b16 %v1512
      %v1551 = vunpack.c.l.b16 %v1515
      %v1552 = vpack.c.b16 %v1521, %v1520
      %v1553 = vpack.c.b16 %v1523, %v1522
      %v1554 = vpack.c.b16 %v1525, %v1524
      %v1555 = vpack.c.b16 %v1527, %v1526
      %v1556 = vpack.c.b16 %v1529, %v1528
      %v1557 = vpack.c.b16 %v1531, %v1530
      %v1558 = vpack.c.b16 %v1533, %v1532
      %v1559 = vpack.c.b16 %v1535, %v1534
      %v1560 = vpack.c.b16 %v1537, %v1536
      %v1561 = vpack.c.b16 %v1539, %v1538
      %v1562 = vpack.c.b16 %v1541, %v1540
      %v1563 = vpack.c.b16 %v1543, %v1542
      %v1564 = vpack.c.b16 %v1545, %v1544
      %v1565 = vpack.c.b16 %v1547, %v1546
      %v1566 = vpack.c.b16 %v1549, %v1548
      %v1567 = vpack.c.b16 %v1551, %v1550
      %v1571 = vunpack.c.l.b16 %v1517
      %v1572 = vunpack.c.l.b16 %v1518
      %v1573 = vunpack.c.l.b16 %v1519
      %v1574 = vpack.c.b16 %v1572, %v1571
      %v1575 = vpack.c.b16 %v1573, %v1573
      %v1578 = vsel %vm870, %v1552, 0
      %v1581 = vsel %vm870, %v1553, 0
      %v1584 = vsel %vm870, %v1554, 0
      %v1587 = vsel %vm870, %v1555, 0
      %v1590 = vsel %vm870, %v1556, 0
      %v1593 = vsel %vm870, %v1557, 0
      %v1596 = vsel %vm870, %v1558, 0
      %v1599 = vsel %vm870, %v1559, 0
      %v1602 = vsel %vm870, %v1560, 0
      %v1605 = vsel %vm870, %v1561, 0
      %v1608 = vsel %vm870, %v1562, 0
      %v1611 = vsel %vm870, %v1563, 0
      %v1614 = vsel %vm870, %v1564, 0
      %v1617 = vsel %vm870, %v1565, 0
      %v1620 = vsel %vm870, %v1566, 0
      %v1623 = vsel %vm870, %v1567, 0
      %v1626 = vsel %vm919, %v1575, 0
      %1628 = vmatprep.subr.bf16.mxu0 0
      %1629 = vmatpush1.bf16.msra.mxu0 %v1574
      %1630 = vmatprep.subr.bf16.mxu0 0
      %1631 = vmatpush1.bf16.msra.mxu0 %v1626
      %1632 = vmatprep.subr.bf16.mxu0 0
      %1633 = vmatpush1.bf16.msra.mxu0 0
      %1634 = vmatprep.subr.bf16.mxu0 0
      %1635 = vmatpush1.bf16.msra.mxu0 0
      %1636 = vmatprep.subr.bf16.mxu0 0
      %1637 = vmatpush1.bf16.msra.mxu0 0
      %1638 = vmatprep.subr.bf16.mxu0 0
      %1639 = vmatpush1.bf16.msra.mxu0 0
      %1640 = vmatprep.subr.bf16.mxu0 0
      %1641 = vmatpush1.bf16.msra.mxu0 0
      %1642 = vmatprep.subr.bf16.mxu0 0
      %1643 = vmatpush1.bf16.msra.mxu0 0
      %1644 = vmatprep.subr.bf16.mxu0 0
      %1645 = vmatpush1.bf16.msra.mxu0 0
      %1646 = vmatprep.subr.bf16.mxu0 0
      %1647 = vmatpush1.bf16.msra.mxu0 0
      %1648 = vmatprep.subr.bf16.mxu0 0
      %1649 = vmatpush1.bf16.msra.mxu0 0
      %1650 = vmatprep.subr.bf16.mxu0 0
      %1651 = vmatpush1.bf16.msra.mxu0 0
      %1652 = vmatprep.subr.bf16.mxu0 0
      %1653 = vmatpush1.bf16.msra.mxu0 0
      %1654 = vmatprep.subr.bf16.mxu0 0
      %1655 = vmatpush1.bf16.msra.mxu0 0
      %1656 = vmatprep.subr.bf16.mxu0 0
      %1657 = vmatpush1.bf16.msra.mxu0 0
      %1658 = vmatprep.subr.bf16.mxu0 0
      %1659 = vmatpush1.bf16.msra.mxu0 0
      %1660 = vmatprep.mubr.bf16.mxu0 0
      %1661 = vmatmul.mubr.bf16.gmra.mrb[0].mxu0 %v1578
      %v1662 = vpop.f32.mrb[0].mxu0
      %v1663 = vadd.f32 0.0, %v1662
      %v1664 = vpop.f32.mrb[0].mxu0
      %v1665 = vpop.f32.mrb[0].mxu0
      %v1666 = vadd.f32 0.0, %v1665
      %v1667 = vpop.f32.mrb[0].mxu0
      %1668 = vmatprep.mubr.bf16.mxu0 0
      %1669 = vmatmul.mubr.bf16.gmra.mrb[0].mxu0 %v1581
      %v1670 = vpop.f32.mrb[0].mxu0
      %v1671 = vadd.f32 0.0, %v1670
      %v1672 = vpop.f32.mrb[0].mxu0
      %v1673 = vpop.f32.mrb[0].mxu0
      %v1674 = vadd.f32 0.0, %v1673
      %v1675 = vpop.f32.mrb[0].mxu0
      %1676 = vmatprep.mubr.bf16.mxu0 0
      %1677 = vmatmul.mubr.bf16.gmra.mrb[0].mxu0 %v1584
      %v1678 = vpop.f32.mrb[0].mxu0
      %v1679 = vadd.f32 0.0, %v1678
      %v1680 = vpop.f32.mrb[0].mxu0
      %v1681 = vpop.f32.mrb[0].mxu0
      %v1682 = vadd.f32 0.0, %v1681
      %v1683 = vpop.f32.mrb[0].mxu0
      %1684 = vmatprep.mubr.bf16.mxu0 0
      %1685 = vmatmul.mubr.bf16.gmra.mrb[0].mxu0 %v1587
      %v1686 = vpop.f32.mrb[0].mxu0
      %v1687 = vadd.f32 0.0, %v1686
      %v1688 = vpop.f32.mrb[0].mxu0
      %v1689 = vpop.f32.mrb[0].mxu0
      %v1690 = vadd.f32 0.0, %v1689
      %v1691 = vpop.f32.mrb[0].mxu0
      %1692 = vmatprep.mubr.bf16.mxu0 0
      %1693 = vmatmul.mubr.bf16.gmra.mrb[0].mxu0 %v1590
      %v1694 = vpop.f32.mrb[0].mxu0
      %v1695 = vadd.f32 0.0, %v1694
      %v1696 = vpop.f32.mrb[0].mxu0
      %v1697 = vpop.f32.mrb[0].mxu0
      %v1698 = vadd.f32 0.0, %v1697
      %v1699 = vpop.f32.mrb[0].mxu0
      %1700 = vmatprep.mubr.bf16.mxu0 0
      %1701 = vmatmul.mubr.bf16.gmra.mrb[0].mxu0 %v1593
      %v1702 = vpop.f32.mrb[0].mxu0
      %v1703 = vadd.f32 0.0, %v1702
      %v1704 = vpop.f32.mrb[0].mxu0
      %v1705 = vpop.f32.mrb[0].mxu0
      %v1706 = vadd.f32 0.0, %v1705
      %v1707 = vpop.f32.mrb[0].mxu0
      %1708 = vmatprep.mubr.bf16.mxu0 0
      %1709 = vmatmul.mubr.bf16.gmra.mrb[0].mxu0 %v1596
      %v1710 = vpop.f32.mrb[0].mxu0
      %v1711 = vadd.f32 0.0, %v1710
      %v1712 = vpop.f32.mrb[0].mxu0
      %v1713 = vpop.f32.mrb[0].mxu0
      %v1714 = vadd.f32 0.0, %v1713
      %v1715 = vpop.f32.mrb[0].mxu0
      %1716 = vmatprep.mubr.bf16.mxu0 0
      %1717 = vmatmul.mubr.bf16.gmra.mrb[0].mxu0 %v1599
      %v1718 = vpop.f32.mrb[0].mxu0
      %v1719 = vadd.f32 0.0, %v1718
      %v1720 = vpop.f32.mrb[0].mxu0
      %v1721 = vpop.f32.mrb[0].mxu0
      %v1722 = vadd.f32 0.0, %v1721
      %v1723 = vpop.f32.mrb[0].mxu0
      %1724 = vmatprep.mubr.bf16.mxu0 0
      %1725 = vmatmul.mubr.bf16.gmra.mrb[0].mxu0 %v1602
      %v1726 = vpop.f32.mrb[0].mxu0
      %v1727 = vadd.f32 0.0, %v1726
      %v1728 = vpop.f32.mrb[0].mxu0
      %v1729 = vpop.f32.mrb[0].mxu0
      %v1730 = vadd.f32 0.0, %v1729
      %v1731 = vpop.f32.mrb[0].mxu0
      %1732 = vmatprep.mubr.bf16.mxu0 0
      %1733 = vmatmul.mubr.bf16.gmra.mrb[0].mxu0 %v1605
      %v1734 = vpop.f32.mrb[0].mxu0
      %v1735 = vadd.f32 0.0, %v1734
      %v1736 = vpop.f32.mrb[0].mxu0
      %v1737 = vpop.f32.mrb[0].mxu0
      %v1738 = vadd.f32 0.0, %v1737
      %v1739 = vpop.f32.mrb[0].mxu0
      %1740 = vmatprep.mubr.bf16.mxu0 0
      %1741 = vmatmul.mubr.bf16.gmra.mrb[0].mxu0 %v1608
      %v1742 = vpop.f32.mrb[0].mxu0
      %v1743 = vadd.f32 0.0, %v1742
      %v1744 = vpop.f32.mrb[0].mxu0
      %v1745 = vpop.f32.mrb[0].mxu0
      %v1746 = vadd.f32 0.0, %v1745
      %v1747 = vpop.f32.mrb[0].mxu0
      %1748 = vmatprep.mubr.bf16.mxu0 0
      %1749 = vmatmul.mubr.bf16.gmra.mrb[0].mxu0 %v1611
      %v1750 = vpop.f32.mrb[0].mxu0
      %v1751 = vadd.f32 0.0, %v1750
      %v1752 = vpop.f32.mrb[0].mxu0
      %v1753 = vpop.f32.mrb[0].mxu0
      %v1754 = vadd.f32 0.0, %v1753
      %v1755 = vpop.f32.mrb[0].mxu0
      %1756 = vmatprep.mubr.bf16.mxu0 0
      %1757 = vmatmul.mubr.bf16.gmra.mrb[0].mxu0 %v1614
      %v1758 = vpop.f32.mrb[0].mxu0
      %v1759 = vadd.f32 0.0, %v1758
      %v1760 = vpop.f32.mrb[0].mxu0
      %v1761 = vpop.f32.mrb[0].mxu0
      %v1762 = vadd.f32 0.0, %v1761
      %v1763 = vpop.f32.mrb[0].mxu0
      %1764 = vmatprep.mubr.bf16.mxu0 0
      %1765 = vmatmul.mubr.bf16.gmra.mrb[0].mxu0 %v1617
      %v1766 = vpop.f32.mrb[0].mxu0
      %v1767 = vadd.f32 0.0, %v1766
      %v1768 = vpop.f32.mrb[0].mxu0
      %v1769 = vpop.f32.mrb[0].mxu0
      %v1770 = vadd.f32 0.0, %v1769
      %v1771 = vpop.f32.mrb[0].mxu0
      %1772 = vmatprep.mubr.bf16.mxu0 0
      %1773 = vmatmul.mubr.bf16.gmra.mrb[0].mxu0 %v1620
      %v1774 = vpop.f32.mrb[0].mxu0
      %v1775 = vadd.f32 0.0, %v1774
      %v1776 = vpop.f32.mrb[0].mxu0
      %v1777 = vpop.f32.mrb[0].mxu0
      %v1778 = vadd.f32 0.0, %v1777
      %v1779 = vpop.f32.mrb[0].mxu0
      %1780 = vmatprep.mubr.bf16.mxu0 0
      %1781 = vmatmul.mubr.bf16.gmra.mrb[0].mxu0 %v1623
      %v1782 = vpop.f32.mrb[0].mxu0
      %v1783 = vadd.f32 0.0, %v1782
      %v1784 = vpop.f32.mrb[0].mxu0
      %v1785 = vpop.f32.mrb[0].mxu0
      %v1786 = vadd.f32 0.0, %v1785
      %v1787 = vpop.f32.mrb[0].mxu0
      %1788 = vdwg.mxu0
      %v1789 = vadd.f32 %v1259, %v1663
      %v1790 = vadd.f32 %v1262, %v1666
      %v1791 = vadd.f32 %v1267, %v1671
      %v1792 = vadd.f32 %v1270, %v1674
      %v1793 = vadd.f32 %v1275, %v1679
      %v1794 = vadd.f32 %v1278, %v1682
      %v1795 = vadd.f32 %v1283, %v1687
      %v1796 = vadd.f32 %v1286, %v1690
      %v1797 = vadd.f32 %v1291, %v1695
      %v1798 = vadd.f32 %v1294, %v1698
      %v1799 = vadd.f32 %v1299, %v1703
      %v1800 = vadd.f32 %v1302, %v1706
      %v1801 = vadd.f32 %v1307, %v1711
      %v1802 = vadd.f32 %v1310, %v1714
      %v1803 = vadd.f32 %v1315, %v1719
      %v1804 = vadd.f32 %v1318, %v1722
      %v1805 = vadd.f32 %v1323, %v1727
      %v1806 = vadd.f32 %v1326, %v1730
      %v1807 = vadd.f32 %v1331, %v1735
      %v1808 = vadd.f32 %v1334, %v1738
      %v1809 = vadd.f32 %v1339, %v1743
      %v1810 = vadd.f32 %v1342, %v1746
      %v1811 = vadd.f32 %v1347, %v1751
      %v1812 = vadd.f32 %v1350, %v1754
      %v1813 = vadd.f32 %v1355, %v1759
      %v1814 = vadd.f32 %v1358, %v1762
      %v1815 = vadd.f32 %v1363, %v1767
      %v1816 = vadd.f32 %v1366, %v1770
      %v1817 = vadd.f32 %v1371, %v1775
      %v1818 = vadd.f32 %v1374, %v1778
      %v1819 = vadd.f32 %v1379, %v1783
      %v1820 = vadd.f32 %v1382, %v1786
      %s1821 = scalar_lea.vmem %s2, 36
      %v1822 = vld [vmem:[%s1821] sm:$0xf]
      %v1823 = vld [vmem:[%s1821 + $0x4] sm:$0xf]
      %v1824 = vld [vmem:[%s1821 + $0x8] sm:$0x3]
      %v1827 = vunpack.c.l.b16 %v413
      %v1828 = vunpack.c.l.b16 %v414
      %v1829 = vpack.c.b16 %v1828, %v1827
      %v1833 = vunpack.c.l.b16 %v1822
      %v1834 = vunpack.c.l.b16 %v1823
      %v1835 = vunpack.c.l.b16 %v1824
      %v1836 = vpack.c.b16 %v1834, %v1833
      %v1837 = vpack.c.b16 %v1835, %v1835
      %v1840 = vsel %vm870, %v1829, 0
      %v1843 = vsel %vm919, %v1837, 0
      %1845 = vmatprep.subr.bf16.mxu0 0
      %1846 = vmatpush1.bf16.msra.mxu0 %v1836
      %1847 = vmatprep.subr.bf16.mxu0 0
      %1848 = vmatpush1.bf16.msra.mxu0 %v1843
      %1849 = vmatprep.subr.bf16.mxu0 0
      %1850 = vmatpush1.bf16.msra.mxu0 0
      %1851 = vmatprep.subr.bf16.mxu0 0
      %1852 = vmatpush1.bf16.msra.mxu0 0
      %1853 = vmatprep.subr.bf16.mxu0 0
      %1854 = vmatpush1.bf16.msra.mxu0 0
      %1855 = vmatprep.subr.bf16.mxu0 0
      %1856 = vmatpush1.bf16.msra.mxu0 0
      %1857 = vmatprep.subr.bf16.mxu0 0
      %1858 = vmatpush1.bf16.msra.mxu0 0
      %1859 = vmatprep.subr.bf16.mxu0 0
      %1860 = vmatpush1.bf16.msra.mxu0 0
      %1861 = vmatprep.subr.bf16.mxu0 0
      %1862 = vmatpush1.bf16.msra.mxu0 0
      %1863 = vmatprep.subr.bf16.mxu0 0
      %1864 = vmatpush1.bf16.msra.mxu0 0
      %1865 = vmatprep.subr.bf16.mxu0 0
      %1866 = vmatpush1.bf16.msra.mxu0 0
      %1867 = vmatprep.subr.bf16.mxu0 0
      %1868 = vmatpush1.bf16.msra.mxu0 0
      %1869 = vmatprep.subr.bf16.mxu0 0
      %1870 = vmatpush1.bf16.msra.mxu0 0
      %1871 = vmatprep.subr.bf16.mxu0 0
      %1872 = vmatpush1.bf16.msra.mxu0 0
      %1873 = vmatprep.subr.bf16.mxu0 0
      %1874 = vmatpush1.bf16.msra.mxu0 0
      %1875 = vmatprep.subr.bf16.mxu0 0
      %1876 = vmatpush1.bf16.msra.mxu0 0
      %1877 = vmatprep.mubr.bf16.mxu0 0
      %1878 = vmatmul.mubr.bf16.gmra.mrb[0].mxu0 %v1177
      %v1879 = vpop.f32.mrb[0].mxu0
      %v1880 = vadd.f32 0.0, %v1879
      %v1881 = vpop.f32.mrb[0].mxu0
      %v1882 = vpop.f32.mrb[0].mxu0
      %v1883 = vadd.f32 0.0, %v1882
      %v1884 = vpop.f32.mrb[0].mxu0
      %1885 = vmatprep.mubr.bf16.mxu0 0
      %1886 = vmatmul.mubr.bf16.gmra.mrb[0].mxu0 %v1180
      %v1887 = vpop.f32.mrb[0].mxu0
      %v1888 = vadd.f32 0.0, %v1887
      %v1889 = vpop.f32.mrb[0].mxu0
      %v1890 = vpop.f32.mrb[0].mxu0
      %v1891 = vadd.f32 0.0, %v1890
      %v1892 = vpop.f32.mrb[0].mxu0
      %1893 = vmatprep.mubr.bf16.mxu0 0
      %1894 = vmatmul.mubr.bf16.gmra.mrb[0].mxu0 %v1183
      %v1895 = vpop.f32.mrb[0].mxu0
      %v1896 = vadd.f32 0.0, %v1895
      %v1897 = vpop.f32.mrb[0].mxu0
      %v1898 = vpop.f32.mrb[0].mxu0
      %v1899 = vadd.f32 0.0, %v1898
      %v1900 = vpop.f32.mrb[0].mxu0
      %1901 = vmatprep.mubr.bf16.mxu0 0
      %1902 = vmatmul.mubr.bf16.gmra.mrb[0].mxu0 %v1186
      %v1903 = vpop.f32.mrb[0].mxu0
      %v1904 = vadd.f32 0.0, %v1903
      %v1905 = vpop.f32.mrb[0].mxu0
      %v1906 = vpop.f32.mrb[0].mxu0
      %v1907 = vadd.f32 0.0, %v1906
      %v1908 = vpop.f32.mrb[0].mxu0
      %1909 = vmatprep.mubr.bf16.mxu0 0
      %1910 = vmatmul.mubr.bf16.gmra.mrb[0].mxu0 %v1189
      %v1911 = vpop.f32.mrb[0].mxu0
      %v1912 = vadd.f32 0.0, %v1911
      %v1913 = vpop.f32.mrb[0].mxu0
      %v1914 = vpop.f32.mrb[0].mxu0
      %v1915 = vadd.f32 0.0, %v1914
      %v1916 = vpop.f32.mrb[0].mxu0
      %1917 = vmatprep.mubr.bf16.mxu0 0
      %1918 = vmatmul.mubr.bf16.gmra.mrb[0].mxu0 %v1192
      %v1919 = vpop.f32.mrb[0].mxu0
      %v1920 = vadd.f32 0.0, %v1919
      %v1921 = vpop.f32.mrb[0].mxu0
      %v1922 = vpop.f32.mrb[0].mxu0
      %v1923 = vadd.f32 0.0, %v1922
      %v1924 = vpop.f32.mrb[0].mxu0
      %1925 = vmatprep.mubr.bf16.mxu0 0
      %1926 = vmatmul.mubr.bf16.gmra.mrb[0].mxu0 %v1195
      %v1927 = vpop.f32.mrb[0].mxu0
      %v1928 = vadd.f32 0.0, %v1927
      %v1929 = vpop.f32.mrb[0].mxu0
      %v1930 = vpop.f32.mrb[0].mxu0
      %v1931 = vadd.f32 0.0, %v1930
      %v1932 = vpop.f32.mrb[0].mxu0
      %1933 = vmatprep.mubr.bf16.mxu0 0
      %1934 = vmatmul.mubr.bf16.gmra.mrb[0].mxu0 %v1198
      %v1935 = vpop.f32.mrb[0].mxu0
      %v1936 = vadd.f32 0.0, %v1935
      %v1937 = vpop.f32.mrb[0].mxu0
      %v1938 = vpop.f32.mrb[0].mxu0
      %v1939 = vadd.f32 0.0, %v1938
      %v1940 = vpop.f32.mrb[0].mxu0
      %1941 = vmatprep.mubr.bf16.mxu0 0
      %1942 = vmatmul.mubr.bf16.gmra.mrb[0].mxu0 %v1201
      %v1943 = vpop.f32.mrb[0].mxu0
      %v1944 = vadd.f32 0.0, %v1943
      %v1945 = vpop.f32.mrb[0].mxu0
      %v1946 = vpop.f32.mrb[0].mxu0
      %v1947 = vadd.f32 0.0, %v1946
      %v1948 = vpop.f32.mrb[0].mxu0
      %1949 = vmatprep.mubr.bf16.mxu0 0
      %1950 = vmatmul.mubr.bf16.gmra.mrb[0].mxu0 %v1204
      %v1951 = vpop.f32.mrb[0].mxu0
      %v1952 = vadd.f32 0.0, %v1951
      %v1953 = vpop.f32.mrb[0].mxu0
      %v1954 = vpop.f32.mrb[0].mxu0
      %v1955 = vadd.f32 0.0, %v1954
      %v1956 = vpop.f32.mrb[0].mxu0
      %1957 = vmatprep.mubr.bf16.mxu0 0
      %1958 = vmatmul.mubr.bf16.gmra.mrb[0].mxu0 %v1207
      %v1959 = vpop.f32.mrb[0].mxu0
      %v1960 = vadd.f32 0.0, %v1959
      %v1961 = vpop.f32.mrb[0].mxu0
      %v1962 = vpop.f32.mrb[0].mxu0
      %v1963 = vadd.f32 0.0, %v1962
      %v1964 = vpop.f32.mrb[0].mxu0
      %1965 = vmatprep.mubr.bf16.mxu0 0
      %1966 = vmatmul.mubr.bf16.gmra.mrb[0].mxu0 %v1210
      %v1967 = vpop.f32.mrb[0].mxu0
      %v1968 = vadd.f32 0.0, %v1967
      %v1969 = vpop.f32.mrb[0].mxu0
      %v1970 = vpop.f32.mrb[0].mxu0
      %v1971 = vadd.f32 0.0, %v1970
      %v1972 = vpop.f32.mrb[0].mxu0
      %1973 = vmatprep.mubr.bf16.mxu0 0
      %1974 = vmatmul.mubr.bf16.gmra.mrb[0].mxu0 %v1213
      %v1975 = vpop.f32.mrb[0].mxu0
      %v1976 = vadd.f32 0.0, %v1975
      %v1977 = vpop.f32.mrb[0].mxu0
      %v1978 = vpop.f32.mrb[0].mxu0
      %v1979 = vadd.f32 0.0, %v1978
      %v1980 = vpop.f32.mrb[0].mxu0
      %1981 = vmatprep.mubr.bf16.mxu0 0
      %1982 = vmatmul.mubr.bf16.gmra.mrb[0].mxu0 %v1216
      %v1983 = vpop.f32.mrb[0].mxu0
      %v1984 = vadd.f32 0.0, %v1983
      %v1985 = vpop.f32.mrb[0].mxu0
      %v1986 = vpop.f32.mrb[0].mxu0
      %v1987 = vadd.f32 0.0, %v1986
      %v1988 = vpop.f32.mrb[0].mxu0
      %1989 = vmatprep.mubr.bf16.mxu0 0
      %1990 = vmatmul.mubr.bf16.gmra.mrb[0].mxu0 %v1219
      %v1991 = vpop.f32.mrb[0].mxu0
      %v1992 = vadd.f32 0.0, %v1991
      %v1993 = vpop.f32.mrb[0].mxu0
      %v1994 = vpop.f32.mrb[0].mxu0
      %v1995 = vadd.f32 0.0, %v1994
      %v1996 = vpop.f32.mrb[0].mxu0
      %1997 = vmatprep.mubr.bf16.mxu0 0
      %1998 = vmatmul.mubr.bf16.gmra.mrb[0].mxu0 %v1840
      %v1999 = vpop.f32.mrb[0].mxu0
      %v2000 = vadd.f32 0.0, %v1999
      %v2001 = vpop.f32.mrb[0].mxu0
      %v2002 = vpop.f32.mrb[0].mxu0
      %v2003 = vadd.f32 0.0, %v2002
      %v2004 = vpop.f32.mrb[0].mxu0
      %2005 = vdwg.mxu0
      %v2006 = vadd.f32 %v1789, %v1880
      %v2007 = vadd.f32 %v1790, %v1883
      %v2008 = vadd.f32 %v1791, %v1888
      %v2009 = vadd.f32 %v1792, %v1891
      %v2010 = vadd.f32 %v1793, %v1896
      %v2011 = vadd.f32 %v1794, %v1899
      %v2012 = vadd.f32 %v1795, %v1904
      %v2013 = vadd.f32 %v1796, %v1907
      %v2014 = vadd.f32 %v1797, %v1912
      %v2015 = vadd.f32 %v1798, %v1915
      %v2016 = vadd.f32 %v1799, %v1920
      %v2017 = vadd.f32 %v1800, %v1923
      %v2018 = vadd.f32 %v1801, %v1928
      %v2019 = vadd.f32 %v1802, %v1931
      %v2020 = vadd.f32 %v1803, %v1936
      %v2021 = vadd.f32 %v1804, %v1939
      %v2022 = vadd.f32 %v1805, %v1944
      %v2023 = vadd.f32 %v1806, %v1947
      %v2024 = vadd.f32 %v1807, %v1952
      %v2025 = vadd.f32 %v1808, %v1955
      %v2026 = vadd.f32 %v1809, %v1960
      %v2027 = vadd.f32 %v1810, %v1963
      %v2028 = vadd.f32 %v1811, %v1968
      %v2029 = vadd.f32 %v1812, %v1971
      %v2030 = vadd.f32 %v1813, %v1976
      %v2031 = vadd.f32 %v1814, %v1979
      %v2032 = vadd.f32 %v1815, %v1984
      %v2033 = vadd.f32 %v1816, %v1987
      %v2034 = vadd.f32 %v1817, %v1992
      %v2035 = vadd.f32 %v1818, %v1995
      %v2036 = vadd.f32 %v1819, %v2000
      %v2037 = vadd.f32 %v1820, %v2003
      %v2039 = vshrl.u32 %v413, 16
      %v2041 = vrot.slane %v2039, 4
      %v2042 = vshll.u32 %v413, 16
      %v2044 = vrot.slane %v2042, 5
      %v2045 = vor.u32 %v2041, %v2044
      %v2046 = vrot.slane %v2045, 4
      %v2048 = vshll.u32 %v414, 16
      %v2050 = vrot.slane %v2048, 5
      %v2051 = vsel %vm424, %v2046, %v2050
      %v2052 = vshrl.u32 %v414, 16
      %v2054 = vrot.slane %v2052, 4
      %v2055 = vor.u32 %v2054, %v2050
      %v2056 = vrot.slane %v2055, 4
      %v2058 = vshll.u32 %v415, 16
      %v2060 = vrot.slane %v2058, 5
      %v2061 = vsel %vm424, %v2056, %v2060
      %s2062 = scalar_lea.vmem %s2, 48
      %v2063 = vld [vmem:[%s2062] sm:$0xf]
      %v2064 = vld [vmem:[%s2062 + $0x4] sm:$0xf]
      %v2065 = vld [vmem:[%s2062 + $0x8] sm:$0x3]
      %v2066 = vunpack.c.l.b16 %v2051
      %v2067 = vunpack.c.l.b16 %v2061
      %v2068 = vpack.c.b16 %v2067, %v2066
      %v2072 = vunpack.c.l.b16 %v2063
      %v2073 = vunpack.c.l.b16 %v2064
      %v2074 = vunpack.c.l.b16 %v2065
      %v2075 = vpack.c.b16 %v2073, %v2072
      %v2076 = vpack.c.b16 %v2074, %v2074
      %v2079 = vsel %vm870, %v2068, 0
      %v2082 = vsel %vm919, %v2076, 0
      %2084 = vmatprep.subr.bf16.mxu0 0
      %2085 = vmatpush1.bf16.msra.mxu0 %v2075
      %2086 = vmatprep.subr.bf16.mxu0 0
      %2087 = vmatpush1.bf16.msra.mxu0 %v2082
      %2088 = vmatprep.subr.bf16.mxu0 0
      %2089 = vmatpush1.bf16.msra.mxu0 0
      %2090 = vmatprep.subr.bf16.mxu0 0
      %2091 = vmatpush1.bf16.msra.mxu0 0
      %2092 = vmatprep.subr.bf16.mxu0 0
      %2093 = vmatpush1.bf16.msra.mxu0 0
      %2094 = vmatprep.subr.bf16.mxu0 0
      %2095 = vmatpush1.bf16.msra.mxu0 0
      %2096 = vmatprep.subr.bf16.mxu0 0
      %2097 = vmatpush1.bf16.msra.mxu0 0
      %2098 = vmatprep.subr.bf16.mxu0 0
      %2099 = vmatpush1.bf16.msra.mxu0 0
      %2100 = vmatprep.subr.bf16.mxu0 0
      %2101 = vmatpush1.bf16.msra.mxu0 0
      %2102 = vmatprep.subr.bf16.mxu0 0
      %2103 = vmatpush1.bf16.msra.mxu0 0
      %2104 = vmatprep.subr.bf16.mxu0 0
      %2105 = vmatpush1.bf16.msra.mxu0 0
      %2106 = vmatprep.subr.bf16.mxu0 0
      %2107 = vmatpush1.bf16.msra.mxu0 0
      %2108 = vmatprep.subr.bf16.mxu0 0
      %2109 = vmatpush1.bf16.msra.mxu0 0
      %2110 = vmatprep.subr.bf16.mxu0 0
      %2111 = vmatpush1.bf16.msra.mxu0 0
      %2112 = vmatprep.subr.bf16.mxu0 0
      %2113 = vmatpush1.bf16.msra.mxu0 0
      %2114 = vmatprep.subr.bf16.mxu0 0
      %2115 = vmatpush1.bf16.msra.mxu0 0
      %2116 = vmatprep.mubr.bf16.mxu0 0
      %2117 = vmatmul.mubr.bf16.gmra.mrb[0].mxu0 %v875
      %v2118 = vpop.f32.mrb[0].mxu0
      %v2119 = vadd.f32 0.0, %v2118
      %v2120 = vpop.f32.mrb[0].mxu0
      %v2121 = vpop.f32.mrb[0].mxu0
      %v2122 = vadd.f32 0.0, %v2121
      %v2123 = vpop.f32.mrb[0].mxu0
      %2124 = vmatprep.mubr.bf16.mxu0 0
      %2125 = vmatmul.mubr.bf16.gmra.mrb[0].mxu0 %v878
      %v2126 = vpop.f32.mrb[0].mxu0
      %v2127 = vadd.f32 0.0, %v2126
      %v2128 = vpop.f32.mrb[0].mxu0
      %v2129 = vpop.f32.mrb[0].mxu0
      %v2130 = vadd.f32 0.0, %v2129
      %v2131 = vpop.f32.mrb[0].mxu0
      %2132 = vmatprep.mubr.bf16.mxu0 0
      %2133 = vmatmul.mubr.bf16.gmra.mrb[0].mxu0 %v881
      %v2134 = vpop.f32.mrb[0].mxu0
      %v2135 = vadd.f32 0.0, %v2134
      %v2136 = vpop.f32.mrb[0].mxu0
      %v2137 = vpop.f32.mrb[0].mxu0
      %v2138 = vadd.f32 0.0, %v2137
      %v2139 = vpop.f32.mrb[0].mxu0
      %2140 = vmatprep.mubr.bf16.mxu0 0
      %2141 = vmatmul.mubr.bf16.gmra.mrb[0].mxu0 %v884
      %v2142 = vpop.f32.mrb[0].mxu0
      %v2143 = vadd.f32 0.0, %v2142
      %v2144 = vpop.f32.mrb[0].mxu0
      %v2145 = vpop.f32.mrb[0].mxu0
      %v2146 = vadd.f32 0.0, %v2145
      %v2147 = vpop.f32.mrb[0].mxu0
      %2148 = vmatprep.mubr.bf16.mxu0 0
      %2149 = vmatmul.mubr.bf16.gmra.mrb[0].mxu0 %v887
      %v2150 = vpop.f32.mrb[0].mxu0
      %v2151 = vadd.f32 0.0, %v2150
      %v2152 = vpop.f32.mrb[0].mxu0
      %v2153 = vpop.f32.mrb[0].mxu0
      %v2154 = vadd.f32 0.0, %v2153
      %v2155 = vpop.f32.mrb[0].mxu0
      %2156 = vmatprep.mubr.bf16.mxu0 0
      %2157 = vmatmul.mubr.bf16.gmra.mrb[0].mxu0 %v890
      %v2158 = vpop.f32.mrb[0].mxu0
      %v2159 = vadd.f32 0.0, %v2158
      %v2160 = vpop.f32.mrb[0].mxu0
      %v2161 = vpop.f32.mrb[0].mxu0
      %v2162 = vadd.f32 0.0, %v2161
      %v2163 = vpop.f32.mrb[0].mxu0
      %2164 = vmatprep.mubr.bf16.mxu0 0
      %2165 = vmatmul.mubr.bf16.gmra.mrb[0].mxu0 %v893
      %v2166 = vpop.f32.mrb[0].mxu0
      %v2167 = vadd.f32 0.0, %v2166
      %v2168 = vpop.f32.mrb[0].mxu0
      %v2169 = vpop.f32.mrb[0].mxu0
      %v2170 = vadd.f32 0.0, %v2169
      %v2171 = vpop.f32.mrb[0].mxu0
      %2172 = vmatprep.mubr.bf16.mxu0 0
      %2173 = vmatmul.mubr.bf16.gmra.mrb[0].mxu0 %v896
      %v2174 = vpop.f32.mrb[0].mxu0
      %v2175 = vadd.f32 0.0, %v2174
      %v2176 = vpop.f32.mrb[0].mxu0
      %v2177 = vpop.f32.mrb[0].mxu0
      %v2178 = vadd.f32 0.0, %v2177
      %v2179 = vpop.f32.mrb[0].mxu0
      %2180 = vmatprep.mubr.bf16.mxu0 0
      %2181 = vmatmul.mubr.bf16.gmra.mrb[0].mxu0 %v899
      %v2182 = vpop.f32.mrb[0].mxu0
      %v2183 = vadd.f32 0.0, %v2182
      %v2184 = vpop.f32.mrb[0].mxu0
      %v2185 = vpop.f32.mrb[0].mxu0
      %v2186 = vadd.f32 0.0, %v2185
      %v2187 = vpop.f32.mrb[0].mxu0
      %2188 = vmatprep.mubr.bf16.mxu0 0
      %2189 = vmatmul.mubr.bf16.gmra.mrb[0].mxu0 %v902
      %v2190 = vpop.f32.mrb[0].mxu0
      %v2191 = vadd.f32 0.0, %v2190
      %v2192 = vpop.f32.mrb[0].mxu0
      %v2193 = vpop.f32.mrb[0].mxu0
      %v2194 = vadd.f32 0.0, %v2193
      %v2195 = vpop.f32.mrb[0].mxu0
      %2196 = vmatprep.mubr.bf16.mxu0 0
      %2197 = vmatmul.mubr.bf16.gmra.mrb[0].mxu0 %v905
      %v2198 = vpop.f32.mrb[0].mxu0
      %v2199 = vadd.f32 0.0, %v2198
      %v2200 = vpop.f32.mrb[0].mxu0
      %v2201 = vpop.f32.mrb[0].mxu0
      %v2202 = vadd.f32 0.0, %v2201
      %v2203 = vpop.f32.mrb[0].mxu0
      %2204 = vmatprep.mubr.bf16.mxu0 0
      %2205 = vmatmul.mubr.bf16.gmra.mrb[0].mxu0 %v908
      %v2206 = vpop.f32.mrb[0].mxu0
      %v2207 = vadd.f32 0.0, %v2206
      %v2208 = vpop.f32.mrb[0].mxu0
      %v2209 = vpop.f32.mrb[0].mxu0
      %v2210 = vadd.f32 0.0, %v2209
      %v2211 = vpop.f32.mrb[0].mxu0
      %2212 = vmatprep.mubr.bf16.mxu0 0
      %2213 = vmatmul.mubr.bf16.gmra.mrb[0].mxu0 %v911
      %v2214 = vpop.f32.mrb[0].mxu0
      %v2215 = vadd.f32 0.0, %v2214
      %v2216 = vpop.f32.mrb[0].mxu0
      %v2217 = vpop.f32.mrb[0].mxu0
      %v2218 = vadd.f32 0.0, %v2217
      %v2219 = vpop.f32.mrb[0].mxu0
      %2220 = vmatprep.mubr.bf16.mxu0 0
      %2221 = vmatmul.mubr.bf16.gmra.mrb[0].mxu0 %v914
      %v2222 = vpop.f32.mrb[0].mxu0
      %v2223 = vadd.f32 0.0, %v2222
      %v2224 = vpop.f32.mrb[0].mxu0
      %v2225 = vpop.f32.mrb[0].mxu0
      %v2226 = vadd.f32 0.0, %v2225
      %v2227 = vpop.f32.mrb[0].mxu0
      %2228 = vmatprep.mubr.bf16.mxu0 0
      %2229 = vmatmul.mubr.bf16.gmra.mrb[0].mxu0 %v917
      %v2230 = vpop.f32.mrb[0].mxu0
      %v2231 = vadd.f32 0.0, %v2230
      %v2232 = vpop.f32.mrb[0].mxu0
      %v2233 = vpop.f32.mrb[0].mxu0
      %v2234 = vadd.f32 0.0, %v2233
      %v2235 = vpop.f32.mrb[0].mxu0
      %2236 = vmatprep.mubr.bf16.mxu0 0
      %2237 = vmatmul.mubr.bf16.gmra.mrb[0].mxu0 %v2079
      %v2238 = vpop.f32.mrb[0].mxu0
      %v2239 = vadd.f32 0.0, %v2238
      %v2240 = vpop.f32.mrb[0].mxu0
      %v2241 = vpop.f32.mrb[0].mxu0
      %v2242 = vadd.f32 0.0, %v2241
      %v2243 = vpop.f32.mrb[0].mxu0
      %2244 = vdwg.mxu0
      %v2245 = vadd.f32 %v2006, %v2119
      %v2246 = vadd.f32 %v2007, %v2122
      %v2247 = vadd.f32 %v2008, %v2127
      %v2248 = vadd.f32 %v2009, %v2130
      %v2249 = vadd.f32 %v2010, %v2135
      %v2250 = vadd.f32 %v2011, %v2138
      %v2251 = vadd.f32 %v2012, %v2143
      %v2252 = vadd.f32 %v2013, %v2146
      %v2253 = vadd.f32 %v2014, %v2151
      %v2254 = vadd.f32 %v2015, %v2154
      %v2255 = vadd.f32 %v2016, %v2159
      %v2256 = vadd.f32 %v2017, %v2162
      %v2257 = vadd.f32 %v2018, %v2167
      %v2258 = vadd.f32 %v2019, %v2170
      %v2259 = vadd.f32 %v2020, %v2175
      %v2260 = vadd.f32 %v2021, %v2178
      %v2261 = vadd.f32 %v2022, %v2183
      %v2262 = vadd.f32 %v2023, %v2186
      %v2263 = vadd.f32 %v2024, %v2191
      %v2264 = vadd.f32 %v2025, %v2194
      %v2265 = vadd.f32 %v2026, %v2199
      %v2266 = vadd.f32 %v2027, %v2202
      %v2267 = vadd.f32 %v2028, %v2207
      %v2268 = vadd.f32 %v2029, %v2210
      %v2269 = vadd.f32 %v2030, %v2215
      %v2270 = vadd.f32 %v2031, %v2218
      %v2271 = vadd.f32 %v2032, %v2223
      %v2272 = vadd.f32 %v2033, %v2226
      %v2273 = vadd.f32 %v2034, %v2231
      %v2274 = vadd.f32 %v2035, %v2234
      %v2275 = vadd.f32 %v2036, %v2239
      %v2276 = vadd.f32 %v2037, %v2242
      %v2278 = vrot.slane %v413, 5
      %v2279 = vrot.slane %v2278, 4
      %v2280 = vrot.slane %v414, 5
      %v2281 = vsel %vm1403, %v2279, %v2280
      %v2282 = vrot.slane %v2280, 4
      %v2283 = vrot.slane %v415, 5
      %v2284 = vsel %vm1403, %v2282, %v2283
      %s2285 = scalar_lea.vmem %s2, 60
      %v2286 = vld [vmem:[%s2285] sm:$0xf]
      %v2287 = vld [vmem:[%s2285 + $0x4] sm:$0xf]
      %v2288 = vld [vmem:[%s2285 + $0x8] sm:$0x3]
      %v2289 = vunpack.c.l.b16 %v2281
      %v2290 = vunpack.c.l.b16 %v2284
      %v2291 = vpack.c.b16 %v2290, %v2289
      %v2295 = vunpack.c.l.b16 %v2286
      %v2296 = vunpack.c.l.b16 %v2287
      %v2297 = vunpack.c.l.b16 %v2288
      %v2298 = vpack.c.b16 %v2296, %v2295
      %v2299 = vpack.c.b16 %v2297, %v2297
      %v2302 = vsel %vm870, %v2291, 0
      %v2305 = vsel %vm919, %v2299, 0
      %2307 = vmatprep.subr.bf16.mxu0 0
      %2308 = vmatpush1.bf16.msra.mxu0 %v2298
      %2309 = vmatprep.subr.bf16.mxu0 0
      %2310 = vmatpush1.bf16.msra.mxu0 %v2305
      %2311 = vmatprep.subr.bf16.mxu0 0
      %2312 = vmatpush1.bf16.msra.mxu0 0
      %2313 = vmatprep.subr.bf16.mxu0 0
      %2314 = vmatpush1.bf16.msra.mxu0 0
      %2315 = vmatprep.subr.bf16.mxu0 0
      %2316 = vmatpush1.bf16.msra.mxu0 0
      %2317 = vmatprep.subr.bf16.mxu0 0
      %2318 = vmatpush1.bf16.msra.mxu0 0
      %2319 = vmatprep.subr.bf16.mxu0 0
      %2320 = vmatpush1.bf16.msra.mxu0 0
      %2321 = vmatprep.subr.bf16.mxu0 0
      %2322 = vmatpush1.bf16.msra.mxu0 0
      %2323 = vmatprep.subr.bf16.mxu0 0
      %2324 = vmatpush1.bf16.msra.mxu0 0
      %2325 = vmatprep.subr.bf16.mxu0 0
      %2326 = vmatpush1.bf16.msra.mxu0 0
      %2327 = vmatprep.subr.bf16.mxu0 0
      %2328 = vmatpush1.bf16.msra.mxu0 0
      %2329 = vmatprep.subr.bf16.mxu0 0
      %2330 = vmatpush1.bf16.msra.mxu0 0
      %2331 = vmatprep.subr.bf16.mxu0 0
      %2332 = vmatpush1.bf16.msra.mxu0 0
      %2333 = vmatprep.subr.bf16.mxu0 0
      %2334 = vmatpush1.bf16.msra.mxu0 0
      %2335 = vmatprep.subr.bf16.mxu0 0
      %2336 = vmatpush1.bf16.msra.mxu0 0
      %2337 = vmatprep.subr.bf16.mxu0 0
      %2338 = vmatpush1.bf16.msra.mxu0 0
      %2339 = vmatprep.mubr.bf16.mxu0 0
      %2340 = vmatmul.mubr.bf16.gmra.mrb[0].mxu0 %v1581
      %v2341 = vpop.f32.mrb[0].mxu0
      %v2342 = vadd.f32 0.0, %v2341
      %v2343 = vpop.f32.mrb[0].mxu0
      %v2344 = vpop.f32.mrb[0].mxu0
      %v2345 = vadd.f32 0.0, %v2344
      %v2346 = vpop.f32.mrb[0].mxu0
      %2347 = vmatprep.mubr.bf16.mxu0 0
      %2348 = vmatmul.mubr.bf16.gmra.mrb[0].mxu0 %v1584
      %v2349 = vpop.f32.mrb[0].mxu0
      %v2350 = vadd.f32 0.0, %v2349
      %v2351 = vpop.f32.mrb[0].mxu0
      %v2352 = vpop.f32.mrb[0].mxu0
      %v2353 = vadd.f32 0.0, %v2352
      %v2354 = vpop.f32.mrb[0].mxu0
      %2355 = vmatprep.mubr.bf16.mxu0 0
      %2356 = vmatmul.mubr.bf16.gmra.mrb[0].mxu0 %v1587
      %v2357 = vpop.f32.mrb[0].mxu0
      %v2358 = vadd.f32 0.0, %v2357
      %v2359 = vpop.f32.mrb[0].mxu0
      %v2360 = vpop.f32.mrb[0].mxu0
      %v2361 = vadd.f32 0.0, %v2360
      %v2362 = vpop.f32.mrb[0].mxu0
      %2363 = vmatprep.mubr.bf16.mxu0 0
      %2364 = vmatmul.mubr.bf16.gmra.mrb[0].mxu0 %v1590
      %v2365 = vpop.f32.mrb[0].mxu0
      %v2366 = vadd.f32 0.0, %v2365
      %v2367 = vpop.f32.mrb[0].mxu0
      %v2368 = vpop.f32.mrb[0].mxu0
      %v2369 = vadd.f32 0.0, %v2368
      %v2370 = vpop.f32.mrb[0].mxu0
      %2371 = vmatprep.mubr.bf16.mxu0 0
      %2372 = vmatmul.mubr.bf16.gmra.mrb[0].mxu0 %v1593
      %v2373 = vpop.f32.mrb[0].mxu0
      %v2374 = vadd.f32 0.0, %v2373
      %v2375 = vpop.f32.mrb[0].mxu0
      %v2376 = vpop.f32.mrb[0].mxu0
      %v2377 = vadd.f32 0.0, %v2376
      %v2378 = vpop.f32.mrb[0].mxu0
      %2379 = vmatprep.mubr.bf16.mxu0 0
      %2380 = vmatmul.mubr.bf16.gmra.mrb[0].mxu0 %v1596
      %v2381 = vpop.f32.mrb[0].mxu0
      %v2382 = vadd.f32 0.0, %v2381
      %v2383 = vpop.f32.mrb[0].mxu0
      %v2384 = vpop.f32.mrb[0].mxu0
      %v2385 = vadd.f32 0.0, %v2384
      %v2386 = vpop.f32.mrb[0].mxu0
      %2387 = vmatprep.mubr.bf16.mxu0 0
      %2388 = vmatmul.mubr.bf16.gmra.mrb[0].mxu0 %v1599
      %v2389 = vpop.f32.mrb[0].mxu0
      %v2390 = vadd.f32 0.0, %v2389
      %v2391 = vpop.f32.mrb[0].mxu0
      %v2392 = vpop.f32.mrb[0].mxu0
      %v2393 = vadd.f32 0.0, %v2392
      %v2394 = vpop.f32.mrb[0].mxu0
      %2395 = vmatprep.mubr.bf16.mxu0 0
      %2396 = vmatmul.mubr.bf16.gmra.mrb[0].mxu0 %v1602
      %v2397 = vpop.f32.mrb[0].mxu0
      %v2398 = vadd.f32 0.0, %v2397
      %v2399 = vpop.f32.mrb[0].mxu0
      %v2400 = vpop.f32.mrb[0].mxu0
      %v2401 = vadd.f32 0.0, %v2400
      %v2402 = vpop.f32.mrb[0].mxu0
      %2403 = vmatprep.mubr.bf16.mxu0 0
      %2404 = vmatmul.mubr.bf16.gmra.mrb[0].mxu0 %v1605
      %v2405 = vpop.f32.mrb[0].mxu0
      %v2406 = vadd.f32 0.0, %v2405
      %v2407 = vpop.f32.mrb[0].mxu0
      %v2408 = vpop.f32.mrb[0].mxu0
      %v2409 = vadd.f32 0.0, %v2408
      %v2410 = vpop.f32.mrb[0].mxu0
      %2411 = vmatprep.mubr.bf16.mxu0 0
      %2412 = vmatmul.mubr.bf16.gmra.mrb[0].mxu0 %v1608
      %v2413 = vpop.f32.mrb[0].mxu0
      %v2414 = vadd.f32 0.0, %v2413
      %v2415 = vpop.f32.mrb[0].mxu0
      %v2416 = vpop.f32.mrb[0].mxu0
      %v2417 = vadd.f32 0.0, %v2416
      %v2418 = vpop.f32.mrb[0].mxu0
      %2419 = vmatprep.mubr.bf16.mxu0 0
      %2420 = vmatmul.mubr.bf16.gmra.mrb[0].mxu0 %v1611
      %v2421 = vpop.f32.mrb[0].mxu0
      %v2422 = vadd.f32 0.0, %v2421
      %v2423 = vpop.f32.mrb[0].mxu0
      %v2424 = vpop.f32.mrb[0].mxu0
      %v2425 = vadd.f32 0.0, %v2424
      %v2426 = vpop.f32.mrb[0].mxu0
      %2427 = vmatprep.mubr.bf16.mxu0 0
      %2428 = vmatmul.mubr.bf16.gmra.mrb[0].mxu0 %v1614
      %v2429 = vpop.f32.mrb[0].mxu0
      %v2430 = vadd.f32 0.0, %v2429
      %v2431 = vpop.f32.mrb[0].mxu0
      %v2432 = vpop.f32.mrb[0].mxu0
      %v2433 = vadd.f32 0.0, %v2432
      %v2434 = vpop.f32.mrb[0].mxu0
      %2435 = vmatprep.mubr.bf16.mxu0 0
      %2436 = vmatmul.mubr.bf16.gmra.mrb[0].mxu0 %v1617
      %v2437 = vpop.f32.mrb[0].mxu0
      %v2438 = vadd.f32 0.0, %v2437
      %v2439 = vpop.f32.mrb[0].mxu0
      %v2440 = vpop.f32.mrb[0].mxu0
      %v2441 = vadd.f32 0.0, %v2440
      %v2442 = vpop.f32.mrb[0].mxu0
      %2443 = vmatprep.mubr.bf16.mxu0 0
      %2444 = vmatmul.mubr.bf16.gmra.mrb[0].mxu0 %v1620
      %v2445 = vpop.f32.mrb[0].mxu0
      %v2446 = vadd.f32 0.0, %v2445
      %v2447 = vpop.f32.mrb[0].mxu0
      %v2448 = vpop.f32.mrb[0].mxu0
      %v2449 = vadd.f32 0.0, %v2448
      %v2450 = vpop.f32.mrb[0].mxu0
      %2451 = vmatprep.mubr.bf16.mxu0 0
      %2452 = vmatmul.mubr.bf16.gmra.mrb[0].mxu0 %v1623
      %v2453 = vpop.f32.mrb[0].mxu0
      %v2454 = vadd.f32 0.0, %v2453
      %v2455 = vpop.f32.mrb[0].mxu0
      %v2456 = vpop.f32.mrb[0].mxu0
      %v2457 = vadd.f32 0.0, %v2456
      %v2458 = vpop.f32.mrb[0].mxu0
      %2459 = vmatprep.mubr.bf16.mxu0 0
      %2460 = vmatmul.mubr.bf16.gmra.mrb[0].mxu0 %v2302
      %v2461 = vpop.f32.mrb[0].mxu0
      %v2462 = vadd.f32 0.0, %v2461
      %v2463 = vpop.f32.mrb[0].mxu0
      %v2464 = vpop.f32.mrb[0].mxu0
      %v2465 = vadd.f32 0.0, %v2464
      %v2466 = vpop.f32.mrb[0].mxu0
      %2467 = vdwg.mxu0
      %v2468 = vadd.f32 %v2245, %v2342
      %v2469 = vadd.f32 %v2246, %v2345
      %v2470 = vadd.f32 %v2247, %v2350
      %v2471 = vadd.f32 %v2248, %v2353
      %v2472 = vadd.f32 %v2249, %v2358
      %v2473 = vadd.f32 %v2250, %v2361
      %v2474 = vadd.f32 %v2251, %v2366
      %v2475 = vadd.f32 %v2252, %v2369
      %v2476 = vadd.f32 %v2253, %v2374
      %v2477 = vadd.f32 %v2254, %v2377
      %v2478 = vadd.f32 %v2255, %v2382
      %v2479 = vadd.f32 %v2256, %v2385
      %v2480 = vadd.f32 %v2257, %v2390
      %v2481 = vadd.f32 %v2258, %v2393
      %v2482 = vadd.f32 %v2259, %v2398
      %v2483 = vadd.f32 %v2260, %v2401
      %v2484 = vadd.f32 %v2261, %v2406
      %v2485 = vadd.f32 %v2262, %v2409
      %v2486 = vadd.f32 %v2263, %v2414
      %v2487 = vadd.f32 %v2264, %v2417
      %v2488 = vadd.f32 %v2265, %v2422
      %v2489 = vadd.f32 %v2266, %v2425
      %v2490 = vadd.f32 %v2267, %v2430
      %v2491 = vadd.f32 %v2268, %v2433
      %v2492 = vadd.f32 %v2269, %v2438
      %v2493 = vadd.f32 %v2270, %v2441
      %v2494 = vadd.f32 %v2271, %v2446
      %v2495 = vadd.f32 %v2272, %v2449
      %v2496 = vadd.f32 %v2273, %v2454
      %v2497 = vadd.f32 %v2274, %v2457
      %v2498 = vadd.f32 %v2275, %v2462
      %v2499 = vadd.f32 %v2276, %v2465
      %s2500 = scalar_lea.vmem %s2, 72
      %v2501 = vld [vmem:[%s2500] sm:$0xf]
      %v2502 = vld [vmem:[%s2500 + $0x4] sm:$0xf]
      %v2503 = vld [vmem:[%s2500 + $0x8] sm:$0x3]
      %v2506 = vunpack.c.l.b16 %v416
      %v2507 = vunpack.c.l.b16 %v417
      %v2508 = vpack.c.b16 %v2507, %v2506
      %v2512 = vunpack.c.l.b16 %v2501
      %v2513 = vunpack.c.l.b16 %v2502
      %v2514 = vunpack.c.l.b16 %v2503
      %v2515 = vpack.c.b16 %v2513, %v2512
      %v2516 = vpack.c.b16 %v2514, %v2514
      %v2519 = vsel %vm870, %v2508, 0
      %v2522 = vsel %vm919, %v2516, 0
      %2524 = vmatprep.subr.bf16.mxu0 0
      %2525 = vmatpush1.bf16.msra.mxu0 %v2515
      %2526 = vmatprep.subr.bf16.mxu0 0
      %2527 = vmatpush1.bf16.msra.mxu0 %v2522
      %2528 = vmatprep.subr.bf16.mxu0 0
      %2529 = vmatpush1.bf16.msra.mxu0 0
      %2530 = vmatprep.subr.bf16.mxu0 0
      %2531 = vmatpush1.bf16.msra.mxu0 0
      %2532 = vmatprep.subr.bf16.mxu0 0
      %2533 = vmatpush1.bf16.msra.mxu0 0
      %2534 = vmatprep.subr.bf16.mxu0 0
      %2535 = vmatpush1.bf16.msra.mxu0 0
      %2536 = vmatprep.subr.bf16.mxu0 0
      %2537 = vmatpush1.bf16.msra.mxu0 0
      %2538 = vmatprep.subr.bf16.mxu0 0
      %2539 = vmatpush1.bf16.msra.mxu0 0
      %2540 = vmatprep.subr.bf16.mxu0 0
      %2541 = vmatpush1.bf16.msra.mxu0 0
      %2542 = vmatprep.subr.bf16.mxu0 0
      %2543 = vmatpush1.bf16.msra.mxu0 0
      %2544 = vmatprep.subr.bf16.mxu0 0
      %2545 = vmatpush1.bf16.msra.mxu0 0
      %2546 = vmatprep.subr.bf16.mxu0 0
      %2547 = vmatpush1.bf16.msra.mxu0 0
      %2548 = vmatprep.subr.bf16.mxu0 0
      %2549 = vmatpush1.bf16.msra.mxu0 0
      %2550 = vmatprep.subr.bf16.mxu0 0
      %2551 = vmatpush1.bf16.msra.mxu0 0
      %2552 = vmatprep.subr.bf16.mxu0 0
      %2553 = vmatpush1.bf16.msra.mxu0 0
      %2554 = vmatprep.subr.bf16.mxu0 0
      %2555 = vmatpush1.bf16.msra.mxu0 0
      %2556 = vmatprep.mubr.bf16.mxu0 0
      %2557 = vmatmul.mubr.bf16.gmra.mrb[0].mxu0 %v1180
      %v2558 = vpop.f32.mrb[0].mxu0
      %v2559 = vadd.f32 0.0, %v2558
      %v2560 = vpop.f32.mrb[0].mxu0
      %v2561 = vpop.f32.mrb[0].mxu0
      %v2562 = vadd.f32 0.0, %v2561
      %v2563 = vpop.f32.mrb[0].mxu0
      %2564 = vmatprep.mubr.bf16.mxu0 0
      %2565 = vmatmul.mubr.bf16.gmra.mrb[0].mxu0 %v1183
      %v2566 = vpop.f32.mrb[0].mxu0
      %v2567 = vadd.f32 0.0, %v2566
      %v2568 = vpop.f32.mrb[0].mxu0
      %v2569 = vpop.f32.mrb[0].mxu0
      %v2570 = vadd.f32 0.0, %v2569
      %v2571 = vpop.f32.mrb[0].mxu0
      %2572 = vmatprep.mubr.bf16.mxu0 0
      %2573 = vmatmul.mubr.bf16.gmra.mrb[0].mxu0 %v1186
      %v2574 = vpop.f32.mrb[0].mxu0
      %v2575 = vadd.f32 0.0, %v2574
      %v2576 = vpop.f32.mrb[0].mxu0
      %v2577 = vpop.f32.mrb[0].mxu0
      %v2578 = vadd.f32 0.0, %v2577
      %v2579 = vpop.f32.mrb[0].mxu0
      %2580 = vmatprep.mubr.bf16.mxu0 0
      %2581 = vmatmul.mubr.bf16.gmra.mrb[0].mxu0 %v1189
      %v2582 = vpop.f32.mrb[0].mxu0
      %v2583 = vadd.f32 0.0, %v2582
      %v2584 = vpop.f32.mrb[0].mxu0
      %v2585 = vpop.f32.mrb[0].mxu0
      %v2586 = vadd.f32 0.0, %v2585
      %v2587 = vpop.f32.mrb[0].mxu0
      %2588 = vmatprep.mubr.bf16.mxu0 0
      %2589 = vmatmul.mubr.bf16.gmra.mrb[0].mxu0 %v1192
      %v2590 = vpop.f32.mrb[0].mxu0
      %v2591 = vadd.f32 0.0, %v2590
      %v2592 = vpop.f32.mrb[0].mxu0
      %v2593 = vpop.f32.mrb[0].mxu0
      %v2594 = vadd.f32 0.0, %v2593
      %v2595 = vpop.f32.mrb[0].mxu0
      %2596 = vmatprep.mubr.bf16.mxu0 0
      %2597 = vmatmul.mubr.bf16.gmra.mrb[0].mxu0 %v1195
      %v2598 = vpop.f32.mrb[0].mxu0
      %v2599 = vadd.f32 0.0, %v2598
      %v2600 = vpop.f32.mrb[0].mxu0
      %v2601 = vpop.f32.mrb[0].mxu0
      %v2602 = vadd.f32 0.0, %v2601
      %v2603 = vpop.f32.mrb[0].mxu0
      %2604 = vmatprep.mubr.bf16.mxu0 0
      %2605 = vmatmul.mubr.bf16.gmra.mrb[0].mxu0 %v1198
      %v2606 = vpop.f32.mrb[0].mxu0
      %v2607 = vadd.f32 0.0, %v2606
      %v2608 = vpop.f32.mrb[0].mxu0
      %v2609 = vpop.f32.mrb[0].mxu0
      %v2610 = vadd.f32 0.0, %v2609
      %v2611 = vpop.f32.mrb[0].mxu0
      %2612 = vmatprep.mubr.bf16.mxu0 0
      %2613 = vmatmul.mubr.bf16.gmra.mrb[0].mxu0 %v1201
      %v2614 = vpop.f32.mrb[0].mxu0
      %v2615 = vadd.f32 0.0, %v2614
      %v2616 = vpop.f32.mrb[0].mxu0
      %v2617 = vpop.f32.mrb[0].mxu0
      %v2618 = vadd.f32 0.0, %v2617
      %v2619 = vpop.f32.mrb[0].mxu0
      %2620 = vmatprep.mubr.bf16.mxu0 0
      %2621 = vmatmul.mubr.bf16.gmra.mrb[0].mxu0 %v1204
      %v2622 = vpop.f32.mrb[0].mxu0
      %v2623 = vadd.f32 0.0, %v2622
      %v2624 = vpop.f32.mrb[0].mxu0
      %v2625 = vpop.f32.mrb[0].mxu0
      %v2626 = vadd.f32 0.0, %v2625
      %v2627 = vpop.f32.mrb[0].mxu0
      %2628 = vmatprep.mubr.bf16.mxu0 0
      %2629 = vmatmul.mubr.bf16.gmra.mrb[0].mxu0 %v1207
      %v2630 = vpop.f32.mrb[0].mxu0
      %v2631 = vadd.f32 0.0, %v2630
      %v2632 = vpop.f32.mrb[0].mxu0
      %v2633 = vpop.f32.mrb[0].mxu0
      %v2634 = vadd.f32 0.0, %v2633
      %v2635 = vpop.f32.mrb[0].mxu0
      %2636 = vmatprep.mubr.bf16.mxu0 0
      %2637 = vmatmul.mubr.bf16.gmra.mrb[0].mxu0 %v1210
      %v2638 = vpop.f32.mrb[0].mxu0
      %v2639 = vadd.f32 0.0, %v2638
      %v2640 = vpop.f32.mrb[0].mxu0
      %v2641 = vpop.f32.mrb[0].mxu0
      %v2642 = vadd.f32 0.0, %v2641
      %v2643 = vpop.f32.mrb[0].mxu0
      %2644 = vmatprep.mubr.bf16.mxu0 0
      %2645 = vmatmul.mubr.bf16.gmra.mrb[0].mxu0 %v1213
      %v2646 = vpop.f32.mrb[0].mxu0
      %v2647 = vadd.f32 0.0, %v2646
      %v2648 = vpop.f32.mrb[0].mxu0
      %v2649 = vpop.f32.mrb[0].mxu0
      %v2650 = vadd.f32 0.0, %v2649
      %v2651 = vpop.f32.mrb[0].mxu0
      %2652 = vmatprep.mubr.bf16.mxu0 0
      %2653 = vmatmul.mubr.bf16.gmra.mrb[0].mxu0 %v1216
      %v2654 = vpop.f32.mrb[0].mxu0
      %v2655 = vadd.f32 0.0, %v2654
      %v2656 = vpop.f32.mrb[0].mxu0
      %v2657 = vpop.f32.mrb[0].mxu0
      %v2658 = vadd.f32 0.0, %v2657
      %v2659 = vpop.f32.mrb[0].mxu0
      %2660 = vmatprep.mubr.bf16.mxu0 0
      %2661 = vmatmul.mubr.bf16.gmra.mrb[0].mxu0 %v1219
      %v2662 = vpop.f32.mrb[0].mxu0
      %v2663 = vadd.f32 0.0, %v2662
      %v2664 = vpop.f32.mrb[0].mxu0
      %v2665 = vpop.f32.mrb[0].mxu0
      %v2666 = vadd.f32 0.0, %v2665
      %v2667 = vpop.f32.mrb[0].mxu0
      %2668 = vmatprep.mubr.bf16.mxu0 0
      %2669 = vmatmul.mubr.bf16.gmra.mrb[0].mxu0 %v1840
      %v2670 = vpop.f32.mrb[0].mxu0
      %v2671 = vadd.f32 0.0, %v2670
      %v2672 = vpop.f32.mrb[0].mxu0
      %v2673 = vpop.f32.mrb[0].mxu0
      %v2674 = vadd.f32 0.0, %v2673
      %v2675 = vpop.f32.mrb[0].mxu0
      %2676 = vmatprep.mubr.bf16.mxu0 0
      %2677 = vmatmul.mubr.bf16.gmra.mrb[0].mxu0 %v2519
      %v2678 = vpop.f32.mrb[0].mxu0
      %v2679 = vadd.f32 0.0, %v2678
      %v2680 = vpop.f32.mrb[0].mxu0
      %v2681 = vpop.f32.mrb[0].mxu0
      %v2682 = vadd.f32 0.0, %v2681
      %v2683 = vpop.f32.mrb[0].mxu0
      %2684 = vdwg.mxu0
      %v2685 = vadd.f32 %v2468, %v2559
      %v2686 = vadd.f32 %v2469, %v2562
      %v2687 = vadd.f32 %v2470, %v2567
      %v2688 = vadd.f32 %v2471, %v2570
      %v2689 = vadd.f32 %v2472, %v2575
      %v2690 = vadd.f32 %v2473, %v2578
      %v2691 = vadd.f32 %v2474, %v2583
      %v2692 = vadd.f32 %v2475, %v2586
      %v2693 = vadd.f32 %v2476, %v2591
      %v2694 = vadd.f32 %v2477, %v2594
      %v2695 = vadd.f32 %v2478, %v2599
      %v2696 = vadd.f32 %v2479, %v2602
      %v2697 = vadd.f32 %v2480, %v2607
      %v2698 = vadd.f32 %v2481, %v2610
      %v2699 = vadd.f32 %v2482, %v2615
      %v2700 = vadd.f32 %v2483, %v2618
      %v2701 = vadd.f32 %v2484, %v2623
      %v2702 = vadd.f32 %v2485, %v2626
      %v2703 = vadd.f32 %v2486, %v2631
      %v2704 = vadd.f32 %v2487, %v2634
      %v2705 = vadd.f32 %v2488, %v2639
      %v2706 = vadd.f32 %v2489, %v2642
      %v2707 = vadd.f32 %v2490, %v2647
      %v2708 = vadd.f32 %v2491, %v2650
      %v2709 = vadd.f32 %v2492, %v2655
      %v2710 = vadd.f32 %v2493, %v2658
      %v2711 = vadd.f32 %v2494, %v2663
      %v2712 = vadd.f32 %v2495, %v2666
      %v2713 = vadd.f32 %v2496, %v2671
      %v2714 = vadd.f32 %v2497, %v2674
      %v2715 = vadd.f32 %v2498, %v2679
      %v2716 = vadd.f32 %v2499, %v2682
      %v2718 = vshrl.u32 %v416, 16
      %v2720 = vrot.slane %v2718, 4
      %v2721 = vshll.u32 %v416, 16
      %v2723 = vrot.slane %v2721, 5
      %v2724 = vor.u32 %v2720, %v2723
      %v2725 = vrot.slane %v2724, 4
      %v2727 = vshll.u32 %v417, 16
      %v2729 = vrot.slane %v2727, 5
      %v2730 = vsel %vm424, %v2725, %v2729
      %v2731 = vshrl.u32 %v417, 16
      %v2733 = vrot.slane %v2731, 4
      %v2734 = vor.u32 %v2733, %v2729
      %v2735 = vrot.slane %v2734, 4
      %v2737 = vshll.u32 %v418, 16
      %v2739 = vrot.slane %v2737, 5
      %v2740 = vsel %vm424, %v2735, %v2739
      %s2741 = scalar_lea.vmem %s2, 84
      %v2742 = vld [vmem:[%s2741] sm:$0xf]
      %v2743 = vld [vmem:[%s2741 + $0x4] sm:$0xf]
      %v2744 = vld [vmem:[%s2741 + $0x8] sm:$0x3]
      %v2745 = vunpack.c.l.b16 %v2730
      %v2746 = vunpack.c.l.b16 %v2740
      %v2747 = vpack.c.b16 %v2746, %v2745
      %v2751 = vunpack.c.l.b16 %v2742
      %v2752 = vunpack.c.l.b16 %v2743
      %v2753 = vunpack.c.l.b16 %v2744
      %v2754 = vpack.c.b16 %v2752, %v2751
      %v2755 = vpack.c.b16 %v2753, %v2753
      %v2758 = vsel %vm870, %v2747, 0
      %v2761 = vsel %vm919, %v2755, 0
      %2763 = vmatprep.subr.bf16.mxu0 0
      %2764 = vmatpush1.bf16.msra.mxu0 %v2754
      %2765 = vmatprep.subr.bf16.mxu0 0
      %2766 = vmatpush1.bf16.msra.mxu0 %v2761
      %2767 = vmatprep.subr.bf16.mxu0 0
      %2768 = vmatpush1.bf16.msra.mxu0 0
      %2769 = vmatprep.subr.bf16.mxu0 0
      %2770 = vmatpush1.bf16.msra.mxu0 0
      %2771 = vmatprep.subr.bf16.mxu0 0
      %2772 = vmatpush1.bf16.msra.mxu0 0
      %2773 = vmatprep.subr.bf16.mxu0 0
      %2774 = vmatpush1.bf16.msra.mxu0 0
      %2775 = vmatprep.subr.bf16.mxu0 0
      %2776 = vmatpush1.bf16.msra.mxu0 0
      %2777 = vmatprep.subr.bf16.mxu0 0
      %2778 = vmatpush1.bf16.msra.mxu0 0
      %2779 = vmatprep.subr.bf16.mxu0 0
      %2780 = vmatpush1.bf16.msra.mxu0 0
      %2781 = vmatprep.subr.bf16.mxu0 0
      %2782 = vmatpush1.bf16.msra.mxu0 0
      %2783 = vmatprep.subr.bf16.mxu0 0
      %2784 = vmatpush1.bf16.msra.mxu0 0
      %2785 = vmatprep.subr.bf16.mxu0 0
      %2786 = vmatpush1.bf16.msra.mxu0 0
      %2787 = vmatprep.subr.bf16.mxu0 0
      %2788 = vmatpush1.bf16.msra.mxu0 0
      %2789 = vmatprep.subr.bf16.mxu0 0
      %2790 = vmatpush1.bf16.msra.mxu0 0
      %2791 = vmatprep.subr.bf16.mxu0 0
      %2792 = vmatpush1.bf16.msra.mxu0 0
      %2793 = vmatprep.subr.bf16.mxu0 0
      %2794 = vmatpush1.bf16.msra.mxu0 0
      %2795 = vmatprep.mubr.bf16.mxu0 0
      %2796 = vmatmul.mubr.bf16.gmra.mrb[0].mxu0 %v878
      %v2797 = vpop.f32.mrb[0].mxu0
      %v2798 = vadd.f32 0.0, %v2797
      %v2799 = vpop.f32.mrb[0].mxu0
      %v2800 = vpop.f32.mrb[0].mxu0
      %v2801 = vadd.f32 0.0, %v2800
      %v2802 = vpop.f32.mrb[0].mxu0
      %2803 = vmatprep.mubr.bf16.mxu0 0
      %2804 = vmatmul.mubr.bf16.gmra.mrb[0].mxu0 %v881
      %v2805 = vpop.f32.mrb[0].mxu0
      %v2806 = vadd.f32 0.0, %v2805
      %v2807 = vpop.f32.mrb[0].mxu0
      %v2808 = vpop.f32.mrb[0].mxu0
      %v2809 = vadd.f32 0.0, %v2808
      %v2810 = vpop.f32.mrb[0].mxu0
      %2811 = vmatprep.mubr.bf16.mxu0 0
      %2812 = vmatmul.mubr.bf16.gmra.mrb[0].mxu0 %v884
      %v2813 = vpop.f32.mrb[0].mxu0
      %v2814 = vadd.f32 0.0, %v2813
      %v2815 = vpop.f32.mrb[0].mxu0
      %v2816 = vpop.f32.mrb[0].mxu0
      %v2817 = vadd.f32 0.0, %v2816
      %v2818 = vpop.f32.mrb[0].mxu0
      %2819 = vmatprep.mubr.bf16.mxu0 0
      %2820 = vmatmul.mubr.bf16.gmra.mrb[0].mxu0 %v887
      %v2821 = vpop.f32.mrb[0].mxu0
      %v2822 = vadd.f32 0.0, %v2821
      %v2823 = vpop.f32.mrb[0].mxu0
      %v2824 = vpop.f32.mrb[0].mxu0
      %v2825 = vadd.f32 0.0, %v2824
      %v2826 = vpop.f32.mrb[0].mxu0
      %2827 = vmatprep.mubr.bf16.mxu0 0
      %2828 = vmatmul.mubr.bf16.gmra.mrb[0].mxu0 %v890
      %v2829 = vpop.f32.mrb[0].mxu0
      %v2830 = vadd.f32 0.0, %v2829
      %v2831 = vpop.f32.mrb[0].mxu0
      %v2832 = vpop.f32.mrb[0].mxu0
      %v2833 = vadd.f32 0.0, %v2832
      %v2834 = vpop.f32.mrb[0].mxu0
      %2835 = vmatprep.mubr.bf16.mxu0 0
      %2836 = vmatmul.mubr.bf16.gmra.mrb[0].mxu0 %v893
      %v2837 = vpop.f32.mrb[0].mxu0
      %v2838 = vadd.f32 0.0, %v2837
      %v2839 = vpop.f32.mrb[0].mxu0
      %v2840 = vpop.f32.mrb[0].mxu0
      %v2841 = vadd.f32 0.0, %v2840
      %v2842 = vpop.f32.mrb[0].mxu0
      %2843 = vmatprep.mubr.bf16.mxu0 0
      %2844 = vmatmul.mubr.bf16.gmra.mrb[0].mxu0 %v896
      %v2845 = vpop.f32.mrb[0].mxu0
      %v2846 = vadd.f32 0.0, %v2845
      %v2847 = vpop.f32.mrb[0].mxu0
      %v2848 = vpop.f32.mrb[0].mxu0
      %v2849 = vadd.f32 0.0, %v2848
      %v2850 = vpop.f32.mrb[0].mxu0
      %2851 = vmatprep.mubr.bf16.mxu0 0
      %2852 = vmatmul.mubr.bf16.gmra.mrb[0].mxu0 %v899
      %v2853 = vpop.f32.mrb[0].mxu0
      %v2854 = vadd.f32 0.0, %v2853
      %v2855 = vpop.f32.mrb[0].mxu0
      %v2856 = vpop.f32.mrb[0].mxu0
      %v2857 = vadd.f32 0.0, %v2856
      %v2858 = vpop.f32.mrb[0].mxu0
      %2859 = vmatprep.mubr.bf16.mxu0 0
      %2860 = vmatmul.mubr.bf16.gmra.mrb[0].mxu0 %v902
      %v2861 = vpop.f32.mrb[0].mxu0
      %v2862 = vadd.f32 0.0, %v2861
      %v2863 = vpop.f32.mrb[0].mxu0
      %v2864 = vpop.f32.mrb[0].mxu0
      %v2865 = vadd.f32 0.0, %v2864
      %v2866 = vpop.f32.mrb[0].mxu0
      %2867 = vmatprep.mubr.bf16.mxu0 0
      %2868 = vmatmul.mubr.bf16.gmra.mrb[0].mxu0 %v905
      %v2869 = vpop.f32.mrb[0].mxu0
      %v2870 = vadd.f32 0.0, %v2869
      %v2871 = vpop.f32.mrb[0].mxu0
      %v2872 = vpop.f32.mrb[0].mxu0
      %v2873 = vadd.f32 0.0, %v2872
      %v2874 = vpop.f32.mrb[0].mxu0
      %2875 = vmatprep.mubr.bf16.mxu0 0
      %2876 = vmatmul.mubr.bf16.gmra.mrb[0].mxu0 %v908
      %v2877 = vpop.f32.mrb[0].mxu0
      %v2878 = vadd.f32 0.0, %v2877
      %v2879 = vpop.f32.mrb[0].mxu0
      %v2880 = vpop.f32.mrb[0].mxu0
      %v2881 = vadd.f32 0.0, %v2880
      %v2882 = vpop.f32.mrb[0].mxu0
      %2883 = vmatprep.mubr.bf16.mxu0 0
      %2884 = vmatmul.mubr.bf16.gmra.mrb[0].mxu0 %v911
      %v2885 = vpop.f32.mrb[0].mxu0
      %v2886 = vadd.f32 0.0, %v2885
      %v2887 = vpop.f32.mrb[0].mxu0
      %v2888 = vpop.f32.mrb[0].mxu0
      %v2889 = vadd.f32 0.0, %v2888
      %v2890 = vpop.f32.mrb[0].mxu0
      %2891 = vmatprep.mubr.bf16.mxu0 0
      %2892 = vmatmul.mubr.bf16.gmra.mrb[0].mxu0 %v914
      %v2893 = vpop.f32.mrb[0].mxu0
      %v2894 = vadd.f32 0.0, %v2893
      %v2895 = vpop.f32.mrb[0].mxu0
      %v2896 = vpop.f32.mrb[0].mxu0
      %v2897 = vadd.f32 0.0, %v2896
      %v2898 = vpop.f32.mrb[0].mxu0
      %2899 = vmatprep.mubr.bf16.mxu0 0
      %2900 = vmatmul.mubr.bf16.gmra.mrb[0].mxu0 %v917
      %v2901 = vpop.f32.mrb[0].mxu0
      %v2902 = vadd.f32 0.0, %v2901
      %v2903 = vpop.f32.mrb[0].mxu0
      %v2904 = vpop.f32.mrb[0].mxu0
      %v2905 = vadd.f32 0.0, %v2904
      %v2906 = vpop.f32.mrb[0].mxu0
      %2907 = vmatprep.mubr.bf16.mxu0 0
      %2908 = vmatmul.mubr.bf16.gmra.mrb[0].mxu0 %v2079
      %v2909 = vpop.f32.mrb[0].mxu0
      %v2910 = vadd.f32 0.0, %v2909
      %v2911 = vpop.f32.mrb[0].mxu0
      %v2912 = vpop.f32.mrb[0].mxu0
      %v2913 = vadd.f32 0.0, %v2912
      %v2914 = vpop.f32.mrb[0].mxu0
      %2915 = vmatprep.mubr.bf16.mxu0 0
      %2916 = vmatmul.mubr.bf16.gmra.mrb[0].mxu0 %v2758
      %v2917 = vpop.f32.mrb[0].mxu0
      %v2918 = vadd.f32 0.0, %v2917
      %v2919 = vpop.f32.mrb[0].mxu0
      %v2920 = vpop.f32.mrb[0].mxu0
      %v2921 = vadd.f32 0.0, %v2920
      %v2922 = vpop.f32.mrb[0].mxu0
      %2923 = vdwg.mxu0
      %v2924 = vadd.f32 %v2685, %v2798
      %v2925 = vadd.f32 %v2686, %v2801
      %v2926 = vadd.f32 %v2687, %v2806
      %v2927 = vadd.f32 %v2688, %v2809
      %v2928 = vadd.f32 %v2689, %v2814
      %v2929 = vadd.f32 %v2690, %v2817
      %v2930 = vadd.f32 %v2691, %v2822
      %v2931 = vadd.f32 %v2692, %v2825
      %v2932 = vadd.f32 %v2693, %v2830
      %v2933 = vadd.f32 %v2694, %v2833
      %v2934 = vadd.f32 %v2695, %v2838
      %v2935 = vadd.f32 %v2696, %v2841
      %v2936 = vadd.f32 %v2697, %v2846
      %v2937 = vadd.f32 %v2698, %v2849
      %v2938 = vadd.f32 %v2699, %v2854
      %v2939 = vadd.f32 %v2700, %v2857
      %v2940 = vadd.f32 %v2701, %v2862
      %v2941 = vadd.f32 %v2702, %v2865
      %v2942 = vadd.f32 %v2703, %v2870
      %v2943 = vadd.f32 %v2704, %v2873
      %v2944 = vadd.f32 %v2705, %v2878
      %v2945 = vadd.f32 %v2706, %v2881
      %v2946 = vadd.f32 %v2707, %v2886
      %v2947 = vadd.f32 %v2708, %v2889
      %v2948 = vadd.f32 %v2709, %v2894
      %v2949 = vadd.f32 %v2710, %v2897
      %v2950 = vadd.f32 %v2711, %v2902
      %v2951 = vadd.f32 %v2712, %v2905
      %v2952 = vadd.f32 %v2713, %v2910
      %v2953 = vadd.f32 %v2714, %v2913
      %v2954 = vadd.f32 %v2715, %v2918
      %v2955 = vadd.f32 %v2716, %v2921
      %v2957 = vrot.slane %v416, 5
      %v2958 = vrot.slane %v2957, 4
      %v2959 = vrot.slane %v417, 5
      %v2960 = vsel %vm1403, %v2958, %v2959
      %v2961 = vrot.slane %v2959, 4
      %v2962 = vrot.slane %v418, 5
      %v2963 = vsel %vm1403, %v2961, %v2962
      %s2964 = scalar_lea.vmem %s2, 96
      %v2965 = vld [vmem:[%s2964] sm:$0xf]
      %v2966 = vld [vmem:[%s2964 + $0x4] sm:$0xf]
      %v2967 = vld [vmem:[%s2964 + $0x8] sm:$0x3]
      %v2968 = vunpack.c.l.b16 %v2960
      %v2969 = vunpack.c.l.b16 %v2963
      %v2970 = vpack.c.b16 %v2969, %v2968
      %v2974 = vunpack.c.l.b16 %v2965
      %v2975 = vunpack.c.l.b16 %v2966
      %v2976 = vunpack.c.l.b16 %v2967
      %v2977 = vpack.c.b16 %v2975, %v2974
      %v2978 = vpack.c.b16 %v2976, %v2976
      %v2981 = vsel %vm870, %v2970, 0
      %v2984 = vsel %vm919, %v2978, 0
      %2986 = vmatprep.subr.bf16.mxu0 0
      %2987 = vmatpush1.bf16.msra.mxu0 %v2977
      %2988 = vmatprep.subr.bf16.mxu0 0
      %2989 = vmatpush1.bf16.msra.mxu0 %v2984
      %2990 = vmatprep.subr.bf16.mxu0 0
      %2991 = vmatpush1.bf16.msra.mxu0 0
      %2992 = vmatprep.subr.bf16.mxu0 0
      %2993 = vmatpush1.bf16.msra.mxu0 0
      %2994 = vmatprep.subr.bf16.mxu0 0
      %2995 = vmatpush1.bf16.msra.mxu0 0
      %2996 = vmatprep.subr.bf16.mxu0 0
      %2997 = vmatpush1.bf16.msra.mxu0 0
      %2998 = vmatprep.subr.bf16.mxu0 0
      %2999 = vmatpush1.bf16.msra.mxu0 0
      %3000 = vmatprep.subr.bf16.mxu0 0
      %3001 = vmatpush1.bf16.msra.mxu0 0
      %3002 = vmatprep.subr.bf16.mxu0 0
      %3003 = vmatpush1.bf16.msra.mxu0 0
      %3004 = vmatprep.subr.bf16.mxu0 0
      %3005 = vmatpush1.bf16.msra.mxu0 0
      %3006 = vmatprep.subr.bf16.mxu0 0
      %3007 = vmatpush1.bf16.msra.mxu0 0
      %3008 = vmatprep.subr.bf16.mxu0 0
      %3009 = vmatpush1.bf16.msra.mxu0 0
      %3010 = vmatprep.subr.bf16.mxu0 0
      %3011 = vmatpush1.bf16.msra.mxu0 0
      %3012 = vmatprep.subr.bf16.mxu0 0
      %3013 = vmatpush1.bf16.msra.mxu0 0
      %3014 = vmatprep.subr.bf16.mxu0 0
      %3015 = vmatpush1.bf16.msra.mxu0 0
      %3016 = vmatprep.subr.bf16.mxu0 0
      %3017 = vmatpush1.bf16.msra.mxu0 0
      %3018 = vmatprep.mubr.bf16.mxu0 0
      %3019 = vmatmul.mubr.bf16.gmra.mrb[0].mxu0 %v1584
      %v3020 = vpop.f32.mrb[0].mxu0
      %v3021 = vadd.f32 0.0, %v3020
      %v3022 = vpop.f32.mrb[0].mxu0
      %v3023 = vpop.f32.mrb[0].mxu0
      %v3024 = vadd.f32 0.0, %v3023
      %v3025 = vpop.f32.mrb[0].mxu0
      %3026 = vmatprep.mubr.bf16.mxu0 0
      %3027 = vmatmul.mubr.bf16.gmra.mrb[0].mxu0 %v1587
      %v3028 = vpop.f32.mrb[0].mxu0
      %v3029 = vadd.f32 0.0, %v3028
      %v3030 = vpop.f32.mrb[0].mxu0
      %v3031 = vpop.f32.mrb[0].mxu0
      %v3032 = vadd.f32 0.0, %v3031
      %v3033 = vpop.f32.mrb[0].mxu0
      %3034 = vmatprep.mubr.bf16.mxu0 0
      %3035 = vmatmul.mubr.bf16.gmra.mrb[0].mxu0 %v1590
      %v3036 = vpop.f32.mrb[0].mxu0
      %v3037 = vadd.f32 0.0, %v3036
      %v3038 = vpop.f32.mrb[0].mxu0
      %v3039 = vpop.f32.mrb[0].mxu0
      %v3040 = vadd.f32 0.0, %v3039
      %v3041 = vpop.f32.mrb[0].mxu0
      %3042 = vmatprep.mubr.bf16.mxu0 0
      %3043 = vmatmul.mubr.bf16.gmra.mrb[0].mxu0 %v1593
      %v3044 = vpop.f32.mrb[0].mxu0
      %v3045 = vadd.f32 0.0, %v3044
      %v3046 = vpop.f32.mrb[0].mxu0
      %v3047 = vpop.f32.mrb[0].mxu0
      %v3048 = vadd.f32 0.0, %v3047
      %v3049 = vpop.f32.mrb[0].mxu0
      %3050 = vmatprep.mubr.bf16.mxu0 0
      %3051 = vmatmul.mubr.bf16.gmra.mrb[0].mxu0 %v1596
      %v3052 = vpop.f32.mrb[0].mxu0
      %v3053 = vadd.f32 0.0, %v3052
      %v3054 = vpop.f32.mrb[0].mxu0
      %v3055 = vpop.f32.mrb[0].mxu0
      %v3056 = vadd.f32 0.0, %v3055
      %v3057 = vpop.f32.mrb[0].mxu0
      %3058 = vmatprep.mubr.bf16.mxu0 0
      %3059 = vmatmul.mubr.bf16.gmra.mrb[0].mxu0 %v1599
      %v3060 = vpop.f32.mrb[0].mxu0
      %v3061 = vadd.f32 0.0, %v3060
      %v3062 = vpop.f32.mrb[0].mxu0
      %v3063 = vpop.f32.mrb[0].mxu0
      %v3064 = vadd.f32 0.0, %v3063
      %v3065 = vpop.f32.mrb[0].mxu0
      %3066 = vmatprep.mubr.bf16.mxu0 0
      %3067 = vmatmul.mubr.bf16.gmra.mrb[0].mxu0 %v1602
      %v3068 = vpop.f32.mrb[0].mxu0
      %v3069 = vadd.f32 0.0, %v3068
      %v3070 = vpop.f32.mrb[0].mxu0
      %v3071 = vpop.f32.mrb[0].mxu0
      %v3072 = vadd.f32 0.0, %v3071
      %v3073 = vpop.f32.mrb[0].mxu0
      %3074 = vmatprep.mubr.bf16.mxu0 0
      %3075 = vmatmul.mubr.bf16.gmra.mrb[0].mxu0 %v1605
      %v3076 = vpop.f32.mrb[0].mxu0
      %v3077 = vadd.f32 0.0, %v3076
      %v3078 = vpop.f32.mrb[0].mxu0
      %v3079 = vpop.f32.mrb[0].mxu0
      %v3080 = vadd.f32 0.0, %v3079
      %v3081 = vpop.f32.mrb[0].mxu0
      %3082 = vmatprep.mubr.bf16.mxu0 0
      %3083 = vmatmul.mubr.bf16.gmra.mrb[0].mxu0 %v1608
      %v3084 = vpop.f32.mrb[0].mxu0
      %v3085 = vadd.f32 0.0, %v3084
      %v3086 = vpop.f32.mrb[0].mxu0
      %v3087 = vpop.f32.mrb[0].mxu0
      %v3088 = vadd.f32 0.0, %v3087
      %v3089 = vpop.f32.mrb[0].mxu0
      %3090 = vmatprep.mubr.bf16.mxu0 0
      %3091 = vmatmul.mubr.bf16.gmra.mrb[0].mxu0 %v1611
      %v3092 = vpop.f32.mrb[0].mxu0
      %v3093 = vadd.f32 0.0, %v3092
      %v3094 = vpop.f32.mrb[0].mxu0
      %v3095 = vpop.f32.mrb[0].mxu0
      %v3096 = vadd.f32 0.0, %v3095
      %v3097 = vpop.f32.mrb[0].mxu0
      %3098 = vmatprep.mubr.bf16.mxu0 0
      %3099 = vmatmul.mubr.bf16.gmra.mrb[0].mxu0 %v1614
      %v3100 = vpop.f32.mrb[0].mxu0
      %v3101 = vadd.f32 0.0, %v3100
      %v3102 = vpop.f32.mrb[0].mxu0
      %v3103 = vpop.f32.mrb[0].mxu0
      %v3104 = vadd.f32 0.0, %v3103
      %v3105 = vpop.f32.mrb[0].mxu0
      %3106 = vmatprep.mubr.bf16.mxu0 0
      %3107 = vmatmul.mubr.bf16.gmra.mrb[0].mxu0 %v1617
      %v3108 = vpop.f32.mrb[0].mxu0
      %v3109 = vadd.f32 0.0, %v3108
      %v3110 = vpop.f32.mrb[0].mxu0
      %v3111 = vpop.f32.mrb[0].mxu0
      %v3112 = vadd.f32 0.0, %v3111
      %v3113 = vpop.f32.mrb[0].mxu0
      %3114 = vmatprep.mubr.bf16.mxu0 0
      %3115 = vmatmul.mubr.bf16.gmra.mrb[0].mxu0 %v1620
      %v3116 = vpop.f32.mrb[0].mxu0
      %v3117 = vadd.f32 0.0, %v3116
      %v3118 = vpop.f32.mrb[0].mxu0
      %v3119 = vpop.f32.mrb[0].mxu0
      %v3120 = vadd.f32 0.0, %v3119
      %v3121 = vpop.f32.mrb[0].mxu0
      %3122 = vmatprep.mubr.bf16.mxu0 0
      %3123 = vmatmul.mubr.bf16.gmra.mrb[0].mxu0 %v1623
      %v3124 = vpop.f32.mrb[0].mxu0
      %v3125 = vadd.f32 0.0, %v3124
      %v3126 = vpop.f32.mrb[0].mxu0
      %v3127 = vpop.f32.mrb[0].mxu0
      %v3128 = vadd.f32 0.0, %v3127
      %v3129 = vpop.f32.mrb[0].mxu0
      %3130 = vmatprep.mubr.bf16.mxu0 0
      %3131 = vmatmul.mubr.bf16.gmra.mrb[0].mxu0 %v2302
      %v3132 = vpop.f32.mrb[0].mxu0
      %v3133 = vadd.f32 0.0, %v3132
      %v3134 = vpop.f32.mrb[0].mxu0
      %v3135 = vpop.f32.mrb[0].mxu0
      %v3136 = vadd.f32 0.0, %v3135
      %v3137 = vpop.f32.mrb[0].mxu0
      %3138 = vmatprep.mubr.bf16.mxu0 0
      %3139 = vmatmul.mubr.bf16.gmra.mrb[0].mxu0 %v2981
      %v3140 = vpop.f32.mrb[0].mxu0
      %v3141 = vadd.f32 0.0, %v3140
      %v3142 = vpop.f32.mrb[0].mxu0
      %v3143 = vpop.f32.mrb[0].mxu0
      %v3144 = vadd.f32 0.0, %v3143
      %v3145 = vpop.f32.mrb[0].mxu0
      %3146 = vdwg.mxu0
      %v3147 = vadd.f32 %v2924, %v3021
      %v3148 = vadd.f32 %v2925, %v3024
      %v3149 = vadd.f32 %v2926, %v3029
      %v3150 = vadd.f32 %v2927, %v3032
      %v3151 = vadd.f32 %v2928, %v3037
      %v3152 = vadd.f32 %v2929, %v3040
      %v3153 = vadd.f32 %v2930, %v3045
      %v3154 = vadd.f32 %v2931, %v3048
      %v3155 = vadd.f32 %v2932, %v3053
      %v3156 = vadd.f32 %v2933, %v3056
      %v3157 = vadd.f32 %v2934, %v3061
      %v3158 = vadd.f32 %v2935, %v3064
      %v3159 = vadd.f32 %v2936, %v3069
      %v3160 = vadd.f32 %v2937, %v3072
      %v3161 = vadd.f32 %v2938, %v3077
      %v3162 = vadd.f32 %v2939, %v3080
      %v3163 = vadd.f32 %v2940, %v3085
      %v3164 = vadd.f32 %v2941, %v3088
      %v3165 = vadd.f32 %v2942, %v3093
      %v3166 = vadd.f32 %v2943, %v3096
      %v3167 = vadd.f32 %v2944, %v3101
      %v3168 = vadd.f32 %v2945, %v3104
      %v3169 = vadd.f32 %v2946, %v3109
      %v3170 = vadd.f32 %v2947, %v3112
      %v3171 = vadd.f32 %v2948, %v3117
      %v3172 = vadd.f32 %v2949, %v3120
      %v3173 = vadd.f32 %v2950, %v3125
      %v3174 = vadd.f32 %v2951, %v3128
      %v3175 = vadd.f32 %v2952, %v3133
      %v3176 = vadd.f32 %v2953, %v3136
      %v3177 = vadd.f32 %v2954, %v3141
      %v3178 = vadd.f32 %v2955, %v3144
      %v3179 = vld [vmem:[%s3] sm:$0x1]
      %v3181 = vlaneseq
      %v3182 = vshrl.u32 %v3181, 7
      %v3183 = vsub.s32 0, %v3182
      %v3184 = vrot.slane %v3179, %v3183
      %v3186 = vadd.f32 %v3147, %v3184
      %v3187 = vadd.f32 %v3148, %v3184
      %v3188 = vadd.f32 %v3149, %v3184
      %v3189 = vadd.f32 %v3150, %v3184
      %v3190 = vadd.f32 %v3151, %v3184
      %v3191 = vadd.f32 %v3152, %v3184
      %v3192 = vadd.f32 %v3153, %v3184
      %v3193 = vadd.f32 %v3154, %v3184
      %v3194 = vadd.f32 %v3155, %v3184
      %v3195 = vadd.f32 %v3156, %v3184
      %v3196 = vadd.f32 %v3157, %v3184
      %v3197 = vadd.f32 %v3158, %v3184
      %v3198 = vadd.f32 %v3159, %v3184
      %v3199 = vadd.f32 %v3160, %v3184
      %v3200 = vadd.f32 %v3161, %v3184
      %v3201 = vadd.f32 %v3162, %v3184
      %v3202 = vadd.f32 %v3163, %v3184
      %v3203 = vadd.f32 %v3164, %v3184
      %v3204 = vadd.f32 %v3165, %v3184
      %v3205 = vadd.f32 %v3166, %v3184
      %v3206 = vadd.f32 %v3167, %v3184
      %v3207 = vadd.f32 %v3168, %v3184
      %v3208 = vadd.f32 %v3169, %v3184
      %v3209 = vadd.f32 %v3170, %v3184
      %v3210 = vadd.f32 %v3171, %v3184
      %v3211 = vadd.f32 %v3172, %v3184
      %v3212 = vadd.f32 %v3173, %v3184
      %v3213 = vadd.f32 %v3174, %v3184
      %v3214 = vadd.f32 %v3175, %v3184
      %v3215 = vadd.f32 %v3176, %v3184
      %v3216 = vadd.f32 %v3177, %v3184
      %v3217 = vadd.f32 %v3178, %v3184
      %vm3218 = vcmp.gt.f32.partialorder %v3186, 0.0
      %vm3219 = vcmp.gt.f32.partialorder %v3187, 0.0
      %vm3220 = vcmp.gt.f32.partialorder %v3188, 0.0
      %vm3221 = vcmp.gt.f32.partialorder %v3189, 0.0
      %vm3222 = vcmp.gt.f32.partialorder %v3190, 0.0
      %vm3223 = vcmp.gt.f32.partialorder %v3191, 0.0
      %vm3224 = vcmp.gt.f32.partialorder %v3192, 0.0
      %vm3225 = vcmp.gt.f32.partialorder %v3193, 0.0
      %vm3226 = vcmp.gt.f32.partialorder %v3194, 0.0
      %vm3227 = vcmp.gt.f32.partialorder %v3195, 0.0
      %vm3228 = vcmp.gt.f32.partialorder %v3196, 0.0
      %vm3229 = vcmp.gt.f32.partialorder %v3197, 0.0
      %vm3230 = vcmp.gt.f32.partialorder %v3198, 0.0
      %vm3231 = vcmp.gt.f32.partialorder %v3199, 0.0
      %vm3232 = vcmp.gt.f32.partialorder %v3200, 0.0
      %vm3233 = vcmp.gt.f32.partialorder %v3201, 0.0
      %vm3234 = vcmp.gt.f32.partialorder %v3202, 0.0
      %vm3235 = vcmp.gt.f32.partialorder %v3203, 0.0
      %vm3236 = vcmp.gt.f32.partialorder %v3204, 0.0
      %vm3237 = vcmp.gt.f32.partialorder %v3205, 0.0
      %vm3238 = vcmp.gt.f32.partialorder %v3206, 0.0
      %vm3239 = vcmp.gt.f32.partialorder %v3207, 0.0
      %vm3240 = vcmp.gt.f32.partialorder %v3208, 0.0
      %vm3241 = vcmp.gt.f32.partialorder %v3209, 0.0
      %vm3242 = vcmp.gt.f32.partialorder %v3210, 0.0
      %vm3243 = vcmp.gt.f32.partialorder %v3211, 0.0
      %vm3244 = vcmp.gt.f32.partialorder %v3212, 0.0
      %vm3245 = vcmp.gt.f32.partialorder %v3213, 0.0
      %vm3246 = vcmp.gt.f32.partialorder %v3214, 0.0
      %vm3247 = vcmp.gt.f32.partialorder %v3215, 0.0
      %vm3248 = vcmp.gt.f32.partialorder %v3216, 0.0
      %vm3249 = vcmp.gt.f32.partialorder %v3217, 0.0
      %v3250 = vmul.f32 %v3186, 0.01
      %v3251 = vmul.f32 %v3187, 0.01
      %v3252 = vmul.f32 %v3188, 0.01
      %v3253 = vmul.f32 %v3189, 0.01
      %v3254 = vmul.f32 %v3190, 0.01
      %v3255 = vmul.f32 %v3191, 0.01
      %v3256 = vmul.f32 %v3192, 0.01
      %v3257 = vmul.f32 %v3193, 0.01
      %v3258 = vmul.f32 %v3194, 0.01
      %v3259 = vmul.f32 %v3195, 0.01
      %v3260 = vmul.f32 %v3196, 0.01
      %v3261 = vmul.f32 %v3197, 0.01
      %v3262 = vmul.f32 %v3198, 0.01
      %v3263 = vmul.f32 %v3199, 0.01
      %v3264 = vmul.f32 %v3200, 0.01
      %v3265 = vmul.f32 %v3201, 0.01
      %v3266 = vmul.f32 %v3202, 0.01
      %v3267 = vmul.f32 %v3203, 0.01
      %v3268 = vmul.f32 %v3204, 0.01
      %v3269 = vmul.f32 %v3205, 0.01
      %v3270 = vmul.f32 %v3206, 0.01
      %v3271 = vmul.f32 %v3207, 0.01
      %v3272 = vmul.f32 %v3208, 0.01
      %v3273 = vmul.f32 %v3209, 0.01
      %v3274 = vmul.f32 %v3210, 0.01
      %v3275 = vmul.f32 %v3211, 0.01
      %v3276 = vmul.f32 %v3212, 0.01
      %v3277 = vmul.f32 %v3213, 0.01
      %v3278 = vmul.f32 %v3214, 0.01
      %v3279 = vmul.f32 %v3215, 0.01
      %v3280 = vmul.f32 %v3216, 0.01
      %v3281 = vmul.f32 %v3217, 0.01
      %v3282 = vsel %vm3218, %v3186, %v3250
      %v3283 = vsel %vm3219, %v3187, %v3251
      %v3284 = vsel %vm3220, %v3188, %v3252
      %v3285 = vsel %vm3221, %v3189, %v3253
      %v3286 = vsel %vm3222, %v3190, %v3254
      %v3287 = vsel %vm3223, %v3191, %v3255
      %v3288 = vsel %vm3224, %v3192, %v3256
      %v3289 = vsel %vm3225, %v3193, %v3257
      %v3290 = vsel %vm3226, %v3194, %v3258
      %v3291 = vsel %vm3227, %v3195, %v3259
      %v3292 = vsel %vm3228, %v3196, %v3260
      %v3293 = vsel %vm3229, %v3197, %v3261
      %v3294 = vsel %vm3230, %v3198, %v3262
      %v3295 = vsel %vm3231, %v3199, %v3263
      %v3296 = vsel %vm3232, %v3200, %v3264
      %v3297 = vsel %vm3233, %v3201, %v3265
      %v3298 = vsel %vm3234, %v3202, %v3266
      %v3299 = vsel %vm3235, %v3203, %v3267
      %v3300 = vsel %vm3236, %v3204, %v3268
      %v3301 = vsel %vm3237, %v3205, %v3269
      %v3302 = vsel %vm3238, %v3206, %v3270
      %v3303 = vsel %vm3239, %v3207, %v3271
      %v3304 = vsel %vm3240, %v3208, %v3272
      %v3305 = vsel %vm3241, %v3209, %v3273
      %v3306 = vsel %vm3242, %v3210, %v3274
      %v3307 = vsel %vm3243, %v3211, %v3275
      %v3308 = vsel %vm3244, %v3212, %v3276
      %v3309 = vsel %vm3245, %v3213, %v3277
      %v3310 = vsel %vm3246, %v3214, %v3278
      %v3311 = vsel %vm3247, %v3215, %v3279
      %v3312 = vsel %vm3248, %v3216, %v3280
      %v3313 = vsel %vm3249, %v3217, %v3281
      %vm3314 = vcmask 64512
      %v3315 = vsel %vm3314, %v3282, 0.0
      %v3316 = vsel %vm3314, %v3283, 0.0
      %v3317 = vadd.f32 %v3315, %v3316
      %v3318 = vsel %vm3314, %v3284, 0.0
      %v3319 = vadd.f32 %v3317, %v3318
      %v3320 = vsel %vm3314, %v3285, 0.0
      %v3321 = vadd.f32 %v3319, %v3320
      %v3322 = vsel %vm3314, %v3286, 0.0
      %v3323 = vadd.f32 %v3321, %v3322
      %v3324 = vsel %vm3314, %v3287, 0.0
      %v3325 = vadd.f32 %v3323, %v3324
      %v3326 = vsel %vm3314, %v3288, 0.0
      %v3327 = vadd.f32 %v3325, %v3326
      %v3328 = vsel %vm3314, %v3289, 0.0
      %v3329 = vadd.f32 %v3327, %v3328
      %v3330 = vsel %vm3314, %v3290, 0.0
      %v3331 = vadd.f32 %v3329, %v3330
      %v3332 = vsel %vm3314, %v3291, 0.0
      %v3333 = vadd.f32 %v3331, %v3332
      %v3334 = vsel %vm3314, %v3292, 0.0
      %v3335 = vadd.f32 %v3333, %v3334
      %v3336 = vsel %vm3314, %v3293, 0.0
      %v3337 = vadd.f32 %v3335, %v3336
      %v3338 = vsel %vm3314, %v3294, 0.0
      %v3339 = vadd.f32 %v3337, %v3338
      %v3340 = vsel %vm3314, %v3295, 0.0
      %v3341 = vadd.f32 %v3339, %v3340
      %v3342 = vsel %vm3314, %v3296, 0.0
      %v3343 = vadd.f32 %v3341, %v3342
      %v3344 = vsel %vm3314, %v3297, 0.0
      %v3345 = vadd.f32 %v3343, %v3344
      %v3346 = vsel %vm3314, %v3298, 0.0
      %v3347 = vadd.f32 %v3345, %v3346
      %v3348 = vsel %vm3314, %v3299, 0.0
      %v3349 = vadd.f32 %v3347, %v3348
      %v3350 = vsel %vm3314, %v3300, 0.0
      %v3351 = vadd.f32 %v3349, %v3350
      %v3352 = vsel %vm3314, %v3301, 0.0
      %v3353 = vadd.f32 %v3351, %v3352
      %v3354 = vsel %vm3314, %v3302, 0.0
      %v3355 = vadd.f32 %v3353, %v3354
      %v3356 = vsel %vm3314, %v3303, 0.0
      %v3357 = vadd.f32 %v3355, %v3356
      %v3358 = vsel %vm3314, %v3304, 0.0
      %v3359 = vadd.f32 %v3357, %v3358
      %v3360 = vsel %vm3314, %v3305, 0.0
      %v3361 = vadd.f32 %v3359, %v3360
      %v3362 = vsel %vm3314, %v3306, 0.0
      %v3363 = vadd.f32 %v3361, %v3362
      %v3364 = vsel %vm3314, %v3307, 0.0
      %v3365 = vadd.f32 %v3363, %v3364
      %v3366 = vsel %vm3314, %v3308, 0.0
      %v3367 = vadd.f32 %v3365, %v3366
      %v3368 = vsel %vm3314, %v3309, 0.0
      %v3369 = vadd.f32 %v3367, %v3368
      %v3370 = vsel %vm3314, %v3310, 0.0
      %v3371 = vadd.f32 %v3369, %v3370
      %v3372 = vsel %vm3314, %v3311, 0.0
      %v3373 = vadd.f32 %v3371, %v3372
      %v3374 = vsel %vm3314, %v3312, 0.0
      %v3375 = vadd.f32 %v3373, %v3374
      %v3376 = vsel %vm3314, %v3313, 0.0
      %v3377 = vadd.f32 %v3375, %v3376
      %v3378 = vrot.slane %v3377, 4
      %v3379 = vadd.f32 %v3377, %v3378
      %v3380 = vrot.slane %v3379, 2
      %v3381 = vadd.f32 %v3379, %v3380
      %v3382 = vrot.slane %v3381, 1
      %v3383 = vadd.f32 %v3381, %v3382
      %v3384 = vmul.f32 %v3282, %v3282
      %v3385 = vmul.f32 %v3283, %v3283
      %v3386 = vmul.f32 %v3284, %v3284
      %v3387 = vmul.f32 %v3285, %v3285
      %v3388 = vmul.f32 %v3286, %v3286
      %v3389 = vmul.f32 %v3287, %v3287
      %v3390 = vmul.f32 %v3288, %v3288
      %v3391 = vmul.f32 %v3289, %v3289
      %v3392 = vmul.f32 %v3290, %v3290
      %v3393 = vmul.f32 %v3291, %v3291
      %v3394 = vmul.f32 %v3292, %v3292
      %v3395 = vmul.f32 %v3293, %v3293
      %v3396 = vmul.f32 %v3294, %v3294
      %v3397 = vmul.f32 %v3295, %v3295
      %v3398 = vmul.f32 %v3296, %v3296
      %v3399 = vmul.f32 %v3297, %v3297
      %v3400 = vmul.f32 %v3298, %v3298
      %v3401 = vmul.f32 %v3299, %v3299
      %v3402 = vmul.f32 %v3300, %v3300
      %v3403 = vmul.f32 %v3301, %v3301
      %v3404 = vmul.f32 %v3302, %v3302
      %v3405 = vmul.f32 %v3303, %v3303
      %v3406 = vmul.f32 %v3304, %v3304
      %v3407 = vmul.f32 %v3305, %v3305
      %v3408 = vmul.f32 %v3306, %v3306
      %v3409 = vmul.f32 %v3307, %v3307
      %v3410 = vmul.f32 %v3308, %v3308
      %v3411 = vmul.f32 %v3309, %v3309
      %v3412 = vmul.f32 %v3310, %v3310
      %v3413 = vmul.f32 %v3311, %v3311
      %v3414 = vmul.f32 %v3312, %v3312
      %v3415 = vmul.f32 %v3313, %v3313
      %v3416 = vsel %vm3314, %v3384, 0.0
      %v3417 = vsel %vm3314, %v3385, 0.0
      %v3418 = vadd.f32 %v3416, %v3417
      %v3419 = vsel %vm3314, %v3386, 0.0
      %v3420 = vadd.f32 %v3418, %v3419
      %v3421 = vsel %vm3314, %v3387, 0.0
      %v3422 = vadd.f32 %v3420, %v3421
      %v3423 = vsel %vm3314, %v3388, 0.0
      %v3424 = vadd.f32 %v3422, %v3423
      %v3425 = vsel %vm3314, %v3389, 0.0
      %v3426 = vadd.f32 %v3424, %v3425
      %v3427 = vsel %vm3314, %v3390, 0.0
      %v3428 = vadd.f32 %v3426, %v3427
      %v3429 = vsel %vm3314, %v3391, 0.0
      %v3430 = vadd.f32 %v3428, %v3429
      %v3431 = vsel %vm3314, %v3392, 0.0
      %v3432 = vadd.f32 %v3430, %v3431
      %v3433 = vsel %vm3314, %v3393, 0.0
      %v3434 = vadd.f32 %v3432, %v3433
      %v3435 = vsel %vm3314, %v3394, 0.0
      %v3436 = vadd.f32 %v3434, %v3435
      %v3437 = vsel %vm3314, %v3395, 0.0
      %v3438 = vadd.f32 %v3436, %v3437
      %v3439 = vsel %vm3314, %v3396, 0.0
      %v3440 = vadd.f32 %v3438, %v3439
      %v3441 = vsel %vm3314, %v3397, 0.0
      %v3442 = vadd.f32 %v3440, %v3441
      %v3443 = vsel %vm3314, %v3398, 0.0
      %v3444 = vadd.f32 %v3442, %v3443
      %v3445 = vsel %vm3314, %v3399, 0.0
      %v3446 = vadd.f32 %v3444, %v3445
      %v3447 = vsel %vm3314, %v3400, 0.0
      %v3448 = vadd.f32 %v3446, %v3447
      %v3449 = vsel %vm3314, %v3401, 0.0
      %v3450 = vadd.f32 %v3448, %v3449
      %v3451 = vsel %vm3314, %v3402, 0.0
      %v3452 = vadd.f32 %v3450, %v3451
      %v3453 = vsel %vm3314, %v3403, 0.0
      %v3454 = vadd.f32 %v3452, %v3453
      %v3455 = vsel %vm3314, %v3404, 0.0
      %v3456 = vadd.f32 %v3454, %v3455
      %v3457 = vsel %vm3314, %v3405, 0.0
      %v3458 = vadd.f32 %v3456, %v3457
      %v3459 = vsel %vm3314, %v3406, 0.0
      %v3460 = vadd.f32 %v3458, %v3459
      %v3461 = vsel %vm3314, %v3407, 0.0
      %v3462 = vadd.f32 %v3460, %v3461
      %v3463 = vsel %vm3314, %v3408, 0.0
      %v3464 = vadd.f32 %v3462, %v3463
      %v3465 = vsel %vm3314, %v3409, 0.0
      %v3466 = vadd.f32 %v3464, %v3465
      %v3467 = vsel %vm3314, %v3410, 0.0
      %v3468 = vadd.f32 %v3466, %v3467
      %v3469 = vsel %vm3314, %v3411, 0.0
      %v3470 = vadd.f32 %v3468, %v3469
      %v3471 = vsel %vm3314, %v3412, 0.0
      %v3472 = vadd.f32 %v3470, %v3471
      %v3473 = vsel %vm3314, %v3413, 0.0
      %v3474 = vadd.f32 %v3472, %v3473
      %v3475 = vsel %vm3314, %v3414, 0.0
      %v3476 = vadd.f32 %v3474, %v3475
      %v3477 = vsel %vm3314, %v3415, 0.0
      %v3478 = vadd.f32 %v3476, %v3477
      %v3479 = vrot.slane %v3478, 4
      %v3480 = vadd.f32 %v3478, %v3479
      %v3481 = vrot.slane %v3480, 2
      %v3482 = vadd.f32 %v3480, %v3481
      %v3483 = vrot.slane %v3482, 1
      %v3484 = vadd.f32 %v3482, %v3483
      %vm3485 = vcmask 1040384
      %v3486 = vsel %vm3485, %v3383, %v3484
      %vm3487 = vcmask 58368
      %3488 = vst.msk [vmem:[%s363] sm:$0x3] %vm3487, %v3486
      %v3489 = vpack.c.bf16 %v3283, %v3282
      %v3490 = vpack.c.bf16 %v3285, %v3284
      %v3491 = vpack.c.bf16 %v3287, %v3286
      %v3492 = vpack.c.bf16 %v3289, %v3288
      %v3493 = vpack.c.bf16 %v3291, %v3290
      %v3494 = vpack.c.bf16 %v3293, %v3292
      %v3495 = vpack.c.bf16 %v3295, %v3294
      %v3496 = vpack.c.bf16 %v3297, %v3296
      %v3497 = vpack.c.bf16 %v3299, %v3298
      %v3498 = vpack.c.bf16 %v3301, %v3300
      %v3499 = vpack.c.bf16 %v3303, %v3302
      %v3500 = vpack.c.bf16 %v3305, %v3304
      %v3501 = vpack.c.bf16 %v3307, %v3306
      %v3502 = vpack.c.bf16 %v3309, %v3308
      %v3503 = vpack.c.bf16 %v3311, %v3310
      %v3504 = vpack.c.bf16 %v3313, %v3312
      %v3521 = vunpack.c.l.b16 %v3489
      %v3522 = vunpack.c.h.b16 %v3489
      %v3523 = vunpack.c.l.b16 %v3490
      %v3524 = vunpack.c.h.b16 %v3490
      %v3525 = vunpack.c.l.b16 %v3491
      %v3526 = vunpack.c.h.b16 %v3491
      %v3527 = vunpack.c.l.b16 %v3492
      %v3528 = vunpack.c.h.b16 %v3492
      %v3529 = vunpack.c.l.b16 %v3493
      %v3530 = vunpack.c.h.b16 %v3493
      %v3531 = vunpack.c.l.b16 %v3494
      %v3532 = vunpack.c.h.b16 %v3494
      %v3533 = vunpack.c.l.b16 %v3495
      %v3534 = vunpack.c.h.b16 %v3495
      %v3535 = vunpack.c.l.b16 %v3496
      %v3536 = vunpack.c.h.b16 %v3496
      %v3537 = vunpack.c.l.b16 %v3497
      %v3538 = vunpack.c.h.b16 %v3497
      %v3539 = vunpack.c.l.b16 %v3498
      %v3540 = vunpack.c.h.b16 %v3498
      %v3541 = vunpack.c.l.b16 %v3499
      %v3542 = vunpack.c.h.b16 %v3499
      %v3543 = vunpack.c.l.b16 %v3500
      %v3544 = vunpack.c.h.b16 %v3500
      %v3545 = vunpack.c.l.b16 %v3501
      %v3546 = vunpack.c.h.b16 %v3501
      %v3547 = vunpack.c.l.b16 %v3502
      %v3548 = vunpack.c.h.b16 %v3502
      %v3549 = vunpack.c.l.b16 %v3503
      %v3550 = vunpack.c.h.b16 %v3503
      %v3551 = vunpack.c.l.b16 %v3504
      %v3552 = vunpack.c.h.b16 %v3504
      %v3553 = vpack.c.b16 %v3521, %v3521
      %v3554 = vpack.c.b16 %v3522, %v3522
      %v3555 = vpack.c.b16 %v3523, %v3523
      %v3556 = vpack.c.b16 %v3524, %v3524
      %v3557 = vpack.c.b16 %v3525, %v3525
      %v3558 = vpack.c.b16 %v3526, %v3526
      %v3559 = vpack.c.b16 %v3527, %v3527
      %v3560 = vpack.c.b16 %v3528, %v3528
      %v3561 = vpack.c.b16 %v3529, %v3529
      %v3562 = vpack.c.b16 %v3530, %v3530
      %v3563 = vpack.c.b16 %v3531, %v3531
      %v3564 = vpack.c.b16 %v3532, %v3532
      %v3565 = vpack.c.b16 %v3533, %v3533
      %v3566 = vpack.c.b16 %v3534, %v3534
      %v3567 = vpack.c.b16 %v3535, %v3535
      %v3568 = vpack.c.b16 %v3536, %v3536
      %v3569 = vpack.c.b16 %v3537, %v3537
      %v3570 = vpack.c.b16 %v3538, %v3538
      %v3571 = vpack.c.b16 %v3539, %v3539
      %v3572 = vpack.c.b16 %v3540, %v3540
      %v3573 = vpack.c.b16 %v3541, %v3541
      %v3574 = vpack.c.b16 %v3542, %v3542
      %v3575 = vpack.c.b16 %v3543, %v3543
      %v3576 = vpack.c.b16 %v3544, %v3544
      %v3577 = vpack.c.b16 %v3545, %v3545
      %v3578 = vpack.c.b16 %v3546, %v3546
      %v3579 = vpack.c.b16 %v3547, %v3547
      %v3580 = vpack.c.b16 %v3548, %v3548
      %v3581 = vpack.c.b16 %v3549, %v3549
      %v3582 = vpack.c.b16 %v3550, %v3550
      %v3583 = vpack.c.b16 %v3551, %v3551
      %v3584 = vpack.c.b16 %v3552, %v3552
      %vm3617 = vcmask 60416
      %3618 = vst.msk [vmem:[%s355] sm:$0xf] %vm3617, %v3553
      %3619 = vst.msk [vmem:[%s355 + $0x4] sm:$0xf] %vm3617, %v3554
      %3620 = vst.msk [vmem:[%s355 + $0x8] sm:$0xf] %vm3617, %v3555
      %3621 = vst.msk [vmem:[%s355 + $0xc] sm:$0xf] %vm3617, %v3556
      %3622 = vst.msk [vmem:[%s355 + $0x10] sm:$0xf] %vm3617, %v3557
      %3623 = vst.msk [vmem:[%s355 + $0x14] sm:$0xf] %vm3617, %v3558
      %3624 = vst.msk [vmem:[%s355 + $0x18] sm:$0xf] %vm3617, %v3559
      %3625 = vst.msk [vmem:[%s355 + $0x1c] sm:$0xf] %vm3617, %v3560
      %3626 = vst.msk [vmem:[%s355 + $0x20] sm:$0xf] %vm3617, %v3561
      %3627 = vst.msk [vmem:[%s355 + $0x24] sm:$0xf] %vm3617, %v3562
      %3628 = vst.msk [vmem:[%s355 + $0x28] sm:$0xf] %vm3617, %v3563
      %3629 = vst.msk [vmem:[%s355 + $0x2c] sm:$0xf] %vm3617, %v3564
      %3630 = vst.msk [vmem:[%s355 + $0x30] sm:$0xf] %vm3617, %v3565
      %3631 = vst.msk [vmem:[%s355 + $0x34] sm:$0xf] %vm3617, %v3566
      %3632 = vst.msk [vmem:[%s355 + $0x38] sm:$0xf] %vm3617, %v3567
      %3633 = vst.msk [vmem:[%s355 + $0x3c] sm:$0xf] %vm3617, %v3568
      %3634 = vst.msk [vmem:[%s355 + $0x40] sm:$0xf] %vm3617, %v3569
      %3635 = vst.msk [vmem:[%s355 + $0x44] sm:$0xf] %vm3617, %v3570
      %3636 = vst.msk [vmem:[%s355 + $0x48] sm:$0xf] %vm3617, %v3571
      %3637 = vst.msk [vmem:[%s355 + $0x4c] sm:$0xf] %vm3617, %v3572
      %3638 = vst.msk [vmem:[%s355 + $0x50] sm:$0xf] %vm3617, %v3573
      %3639 = vst.msk [vmem:[%s355 + $0x54] sm:$0xf] %vm3617, %v3574
      %3640 = vst.msk [vmem:[%s355 + $0x58] sm:$0xf] %vm3617, %v3575
      %3641 = vst.msk [vmem:[%s355 + $0x5c] sm:$0xf] %vm3617, %v3576
      %3642 = vst.msk [vmem:[%s355 + $0x60] sm:$0xf] %vm3617, %v3577
      %3643 = vst.msk [vmem:[%s355 + $0x64] sm:$0xf] %vm3617, %v3578
      %3644 = vst.msk [vmem:[%s355 + $0x68] sm:$0xf] %vm3617, %v3579
      %3645 = vst.msk [vmem:[%s355 + $0x6c] sm:$0xf] %vm3617, %v3580
      %3646 = vst.msk [vmem:[%s355 + $0x70] sm:$0xf] %vm3617, %v3581
      %3647 = vst.msk [vmem:[%s355 + $0x74] sm:$0xf] %vm3617, %v3582
      %3648 = vst.msk [vmem:[%s355 + $0x78] sm:$0xf] %vm3617, %v3583
      %3649 = vst.msk [vmem:[%s355 + $0x7c] sm:$0xf] %vm3617, %v3584
      %s3650 = smul.u32 32, %s22
      %p3651 = scmp.lt.s32.totalorder %s21, 1
      %s3652 = scalar_select %p3651, %s21, 1
      %p3653 = scmp.lt.s32.totalorder %s3650, 31
      %s3654 = scalar_select %p3653, %s3650, 31
      %s3655 = smul.addr %s3652, 32
      %s3656 = sadd.s32 %s3654, %s3655
      %s3657 = smul.addr %s3656, 4
      %s3658 = scalar_lea.vmem %s4, %s3657
      %p3659 = scmp.lt.s32.totalorder %s21, 1
      %s3660 = scalar_select %p3659, %s21, 1
      %p3661 = scmp.lt.s32.totalorder %s22, 0
      %s3662 = scalar_select %p3661, %s22, 0
      %s3663 = sadd.s32 %s3662, %s3660
      %s3664 = smul.addr %s3663, 2
      %s3665 = scalar_lea.vmem %s5, %s3664
      // Predicated region
      $region37: #{upblock_forward.6} parent=35 // pred_check
        %p3666 = pneg %p151
      $region38: #{upblock_forward.6} parent=35 // pred_check_branch
        %3668 = sbr.rel (%p3666) target = $region40
      $region39: #{upblock_forward.6} parent=35 // pred_region
        %s3669 = smul.u32 32, %s22
      $region40: #{upblock_forward.6} parent=35 // pred_fallthru
        _
      // Predicated region
      $region41: #{upblock_forward.6} parent=35 // pred_check
        %p3670 = pneg %p179
      $region42: #{upblock_forward.6} parent=35 // pred_check_branch
        %3672 = sbr.rel (%p3670) target = $region44
      $region43: #{upblock_forward.6} parent=35 // pred_region
        _
      $region44: #{upblock_forward.6} parent=35 // pred_fallthru
        _
    $region36: #{upblock_forward.6} parent=5 // pred_fallthru
      _
    %p3673 = scmp.le.s32.totalorder 2, %s12
    // Predicated region
    $region45: #{upblock_forward.6} parent=5 // pred_check
      %p3674 = pneg %p3673
    $region46: #{upblock_forward.6} parent=5 // pred_check_branch
      %3676 = sbr.rel (%p3674) target = $region48
    $region47: #{upblock_forward.6} parent=5 // pred_region
      %s3677 = ssub.s32 %s12, 2
      // Predicated region
      $region49: #{upblock_forward.6} parent=47 // pred_check
        %p3678 = pneg %p157
      $region50: #{upblock_forward.6} parent=47 // pred_check_branch
        %3680 = sbr.rel (%p3678) target = $region52
      $region51: #{upblock_forward.6} parent=47 // pred_region
        %s3681 = smul.u32 32, %s24
        %p3682 = scmp.lt.s32.totalorder %s23, 1
        %s3683 = scalar_select %p3682, %s23, 1
        %p3684 = scmp.lt.s32.totalorder %s3681, 31
        %s3685 = scalar_select %p3684, %s3681, 31
        %s3686 = smul.addr %s3683, 32
        %s3687 = sadd.s32 %s3685, %s3686
        %s3688 = smul.addr %s3687, 4
        %s3689 = scalar_lea.vmem %s4, %s3688
      $region52: #{upblock_forward.6} parent=47 // pred_fallthru
        _
      // Predicated region
      $region53: #{upblock_forward.6} parent=47 // pred_check
        %p3690 = pneg %p185
      $region54: #{upblock_forward.6} parent=47 // pred_check_branch
        %3692 = sbr.rel (%p3690) target = $region56
      $region55: #{upblock_forward.6} parent=47 // pred_region
        %p3693 = scmp.lt.s32.totalorder %s23, 1
        %s3694 = scalar_select %p3693, %s23, 1
        %p3695 = scmp.lt.s32.totalorder %s24, 0
        %s3696 = scalar_select %p3695, %s24, 0
        %s3697 = sadd.s32 %s3696, %s3694
        %s3698 = smul.addr %s3697, 2
        %s3699 = scalar_lea.vmem %s5, %s3698
      $region56: #{upblock_forward.6} parent=47 // pred_fallthru
        _
    $region48: #{upblock_forward.6} parent=5 // pred_fallthru
      _
  $region6: #{upblock_forward.6} parent=0 // loop_footer
    %s16 = sadd.s32 1, %s12
  $region7: #{upblock_forward.6} parent=0 // loop_footer_branch
    %11 = sbr.rel target = $region3
  $region8: #{upblock_forward.6} parent=0 // loop_exit
    _

// kernel: upblock_forward.8
$region0: #{upblock_forward.8}
  #allocation0 [shape = 'u32[]', space=smem, size = 0x4, offset = 0x4, fixed_abs, tag = 'smem constant byte address 0x4 - core index']
  #allocation1 [shape = 'u32[144,128]{1,0:T(1,128)}', space=vmem, size = 0x12000, scoped, tag = 'internal scratch']
  %s0 = inlined_call_operand.vmem [shape: bf16[2,18,18,8], index: 0, kind: input, shape index: {}, may-alias: {0,1}]
  %s1 = inlined_call_operand.vmem [shape: bf16[2,18,18,8], index: 1, kind: input, shape index: {}, may-alias: {0,1}]
  %s2 = inlined_call_operand.vmem [shape: bf16[4,8,8], index: 2, kind: input, shape index: {}]
  %s3 = inlined_call_operand.vmem [shape: f32[1,8], index: 3, kind: input, shape index: {}]
  %s4 = inlined_call_operand.vmem [shape: bf16[2,256,8], index: 4, kind: output, shape index: {0}]
  %s5 = inlined_call_operand.vmem [shape: f32[2,1,2,8], index: 5, kind: output, shape index: {1}]
  %6 = xla_tuple %s4, %s5
  %s7 = sld [smem:[#allocation0]]
  $region57: #{upblock_forward.8} parent=0
    _
  %s9 = ssub.s32 1, %s7
  %s10 = scalar_select 0, %s9, %s7
  loop: start=0, step=1, limit=4
  $region2: #{upblock_forward.8} parent=0 // loop_pre_header
    _
  $region3: #{upblock_forward.8} parent=0 // loop_header
    %s12 = sphi 0, %s16
    %p13 = scmp.ge.s32.totalorder %s12, 4
    %s19 = sphi 0, %s31
    %s20 = sphi 0, %s27
    %s21 = sphi 0, %s19
    %s22 = sphi 0, %s20
    %s23 = sphi 0, %s21
    %s24 = sphi 0, %s22
    %s36 = sphi 0, %s38
    %s39 = sphi 0, %s36
    %s40 = sphi 0, %s39
    %s56 = sphi 0, %s40
    %s68 = sphi 0, %s70
    %s71 = sphi 0, %s68
    %s72 = sphi 0, %s71
    %s88 = sphi 0, %s72
    %s92 = sphi 0, %s92
    %s94 = sphi 0, %s92
    %s95 = sphi 0, %s94
    %s109 = sphi 0, %s95
    %s113 = sphi 0, %s113
    %s115 = sphi 0, %s113
    %s116 = sphi 0, %s115
    %s130 = sphi 0, %s116
    %s138 = sphi 0, %s140
    %s141 = sphi 0, %s138
    %s142 = sphi 0, %s141
    %s158 = sphi 0, %s142
    %s166 = sphi 0, %s168
    %s169 = sphi 0, %s166
    %s170 = sphi 0, %s169
    %s186 = sphi 0, %s170
  $region4: #{upblock_forward.8} parent=0 // loop_header_branch
    %15 = sbr.rel (%p13) target = $region8
  $region5: #{upblock_forward.8} parent=0 // loop_body
    %s17 = ssub.s32 %s12, 1
    %s18 = ssub.s32 %s12, 2
    %s25 = sadd.s32 1, %s20
    %p26 = scmp.ge.s32.totalorder %s25, 1
    %s27 = scalar_select %p26, 0, %s25
    %s28 = sadd.s32 1, %s19
    %s29 = scalar_select %p26, %s28, %s19
    %p30 = scmp.ge.s32.totalorder %s29, 2
    %s31 = scalar_select %p30, 0, %s29
    %s32 = ssub.s32 %s19, %s31
    %s33 = ssub.s32 %s20, %s27
    %s34 = sor.u32 %s32, %s33
    %p35 = scmp.eq.s32.totalorder %s34, 0
    %s37 = sadd.s32 %s36, 1
    %s38 = scalar_select %p35, %s36, %s37
    %p41 = pneg %p35
    %p42 = scmp.eq.s32.totalorder %s12, 1
    %p43 = por %p41, %p42
    %p44 = scmp.ne.s32.totalorder %s36, %s39
    %p45 = scmp.eq.s32.totalorder %s12, 0
    %p46 = por %p44, %p45
    %p47 = scmp.ne.s32.totalorder %s36, %s39
    %p48 = scmp.eq.s32.totalorder %s17, 1
    %p49 = por %p47, %p48
    %p50 = scmp.ne.s32.totalorder %s39, %s40
    %p51 = scmp.eq.s32.totalorder %s17, 0
    %p52 = por %p50, %p51
    %p53 = scmp.ne.s32.totalorder %s39, %s40
    %p54 = scmp.eq.s32.totalorder %s18, 1
    %p55 = por %p53, %p54
    %p57 = scmp.ne.s32.totalorder %s40, %s56
    %p58 = scmp.eq.s32.totalorder %s18, 0
    %p59 = por %p57, %p58
    %s60 = sadd.s32 %s20, 1
    %s61 = smul.u32 %s60, 8
    %s62 = sadd.s32 %s27, 1
    %s63 = smul.u32 %s62, 8
    %s64 = ssub.s32 %s19, %s31
    %s65 = ssub.s32 %s61, %s63
    %s66 = sor.u32 %s64, %s65
    %p67 = scmp.eq.s32.totalorder %s66, 0
    %s69 = sadd.s32 %s68, 1
    %s70 = scalar_select %p67, %s68, %s69
    %p73 = pneg %p67
    %p74 = scmp.eq.s32.totalorder %s12, 1
    %p75 = por %p73, %p74
    %p76 = scmp.ne.s32.totalorder %s68, %s71
    %p77 = scmp.eq.s32.totalorder %s12, 0
    %p78 = por %p76, %p77
    %p79 = scmp.ne.s32.totalorder %s68, %s71
    %p80 = scmp.eq.s32.totalorder %s17, 1
    %p81 = por %p79, %p80
    %p82 = scmp.ne.s32.totalorder %s71, %s72
    %p83 = scmp.eq.s32.totalorder %s17, 0
    %p84 = por %p82, %p83
    %p85 = scmp.ne.s32.totalorder %s71, %s72
    %p86 = scmp.eq.s32.totalorder %s18, 1
    %p87 = por %p85, %p86
    %p89 = scmp.ne.s32.totalorder %s72, %s88
    %p90 = scmp.eq.s32.totalorder %s18, 0
    %p91 = por %p89, %p90
    %s93 = sadd.s32 %s92, 1
    %p96 = scmp.eq.s32.totalorder %s12, 1
    %p97 = scmp.ne.s32.totalorder %s92, %s94
    %p98 = scmp.eq.s32.totalorder %s12, 0
    %p99 = por %p97, %p98
    %p100 = scmp.ne.s32.totalorder %s92, %s94
    %p101 = scmp.eq.s32.totalorder %s17, 1
    %p102 = por %p100, %p101
    %p103 = scmp.ne.s32.totalorder %s94, %s95
    %p104 = scmp.eq.s32.totalorder %s17, 0
    %p105 = por %p103, %p104
    %p106 = scmp.ne.s32.totalorder %s94, %s95
    %p107 = scmp.eq.s32.totalorder %s18, 1
    %p108 = por %p106, %p107
    %p110 = scmp.ne.s32.totalorder %s95, %s109
    %p111 = scmp.eq.s32.totalorder %s18, 0
    %p112 = por %p110, %p111
    %s114 = sadd.s32 %s113, 1
    %p117 = scmp.eq.s32.totalorder %s12, 1
    %p118 = scmp.ne.s32.totalorder %s113, %s115
    %p119 = scmp.eq.s32.totalorder %s12, 0
    %p120 = por %p118, %p119
    %p121 = scmp.ne.s32.totalorder %s113, %s115
    %p122 = scmp.eq.s32.totalorder %s17, 1
    %p123 = por %p121, %p122
    %p124 = scmp.ne.s32.totalorder %s115, %s116
    %p125 = scmp.eq.s32.totalorder %s17, 0
    %p126 = por %p124, %p125
    %p127 = scmp.ne.s32.totalorder %s115, %s116
    %p128 = scmp.eq.s32.totalorder %s18, 1
    %p129 = por %p127, %p128
    %p131 = scmp.ne.s32.totalorder %s116, %s130
    %p132 = scmp.eq.s32.totalorder %s18, 0
    %p133 = por %p131, %p132
    %s134 = ssub.s32 %s19, %s31
    %s135 = ssub.s32 %s20, %s27
    %s136 = sor.u32 %s134, %s135
    %p137 = scmp.eq.s32.totalorder %s136, 0
    %s139 = sadd.s32 %s138, 1
    %s140 = scalar_select %p137, %s138, %s139
    %p143 = pneg %p137
    %p144 = scmp.eq.s32.totalorder %s12, 1
    %p145 = por %p143, %p144
    %p146 = scmp.ne.s32.totalorder %s138, %s141
    %p147 = scmp.eq.s32.totalorder %s12, 0
    %p148 = por %p146, %p147
    %p149 = scmp.ne.s32.totalorder %s138, %s141
    %p150 = scmp.eq.s32.totalorder %s17, 1
    %p151 = por %p149, %p150
    %p152 = scmp.ne.s32.totalorder %s141, %s142
    %p153 = scmp.eq.s32.totalorder %s17, 0
    %p154 = por %p152, %p153
    %p155 = scmp.ne.s32.totalorder %s141, %s142
    %p156 = scmp.eq.s32.totalorder %s18, 1
    %p157 = por %p155, %p156
    %p159 = scmp.ne.s32.totalorder %s142, %s158
    %p160 = scmp.eq.s32.totalorder %s18, 0
    %p161 = por %p159, %p160
    %s162 = ssub.s32 %s19, %s31
    %s163 = ssub.s32 %s20, %s27
    %s164 = sor.u32 %s162, %s163
    %p165 = scmp.eq.s32.totalorder %s164, 0
    %s167 = sadd.s32 %s166, 1
    %s168 = scalar_select %p165, %s166, %s167
    %p171 = pneg %p165
    %p172 = scmp.eq.s32.totalorder %s12, 1
    %p173 = por %p171, %p172
    %p174 = scmp.ne.s32.totalorder %s166, %s169
    %p175 = scmp.eq.s32.totalorder %s12, 0
    %p176 = por %p174, %p175
    %p177 = scmp.ne.s32.totalorder %s166, %s169
    %p178 = scmp.eq.s32.totalorder %s17, 1
    %p179 = por %p177, %p178
    %p180 = scmp.ne.s32.totalorder %s169, %s170
    %p181 = scmp.eq.s32.totalorder %s17, 0
    %p182 = por %p180, %p181
    %p183 = scmp.ne.s32.totalorder %s169, %s170
    %p184 = scmp.eq.s32.totalorder %s18, 1
    %p185 = por %p183, %p184
    %p187 = scmp.ne.s32.totalorder %s170, %s186
    %p188 = scmp.eq.s32.totalorder %s18, 0
    %p189 = por %p187, %p188
    %p190 = scmp.le.s32.totalorder 1, %s12
    %p191 = scmp.lt.s32.totalorder %s12, 3
    %p192 = pnand %p190, %p191
    %p193 = pneg %p192
    // Predicated region
    $region9: #{upblock_forward.8} parent=5 // pred_check
      _
    $region10: #{upblock_forward.8} parent=5 // pred_check_branch
      %195 = sbr.rel (%p192) target = $region12
    $region11: #{upblock_forward.8} parent=5 // pred_region
      %s196 = ssub.s32 %s12, 1
      // Predicated region
      $region13: #{upblock_forward.8} parent=11 // pred_check
        %p197 = pneg %p105
      $region14: #{upblock_forward.8} parent=11 // pred_check_branch
        %199 = sbr.rel (%p197) target = $region16
      $region15: #{upblock_forward.8} parent=11 // pred_region
        _
      $region16: #{upblock_forward.8} parent=11 // pred_fallthru
        _
      // Predicated region
      $region17: #{upblock_forward.8} parent=11 // pred_check
        %p200 = pneg %p126
      $region18: #{upblock_forward.8} parent=11 // pred_check_branch
        %202 = sbr.rel (%p200) target = $region20
      $region19: #{upblock_forward.8} parent=11 // pred_region
        _
      $region20: #{upblock_forward.8} parent=11 // pred_fallthru
        _
    $region12: #{upblock_forward.8} parent=5 // pred_fallthru
      _
    %p203 = scmp.lt.s32.totalorder %s12, 2
    // Predicated region
    $region21: #{upblock_forward.8} parent=5 // pred_check
      %p204 = pneg %p203
    $region22: #{upblock_forward.8} parent=5 // pred_check_branch
      %206 = sbr.rel (%p204) target = $region24
    $region23: #{upblock_forward.8} parent=5 // pred_region
      // Predicated region
      $region25: #{upblock_forward.8} parent=23 // pred_check
        %p207 = pneg %p46
      $region26: #{upblock_forward.8} parent=23 // pred_check_branch
        %209 = sbr.rel (%p207) target = $region28
      $region27: #{upblock_forward.8} parent=23 // pred_region
        %s210 = smul.u32 16, %s20
        %s211 = ssub.s32 18, %s210
        %p212 = scmp.lt.s32.totalorder %s211, 16
        %s213 = scalar_select %p212, %s211, 16
        %s214 = smul.u32 64, %s213
        %s215 = smul.u32 %s214, 3
        %p216 = scmp.lt.s32.totalorder %s19, 1
        %s217 = scalar_select %p216, %s19, 1
        %p218 = scmp.lt.s32.totalorder %s210, 17
        %s219 = scalar_select %p218, %s210, 17
        %s220 = smul.addr %s219, 3
        %s221 = smul.addr %s217, 54
        %s222 = sadd.s32 %s220, %s221
        %s223 = smul.addr %s222, 4
        %s224 = scalar_lea.vmem %s0, %s223
        %s225 = smul.u32 16, %s20
        %s226 = ssub.s32 18, %s225
        %p227 = scmp.lt.s32.totalorder %s226, 16
        %s228 = scalar_select %p227, %s226, 16
        %s229 = smul.u32 64, %s228
        %s230 = smul.u32 %s229, 3
      $region28: #{upblock_forward.8} parent=23 // pred_fallthru
        _
      // Predicated region
      $region29: #{upblock_forward.8} parent=23 // pred_check
        %p231 = pneg %p78
      $region30: #{upblock_forward.8} parent=23 // pred_check_branch
        %233 = sbr.rel (%p231) target = $region32
      $region31: #{upblock_forward.8} parent=23 // pred_region
        %s234 = sadd.s32 %s20, 1
        %s235 = smul.u32 %s234, 8
        %s236 = smul.u32 2, %s235
        %p237 = scmp.lt.s32.totalorder %s19, 1
        %s238 = scalar_select %p237, %s19, 1
        %p239 = scmp.lt.s32.totalorder %s236, 17
        %s240 = scalar_select %p239, %s236, 17
        %s241 = smul.addr %s240, 3
        %s242 = smul.addr %s238, 54
        %s243 = sadd.s32 %s241, %s242
        %s244 = smul.addr %s243, 4
        %s245 = scalar_lea.vmem %s1, %s244
        %s246 = sadd.s32 %s20, 1
        %s247 = smul.u32 %s246, 8
        %s248 = smul.u32 2, %s247
      $region32: #{upblock_forward.8} parent=23 // pred_fallthru
        _
    $region24: #{upblock_forward.8} parent=5 // pred_fallthru
      _
    %p249 = scmp.le.s32.totalorder 1, %s12
    %p250 = scmp.lt.s32.totalorder %s12, 3
    %p251 = pnand %p249, %p250
    %p252 = pneg %p251
    // Predicated region
    $region33: #{upblock_forward.8} parent=5 // pred_check
      _
    $region34: #{upblock_forward.8} parent=5 // pred_check_branch
      %254 = sbr.rel (%p251) target = $region36
    $region35: #{upblock_forward.8} parent=5 // pred_region
      %s255 = ssub.s32 %s12, 1
      %s256 = smul.u32 16, %s22
      %s257 = ssub.s32 18, %s256
      %p258 = scmp.lt.s32.totalorder %s257, 16
      %s259 = scalar_select %p258, %s257, 16
      %s260 = smul.u32 64, %s259
      %s261 = smul.u32 %s260, 3
      %p262 = scmp.lt.s32.totalorder %s21, 1
      %s263 = scalar_select %p262, %s21, 1
      %p264 = scmp.lt.s32.totalorder %s256, 17
      %s265 = scalar_select %p264, %s256, 17
      %s266 = smul.addr %s265, 3
      %s267 = smul.addr %s263, 54
      %s268 = sadd.s32 %s266, %s267
      %s269 = smul.addr %s268, 4
      %s270 = scalar_lea.vmem %s0, %s269
      %p271 = pneg %p52
      %p272 = pneg %p49
      %s273 = sadd.s32 %s22, 1
      %s274 = smul.u32 %s273, 8
      %s275 = smul.u32 2, %s274
      %p276 = scmp.lt.s32.totalorder %s21, 1
      %s277 = scalar_select %p276, %s21, 1
      %p278 = scmp.lt.s32.totalorder %s275, 17
      %s279 = scalar_select %p278, %s275, 17
      %s280 = smul.addr %s279, 3
      %s281 = smul.addr %s277, 54
      %s282 = sadd.s32 %s280, %s281
      %s283 = smul.addr %s282, 4
      %s284 = scalar_lea.vmem %s1, %s283
      %p285 = pneg %p84
      %p286 = pneg %p81
      %p287 = pneg %p105
      %p288 = pneg %p102
      %p289 = pneg %p126
      %p290 = pneg %p123
      %p291 = pneg %p154
      %p292 = pneg %p151
      %s293 = smul.u32 32, %s22
      %p294 = scmp.lt.s32.totalorder %s21, 1
      %s295 = scalar_select %p294, %s21, 1
      %p296 = scmp.lt.s32.totalorder %s293, 31
      %s297 = scalar_select %p296, %s293, 31
      %s298 = smul.addr %s295, 32
      %s299 = sadd.s32 %s297, %s298
      %s300 = smul.addr %s299, 4
      %s301 = scalar_lea.vmem %s4, %s300
      %p302 = pneg %p182
      %p303 = pneg %p179
      %p304 = scmp.lt.s32.totalorder %s21, 1
      %s305 = scalar_select %p304, %s21, 1
      %p306 = scmp.lt.s32.totalorder %s22, 0
      %s307 = scalar_select %p306, %s22, 0
      %s308 = sadd.s32 %s307, %s305
      %s309 = smul.addr %s308, 2
      %s310 = scalar_lea.vmem %s5, %s309
      %s311 = smul.u32 16, %s22
      %s312 = ssub.s32 18, %s311
      %p313 = scmp.lt.s32.totalorder %s312, 16
      %s314 = scalar_select %p313, %s312, 16
      %s315 = smul.u32 64, %s314
      %s316 = smul.u32 %s315, 3
      %p317 = scmp.lt.s32.totalorder %s21, 1
      %s318 = scalar_select %p317, %s21, 1
      %p319 = scmp.lt.s32.totalorder %s311, 17
      %s320 = scalar_select %p319, %s311, 17
      %s321 = smul.addr %s320, 3
      %s322 = smul.addr %s318, 54
      %s323 = sadd.s32 %s321, %s322
      %s324 = smul.addr %s323, 4
      %s325 = scalar_lea.vmem %s0, %s324
      %s326 = smul.u32 16, %s22
      %s327 = ssub.s32 18, %s326
      %p328 = scmp.lt.s32.totalorder %s327, 16
      %s329 = scalar_select %p328, %s327, 16
      %s330 = smul.u32 64, %s329
      %s331 = smul.u32 %s330, 3
      %s332 = sadd.s32 %s22, 1
      %s333 = smul.u32 %s332, 8
      %s334 = smul.u32 2, %s333
      %p335 = scmp.lt.s32.totalorder %s21, 1
      %s336 = scalar_select %p335, %s21, 1
      %p337 = scmp.lt.s32.totalorder %s334, 17
      %s338 = scalar_select %p337, %s334, 17
      %s339 = smul.addr %s338, 3
      %s340 = smul.addr %s336, 54
      %s341 = sadd.s32 %s339, %s340
      %s342 = smul.addr %s341, 4
      %s343 = scalar_lea.vmem %s1, %s342
      %s344 = sadd.s32 %s22, 1
      %s345 = smul.u32 %s344, 8
      %s346 = smul.u32 2, %s345
      %s347 = smul.u32 32, %s22
      %p348 = scmp.lt.s32.totalorder %s21, 1
      %s349 = scalar_select %p348, %s21, 1
      %p350 = scmp.lt.s32.totalorder %s347, 31
      %s351 = scalar_select %p350, %s347, 31
      %s352 = smul.addr %s349, 32
      %s353 = sadd.s32 %s351, %s352
      %s354 = smul.addr %s353, 4
      %s355 = scalar_lea.vmem %s4, %s354
      %s356 = smul.u32 32, %s22
      %p357 = scmp.lt.s32.totalorder %s21, 1
      %s358 = scalar_select %p357, %s21, 1
      %p359 = scmp.lt.s32.totalorder %s22, 0
      %s360 = scalar_select %p359, %s22, 0
      %s361 = sadd.s32 %s360, %s358
      %s362 = smul.addr %s361, 2
      %s363 = scalar_lea.vmem %s5, %s362
      %v365 = vld [vmem:[%s325] sm:$0xf]
      %v366 = vld [vmem:[%s325 + $0x4] sm:$0xf]
      %v367 = vld [vmem:[%s325 + $0x8] sm:$0x1]
      %v368 = vld [vmem:[%s325 + $0xc] sm:$0xf]
      %v369 = vld [vmem:[%s325 + $0x10] sm:$0xf]
      %v370 = vld [vmem:[%s325 + $0x14] sm:$0x1]
      %v371 = vld [vmem:[%s325 + $0x18] sm:$0xf]
      %v372 = vld [vmem:[%s325 + $0x1c] sm:$0xf]
      %v373 = vld [vmem:[%s325 + $0x20] sm:$0x1]
      %v374 = vld [vmem:[%s325 + $0x24] sm:$0xf]
      %v375 = vld [vmem:[%s325 + $0x28] sm:$0xf]
      %v376 = vld [vmem:[%s325 + $0x2c] sm:$0x1]
      %v377 = vld [vmem:[%s325 + $0x30] sm:$0xf]
      %v378 = vld [vmem:[%s325 + $0x34] sm:$0xf]
      %v379 = vld [vmem:[%s325 + $0x38] sm:$0x1]
      %v380 = vld [vmem:[%s325 + $0x3c] sm:$0xf]
      %v381 = vld [vmem:[%s325 + $0x40] sm:$0xf]
      %v382 = vld [vmem:[%s325 + $0x44] sm:$0x1]
      %v383 = vld [vmem:[%s325 + $0x48] sm:$0xf]
      %v384 = vld [vmem:[%s325 + $0x4c] sm:$0xf]
      %v385 = vld [vmem:[%s325 + $0x50] sm:$0x1]
      %v386 = vld [vmem:[%s325 + $0x54] sm:$0xf]
      %v387 = vld [vmem:[%s325 + $0x58] sm:$0xf]
      %v388 = vld [vmem:[%s325 + $0x5c] sm:$0x1]
      %v389 = vld [vmem:[%s325 + $0x60] sm:$0xf]
      %v390 = vld [vmem:[%s325 + $0x64] sm:$0xf]
      %v391 = vld [vmem:[%s325 + $0x68] sm:$0x1]
      %v392 = vld [vmem:[%s325 + $0x6c] sm:$0xf]
      %v393 = vld [vmem:[%s325 + $0x70] sm:$0xf]
      %v394 = vld [vmem:[%s325 + $0x74] sm:$0x1]
      %v395 = vld [vmem:[%s325 + $0x78] sm:$0xf]
      %v396 = vld [vmem:[%s325 + $0x7c] sm:$0xf]
      %v397 = vld [vmem:[%s325 + $0x80] sm:$0x1]
      %v398 = vld [vmem:[%s325 + $0x84] sm:$0xf]
      %v399 = vld [vmem:[%s325 + $0x88] sm:$0xf]
      %v400 = vld [vmem:[%s325 + $0x8c] sm:$0x1]
      %v401 = vld [vmem:[%s325 + $0x90] sm:$0xf]
      %v402 = vld [vmem:[%s325 + $0x94] sm:$0xf]
      %v403 = vld [vmem:[%s325 + $0x98] sm:$0x1]
      %v404 = vld [vmem:[%s325 + $0x9c] sm:$0xf]
      %v405 = vld [vmem:[%s325 + $0xa0] sm:$0xf]
      %v406 = vld [vmem:[%s325 + $0xa4] sm:$0x1]
      %v407 = vld [vmem:[%s325 + $0xa8] sm:$0xf]
      %v408 = vld [vmem:[%s325 + $0xac] sm:$0xf]
      %v409 = vld [vmem:[%s325 + $0xb0] sm:$0x1]
      %v410 = vld [vmem:[%s325 + $0xb4] sm:$0xf]
      %v411 = vld [vmem:[%s325 + $0xb8] sm:$0xf]
      %v412 = vld [vmem:[%s325 + $0xbc] sm:$0x1]
      %v413 = vld [vmem:[%s343] sm:$0xf]
      %v414 = vld [vmem:[%s343 + $0x4] sm:$0xf]
      %v415 = vld [vmem:[%s343 + $0x8] sm:$0x1]
      %v416 = vld [vmem:[%s343 + $0xc] sm:$0xf]
      %v417 = vld [vmem:[%s343 + $0x10] sm:$0xf]
      %v418 = vld [vmem:[%s343 + $0x14] sm:$0x1]
      %v419 = vld [vmem:[%s2] sm:$0xf]
      %vm468 = vcmask 1042432
      %vm469 = vcmask 1046532
      %vm470 = vmor %vm468, %vm469
      %v471 = vrot.slane %v365, 5
      %v472 = vrot.slane %v471, 4
      %v473 = vrot.slane %v366, 5
      %v474 = vsel %vm470, %v472, %v473
      %v475 = vrot.slane %v473, 4
      %v476 = vrot.slane %v367, 5
      %v477 = vsel %vm470, %v475, %v476
      %v478 = vrot.slane %v368, 5
      %v479 = vrot.slane %v478, 4
      %v480 = vrot.slane %v369, 5
      %v481 = vsel %vm470, %v479, %v480
      %v482 = vrot.slane %v480, 4
      %v483 = vrot.slane %v370, 5
      %v484 = vsel %vm470, %v482, %v483
      %v485 = vrot.slane %v371, 5
      %v486 = vrot.slane %v485, 4
      %v487 = vrot.slane %v372, 5
      %v488 = vsel %vm470, %v486, %v487
      %v489 = vrot.slane %v487, 4
      %v490 = vrot.slane %v373, 5
      %v491 = vsel %vm470, %v489, %v490
      %v492 = vrot.slane %v374, 5
      %v493 = vrot.slane %v492, 4
      %v494 = vrot.slane %v375, 5
      %v495 = vsel %vm470, %v493, %v494
      %v496 = vrot.slane %v494, 4
      %v497 = vrot.slane %v376, 5
      %v498 = vsel %vm470, %v496, %v497
      %v499 = vrot.slane %v377, 5
      %v500 = vrot.slane %v499, 4
      %v501 = vrot.slane %v378, 5
      %v502 = vsel %vm470, %v500, %v501
      %v503 = vrot.slane %v501, 4
      %v504 = vrot.slane %v379, 5
      %v505 = vsel %vm470, %v503, %v504
      %v506 = vrot.slane %v380, 5
      %v507 = vrot.slane %v506, 4
      %v508 = vrot.slane %v381, 5
      %v509 = vsel %vm470, %v507, %v508
      %v510 = vrot.slane %v508, 4
      %v511 = vrot.slane %v382, 5
      %v512 = vsel %vm470, %v510, %v511
      %v513 = vrot.slane %v383, 5
      %v514 = vrot.slane %v513, 4
      %v515 = vrot.slane %v384, 5
      %v516 = vsel %vm470, %v514, %v515
      %v517 = vrot.slane %v515, 4
      %v518 = vrot.slane %v385, 5
      %v519 = vsel %vm470, %v517, %v518
      %v520 = vrot.slane %v386, 5
      %v521 = vrot.slane %v520, 4
      %v522 = vrot.slane %v387, 5
      %v523 = vsel %vm470, %v521, %v522
      %v524 = vrot.slane %v522, 4
      %v525 = vrot.slane %v388, 5
      %v526 = vsel %vm470, %v524, %v525
      %v527 = vrot.slane %v389, 5
      %v528 = vrot.slane %v527, 4
      %v529 = vrot.slane %v390, 5
      %v530 = vsel %vm470, %v528, %v529
      %v531 = vrot.slane %v529, 4
      %v532 = vrot.slane %v391, 5
      %v533 = vsel %vm470, %v531, %v532
      %v534 = vrot.slane %v392, 5
      %v535 = vrot.slane %v534, 4
      %v536 = vrot.slane %v393, 5
      %v537 = vsel %vm470, %v535, %v536
      %v538 = vrot.slane %v536, 4
      %v539 = vrot.slane %v394, 5
      %v540 = vsel %vm470, %v538, %v539
      %v541 = vrot.slane %v395, 5
      %v542 = vrot.slane %v541, 4
      %v543 = vrot.slane %v396, 5
      %v544 = vsel %vm470, %v542, %v543
      %v545 = vrot.slane %v543, 4
      %v546 = vrot.slane %v397, 5
      %v547 = vsel %vm470, %v545, %v546
      %v548 = vrot.slane %v398, 5
      %v549 = vrot.slane %v548, 4
      %v550 = vrot.slane %v399, 5
      %v551 = vsel %vm470, %v549, %v550
      %v552 = vrot.slane %v550, 4
      %v553 = vrot.slane %v400, 5
      %v554 = vsel %vm470, %v552, %v553
      %v555 = vrot.slane %v401, 5
      %v556 = vrot.slane %v555, 4
      %v557 = vrot.slane %v402, 5
      %v558 = vsel %vm470, %v556, %v557
      %v559 = vrot.slane %v557, 4
      %v560 = vrot.slane %v403, 5
      %v561 = vsel %vm470, %v559, %v560
      %v562 = vrot.slane %v404, 5
      %v563 = vrot.slane %v562, 4
      %v564 = vrot.slane %v405, 5
      %v565 = vsel %vm470, %v563, %v564
      %v566 = vrot.slane %v564, 4
      %v567 = vrot.slane %v406, 5
      %v568 = vsel %vm470, %v566, %v567
      %v569 = vrot.slane %v407, 5
      %v570 = vrot.slane %v569, 4
      %v571 = vrot.slane %v408, 5
      %v572 = vsel %vm470, %v570, %v571
      %v573 = vrot.slane %v571, 4
      %v574 = vrot.slane %v409, 5
      %v575 = vsel %vm470, %v573, %v574
      %v576 = vrot.slane %v410, 5
      %v577 = vrot.slane %v576, 4
      %v578 = vrot.slane %v411, 5
      %v579 = vsel %vm470, %v577, %v578
      %v580 = vrot.slane %v578, 4
      %v581 = vrot.slane %v412, 5
      %v582 = vsel %vm470, %v580, %v581
      %s583 = scalar_lea.vmem %s2, 4
      %v584 = vld [vmem:[%s583] sm:$0xf]
      %v585 = vunpack.c.l.b16 %v474
      %v586 = vunpack.c.l.b16 %v477
      %v587 = vunpack.c.l.b16 %v481
      %v588 = vunpack.c.l.b16 %v484
      %v589 = vunpack.c.l.b16 %v488
      %v590 = vunpack.c.l.b16 %v491
      %v591 = vunpack.c.l.b16 %v495
      %v592 = vunpack.c.l.b16 %v498
      %v593 = vunpack.c.l.b16 %v502
      %v594 = vunpack.c.l.b16 %v505
      %v595 = vunpack.c.l.b16 %v509
      %v596 = vunpack.c.l.b16 %v512
      %v597 = vunpack.c.l.b16 %v516
      %v598 = vunpack.c.l.b16 %v519
      %v599 = vunpack.c.l.b16 %v523
      %v600 = vunpack.c.l.b16 %v526
      %v601 = vunpack.c.l.b16 %v530
      %v602 = vunpack.c.l.b16 %v533
      %v603 = vunpack.c.l.b16 %v537
      %v604 = vunpack.c.l.b16 %v540
      %v605 = vunpack.c.l.b16 %v544
      %v606 = vunpack.c.l.b16 %v547
      %v607 = vunpack.c.l.b16 %v551
      %v608 = vunpack.c.l.b16 %v554
      %v609 = vunpack.c.l.b16 %v558
      %v610 = vunpack.c.l.b16 %v561
      %v611 = vunpack.c.l.b16 %v565
      %v612 = vunpack.c.l.b16 %v568
      %v613 = vunpack.c.l.b16 %v572
      %v614 = vunpack.c.l.b16 %v575
      %v615 = vunpack.c.l.b16 %v579
      %v616 = vunpack.c.l.b16 %v582
      %v617 = vpack.c.b16 %v586, %v585
      %v618 = vpack.c.b16 %v588, %v587
      %v619 = vpack.c.b16 %v590, %v589
      %v620 = vpack.c.b16 %v592, %v591
      %v621 = vpack.c.b16 %v594, %v593
      %v622 = vpack.c.b16 %v596, %v595
      %v623 = vpack.c.b16 %v598, %v597
      %v624 = vpack.c.b16 %v600, %v599
      %v625 = vpack.c.b16 %v602, %v601
      %v626 = vpack.c.b16 %v604, %v603
      %v627 = vpack.c.b16 %v606, %v605
      %v628 = vpack.c.b16 %v608, %v607
      %v629 = vpack.c.b16 %v610, %v609
      %v630 = vpack.c.b16 %v612, %v611
      %v631 = vpack.c.b16 %v614, %v613
      %v632 = vpack.c.b16 %v616, %v615
      %vm633 = vcmask 64512
      %v635 = vsel %vm633, %v617, 0
      %v638 = vsel %vm633, %v618, 0
      %v641 = vsel %vm633, %v619, 0
      %v644 = vsel %vm633, %v620, 0
      %v647 = vsel %vm633, %v621, 0
      %v650 = vsel %vm633, %v622, 0
      %v653 = vsel %vm633, %v623, 0
      %v656 = vsel %vm633, %v624, 0
      %v659 = vsel %vm633, %v625, 0
      %v662 = vsel %vm633, %v626, 0
      %v665 = vsel %vm633, %v627, 0
      %v668 = vsel %vm633, %v628, 0
      %v671 = vsel %vm633, %v629, 0
      %v674 = vsel %vm633, %v630, 0
      %v677 = vsel %vm633, %v631, 0
      %v680 = vsel %vm633, %v632, 0
      %vm682 = vcmask 1043456
      %v684 = vsel %vm682, %v584, 0
      %686 = vmatprep.subr.bf16.mxu0 0
      %687 = vmatpush1.bf16.msra.mxu0 %v684
      %688 = vmatprep.subr.bf16.mxu0 0
      %689 = vmatpush1.bf16.msra.mxu0 0
      %690 = vmatprep.subr.bf16.mxu0 0
      %691 = vmatpush1.bf16.msra.mxu0 0
      %692 = vmatprep.subr.bf16.mxu0 0
      %693 = vmatpush1.bf16.msra.mxu0 0
      %694 = vmatprep.subr.bf16.mxu0 0
      %695 = vmatpush1.bf16.msra.mxu0 0
      %696 = vmatprep.subr.bf16.mxu0 0
      %697 = vmatpush1.bf16.msra.mxu0 0
      %698 = vmatprep.subr.bf16.mxu0 0
      %699 = vmatpush1.bf16.msra.mxu0 0
      %700 = vmatprep.subr.bf16.mxu0 0
      %701 = vmatpush1.bf16.msra.mxu0 0
      %702 = vmatprep.subr.bf16.mxu0 0
      %703 = vmatpush1.bf16.msra.mxu0 0
      %704 = vmatprep.subr.bf16.mxu0 0
      %705 = vmatpush1.bf16.msra.mxu0 0
      %706 = vmatprep.subr.bf16.mxu0 0
      %707 = vmatpush1.bf16.msra.mxu0 0
      %708 = vmatprep.subr.bf16.mxu0 0
      %709 = vmatpush1.bf16.msra.mxu0 0
      %710 = vmatprep.subr.bf16.mxu0 0
      %711 = vmatpush1.bf16.msra.mxu0 0
      %712 = vmatprep.subr.bf16.mxu0 0
      %713 = vmatpush1.bf16.msra.mxu0 0
      %714 = vmatprep.subr.bf16.mxu0 0
      %715 = vmatpush1.bf16.msra.mxu0 0
      %716 = vmatprep.subr.bf16.mxu0 0
      %717 = vmatpush1.bf16.msra.mxu0 0
      %718 = vmatprep.mubr.bf16.mxu0 0
      %719 = vmatmul.mubr.bf16.gmra.mrb[0].mxu0 %v635
      %v720 = vpop.f32.mrb[0].mxu0
      %v721 = vadd.f32 0.0, %v720
      %v722 = vpop.f32.mrb[0].mxu0
      %v723 = vpop.f32.mrb[0].mxu0
      %v724 = vadd.f32 0.0, %v723
      %v725 = vpop.f32.mrb[0].mxu0
      %726 = vmatprep.mubr.bf16.mxu0 0
      %727 = vmatmul.mubr.bf16.gmra.mrb[0].mxu0 %v638
      %v728 = vpop.f32.mrb[0].mxu0
      %v729 = vadd.f32 0.0, %v728
      %v730 = vpop.f32.mrb[0].mxu0
      %v731 = vpop.f32.mrb[0].mxu0
      %v732 = vadd.f32 0.0, %v731
      %v733 = vpop.f32.mrb[0].mxu0
      %734 = vmatprep.mubr.bf16.mxu0 0
      %735 = vmatmul.mubr.bf16.gmra.mrb[0].mxu0 %v641
      %v736 = vpop.f32.mrb[0].mxu0
      %v737 = vadd.f32 0.0, %v736
      %v738 = vpop.f32.mrb[0].mxu0
      %v739 = vpop.f32.mrb[0].mxu0
      %v740 = vadd.f32 0.0, %v739
      %v741 = vpop.f32.mrb[0].mxu0
      %742 = vmatprep.mubr.bf16.mxu0 0
      %743 = vmatmul.mubr.bf16.gmra.mrb[0].mxu0 %v644
      %v744 = vpop.f32.mrb[0].mxu0
      %v745 = vadd.f32 0.0, %v744
      %v746 = vpop.f32.mrb[0].mxu0
      %v747 = vpop.f32.mrb[0].mxu0
      %v748 = vadd.f32 0.0, %v747
      %v749 = vpop.f32.mrb[0].mxu0
      %750 = vmatprep.mubr.bf16.mxu0 0
      %751 = vmatmul.mubr.bf16.gmra.mrb[0].mxu0 %v647
      %v752 = vpop.f32.mrb[0].mxu0
      %v753 = vadd.f32 0.0, %v752
      %v754 = vpop.f32.mrb[0].mxu0
      %v755 = vpop.f32.mrb[0].mxu0
      %v756 = vadd.f32 0.0, %v755
      %v757 = vpop.f32.mrb[0].mxu0
      %758 = vmatprep.mubr.bf16.mxu0 0
      %759 = vmatmul.mubr.bf16.gmra.mrb[0].mxu0 %v650
      %v760 = vpop.f32.mrb[0].mxu0
      %v761 = vadd.f32 0.0, %v760
      %v762 = vpop.f32.mrb[0].mxu0
      %v763 = vpop.f32.mrb[0].mxu0
      %v764 = vadd.f32 0.0, %v763
      %v765 = vpop.f32.mrb[0].mxu0
      %766 = vmatprep.mubr.bf16.mxu0 0
      %767 = vmatmul.mubr.bf16.gmra.mrb[0].mxu0 %v653
      %v768 = vpop.f32.mrb[0].mxu0
      %v769 = vadd.f32 0.0, %v768
      %v770 = vpop.f32.mrb[0].mxu0
      %v771 = vpop.f32.mrb[0].mxu0
      %v772 = vadd.f32 0.0, %v771
      %v773 = vpop.f32.mrb[0].mxu0
      %774 = vmatprep.mubr.bf16.mxu0 0
      %775 = vmatmul.mubr.bf16.gmra.mrb[0].mxu0 %v656
      %v776 = vpop.f32.mrb[0].mxu0
      %v777 = vadd.f32 0.0, %v776
      %v778 = vpop.f32.mrb[0].mxu0
      %v779 = vpop.f32.mrb[0].mxu0
      %v780 = vadd.f32 0.0, %v779
      %v781 = vpop.f32.mrb[0].mxu0
      %782 = vmatprep.mubr.bf16.mxu0 0
      %783 = vmatmul.mubr.bf16.gmra.mrb[0].mxu0 %v659
      %v784 = vpop.f32.mrb[0].mxu0
      %v785 = vadd.f32 0.0, %v784
      %v786 = vpop.f32.mrb[0].mxu0
      %v787 = vpop.f32.mrb[0].mxu0
      %v788 = vadd.f32 0.0, %v787
      %v789 = vpop.f32.mrb[0].mxu0
      %790 = vmatprep.mubr.bf16.mxu0 0
      %791 = vmatmul.mubr.bf16.gmra.mrb[0].mxu0 %v662
      %v792 = vpop.f32.mrb[0].mxu0
      %v793 = vadd.f32 0.0, %v792
      %v794 = vpop.f32.mrb[0].mxu0
      %v795 = vpop.f32.mrb[0].mxu0
      %v796 = vadd.f32 0.0, %v795
      %v797 = vpop.f32.mrb[0].mxu0
      %798 = vmatprep.mubr.bf16.mxu0 0
      %799 = vmatmul.mubr.bf16.gmra.mrb[0].mxu0 %v665
      %v800 = vpop.f32.mrb[0].mxu0
      %v801 = vadd.f32 0.0, %v800
      %v802 = vpop.f32.mrb[0].mxu0
      %v803 = vpop.f32.mrb[0].mxu0
      %v804 = vadd.f32 0.0, %v803
      %v805 = vpop.f32.mrb[0].mxu0
      %806 = vmatprep.mubr.bf16.mxu0 0
      %807 = vmatmul.mubr.bf16.gmra.mrb[0].mxu0 %v668
      %v808 = vpop.f32.mrb[0].mxu0
      %v809 = vadd.f32 0.0, %v808
      %v810 = vpop.f32.mrb[0].mxu0
      %v811 = vpop.f32.mrb[0].mxu0
      %v812 = vadd.f32 0.0, %v811
      %v813 = vpop.f32.mrb[0].mxu0
      %814 = vmatprep.mubr.bf16.mxu0 0
      %815 = vmatmul.mubr.bf16.gmra.mrb[0].mxu0 %v671
      %v816 = vpop.f32.mrb[0].mxu0
      %v817 = vadd.f32 0.0, %v816
      %v818 = vpop.f32.mrb[0].mxu0
      %v819 = vpop.f32.mrb[0].mxu0
      %v820 = vadd.f32 0.0, %v819
      %v821 = vpop.f32.mrb[0].mxu0
      %822 = vmatprep.mubr.bf16.mxu0 0
      %823 = vmatmul.mubr.bf16.gmra.mrb[0].mxu0 %v674
      %v824 = vpop.f32.mrb[0].mxu0
      %v825 = vadd.f32 0.0, %v824
      %v826 = vpop.f32.mrb[0].mxu0
      %v827 = vpop.f32.mrb[0].mxu0
      %v828 = vadd.f32 0.0, %v827
      %v829 = vpop.f32.mrb[0].mxu0
      %830 = vmatprep.mubr.bf16.mxu0 0
      %831 = vmatmul.mubr.bf16.gmra.mrb[0].mxu0 %v677
      %v832 = vpop.f32.mrb[0].mxu0
      %v833 = vadd.f32 0.0, %v832
      %v834 = vpop.f32.mrb[0].mxu0
      %v835 = vpop.f32.mrb[0].mxu0
      %v836 = vadd.f32 0.0, %v835
      %v837 = vpop.f32.mrb[0].mxu0
      %838 = vmatprep.mubr.bf16.mxu0 0
      %839 = vmatmul.mubr.bf16.gmra.mrb[0].mxu0 %v680
      %v840 = vpop.f32.mrb[0].mxu0
      %v841 = vadd.f32 0.0, %v840
      %v842 = vpop.f32.mrb[0].mxu0
      %v843 = vpop.f32.mrb[0].mxu0
      %v844 = vadd.f32 0.0, %v843
      %v845 = vpop.f32.mrb[0].mxu0
      %846 = vdwg.mxu0
      %v847 = vunpack.c.l.b16 %v365
      %v848 = vunpack.c.l.b16 %v366
      %v849 = vunpack.c.l.b16 %v368
      %v850 = vunpack.c.l.b16 %v369
      %v851 = vunpack.c.l.b16 %v371
      %v852 = vunpack.c.l.b16 %v372
      %v853 = vunpack.c.l.b16 %v374
      %v854 = vunpack.c.l.b16 %v375
      %v855 = vunpack.c.l.b16 %v377
      %v856 = vunpack.c.l.b16 %v378
      %v857 = vunpack.c.l.b16 %v380
      %v858 = vunpack.c.l.b16 %v381
      %v859 = vunpack.c.l.b16 %v383
      %v860 = vunpack.c.l.b16 %v384
      %v861 = vunpack.c.l.b16 %v386
      %v862 = vunpack.c.l.b16 %v387
      %v863 = vunpack.c.l.b16 %v389
      %v864 = vunpack.c.l.b16 %v390
      %v865 = vunpack.c.l.b16 %v392
      %v866 = vunpack.c.l.b16 %v393
      %v867 = vunpack.c.l.b16 %v395
      %v868 = vunpack.c.l.b16 %v396
      %v869 = vunpack.c.l.b16 %v398
      %v870 = vunpack.c.l.b16 %v399
      %v871 = vunpack.c.l.b16 %v401
      %v872 = vunpack.c.l.b16 %v402
      %v873 = vunpack.c.l.b16 %v404
      %v874 = vunpack.c.l.b16 %v405
      %v875 = vunpack.c.l.b16 %v407
      %v876 = vunpack.c.l.b16 %v408
      %v877 = vunpack.c.l.b16 %v410
      %v878 = vunpack.c.l.b16 %v411
      %v879 = vpack.c.b16 %v848, %v847
      %v880 = vpack.c.b16 %v850, %v849
      %v881 = vpack.c.b16 %v852, %v851
      %v882 = vpack.c.b16 %v854, %v853
      %v883 = vpack.c.b16 %v856, %v855
      %v884 = vpack.c.b16 %v858, %v857
      %v885 = vpack.c.b16 %v860, %v859
      %v886 = vpack.c.b16 %v862, %v861
      %v887 = vpack.c.b16 %v864, %v863
      %v888 = vpack.c.b16 %v866, %v865
      %v889 = vpack.c.b16 %v868, %v867
      %v890 = vpack.c.b16 %v870, %v869
      %v891 = vpack.c.b16 %v872, %v871
      %v892 = vpack.c.b16 %v874, %v873
      %v893 = vpack.c.b16 %v876, %v875
      %v894 = vpack.c.b16 %v878, %v877
      %v896 = vsel %vm633, %v879, 0
      %v899 = vsel %vm633, %v880, 0
      %v902 = vsel %vm633, %v881, 0
      %v905 = vsel %vm633, %v882, 0
      %v908 = vsel %vm633, %v883, 0
      %v911 = vsel %vm633, %v884, 0
      %v914 = vsel %vm633, %v885, 0
      %v917 = vsel %vm633, %v886, 0
      %v920 = vsel %vm633, %v887, 0
      %v923 = vsel %vm633, %v888, 0
      %v926 = vsel %vm633, %v889, 0
      %v929 = vsel %vm633, %v890, 0
      %v932 = vsel %vm633, %v891, 0
      %v935 = vsel %vm633, %v892, 0
      %v938 = vsel %vm633, %v893, 0
      %v941 = vsel %vm633, %v894, 0
      %v944 = vsel %vm682, %v419, 0
      %946 = vmatprep.subr.bf16.mxu0 0
      %947 = vmatpush1.bf16.msra.mxu0 %v944
      %948 = vmatprep.subr.bf16.mxu0 0
      %949 = vmatpush1.bf16.msra.mxu0 0
      %950 = vmatprep.subr.bf16.mxu0 0
      %951 = vmatpush1.bf16.msra.mxu0 0
      %952 = vmatprep.subr.bf16.mxu0 0
      %953 = vmatpush1.bf16.msra.mxu0 0
      %954 = vmatprep.subr.bf16.mxu0 0
      %955 = vmatpush1.bf16.msra.mxu0 0
      %956 = vmatprep.subr.bf16.mxu0 0
      %957 = vmatpush1.bf16.msra.mxu0 0
      %958 = vmatprep.subr.bf16.mxu0 0
      %959 = vmatpush1.bf16.msra.mxu0 0
      %960 = vmatprep.subr.bf16.mxu0 0
      %961 = vmatpush1.bf16.msra.mxu0 0
      %962 = vmatprep.subr.bf16.mxu0 0
      %963 = vmatpush1.bf16.msra.mxu0 0
      %964 = vmatprep.subr.bf16.mxu0 0
      %965 = vmatpush1.bf16.msra.mxu0 0
      %966 = vmatprep.subr.bf16.mxu0 0
      %967 = vmatpush1.bf16.msra.mxu0 0
      %968 = vmatprep.subr.bf16.mxu0 0
      %969 = vmatpush1.bf16.msra.mxu0 0
      %970 = vmatprep.subr.bf16.mxu0 0
      %971 = vmatpush1.bf16.msra.mxu0 0
      %972 = vmatprep.subr.bf16.mxu0 0
      %973 = vmatpush1.bf16.msra.mxu0 0
      %974 = vmatprep.subr.bf16.mxu0 0
      %975 = vmatpush1.bf16.msra.mxu0 0
      %976 = vmatprep.subr.bf16.mxu0 0
      %977 = vmatpush1.bf16.msra.mxu0 0
      %978 = vmatprep.mubr.bf16.mxu0 0
      %979 = vmatmul.mubr.bf16.gmra.mrb[0].mxu0 %v896
      %v980 = vpop.f32.mrb[0].mxu0
      %v981 = vadd.f32 %v721, %v980
      %v982 = vpop.f32.mrb[0].mxu0
      %v983 = vpop.f32.mrb[0].mxu0
      %v984 = vadd.f32 %v724, %v983
      %v985 = vpop.f32.mrb[0].mxu0
      %986 = vmatprep.mubr.bf16.mxu0 0
      %987 = vmatmul.mubr.bf16.gmra.mrb[0].mxu0 %v899
      %v988 = vpop.f32.mrb[0].mxu0
      %v989 = vadd.f32 %v729, %v988
      %v990 = vpop.f32.mrb[0].mxu0
      %v991 = vpop.f32.mrb[0].mxu0
      %v992 = vadd.f32 %v732, %v991
      %v993 = vpop.f32.mrb[0].mxu0
      %994 = vmatprep.mubr.bf16.mxu0 0
      %995 = vmatmul.mubr.bf16.gmra.mrb[0].mxu0 %v902
      %v996 = vpop.f32.mrb[0].mxu0
      %v997 = vadd.f32 %v737, %v996
      %v998 = vpop.f32.mrb[0].mxu0
      %v999 = vpop.f32.mrb[0].mxu0
      %v1000 = vadd.f32 %v740, %v999
      %v1001 = vpop.f32.mrb[0].mxu0
      %1002 = vmatprep.mubr.bf16.mxu0 0
      %1003 = vmatmul.mubr.bf16.gmra.mrb[0].mxu0 %v905
      %v1004 = vpop.f32.mrb[0].mxu0
      %v1005 = vadd.f32 %v745, %v1004
      %v1006 = vpop.f32.mrb[0].mxu0
      %v1007 = vpop.f32.mrb[0].mxu0
      %v1008 = vadd.f32 %v748, %v1007
      %v1009 = vpop.f32.mrb[0].mxu0
      %1010 = vmatprep.mubr.bf16.mxu0 0
      %1011 = vmatmul.mubr.bf16.gmra.mrb[0].mxu0 %v908
      %v1012 = vpop.f32.mrb[0].mxu0
      %v1013 = vadd.f32 %v753, %v1012
      %v1014 = vpop.f32.mrb[0].mxu0
      %v1015 = vpop.f32.mrb[0].mxu0
      %v1016 = vadd.f32 %v756, %v1015
      %v1017 = vpop.f32.mrb[0].mxu0
      %1018 = vmatprep.mubr.bf16.mxu0 0
      %1019 = vmatmul.mubr.bf16.gmra.mrb[0].mxu0 %v911
      %v1020 = vpop.f32.mrb[0].mxu0
      %v1021 = vadd.f32 %v761, %v1020
      %v1022 = vpop.f32.mrb[0].mxu0
      %v1023 = vpop.f32.mrb[0].mxu0
      %v1024 = vadd.f32 %v764, %v1023
      %v1025 = vpop.f32.mrb[0].mxu0
      %1026 = vmatprep.mubr.bf16.mxu0 0
      %1027 = vmatmul.mubr.bf16.gmra.mrb[0].mxu0 %v914
      %v1028 = vpop.f32.mrb[0].mxu0
      %v1029 = vadd.f32 %v769, %v1028
      %v1030 = vpop.f32.mrb[0].mxu0
      %v1031 = vpop.f32.mrb[0].mxu0
      %v1032 = vadd.f32 %v772, %v1031
      %v1033 = vpop.f32.mrb[0].mxu0
      %1034 = vmatprep.mubr.bf16.mxu0 0
      %1035 = vmatmul.mubr.bf16.gmra.mrb[0].mxu0 %v917
      %v1036 = vpop.f32.mrb[0].mxu0
      %v1037 = vadd.f32 %v777, %v1036
      %v1038 = vpop.f32.mrb[0].mxu0
      %v1039 = vpop.f32.mrb[0].mxu0
      %v1040 = vadd.f32 %v780, %v1039
      %v1041 = vpop.f32.mrb[0].mxu0
      %1042 = vmatprep.mubr.bf16.mxu0 0
      %1043 = vmatmul.mubr.bf16.gmra.mrb[0].mxu0 %v920
      %v1044 = vpop.f32.mrb[0].mxu0
      %v1045 = vadd.f32 %v785, %v1044
      %v1046 = vpop.f32.mrb[0].mxu0
      %v1047 = vpop.f32.mrb[0].mxu0
      %v1048 = vadd.f32 %v788, %v1047
      %v1049 = vpop.f32.mrb[0].mxu0
      %1050 = vmatprep.mubr.bf16.mxu0 0
      %1051 = vmatmul.mubr.bf16.gmra.mrb[0].mxu0 %v923
      %v1052 = vpop.f32.mrb[0].mxu0
      %v1053 = vadd.f32 %v793, %v1052
      %v1054 = vpop.f32.mrb[0].mxu0
      %v1055 = vpop.f32.mrb[0].mxu0
      %v1056 = vadd.f32 %v796, %v1055
      %v1057 = vpop.f32.mrb[0].mxu0
      %1058 = vmatprep.mubr.bf16.mxu0 0
      %1059 = vmatmul.mubr.bf16.gmra.mrb[0].mxu0 %v926
      %v1060 = vpop.f32.mrb[0].mxu0
      %v1061 = vadd.f32 %v801, %v1060
      %v1062 = vpop.f32.mrb[0].mxu0
      %v1063 = vpop.f32.mrb[0].mxu0
      %v1064 = vadd.f32 %v804, %v1063
      %v1065 = vpop.f32.mrb[0].mxu0
      %1066 = vmatprep.mubr.bf16.mxu0 0
      %1067 = vmatmul.mubr.bf16.gmra.mrb[0].mxu0 %v929
      %v1068 = vpop.f32.mrb[0].mxu0
      %v1069 = vadd.f32 %v809, %v1068
      %v1070 = vpop.f32.mrb[0].mxu0
      %v1071 = vpop.f32.mrb[0].mxu0
      %v1072 = vadd.f32 %v812, %v1071
      %v1073 = vpop.f32.mrb[0].mxu0
      %1074 = vmatprep.mubr.bf16.mxu0 0
      %1075 = vmatmul.mubr.bf16.gmra.mrb[0].mxu0 %v932
      %v1076 = vpop.f32.mrb[0].mxu0
      %v1077 = vadd.f32 %v817, %v1076
      %v1078 = vpop.f32.mrb[0].mxu0
      %v1079 = vpop.f32.mrb[0].mxu0
      %v1080 = vadd.f32 %v820, %v1079
      %v1081 = vpop.f32.mrb[0].mxu0
      %1082 = vmatprep.mubr.bf16.mxu0 0
      %1083 = vmatmul.mubr.bf16.gmra.mrb[0].mxu0 %v935
      %v1084 = vpop.f32.mrb[0].mxu0
      %v1085 = vadd.f32 %v825, %v1084
      %v1086 = vpop.f32.mrb[0].mxu0
      %v1087 = vpop.f32.mrb[0].mxu0
      %v1088 = vadd.f32 %v828, %v1087
      %v1089 = vpop.f32.mrb[0].mxu0
      %1090 = vmatprep.mubr.bf16.mxu0 0
      %1091 = vmatmul.mubr.bf16.gmra.mrb[0].mxu0 %v938
      %v1092 = vpop.f32.mrb[0].mxu0
      %v1093 = vadd.f32 %v833, %v1092
      %v1094 = vpop.f32.mrb[0].mxu0
      %v1095 = vpop.f32.mrb[0].mxu0
      %v1096 = vadd.f32 %v836, %v1095
      %v1097 = vpop.f32.mrb[0].mxu0
      %1098 = vmatprep.mubr.bf16.mxu0 0
      %1099 = vmatmul.mubr.bf16.gmra.mrb[0].mxu0 %v941
      %v1100 = vpop.f32.mrb[0].mxu0
      %v1101 = vadd.f32 %v841, %v1100
      %v1102 = vpop.f32.mrb[0].mxu0
      %v1103 = vpop.f32.mrb[0].mxu0
      %v1104 = vadd.f32 %v844, %v1103
      %v1105 = vpop.f32.mrb[0].mxu0
      %1106 = vdwg.mxu0
      %s1107 = scalar_lea.vmem %s2, 8
      %v1108 = vld [vmem:[%s1107] sm:$0xf]
      %v1113 = vunpack.c.l.b16 %v413
      %v1114 = vunpack.c.l.b16 %v414
      %v1115 = vunpack.c.l.b16 %v416
      %v1116 = vunpack.c.l.b16 %v417
      %v1117 = vpack.c.b16 %v1114, %v1113
      %v1118 = vpack.c.b16 %v1116, %v1115
      %v1120 = vsel %vm633, %v1117, 0
      %v1123 = vsel %vm633, %v1118, 0
      %v1126 = vsel %vm682, %v1108, 0
      %1128 = vmatprep.subr.bf16.mxu0 0
      %1129 = vmatpush1.bf16.msra.mxu0 %v1126
      %1130 = vmatprep.subr.bf16.mxu0 0
      %1131 = vmatpush1.bf16.msra.mxu0 0
      %1132 = vmatprep.subr.bf16.mxu0 0
      %1133 = vmatpush1.bf16.msra.mxu0 0
      %1134 = vmatprep.subr.bf16.mxu0 0
      %1135 = vmatpush1.bf16.msra.mxu0 0
      %1136 = vmatprep.subr.bf16.mxu0 0
      %1137 = vmatpush1.bf16.msra.mxu0 0
      %1138 = vmatprep.subr.bf16.mxu0 0
      %1139 = vmatpush1.bf16.msra.mxu0 0
      %1140 = vmatprep.subr.bf16.mxu0 0
      %1141 = vmatpush1.bf16.msra.mxu0 0
      %1142 = vmatprep.subr.bf16.mxu0 0
      %1143 = vmatpush1.bf16.msra.mxu0 0
      %1144 = vmatprep.subr.bf16.mxu0 0
      %1145 = vmatpush1.bf16.msra.mxu0 0
      %1146 = vmatprep.subr.bf16.mxu0 0
      %1147 = vmatpush1.bf16.msra.mxu0 0
      %1148 = vmatprep.subr.bf16.mxu0 0
      %1149 = vmatpush1.bf16.msra.mxu0 0
      %1150 = vmatprep.subr.bf16.mxu0 0
      %1151 = vmatpush1.bf16.msra.mxu0 0
      %1152 = vmatprep.subr.bf16.mxu0 0
      %1153 = vmatpush1.bf16.msra.mxu0 0
      %1154 = vmatprep.subr.bf16.mxu0 0
      %1155 = vmatpush1.bf16.msra.mxu0 0
      %1156 = vmatprep.subr.bf16.mxu0 0
      %1157 = vmatpush1.bf16.msra.mxu0 0
      %1158 = vmatprep.subr.bf16.mxu0 0
      %1159 = vmatpush1.bf16.msra.mxu0 0
      %1160 = vmatprep.mubr.bf16.mxu0 0
      %1161 = vmatmul.mubr.bf16.gmra.mrb[0].mxu0 %v902
      %v1162 = vpop.f32.mrb[0].mxu0
      %v1163 = vadd.f32 0.0, %v1162
      %v1164 = vpop.f32.mrb[0].mxu0
      %v1165 = vpop.f32.mrb[0].mxu0
      %v1166 = vadd.f32 0.0, %v1165
      %v1167 = vpop.f32.mrb[0].mxu0
      %1168 = vmatprep.mubr.bf16.mxu0 0
      %1169 = vmatmul.mubr.bf16.gmra.mrb[0].mxu0 %v905
      %v1170 = vpop.f32.mrb[0].mxu0
      %v1171 = vadd.f32 0.0, %v1170
      %v1172 = vpop.f32.mrb[0].mxu0
      %v1173 = vpop.f32.mrb[0].mxu0
      %v1174 = vadd.f32 0.0, %v1173
      %v1175 = vpop.f32.mrb[0].mxu0
      %1176 = vmatprep.mubr.bf16.mxu0 0
      %1177 = vmatmul.mubr.bf16.gmra.mrb[0].mxu0 %v908
      %v1178 = vpop.f32.mrb[0].mxu0
      %v1179 = vadd.f32 0.0, %v1178
      %v1180 = vpop.f32.mrb[0].mxu0
      %v1181 = vpop.f32.mrb[0].mxu0
      %v1182 = vadd.f32 0.0, %v1181
      %v1183 = vpop.f32.mrb[0].mxu0
      %1184 = vmatprep.mubr.bf16.mxu0 0
      %1185 = vmatmul.mubr.bf16.gmra.mrb[0].mxu0 %v911
      %v1186 = vpop.f32.mrb[0].mxu0
      %v1187 = vadd.f32 0.0, %v1186
      %v1188 = vpop.f32.mrb[0].mxu0
      %v1189 = vpop.f32.mrb[0].mxu0
      %v1190 = vadd.f32 0.0, %v1189
      %v1191 = vpop.f32.mrb[0].mxu0
      %1192 = vmatprep.mubr.bf16.mxu0 0
      %1193 = vmatmul.mubr.bf16.gmra.mrb[0].mxu0 %v914
      %v1194 = vpop.f32.mrb[0].mxu0
      %v1195 = vadd.f32 0.0, %v1194
      %v1196 = vpop.f32.mrb[0].mxu0
      %v1197 = vpop.f32.mrb[0].mxu0
      %v1198 = vadd.f32 0.0, %v1197
      %v1199 = vpop.f32.mrb[0].mxu0
      %1200 = vmatprep.mubr.bf16.mxu0 0
      %1201 = vmatmul.mubr.bf16.gmra.mrb[0].mxu0 %v917
      %v1202 = vpop.f32.mrb[0].mxu0
      %v1203 = vadd.f32 0.0, %v1202
      %v1204 = vpop.f32.mrb[0].mxu0
      %v1205 = vpop.f32.mrb[0].mxu0
      %v1206 = vadd.f32 0.0, %v1205
      %v1207 = vpop.f32.mrb[0].mxu0
      %1208 = vmatprep.mubr.bf16.mxu0 0
      %1209 = vmatmul.mubr.bf16.gmra.mrb[0].mxu0 %v920
      %v1210 = vpop.f32.mrb[0].mxu0
      %v1211 = vadd.f32 0.0, %v1210
      %v1212 = vpop.f32.mrb[0].mxu0
      %v1213 = vpop.f32.mrb[0].mxu0
      %v1214 = vadd.f32 0.0, %v1213
      %v1215 = vpop.f32.mrb[0].mxu0
      %1216 = vmatprep.mubr.bf16.mxu0 0
      %1217 = vmatmul.mubr.bf16.gmra.mrb[0].mxu0 %v923
      %v1218 = vpop.f32.mrb[0].mxu0
      %v1219 = vadd.f32 0.0, %v1218
      %v1220 = vpop.f32.mrb[0].mxu0
      %v1221 = vpop.f32.mrb[0].mxu0
      %v1222 = vadd.f32 0.0, %v1221
      %v1223 = vpop.f32.mrb[0].mxu0
      %1224 = vmatprep.mubr.bf16.mxu0 0
      %1225 = vmatmul.mubr.bf16.gmra.mrb[0].mxu0 %v926
      %v1226 = vpop.f32.mrb[0].mxu0
      %v1227 = vadd.f32 0.0, %v1226
      %v1228 = vpop.f32.mrb[0].mxu0
      %v1229 = vpop.f32.mrb[0].mxu0
      %v1230 = vadd.f32 0.0, %v1229
      %v1231 = vpop.f32.mrb[0].mxu0
      %1232 = vmatprep.mubr.bf16.mxu0 0
      %1233 = vmatmul.mubr.bf16.gmra.mrb[0].mxu0 %v929
      %v1234 = vpop.f32.mrb[0].mxu0
      %v1235 = vadd.f32 0.0, %v1234
      %v1236 = vpop.f32.mrb[0].mxu0
      %v1237 = vpop.f32.mrb[0].mxu0
      %v1238 = vadd.f32 0.0, %v1237
      %v1239 = vpop.f32.mrb[0].mxu0
      %1240 = vmatprep.mubr.bf16.mxu0 0
      %1241 = vmatmul.mubr.bf16.gmra.mrb[0].mxu0 %v932
      %v1242 = vpop.f32.mrb[0].mxu0
      %v1243 = vadd.f32 0.0, %v1242
      %v1244 = vpop.f32.mrb[0].mxu0
      %v1245 = vpop.f32.mrb[0].mxu0
      %v1246 = vadd.f32 0.0, %v1245
      %v1247 = vpop.f32.mrb[0].mxu0
      %1248 = vmatprep.mubr.bf16.mxu0 0
      %1249 = vmatmul.mubr.bf16.gmra.mrb[0].mxu0 %v935
      %v1250 = vpop.f32.mrb[0].mxu0
      %v1251 = vadd.f32 0.0, %v1250
      %v1252 = vpop.f32.mrb[0].mxu0
      %v1253 = vpop.f32.mrb[0].mxu0
      %v1254 = vadd.f32 0.0, %v1253
      %v1255 = vpop.f32.mrb[0].mxu0
      %1256 = vmatprep.mubr.bf16.mxu0 0
      %1257 = vmatmul.mubr.bf16.gmra.mrb[0].mxu0 %v938
      %v1258 = vpop.f32.mrb[0].mxu0
      %v1259 = vadd.f32 0.0, %v1258
      %v1260 = vpop.f32.mrb[0].mxu0
      %v1261 = vpop.f32.mrb[0].mxu0
      %v1262 = vadd.f32 0.0, %v1261
      %v1263 = vpop.f32.mrb[0].mxu0
      %1264 = vmatprep.mubr.bf16.mxu0 0
      %1265 = vmatmul.mubr.bf16.gmra.mrb[0].mxu0 %v941
      %v1266 = vpop.f32.mrb[0].mxu0
      %v1267 = vadd.f32 0.0, %v1266
      %v1268 = vpop.f32.mrb[0].mxu0
      %v1269 = vpop.f32.mrb[0].mxu0
      %v1270 = vadd.f32 0.0, %v1269
      %v1271 = vpop.f32.mrb[0].mxu0
      %1272 = vmatprep.mubr.bf16.mxu0 0
      %1273 = vmatmul.mubr.bf16.gmra.mrb[0].mxu0 %v1120
      %v1274 = vpop.f32.mrb[0].mxu0
      %v1275 = vadd.f32 0.0, %v1274
      %v1276 = vpop.f32.mrb[0].mxu0
      %v1277 = vpop.f32.mrb[0].mxu0
      %v1278 = vadd.f32 0.0, %v1277
      %v1279 = vpop.f32.mrb[0].mxu0
      %1280 = vmatprep.mubr.bf16.mxu0 0
      %1281 = vmatmul.mubr.bf16.gmra.mrb[0].mxu0 %v1123
      %v1282 = vpop.f32.mrb[0].mxu0
      %v1283 = vadd.f32 0.0, %v1282
      %v1284 = vpop.f32.mrb[0].mxu0
      %v1285 = vpop.f32.mrb[0].mxu0
      %v1286 = vadd.f32 0.0, %v1285
      %v1287 = vpop.f32.mrb[0].mxu0
      %1288 = vdwg.mxu0
      %v1289 = vadd.f32 %v981, %v1163
      %v1290 = vadd.f32 %v984, %v1166
      %v1291 = vadd.f32 %v989, %v1171
      %v1292 = vadd.f32 %v992, %v1174
      %v1293 = vadd.f32 %v997, %v1179
      %v1294 = vadd.f32 %v1000, %v1182
      %v1295 = vadd.f32 %v1005, %v1187
      %v1296 = vadd.f32 %v1008, %v1190
      %v1297 = vadd.f32 %v1013, %v1195
      %v1298 = vadd.f32 %v1016, %v1198
      %v1299 = vadd.f32 %v1021, %v1203
      %v1300 = vadd.f32 %v1024, %v1206
      %v1301 = vadd.f32 %v1029, %v1211
      %v1302 = vadd.f32 %v1032, %v1214
      %v1303 = vadd.f32 %v1037, %v1219
      %v1304 = vadd.f32 %v1040, %v1222
      %v1305 = vadd.f32 %v1045, %v1227
      %v1306 = vadd.f32 %v1048, %v1230
      %v1307 = vadd.f32 %v1053, %v1235
      %v1308 = vadd.f32 %v1056, %v1238
      %v1309 = vadd.f32 %v1061, %v1243
      %v1310 = vadd.f32 %v1064, %v1246
      %v1311 = vadd.f32 %v1069, %v1251
      %v1312 = vadd.f32 %v1072, %v1254
      %v1313 = vadd.f32 %v1077, %v1259
      %v1314 = vadd.f32 %v1080, %v1262
      %v1315 = vadd.f32 %v1085, %v1267
      %v1316 = vadd.f32 %v1088, %v1270
      %v1317 = vadd.f32 %v1093, %v1275
      %v1318 = vadd.f32 %v1096, %v1278
      %v1319 = vadd.f32 %v1101, %v1283
      %v1320 = vadd.f32 %v1104, %v1286
      %v1323 = vrot.slane %v413, 5
      %v1324 = vrot.slane %v1323, 4
      %v1325 = vrot.slane %v414, 5
      %v1326 = vsel %vm470, %v1324, %v1325
      %v1327 = vrot.slane %v1325, 4
      %v1328 = vrot.slane %v415, 5
      %v1329 = vsel %vm470, %v1327, %v1328
      %v1330 = vrot.slane %v416, 5
      %v1331 = vrot.slane %v1330, 4
      %v1332 = vrot.slane %v417, 5
      %v1333 = vsel %vm470, %v1331, %v1332
      %v1334 = vrot.slane %v1332, 4
      %v1335 = vrot.slane %v418, 5
      %v1336 = vsel %vm470, %v1334, %v1335
      %s1337 = scalar_lea.vmem %s2, 12
      %v1338 = vld [vmem:[%s1337] sm:$0xf]
      %v1339 = vunpack.c.l.b16 %v1326
      %v1340 = vunpack.c.l.b16 %v1329
      %v1341 = vunpack.c.l.b16 %v1333
      %v1342 = vunpack.c.l.b16 %v1336
      %v1343 = vpack.c.b16 %v1340, %v1339
      %v1344 = vpack.c.b16 %v1342, %v1341
      %v1346 = vsel %vm633, %v1343, 0
      %v1349 = vsel %vm633, %v1344, 0
      %v1352 = vsel %vm682, %v1338, 0
      %1354 = vmatprep.subr.bf16.mxu0 0
      %1355 = vmatpush1.bf16.msra.mxu0 %v1352
      %1356 = vmatprep.subr.bf16.mxu0 0
      %1357 = vmatpush1.bf16.msra.mxu0 0
      %1358 = vmatprep.subr.bf16.mxu0 0
      %1359 = vmatpush1.bf16.msra.mxu0 0
      %1360 = vmatprep.subr.bf16.mxu0 0
      %1361 = vmatpush1.bf16.msra.mxu0 0
      %1362 = vmatprep.subr.bf16.mxu0 0
      %1363 = vmatpush1.bf16.msra.mxu0 0
      %1364 = vmatprep.subr.bf16.mxu0 0
      %1365 = vmatpush1.bf16.msra.mxu0 0
      %1366 = vmatprep.subr.bf16.mxu0 0
      %1367 = vmatpush1.bf16.msra.mxu0 0
      %1368 = vmatprep.subr.bf16.mxu0 0
      %1369 = vmatpush1.bf16.msra.mxu0 0
      %1370 = vmatprep.subr.bf16.mxu0 0
      %1371 = vmatpush1.bf16.msra.mxu0 0
      %1372 = vmatprep.subr.bf16.mxu0 0
      %1373 = vmatpush1.bf16.msra.mxu0 0
      %1374 = vmatprep.subr.bf16.mxu0 0
      %1375 = vmatpush1.bf16.msra.mxu0 0
      %1376 = vmatprep.subr.bf16.mxu0 0
      %1377 = vmatpush1.bf16.msra.mxu0 0
      %1378 = vmatprep.subr.bf16.mxu0 0
      %1379 = vmatpush1.bf16.msra.mxu0 0
      %1380 = vmatprep.subr.bf16.mxu0 0
      %1381 = vmatpush1.bf16.msra.mxu0 0
      %1382 = vmatprep.subr.bf16.mxu0 0
      %1383 = vmatpush1.bf16.msra.mxu0 0
      %1384 = vmatprep.subr.bf16.mxu0 0
      %1385 = vmatpush1.bf16.msra.mxu0 0
      %1386 = vmatprep.mubr.bf16.mxu0 0
      %1387 = vmatmul.mubr.bf16.gmra.mrb[0].mxu0 %v641
      %v1388 = vpop.f32.mrb[0].mxu0
      %v1389 = vadd.f32 0.0, %v1388
      %v1390 = vpop.f32.mrb[0].mxu0
      %v1391 = vpop.f32.mrb[0].mxu0
      %v1392 = vadd.f32 0.0, %v1391
      %v1393 = vpop.f32.mrb[0].mxu0
      %1394 = vmatprep.mubr.bf16.mxu0 0
      %1395 = vmatmul.mubr.bf16.gmra.mrb[0].mxu0 %v644
      %v1396 = vpop.f32.mrb[0].mxu0
      %v1397 = vadd.f32 0.0, %v1396
      %v1398 = vpop.f32.mrb[0].mxu0
      %v1399 = vpop.f32.mrb[0].mxu0
      %v1400 = vadd.f32 0.0, %v1399
      %v1401 = vpop.f32.mrb[0].mxu0
      %1402 = vmatprep.mubr.bf16.mxu0 0
      %1403 = vmatmul.mubr.bf16.gmra.mrb[0].mxu0 %v647
      %v1404 = vpop.f32.mrb[0].mxu0
      %v1405 = vadd.f32 0.0, %v1404
      %v1406 = vpop.f32.mrb[0].mxu0
      %v1407 = vpop.f32.mrb[0].mxu0
      %v1408 = vadd.f32 0.0, %v1407
      %v1409 = vpop.f32.mrb[0].mxu0
      %1410 = vmatprep.mubr.bf16.mxu0 0
      %1411 = vmatmul.mubr.bf16.gmra.mrb[0].mxu0 %v650
      %v1412 = vpop.f32.mrb[0].mxu0
      %v1413 = vadd.f32 0.0, %v1412
      %v1414 = vpop.f32.mrb[0].mxu0
      %v1415 = vpop.f32.mrb[0].mxu0
      %v1416 = vadd.f32 0.0, %v1415
      %v1417 = vpop.f32.mrb[0].mxu0
      %1418 = vmatprep.mubr.bf16.mxu0 0
      %1419 = vmatmul.mubr.bf16.gmra.mrb[0].mxu0 %v653
      %v1420 = vpop.f32.mrb[0].mxu0
      %v1421 = vadd.f32 0.0, %v1420
      %v1422 = vpop.f32.mrb[0].mxu0
      %v1423 = vpop.f32.mrb[0].mxu0
      %v1424 = vadd.f32 0.0, %v1423
      %v1425 = vpop.f32.mrb[0].mxu0
      %1426 = vmatprep.mubr.bf16.mxu0 0
      %1427 = vmatmul.mubr.bf16.gmra.mrb[0].mxu0 %v656
      %v1428 = vpop.f32.mrb[0].mxu0
      %v1429 = vadd.f32 0.0, %v1428
      %v1430 = vpop.f32.mrb[0].mxu0
      %v1431 = vpop.f32.mrb[0].mxu0
      %v1432 = vadd.f32 0.0, %v1431
      %v1433 = vpop.f32.mrb[0].mxu0
      %1434 = vmatprep.mubr.bf16.mxu0 0
      %1435 = vmatmul.mubr.bf16.gmra.mrb[0].mxu0 %v659
      %v1436 = vpop.f32.mrb[0].mxu0
      %v1437 = vadd.f32 0.0, %v1436
      %v1438 = vpop.f32.mrb[0].mxu0
      %v1439 = vpop.f32.mrb[0].mxu0
      %v1440 = vadd.f32 0.0, %v1439
      %v1441 = vpop.f32.mrb[0].mxu0
      %1442 = vmatprep.mubr.bf16.mxu0 0
      %1443 = vmatmul.mubr.bf16.gmra.mrb[0].mxu0 %v662
      %v1444 = vpop.f32.mrb[0].mxu0
      %v1445 = vadd.f32 0.0, %v1444
      %v1446 = vpop.f32.mrb[0].mxu0
      %v1447 = vpop.f32.mrb[0].mxu0
      %v1448 = vadd.f32 0.0, %v1447
      %v1449 = vpop.f32.mrb[0].mxu0
      %1450 = vmatprep.mubr.bf16.mxu0 0
      %1451 = vmatmul.mubr.bf16.gmra.mrb[0].mxu0 %v665
      %v1452 = vpop.f32.mrb[0].mxu0
      %v1453 = vadd.f32 0.0, %v1452
      %v1454 = vpop.f32.mrb[0].mxu0
      %v1455 = vpop.f32.mrb[0].mxu0
      %v1456 = vadd.f32 0.0, %v1455
      %v1457 = vpop.f32.mrb[0].mxu0
      %1458 = vmatprep.mubr.bf16.mxu0 0
      %1459 = vmatmul.mubr.bf16.gmra.mrb[0].mxu0 %v668
      %v1460 = vpop.f32.mrb[0].mxu0
      %v1461 = vadd.f32 0.0, %v1460
      %v1462 = vpop.f32.mrb[0].mxu0
      %v1463 = vpop.f32.mrb[0].mxu0
      %v1464 = vadd.f32 0.0, %v1463
      %v1465 = vpop.f32.mrb[0].mxu0
      %1466 = vmatprep.mubr.bf16.mxu0 0
      %1467 = vmatmul.mubr.bf16.gmra.mrb[0].mxu0 %v671
      %v1468 = vpop.f32.mrb[0].mxu0
      %v1469 = vadd.f32 0.0, %v1468
      %v1470 = vpop.f32.mrb[0].mxu0
      %v1471 = vpop.f32.mrb[0].mxu0
      %v1472 = vadd.f32 0.0, %v1471
      %v1473 = vpop.f32.mrb[0].mxu0
      %1474 = vmatprep.mubr.bf16.mxu0 0
      %1475 = vmatmul.mubr.bf16.gmra.mrb[0].mxu0 %v674
      %v1476 = vpop.f32.mrb[0].mxu0
      %v1477 = vadd.f32 0.0, %v1476
      %v1478 = vpop.f32.mrb[0].mxu0
      %v1479 = vpop.f32.mrb[0].mxu0
      %v1480 = vadd.f32 0.0, %v1479
      %v1481 = vpop.f32.mrb[0].mxu0
      %1482 = vmatprep.mubr.bf16.mxu0 0
      %1483 = vmatmul.mubr.bf16.gmra.mrb[0].mxu0 %v677
      %v1484 = vpop.f32.mrb[0].mxu0
      %v1485 = vadd.f32 0.0, %v1484
      %v1486 = vpop.f32.mrb[0].mxu0
      %v1487 = vpop.f32.mrb[0].mxu0
      %v1488 = vadd.f32 0.0, %v1487
      %v1489 = vpop.f32.mrb[0].mxu0
      %1490 = vmatprep.mubr.bf16.mxu0 0
      %1491 = vmatmul.mubr.bf16.gmra.mrb[0].mxu0 %v680
      %v1492 = vpop.f32.mrb[0].mxu0
      %v1493 = vadd.f32 0.0, %v1492
      %v1494 = vpop.f32.mrb[0].mxu0
      %v1495 = vpop.f32.mrb[0].mxu0
      %v1496 = vadd.f32 0.0, %v1495
      %v1497 = vpop.f32.mrb[0].mxu0
      %1498 = vmatprep.mubr.bf16.mxu0 0
      %1499 = vmatmul.mubr.bf16.gmra.mrb[0].mxu0 %v1346
      %v1500 = vpop.f32.mrb[0].mxu0
      %v1501 = vadd.f32 0.0, %v1500
      %v1502 = vpop.f32.mrb[0].mxu0
      %v1503 = vpop.f32.mrb[0].mxu0
      %v1504 = vadd.f32 0.0, %v1503
      %v1505 = vpop.f32.mrb[0].mxu0
      %1506 = vmatprep.mubr.bf16.mxu0 0
      %1507 = vmatmul.mubr.bf16.gmra.mrb[0].mxu0 %v1349
      %v1508 = vpop.f32.mrb[0].mxu0
      %v1509 = vadd.f32 0.0, %v1508
      %v1510 = vpop.f32.mrb[0].mxu0
      %v1511 = vpop.f32.mrb[0].mxu0
      %v1512 = vadd.f32 0.0, %v1511
      %v1513 = vpop.f32.mrb[0].mxu0
      %1514 = vdwg.mxu0
      %v1515 = vadd.f32 %v1289, %v1389
      %v1516 = vadd.f32 %v1290, %v1392
      %v1517 = vadd.f32 %v1291, %v1397
      %v1518 = vadd.f32 %v1292, %v1400
      %v1519 = vadd.f32 %v1293, %v1405
      %v1520 = vadd.f32 %v1294, %v1408
      %v1521 = vadd.f32 %v1295, %v1413
      %v1522 = vadd.f32 %v1296, %v1416
      %v1523 = vadd.f32 %v1297, %v1421
      %v1524 = vadd.f32 %v1298, %v1424
      %v1525 = vadd.f32 %v1299, %v1429
      %v1526 = vadd.f32 %v1300, %v1432
      %v1527 = vadd.f32 %v1301, %v1437
      %v1528 = vadd.f32 %v1302, %v1440
      %v1529 = vadd.f32 %v1303, %v1445
      %v1530 = vadd.f32 %v1304, %v1448
      %v1531 = vadd.f32 %v1305, %v1453
      %v1532 = vadd.f32 %v1306, %v1456
      %v1533 = vadd.f32 %v1307, %v1461
      %v1534 = vadd.f32 %v1308, %v1464
      %v1535 = vadd.f32 %v1309, %v1469
      %v1536 = vadd.f32 %v1310, %v1472
      %v1537 = vadd.f32 %v1311, %v1477
      %v1538 = vadd.f32 %v1312, %v1480
      %v1539 = vadd.f32 %v1313, %v1485
      %v1540 = vadd.f32 %v1314, %v1488
      %v1541 = vadd.f32 %v1315, %v1493
      %v1542 = vadd.f32 %v1316, %v1496
      %v1543 = vadd.f32 %v1317, %v1501
      %v1544 = vadd.f32 %v1318, %v1504
      %v1545 = vadd.f32 %v1319, %v1509
      %v1546 = vadd.f32 %v1320, %v1512
      %v1547 = vld [vmem:[%s3] sm:$0x1]
      %v1549 = vlaneseq
      %v1550 = vshrl.u32 %v1549, 7
      %v1551 = vsub.s32 0, %v1550
      %v1552 = vrot.slane %v1547, %v1551
      %v1554 = vadd.f32 %v1515, %v1552
      %v1555 = vadd.f32 %v1516, %v1552
      %v1556 = vadd.f32 %v1517, %v1552
      %v1557 = vadd.f32 %v1518, %v1552
      %v1558 = vadd.f32 %v1519, %v1552
      %v1559 = vadd.f32 %v1520, %v1552
      %v1560 = vadd.f32 %v1521, %v1552
      %v1561 = vadd.f32 %v1522, %v1552
      %v1562 = vadd.f32 %v1523, %v1552
      %v1563 = vadd.f32 %v1524, %v1552
      %v1564 = vadd.f32 %v1525, %v1552
      %v1565 = vadd.f32 %v1526, %v1552
      %v1566 = vadd.f32 %v1527, %v1552
      %v1567 = vadd.f32 %v1528, %v1552
      %v1568 = vadd.f32 %v1529, %v1552
      %v1569 = vadd.f32 %v1530, %v1552
      %v1570 = vadd.f32 %v1531, %v1552
      %v1571 = vadd.f32 %v1532, %v1552
      %v1572 = vadd.f32 %v1533, %v1552
      %v1573 = vadd.f32 %v1534, %v1552
      %v1574 = vadd.f32 %v1535, %v1552
      %v1575 = vadd.f32 %v1536, %v1552
      %v1576 = vadd.f32 %v1537, %v1552
      %v1577 = vadd.f32 %v1538, %v1552
      %v1578 = vadd.f32 %v1539, %v1552
      %v1579 = vadd.f32 %v1540, %v1552
      %v1580 = vadd.f32 %v1541, %v1552
      %v1581 = vadd.f32 %v1542, %v1552
      %v1582 = vadd.f32 %v1543, %v1552
      %v1583 = vadd.f32 %v1544, %v1552
      %v1584 = vadd.f32 %v1545, %v1552
      %v1585 = vadd.f32 %v1546, %v1552
      %vm1586 = vcmp.gt.f32.partialorder %v1554, 0.0
      %vm1587 = vcmp.gt.f32.partialorder %v1555, 0.0
      %vm1588 = vcmp.gt.f32.partialorder %v1556, 0.0
      %vm1589 = vcmp.gt.f32.partialorder %v1557, 0.0
      %vm1590 = vcmp.gt.f32.partialorder %v1558, 0.0
      %vm1591 = vcmp.gt.f32.partialorder %v1559, 0.0
      %vm1592 = vcmp.gt.f32.partialorder %v1560, 0.0
      %vm1593 = vcmp.gt.f32.partialorder %v1561, 0.0
      %vm1594 = vcmp.gt.f32.partialorder %v1562, 0.0
      %vm1595 = vcmp.gt.f32.partialorder %v1563, 0.0
      %vm1596 = vcmp.gt.f32.partialorder %v1564, 0.0
      %vm1597 = vcmp.gt.f32.partialorder %v1565, 0.0
      %vm1598 = vcmp.gt.f32.partialorder %v1566, 0.0
      %vm1599 = vcmp.gt.f32.partialorder %v1567, 0.0
      %vm1600 = vcmp.gt.f32.partialorder %v1568, 0.0
      %vm1601 = vcmp.gt.f32.partialorder %v1569, 0.0
      %vm1602 = vcmp.gt.f32.partialorder %v1570, 0.0
      %vm1603 = vcmp.gt.f32.partialorder %v1571, 0.0
      %vm1604 = vcmp.gt.f32.partialorder %v1572, 0.0
      %vm1605 = vcmp.gt.f32.partialorder %v1573, 0.0
      %vm1606 = vcmp.gt.f32.partialorder %v1574, 0.0
      %vm1607 = vcmp.gt.f32.partialorder %v1575, 0.0
      %vm1608 = vcmp.gt.f32.partialorder %v1576, 0.0
      %vm1609 = vcmp.gt.f32.partialorder %v1577, 0.0
      %vm1610 = vcmp.gt.f32.partialorder %v1578, 0.0
      %vm1611 = vcmp.gt.f32.partialorder %v1579, 0.0
      %vm1612 = vcmp.gt.f32.partialorder %v1580, 0.0
      %vm1613 = vcmp.gt.f32.partialorder %v1581, 0.0
      %vm1614 = vcmp.gt.f32.partialorder %v1582, 0.0
      %vm1615 = vcmp.gt.f32.partialorder %v1583, 0.0
      %vm1616 = vcmp.gt.f32.partialorder %v1584, 0.0
      %vm1617 = vcmp.gt.f32.partialorder %v1585, 0.0
      %v1618 = vmul.f32 %v1554, 0.01
      %v1619 = vmul.f32 %v1555, 0.01
      %v1620 = vmul.f32 %v1556, 0.01
      %v1621 = vmul.f32 %v1557, 0.01
      %v1622 = vmul.f32 %v1558, 0.01
      %v1623 = vmul.f32 %v1559, 0.01
      %v1624 = vmul.f32 %v1560, 0.01
      %v1625 = vmul.f32 %v1561, 0.01
      %v1626 = vmul.f32 %v1562, 0.01
      %v1627 = vmul.f32 %v1563, 0.01
      %v1628 = vmul.f32 %v1564, 0.01
      %v1629 = vmul.f32 %v1565, 0.01
      %v1630 = vmul.f32 %v1566, 0.01
      %v1631 = vmul.f32 %v1567, 0.01
      %v1632 = vmul.f32 %v1568, 0.01
      %v1633 = vmul.f32 %v1569, 0.01
      %v1634 = vmul.f32 %v1570, 0.01
      %v1635 = vmul.f32 %v1571, 0.01
      %v1636 = vmul.f32 %v1572, 0.01
      %v1637 = vmul.f32 %v1573, 0.01
      %v1638 = vmul.f32 %v1574, 0.01
      %v1639 = vmul.f32 %v1575, 0.01
      %v1640 = vmul.f32 %v1576, 0.01
      %v1641 = vmul.f32 %v1577, 0.01
      %v1642 = vmul.f32 %v1578, 0.01
      %v1643 = vmul.f32 %v1579, 0.01
      %v1644 = vmul.f32 %v1580, 0.01
      %v1645 = vmul.f32 %v1581, 0.01
      %v1646 = vmul.f32 %v1582, 0.01
      %v1647 = vmul.f32 %v1583, 0.01
      %v1648 = vmul.f32 %v1584, 0.01
      %v1649 = vmul.f32 %v1585, 0.01
      %v1650 = vsel %vm1586, %v1554, %v1618
      %v1651 = vsel %vm1587, %v1555, %v1619
      %v1652 = vsel %vm1588, %v1556, %v1620
      %v1653 = vsel %vm1589, %v1557, %v1621
      %v1654 = vsel %vm1590, %v1558, %v1622
      %v1655 = vsel %vm1591, %v1559, %v1623
      %v1656 = vsel %vm1592, %v1560, %v1624
      %v1657 = vsel %vm1593, %v1561, %v1625
      %v1658 = vsel %vm1594, %v1562, %v1626
      %v1659 = vsel %vm1595, %v1563, %v1627
      %v1660 = vsel %vm1596, %v1564, %v1628
      %v1661 = vsel %vm1597, %v1565, %v1629
      %v1662 = vsel %vm1598, %v1566, %v1630
      %v1663 = vsel %vm1599, %v1567, %v1631
      %v1664 = vsel %vm1600, %v1568, %v1632
      %v1665 = vsel %vm1601, %v1569, %v1633
      %v1666 = vsel %vm1602, %v1570, %v1634
      %v1667 = vsel %vm1603, %v1571, %v1635
      %v1668 = vsel %vm1604, %v1572, %v1636
      %v1669 = vsel %vm1605, %v1573, %v1637
      %v1670 = vsel %vm1606, %v1574, %v1638
      %v1671 = vsel %vm1607, %v1575, %v1639
      %v1672 = vsel %vm1608, %v1576, %v1640
      %v1673 = vsel %vm1609, %v1577, %v1641
      %v1674 = vsel %vm1610, %v1578, %v1642
      %v1675 = vsel %vm1611, %v1579, %v1643
      %v1676 = vsel %vm1612, %v1580, %v1644
      %v1677 = vsel %vm1613, %v1581, %v1645
      %v1678 = vsel %vm1614, %v1582, %v1646
      %v1679 = vsel %vm1615, %v1583, %v1647
      %v1680 = vsel %vm1616, %v1584, %v1648
      %v1681 = vsel %vm1617, %v1585, %v1649
      %v1682 = vsel %vm633, %v1650, 0.0
      %v1683 = vsel %vm633, %v1651, 0.0
      %v1684 = vadd.f32 %v1682, %v1683
      %v1685 = vsel %vm633, %v1652, 0.0
      %v1686 = vadd.f32 %v1684, %v1685
      %v1687 = vsel %vm633, %v1653, 0.0
      %v1688 = vadd.f32 %v1686, %v1687
      %v1689 = vsel %vm633, %v1654, 0.0
      %v1690 = vadd.f32 %v1688, %v1689
      %v1691 = vsel %vm633, %v1655, 0.0
      %v1692 = vadd.f32 %v1690, %v1691
      %v1693 = vsel %vm633, %v1656, 0.0
      %v1694 = vadd.f32 %v1692, %v1693
      %v1695 = vsel %vm633, %v1657, 0.0
      %v1696 = vadd.f32 %v1694, %v1695
      %v1697 = vsel %vm633, %v1658, 0.0
      %v1698 = vadd.f32 %v1696, %v1697
      %v1699 = vsel %vm633, %v1659, 0.0
      %v1700 = vadd.f32 %v1698, %v1699
      %v1701 = vsel %vm633, %v1660, 0.0
      %v1702 = vadd.f32 %v1700, %v1701
      %v1703 = vsel %vm633, %v1661, 0.0
      %v1704 = vadd.f32 %v1702, %v1703
      %v1705 = vsel %vm633, %v1662, 0.0
      %v1706 = vadd.f32 %v1704, %v1705
      %v1707 = vsel %vm633, %v1663, 0.0
      %v1708 = vadd.f32 %v1706, %v1707
      %v1709 = vsel %vm633, %v1664, 0.0
      %v1710 = vadd.f32 %v1708, %v1709
      %v1711 = vsel %vm633, %v1665, 0.0
      %v1712 = vadd.f32 %v1710, %v1711
      %v1713 = vsel %vm633, %v1666, 0.0
      %v1714 = vadd.f32 %v1712, %v1713
      %v1715 = vsel %vm633, %v1667, 0.0
      %v1716 = vadd.f32 %v1714, %v1715
      %v1717 = vsel %vm633, %v1668, 0.0
      %v1718 = vadd.f32 %v1716, %v1717
      %v1719 = vsel %vm633, %v1669, 0.0
      %v1720 = vadd.f32 %v1718, %v1719
      %v1721 = vsel %vm633, %v1670, 0.0
      %v1722 = vadd.f32 %v1720, %v1721
      %v1723 = vsel %vm633, %v1671, 0.0
      %v1724 = vadd.f32 %v1722, %v1723
      %v1725 = vsel %vm633, %v1672, 0.0
      %v1726 = vadd.f32 %v1724, %v1725
      %v1727 = vsel %vm633, %v1673, 0.0
      %v1728 = vadd.f32 %v1726, %v1727
      %v1729 = vsel %vm633, %v1674, 0.0
      %v1730 = vadd.f32 %v1728, %v1729
      %v1731 = vsel %vm633, %v1675, 0.0
      %v1732 = vadd.f32 %v1730, %v1731
      %v1733 = vsel %vm633, %v1676, 0.0
      %v1734 = vadd.f32 %v1732, %v1733
      %v1735 = vsel %vm633, %v1677, 0.0
      %v1736 = vadd.f32 %v1734, %v1735
      %v1737 = vsel %vm633, %v1678, 0.0
      %v1738 = vadd.f32 %v1736, %v1737
      %v1739 = vsel %vm633, %v1679, 0.0
      %v1740 = vadd.f32 %v1738, %v1739
      %v1741 = vsel %vm633, %v1680, 0.0
      %v1742 = vadd.f32 %v1740, %v1741
      %v1743 = vsel %vm633, %v1681, 0.0
      %v1744 = vadd.f32 %v1742, %v1743
      %v1745 = vrot.slane %v1744, 4
      %v1746 = vadd.f32 %v1744, %v1745
      %v1747 = vrot.slane %v1746, 2
      %v1748 = vadd.f32 %v1746, %v1747
      %v1749 = vrot.slane %v1748, 1
      %v1750 = vadd.f32 %v1748, %v1749
      %v1751 = vmul.f32 %v1650, %v1650
      %v1752 = vmul.f32 %v1651, %v1651
      %v1753 = vmul.f32 %v1652, %v1652
      %v1754 = vmul.f32 %v1653, %v1653
      %v1755 = vmul.f32 %v1654, %v1654
      %v1756 = vmul.f32 %v1655, %v1655
      %v1757 = vmul.f32 %v1656, %v1656
      %v1758 = vmul.f32 %v1657, %v1657
      %v1759 = vmul.f32 %v1658, %v1658
      %v1760 = vmul.f32 %v1659, %v1659
      %v1761 = vmul.f32 %v1660, %v1660
      %v1762 = vmul.f32 %v1661, %v1661
      %v1763 = vmul.f32 %v1662, %v1662
      %v1764 = vmul.f32 %v1663, %v1663
      %v1765 = vmul.f32 %v1664, %v1664
      %v1766 = vmul.f32 %v1665, %v1665
      %v1767 = vmul.f32 %v1666, %v1666
      %v1768 = vmul.f32 %v1667, %v1667
      %v1769 = vmul.f32 %v1668, %v1668
      %v1770 = vmul.f32 %v1669, %v1669
      %v1771 = vmul.f32 %v1670, %v1670
      %v1772 = vmul.f32 %v1671, %v1671
      %v1773 = vmul.f32 %v1672, %v1672
      %v1774 = vmul.f32 %v1673, %v1673
      %v1775 = vmul.f32 %v1674, %v1674
      %v1776 = vmul.f32 %v1675, %v1675
      %v1777 = vmul.f32 %v1676, %v1676
      %v1778 = vmul.f32 %v1677, %v1677
      %v1779 = vmul.f32 %v1678, %v1678
      %v1780 = vmul.f32 %v1679, %v1679
      %v1781 = vmul.f32 %v1680, %v1680
      %v1782 = vmul.f32 %v1681, %v1681
      %v1783 = vsel %vm633, %v1751, 0.0
      %v1784 = vsel %vm633, %v1752, 0.0
      %v1785 = vadd.f32 %v1783, %v1784
      %v1786 = vsel %vm633, %v1753, 0.0
      %v1787 = vadd.f32 %v1785, %v1786
      %v1788 = vsel %vm633, %v1754, 0.0
      %v1789 = vadd.f32 %v1787, %v1788
      %v1790 = vsel %vm633, %v1755, 0.0
      %v1791 = vadd.f32 %v1789, %v1790
      %v1792 = vsel %vm633, %v1756, 0.0
      %v1793 = vadd.f32 %v1791, %v1792
      %v1794 = vsel %vm633, %v1757, 0.0
      %v1795 = vadd.f32 %v1793, %v1794
      %v1796 = vsel %vm633, %v1758, 0.0
      %v1797 = vadd.f32 %v1795, %v1796
      %v1798 = vsel %vm633, %v1759, 0.0
      %v1799 = vadd.f32 %v1797, %v1798
      %v1800 = vsel %vm633, %v1760, 0.0
      %v1801 = vadd.f32 %v1799, %v1800
      %v1802 = vsel %vm633, %v1761, 0.0
      %v1803 = vadd.f32 %v1801, %v1802
      %v1804 = vsel %vm633, %v1762, 0.0
      %v1805 = vadd.f32 %v1803, %v1804
      %v1806 = vsel %vm633, %v1763, 0.0
      %v1807 = vadd.f32 %v1805, %v1806
      %v1808 = vsel %vm633, %v1764, 0.0
      %v1809 = vadd.f32 %v1807, %v1808
      %v1810 = vsel %vm633, %v1765, 0.0
      %v1811 = vadd.f32 %v1809, %v1810
      %v1812 = vsel %vm633, %v1766, 0.0
      %v1813 = vadd.f32 %v1811, %v1812
      %v1814 = vsel %vm633, %v1767, 0.0
      %v1815 = vadd.f32 %v1813, %v1814
      %v1816 = vsel %vm633, %v1768, 0.0
      %v1817 = vadd.f32 %v1815, %v1816
      %v1818 = vsel %vm633, %v1769, 0.0
      %v1819 = vadd.f32 %v1817, %v1818
      %v1820 = vsel %vm633, %v1770, 0.0
      %v1821 = vadd.f32 %v1819, %v1820
      %v1822 = vsel %vm633, %v1771, 0.0
      %v1823 = vadd.f32 %v1821, %v1822
      %v1824 = vsel %vm633, %v1772, 0.0
      %v1825 = vadd.f32 %v1823, %v1824
      %v1826 = vsel %vm633, %v1773, 0.0
      %v1827 = vadd.f32 %v1825, %v1826
      %v1828 = vsel %vm633, %v1774, 0.0
      %v1829 = vadd.f32 %v1827, %v1828
      %v1830 = vsel %vm633, %v1775, 0.0
      %v1831 = vadd.f32 %v1829, %v1830
      %v1832 = vsel %vm633, %v1776, 0.0
      %v1833 = vadd.f32 %v1831, %v1832
      %v1834 = vsel %vm633, %v1777, 0.0
      %v1835 = vadd.f32 %v1833, %v1834
      %v1836 = vsel %vm633, %v1778, 0.0
      %v1837 = vadd.f32 %v1835, %v1836
      %v1838 = vsel %vm633, %v1779, 0.0
      %v1839 = vadd.f32 %v1837, %v1838
      %v1840 = vsel %vm633, %v1780, 0.0
      %v1841 = vadd.f32 %v1839, %v1840
      %v1842 = vsel %vm633, %v1781, 0.0
      %v1843 = vadd.f32 %v1841, %v1842
      %v1844 = vsel %vm633, %v1782, 0.0
      %v1845 = vadd.f32 %v1843, %v1844
      %v1846 = vrot.slane %v1845, 4
      %v1847 = vadd.f32 %v1845, %v1846
      %v1848 = vrot.slane %v1847, 2
      %v1849 = vadd.f32 %v1847, %v1848
      %v1850 = vrot.slane %v1849, 1
      %v1851 = vadd.f32 %v1849, %v1850
      %vm1852 = vcmask 1040384
      %v1853 = vsel %vm1852, %v1750, %v1851
      %vm1854 = vcmask 58368
      %1855 = vst.msk [vmem:[%s363] sm:$0x3] %vm1854, %v1853
      %v1856 = vpack.c.bf16 %v1651, %v1650
      %v1857 = vpack.c.bf16 %v1653, %v1652
      %v1858 = vpack.c.bf16 %v1655, %v1654
      %v1859 = vpack.c.bf16 %v1657, %v1656
      %v1860 = vpack.c.bf16 %v1659, %v1658
      %v1861 = vpack.c.bf16 %v1661, %v1660
      %v1862 = vpack.c.bf16 %v1663, %v1662
      %v1863 = vpack.c.bf16 %v1665, %v1664
      %v1864 = vpack.c.bf16 %v1667, %v1666
      %v1865 = vpack.c.bf16 %v1669, %v1668
      %v1866 = vpack.c.bf16 %v1671, %v1670
      %v1867 = vpack.c.bf16 %v1673, %v1672
      %v1868 = vpack.c.bf16 %v1675, %v1674
      %v1869 = vpack.c.bf16 %v1677, %v1676
      %v1870 = vpack.c.bf16 %v1679, %v1678
      %v1871 = vpack.c.bf16 %v1681, %v1680
      %v1888 = vunpack.c.l.b16 %v1856
      %v1889 = vunpack.c.h.b16 %v1856
      %v1890 = vunpack.c.l.b16 %v1857
      %v1891 = vunpack.c.h.b16 %v1857
      %v1892 = vunpack.c.l.b16 %v1858
      %v1893 = vunpack.c.h.b16 %v1858
      %v1894 = vunpack.c.l.b16 %v1859
      %v1895 = vunpack.c.h.b16 %v1859
      %v1896 = vunpack.c.l.b16 %v1860
      %v1897 = vunpack.c.h.b16 %v1860
      %v1898 = vunpack.c.l.b16 %v1861
      %v1899 = vunpack.c.h.b16 %v1861
      %v1900 = vunpack.c.l.b16 %v1862
      %v1901 = vunpack.c.h.b16 %v1862
      %v1902 = vunpack.c.l.b16 %v1863
      %v1903 = vunpack.c.h.b16 %v1863
      %v1904 = vunpack.c.l.b16 %v1864
      %v1905 = vunpack.c.h.b16 %v1864
      %v1906 = vunpack.c.l.b16 %v1865
      %v1907 = vunpack.c.h.b16 %v1865
      %v1908 = vunpack.c.l.b16 %v1866
      %v1909 = vunpack.c.h.b16 %v1866
      %v1910 = vunpack.c.l.b16 %v1867
      %v1911 = vunpack.c.h.b16 %v1867
      %v1912 = vunpack.c.l.b16 %v1868
      %v1913 = vunpack.c.h.b16 %v1868
      %v1914 = vunpack.c.l.b16 %v1869
      %v1915 = vunpack.c.h.b16 %v1869
      %v1916 = vunpack.c.l.b16 %v1870
      %v1917 = vunpack.c.h.b16 %v1870
      %v1918 = vunpack.c.l.b16 %v1871
      %v1919 = vunpack.c.h.b16 %v1871
      %v1920 = vpack.c.b16 %v1888, %v1888
      %v1921 = vpack.c.b16 %v1889, %v1889
      %v1922 = vpack.c.b16 %v1890, %v1890
      %v1923 = vpack.c.b16 %v1891, %v1891
      %v1924 = vpack.c.b16 %v1892, %v1892
      %v1925 = vpack.c.b16 %v1893, %v1893
      %v1926 = vpack.c.b16 %v1894, %v1894
      %v1927 = vpack.c.b16 %v1895, %v1895
      %v1928 = vpack.c.b16 %v1896, %v1896
      %v1929 = vpack.c.b16 %v1897, %v1897
      %v1930 = vpack.c.b16 %v1898, %v1898
      %v1931 = vpack.c.b16 %v1899, %v1899
      %v1932 = vpack.c.b16 %v1900, %v1900
      %v1933 = vpack.c.b16 %v1901, %v1901
      %v1934 = vpack.c.b16 %v1902, %v1902
      %v1935 = vpack.c.b16 %v1903, %v1903
      %v1936 = vpack.c.b16 %v1904, %v1904
      %v1937 = vpack.c.b16 %v1905, %v1905
      %v1938 = vpack.c.b16 %v1906, %v1906
      %v1939 = vpack.c.b16 %v1907, %v1907
      %v1940 = vpack.c.b16 %v1908, %v1908
      %v1941 = vpack.c.b16 %v1909, %v1909
      %v1942 = vpack.c.b16 %v1910, %v1910
      %v1943 = vpack.c.b16 %v1911, %v1911
      %v1944 = vpack.c.b16 %v1912, %v1912
      %v1945 = vpack.c.b16 %v1913, %v1913
      %v1946 = vpack.c.b16 %v1914, %v1914
      %v1947 = vpack.c.b16 %v1915, %v1915
      %v1948 = vpack.c.b16 %v1916, %v1916
      %v1949 = vpack.c.b16 %v1917, %v1917
      %v1950 = vpack.c.b16 %v1918, %v1918
      %v1951 = vpack.c.b16 %v1919, %v1919
      %vm1984 = vcmask 60416
      %1985 = vst.msk [vmem:[%s355] sm:$0xf] %vm1984, %v1920
      %1986 = vst.msk [vmem:[%s355 + $0x4] sm:$0xf] %vm1984, %v1921
      %1987 = vst.msk [vmem:[%s355 + $0x8] sm:$0xf] %vm1984, %v1922
      %1988 = vst.msk [vmem:[%s355 + $0xc] sm:$0xf] %vm1984, %v1923
      %1989 = vst.msk [vmem:[%s355 + $0x10] sm:$0xf] %vm1984, %v1924
      %1990 = vst.msk [vmem:[%s355 + $0x14] sm:$0xf] %vm1984, %v1925
      %1991 = vst.msk [vmem:[%s355 + $0x18] sm:$0xf] %vm1984, %v1926
      %1992 = vst.msk [vmem:[%s355 + $0x1c] sm:$0xf] %vm1984, %v1927
      %1993 = vst.msk [vmem:[%s355 + $0x20] sm:$0xf] %vm1984, %v1928
      %1994 = vst.msk [vmem:[%s355 + $0x24] sm:$0xf] %vm1984, %v1929
      %1995 = vst.msk [vmem:[%s355 + $0x28] sm:$0xf] %vm1984, %v1930
      %1996 = vst.msk [vmem:[%s355 + $0x2c] sm:$0xf] %vm1984, %v1931
      %1997 = vst.msk [vmem:[%s355 + $0x30] sm:$0xf] %vm1984, %v1932
      %1998 = vst.msk [vmem:[%s355 + $0x34] sm:$0xf] %vm1984, %v1933
      %1999 = vst.msk [vmem:[%s355 + $0x38] sm:$0xf] %vm1984, %v1934
      %2000 = vst.msk [vmem:[%s355 + $0x3c] sm:$0xf] %vm1984, %v1935
      %2001 = vst.msk [vmem:[%s355 + $0x40] sm:$0xf] %vm1984, %v1936
      %2002 = vst.msk [vmem:[%s355 + $0x44] sm:$0xf] %vm1984, %v1937
      %2003 = vst.msk [vmem:[%s355 + $0x48] sm:$0xf] %vm1984, %v1938
      %2004 = vst.msk [vmem:[%s355 + $0x4c] sm:$0xf] %vm1984, %v1939
      %2005 = vst.msk [vmem:[%s355 + $0x50] sm:$0xf] %vm1984, %v1940
      %2006 = vst.msk [vmem:[%s355 + $0x54] sm:$0xf] %vm1984, %v1941
      %2007 = vst.msk [vmem:[%s355 + $0x58] sm:$0xf] %vm1984, %v1942
      %2008 = vst.msk [vmem:[%s355 + $0x5c] sm:$0xf] %vm1984, %v1943
      %2009 = vst.msk [vmem:[%s355 + $0x60] sm:$0xf] %vm1984, %v1944
      %2010 = vst.msk [vmem:[%s355 + $0x64] sm:$0xf] %vm1984, %v1945
      %2011 = vst.msk [vmem:[%s355 + $0x68] sm:$0xf] %vm1984, %v1946
      %2012 = vst.msk [vmem:[%s355 + $0x6c] sm:$0xf] %vm1984, %v1947
      %2013 = vst.msk [vmem:[%s355 + $0x70] sm:$0xf] %vm1984, %v1948
      %2014 = vst.msk [vmem:[%s355 + $0x74] sm:$0xf] %vm1984, %v1949
      %2015 = vst.msk [vmem:[%s355 + $0x78] sm:$0xf] %vm1984, %v1950
      %2016 = vst.msk [vmem:[%s355 + $0x7c] sm:$0xf] %vm1984, %v1951
      %s2017 = smul.u32 32, %s22
      %p2018 = scmp.lt.s32.totalorder %s21, 1
      %s2019 = scalar_select %p2018, %s21, 1
      %p2020 = scmp.lt.s32.totalorder %s2017, 31
      %s2021 = scalar_select %p2020, %s2017, 31
      %s2022 = smul.addr %s2019, 32
      %s2023 = sadd.s32 %s2021, %s2022
      %s2024 = smul.addr %s2023, 4
      %s2025 = scalar_lea.vmem %s4, %s2024
      %p2026 = scmp.lt.s32.totalorder %s21, 1
      %s2027 = scalar_select %p2026, %s21, 1
      %p2028 = scmp.lt.s32.totalorder %s22, 0
      %s2029 = scalar_select %p2028, %s22, 0
      %s2030 = sadd.s32 %s2029, %s2027
      %s2031 = smul.addr %s2030, 2
      %s2032 = scalar_lea.vmem %s5, %s2031
      // Predicated region
      $region37: #{upblock_forward.8} parent=35 // pred_check
        %p2033 = pneg %p151
      $region38: #{upblock_forward.8} parent=35 // pred_check_branch
        %2035 = sbr.rel (%p2033) target = $region40
      $region39: #{upblock_forward.8} parent=35 // pred_region
        %s2036 = smul.u32 32, %s22
      $region40: #{upblock_forward.8} parent=35 // pred_fallthru
        _
      // Predicated region
      $region41: #{upblock_forward.8} parent=35 // pred_check
        %p2037 = pneg %p179
      $region42: #{upblock_forward.8} parent=35 // pred_check_branch
        %2039 = sbr.rel (%p2037) target = $region44
      $region43: #{upblock_forward.8} parent=35 // pred_region
        _
      $region44: #{upblock_forward.8} parent=35 // pred_fallthru
        _
    $region36: #{upblock_forward.8} parent=5 // pred_fallthru
      _
    %p2040 = scmp.le.s32.totalorder 2, %s12
    // Predicated region
    $region45: #{upblock_forward.8} parent=5 // pred_check
      %p2041 = pneg %p2040
    $region46: #{upblock_forward.8} parent=5 // pred_check_branch
      %2043 = sbr.rel (%p2041) target = $region48
    $region47: #{upblock_forward.8} parent=5 // pred_region
      %s2044 = ssub.s32 %s12, 2
      // Predicated region
      $region49: #{upblock_forward.8} parent=47 // pred_check
        %p2045 = pneg %p157
      $region50: #{upblock_forward.8} parent=47 // pred_check_branch
        %2047 = sbr.rel (%p2045) target = $region52
      $region51: #{upblock_forward.8} parent=47 // pred_region
        %s2048 = smul.u32 32, %s24
        %p2049 = scmp.lt.s32.totalorder %s23, 1
        %s2050 = scalar_select %p2049, %s23, 1
        %p2051 = scmp.lt.s32.totalorder %s2048, 31
        %s2052 = scalar_select %p2051, %s2048, 31
        %s2053 = smul.addr %s2050, 32
        %s2054 = sadd.s32 %s2052, %s2053
        %s2055 = smul.addr %s2054, 4
        %s2056 = scalar_lea.vmem %s4, %s2055
      $region52: #{upblock_forward.8} parent=47 // pred_fallthru
        _
      // Predicated region
      $region53: #{upblock_forward.8} parent=47 // pred_check
        %p2057 = pneg %p185
      $region54: #{upblock_forward.8} parent=47 // pred_check_branch
        %2059 = sbr.rel (%p2057) target = $region56
      $region55: #{upblock_forward.8} parent=47 // pred_region
        %p2060 = scmp.lt.s32.totalorder %s23, 1
        %s2061 = scalar_select %p2060, %s23, 1
        %p2062 = scmp.lt.s32.totalorder %s24, 0
        %s2063 = scalar_select %p2062, %s24, 0
        %s2064 = sadd.s32 %s2063, %s2061
        %s2065 = smul.addr %s2064, 2
        %s2066 = scalar_lea.vmem %s5, %s2065
      $region56: #{upblock_forward.8} parent=47 // pred_fallthru
        _
    $region48: #{upblock_forward.8} parent=5 // pred_fallthru
      _
  $region6: #{upblock_forward.8} parent=0 // loop_footer
    %s16 = sadd.s32 1, %s12
  $region7: #{upblock_forward.8} parent=0 // loop_footer_branch
    %11 = sbr.rel target = $region3
  $region8: #{upblock_forward.8} parent=0 // loop_exit
    _

// kernel: upblock_forward.7
$region0: #{upblock_forward.7}
  #allocation0 [shape = 'u32[]', space=smem, size = 0x4, offset = 0x4, fixed_abs, tag = 'smem constant byte address 0x4 - core index']
  #allocation1 [shape = 'u32[144,128]{1,0:T(1,128)}', space=vmem, size = 0x12000, scoped, tag = 'internal scratch']
  %s0 = inlined_call_operand.vmem [shape: bf16[2,20,20,8], index: 0, kind: input, shape index: {}, may-alias: {0,1}]
  %s1 = inlined_call_operand.vmem [shape: bf16[2,20,20,8], index: 1, kind: input, shape index: {}, may-alias: {0,1}]
  %s2 = inlined_call_operand.vmem [shape: bf16[9,8,8], index: 2, kind: input, shape index: {}]
  %s3 = inlined_call_operand.vmem [shape: f32[1,8], index: 3, kind: input, shape index: {}]
  %s4 = inlined_call_operand.vmem [shape: bf16[2,256,8], index: 4, kind: output, shape index: {0}]
  %s5 = inlined_call_operand.vmem [shape: f32[2,1,2,8], index: 5, kind: output, shape index: {1}]
  %6 = xla_tuple %s4, %s5
  %s7 = sld [smem:[#allocation0]]
  $region57: #{upblock_forward.7} parent=0
    _
  %s9 = ssub.s32 1, %s7
  %s10 = scalar_select 0, %s9, %s7
  loop: start=0, step=1, limit=4
  $region2: #{upblock_forward.7} parent=0 // loop_pre_header
    _
  $region3: #{upblock_forward.7} parent=0 // loop_header
    %s12 = sphi 0, %s16
    %p13 = scmp.ge.s32.totalorder %s12, 4
    %s19 = sphi 0, %s31
    %s20 = sphi 0, %s27
    %s21 = sphi 0, %s19
    %s22 = sphi 0, %s20
    %s23 = sphi 0, %s21
    %s24 = sphi 0, %s22
    %s36 = sphi 0, %s38
    %s39 = sphi 0, %s36
    %s40 = sphi 0, %s39
    %s56 = sphi 0, %s40
    %s68 = sphi 0, %s70
    %s71 = sphi 0, %s68
    %s72 = sphi 0, %s71
    %s88 = sphi 0, %s72
    %s92 = sphi 0, %s92
    %s94 = sphi 0, %s92
    %s95 = sphi 0, %s94
    %s109 = sphi 0, %s95
    %s113 = sphi 0, %s113
    %s115 = sphi 0, %s113
    %s116 = sphi 0, %s115
    %s130 = sphi 0, %s116
    %s138 = sphi 0, %s140
    %s141 = sphi 0, %s138
    %s142 = sphi 0, %s141
    %s158 = sphi 0, %s142
    %s166 = sphi 0, %s168
    %s169 = sphi 0, %s166
    %s170 = sphi 0, %s169
    %s186 = sphi 0, %s170
  $region4: #{upblock_forward.7} parent=0 // loop_header_branch
    %15 = sbr.rel (%p13) target = $region8
  $region5: #{upblock_forward.7} parent=0 // loop_body
    %s17 = ssub.s32 %s12, 1
    %s18 = ssub.s32 %s12, 2
    %s25 = sadd.s32 1, %s20
    %p26 = scmp.ge.s32.totalorder %s25, 1
    %s27 = scalar_select %p26, 0, %s25
    %s28 = sadd.s32 1, %s19
    %s29 = scalar_select %p26, %s28, %s19
    %p30 = scmp.ge.s32.totalorder %s29, 2
    %s31 = scalar_select %p30, 0, %s29
    %s32 = ssub.s32 %s19, %s31
    %s33 = ssub.s32 %s20, %s27
    %s34 = sor.u32 %s32, %s33
    %p35 = scmp.eq.s32.totalorder %s34, 0
    %s37 = sadd.s32 %s36, 1
    %s38 = scalar_select %p35, %s36, %s37
    %p41 = pneg %p35
    %p42 = scmp.eq.s32.totalorder %s12, 1
    %p43 = por %p41, %p42
    %p44 = scmp.ne.s32.totalorder %s36, %s39
    %p45 = scmp.eq.s32.totalorder %s12, 0
    %p46 = por %p44, %p45
    %p47 = scmp.ne.s32.totalorder %s36, %s39
    %p48 = scmp.eq.s32.totalorder %s17, 1
    %p49 = por %p47, %p48
    %p50 = scmp.ne.s32.totalorder %s39, %s40
    %p51 = scmp.eq.s32.totalorder %s17, 0
    %p52 = por %p50, %p51
    %p53 = scmp.ne.s32.totalorder %s39, %s40
    %p54 = scmp.eq.s32.totalorder %s18, 1
    %p55 = por %p53, %p54
    %p57 = scmp.ne.s32.totalorder %s40, %s56
    %p58 = scmp.eq.s32.totalorder %s18, 0
    %p59 = por %p57, %p58
    %s60 = sadd.s32 %s20, 1
    %s61 = smul.u32 %s60, 4
    %s62 = sadd.s32 %s27, 1
    %s63 = smul.u32 %s62, 4
    %s64 = ssub.s32 %s19, %s31
    %s65 = ssub.s32 %s61, %s63
    %s66 = sor.u32 %s64, %s65
    %p67 = scmp.eq.s32.totalorder %s66, 0
    %s69 = sadd.s32 %s68, 1
    %s70 = scalar_select %p67, %s68, %s69
    %p73 = pneg %p67
    %p74 = scmp.eq.s32.totalorder %s12, 1
    %p75 = por %p73, %p74
    %p76 = scmp.ne.s32.totalorder %s68, %s71
    %p77 = scmp.eq.s32.totalorder %s12, 0
    %p78 = por %p76, %p77
    %p79 = scmp.ne.s32.totalorder %s68, %s71
    %p80 = scmp.eq.s32.totalorder %s17, 1
    %p81 = por %p79, %p80
    %p82 = scmp.ne.s32.totalorder %s71, %s72
    %p83 = scmp.eq.s32.totalorder %s17, 0
    %p84 = por %p82, %p83
    %p85 = scmp.ne.s32.totalorder %s71, %s72
    %p86 = scmp.eq.s32.totalorder %s18, 1
    %p87 = por %p85, %p86
    %p89 = scmp.ne.s32.totalorder %s72, %s88
    %p90 = scmp.eq.s32.totalorder %s18, 0
    %p91 = por %p89, %p90
    %s93 = sadd.s32 %s92, 1
    %p96 = scmp.eq.s32.totalorder %s12, 1
    %p97 = scmp.ne.s32.totalorder %s92, %s94
    %p98 = scmp.eq.s32.totalorder %s12, 0
    %p99 = por %p97, %p98
    %p100 = scmp.ne.s32.totalorder %s92, %s94
    %p101 = scmp.eq.s32.totalorder %s17, 1
    %p102 = por %p100, %p101
    %p103 = scmp.ne.s32.totalorder %s94, %s95
    %p104 = scmp.eq.s32.totalorder %s17, 0
    %p105 = por %p103, %p104
    %p106 = scmp.ne.s32.totalorder %s94, %s95
    %p107 = scmp.eq.s32.totalorder %s18, 1
    %p108 = por %p106, %p107
    %p110 = scmp.ne.s32.totalorder %s95, %s109
    %p111 = scmp.eq.s32.totalorder %s18, 0
    %p112 = por %p110, %p111
    %s114 = sadd.s32 %s113, 1
    %p117 = scmp.eq.s32.totalorder %s12, 1
    %p118 = scmp.ne.s32.totalorder %s113, %s115
    %p119 = scmp.eq.s32.totalorder %s12, 0
    %p120 = por %p118, %p119
    %p121 = scmp.ne.s32.totalorder %s113, %s115
    %p122 = scmp.eq.s32.totalorder %s17, 1
    %p123 = por %p121, %p122
    %p124 = scmp.ne.s32.totalorder %s115, %s116
    %p125 = scmp.eq.s32.totalorder %s17, 0
    %p126 = por %p124, %p125
    %p127 = scmp.ne.s32.totalorder %s115, %s116
    %p128 = scmp.eq.s32.totalorder %s18, 1
    %p129 = por %p127, %p128
    %p131 = scmp.ne.s32.totalorder %s116, %s130
    %p132 = scmp.eq.s32.totalorder %s18, 0
    %p133 = por %p131, %p132
    %s134 = ssub.s32 %s19, %s31
    %s135 = ssub.s32 %s20, %s27
    %s136 = sor.u32 %s134, %s135
    %p137 = scmp.eq.s32.totalorder %s136, 0
    %s139 = sadd.s32 %s138, 1
    %s140 = scalar_select %p137, %s138, %s139
    %p143 = pneg %p137
    %p144 = scmp.eq.s32.totalorder %s12, 1
    %p145 = por %p143, %p144
    %p146 = scmp.ne.s32.totalorder %s138, %s141
    %p147 = scmp.eq.s32.totalorder %s12, 0
    %p148 = por %p146, %p147
    %p149 = scmp.ne.s32.totalorder %s138, %s141
    %p150 = scmp.eq.s32.totalorder %s17, 1
    %p151 = por %p149, %p150
    %p152 = scmp.ne.s32.totalorder %s141, %s142
    %p153 = scmp.eq.s32.totalorder %s17, 0
    %p154 = por %p152, %p153
    %p155 = scmp.ne.s32.totalorder %s141, %s142
    %p156 = scmp.eq.s32.totalorder %s18, 1
    %p157 = por %p155, %p156
    %p159 = scmp.ne.s32.totalorder %s142, %s158
    %p160 = scmp.eq.s32.totalorder %s18, 0
    %p161 = por %p159, %p160
    %s162 = ssub.s32 %s19, %s31
    %s163 = ssub.s32 %s20, %s27
    %s164 = sor.u32 %s162, %s163
    %p165 = scmp.eq.s32.totalorder %s164, 0
    %s167 = sadd.s32 %s166, 1
    %s168 = scalar_select %p165, %s166, %s167
    %p171 = pneg %p165
    %p172 = scmp.eq.s32.totalorder %s12, 1
    %p173 = por %p171, %p172
    %p174 = scmp.ne.s32.totalorder %s166, %s169
    %p175 = scmp.eq.s32.totalorder %s12, 0
    %p176 = por %p174, %p175
    %p177 = scmp.ne.s32.totalorder %s166, %s169
    %p178 = scmp.eq.s32.totalorder %s17, 1
    %p179 = por %p177, %p178
    %p180 = scmp.ne.s32.totalorder %s169, %s170
    %p181 = scmp.eq.s32.totalorder %s17, 0
    %p182 = por %p180, %p181
    %p183 = scmp.ne.s32.totalorder %s169, %s170
    %p184 = scmp.eq.s32.totalorder %s18, 1
    %p185 = por %p183, %p184
    %p187 = scmp.ne.s32.totalorder %s170, %s186
    %p188 = scmp.eq.s32.totalorder %s18, 0
    %p189 = por %p187, %p188
    %p190 = scmp.le.s32.totalorder 1, %s12
    %p191 = scmp.lt.s32.totalorder %s12, 3
    %p192 = pnand %p190, %p191
    %p193 = pneg %p192
    // Predicated region
    $region9: #{upblock_forward.7} parent=5 // pred_check
      _
    $region10: #{upblock_forward.7} parent=5 // pred_check_branch
      %195 = sbr.rel (%p192) target = $region12
    $region11: #{upblock_forward.7} parent=5 // pred_region
      %s196 = ssub.s32 %s12, 1
      // Predicated region
      $region13: #{upblock_forward.7} parent=11 // pred_check
        %p197 = pneg %p105
      $region14: #{upblock_forward.7} parent=11 // pred_check_branch
        %199 = sbr.rel (%p197) target = $region16
      $region15: #{upblock_forward.7} parent=11 // pred_region
        _
      $region16: #{upblock_forward.7} parent=11 // pred_fallthru
        _
      // Predicated region
      $region17: #{upblock_forward.7} parent=11 // pred_check
        %p200 = pneg %p126
      $region18: #{upblock_forward.7} parent=11 // pred_check_branch
        %202 = sbr.rel (%p200) target = $region20
      $region19: #{upblock_forward.7} parent=11 // pred_region
        _
      $region20: #{upblock_forward.7} parent=11 // pred_fallthru
        _
    $region12: #{upblock_forward.7} parent=5 // pred_fallthru
      _
    %p203 = scmp.lt.s32.totalorder %s12, 2
    // Predicated region
    $region21: #{upblock_forward.7} parent=5 // pred_check
      %p204 = pneg %p203
    $region22: #{upblock_forward.7} parent=5 // pred_check_branch
      %206 = sbr.rel (%p204) target = $region24
    $region23: #{upblock_forward.7} parent=5 // pred_region
      // Predicated region
      $region25: #{upblock_forward.7} parent=23 // pred_check
        %p207 = pneg %p46
      $region26: #{upblock_forward.7} parent=23 // pred_check_branch
        %209 = sbr.rel (%p207) target = $region28
      $region27: #{upblock_forward.7} parent=23 // pred_region
        %s210 = smul.u32 16, %s20
        %s211 = ssub.s32 20, %s210
        %p212 = scmp.lt.s32.totalorder %s211, 16
        %s213 = scalar_select %p212, %s211, 16
        %s214 = smul.u32 64, %s213
        %s215 = smul.u32 %s214, 3
        %p216 = scmp.lt.s32.totalorder %s19, 1
        %s217 = scalar_select %p216, %s19, 1
        %p218 = scmp.lt.s32.totalorder %s210, 19
        %s219 = scalar_select %p218, %s210, 19
        %s220 = smul.addr %s219, 3
        %s221 = smul.addr %s217, 60
        %s222 = sadd.s32 %s220, %s221
        %s223 = smul.addr %s222, 4
        %s224 = scalar_lea.vmem %s0, %s223
        %s225 = smul.u32 16, %s20
        %s226 = ssub.s32 20, %s225
        %p227 = scmp.lt.s32.totalorder %s226, 16
        %s228 = scalar_select %p227, %s226, 16
        %s229 = smul.u32 64, %s228
        %s230 = smul.u32 %s229, 3
      $region28: #{upblock_forward.7} parent=23 // pred_fallthru
        _
      // Predicated region
      $region29: #{upblock_forward.7} parent=23 // pred_check
        %p231 = pneg %p78
      $region30: #{upblock_forward.7} parent=23 // pred_check_branch
        %233 = sbr.rel (%p231) target = $region32
      $region31: #{upblock_forward.7} parent=23 // pred_region
        %s234 = sadd.s32 %s20, 1
        %s235 = smul.u32 %s234, 4
        %s236 = smul.u32 4, %s235
        %p237 = scmp.lt.s32.totalorder %s19, 1
        %s238 = scalar_select %p237, %s19, 1
        %p239 = scmp.lt.s32.totalorder %s236, 19
        %s240 = scalar_select %p239, %s236, 19
        %s241 = smul.addr %s240, 3
        %s242 = smul.addr %s238, 60
        %s243 = sadd.s32 %s241, %s242
        %s244 = smul.addr %s243, 4
        %s245 = scalar_lea.vmem %s1, %s244
        %s246 = sadd.s32 %s20, 1
        %s247 = smul.u32 %s246, 4
        %s248 = smul.u32 4, %s247
      $region32: #{upblock_forward.7} parent=23 // pred_fallthru
        _
    $region24: #{upblock_forward.7} parent=5 // pred_fallthru
      _
    %p249 = scmp.le.s32.totalorder 1, %s12
    %p250 = scmp.lt.s32.totalorder %s12, 3
    %p251 = pnand %p249, %p250
    %p252 = pneg %p251
    // Predicated region
    $region33: #{upblock_forward.7} parent=5 // pred_check
      _
    $region34: #{upblock_forward.7} parent=5 // pred_check_branch
      %254 = sbr.rel (%p251) target = $region36
    $region35: #{upblock_forward.7} parent=5 // pred_region
      %s255 = ssub.s32 %s12, 1
      %s256 = smul.u32 16, %s22
      %s257 = ssub.s32 20, %s256
      %p258 = scmp.lt.s32.totalorder %s257, 16
      %s259 = scalar_select %p258, %s257, 16
      %s260 = smul.u32 64, %s259
      %s261 = smul.u32 %s260, 3
      %p262 = scmp.lt.s32.totalorder %s21, 1
      %s263 = scalar_select %p262, %s21, 1
      %p264 = scmp.lt.s32.totalorder %s256, 19
      %s265 = scalar_select %p264, %s256, 19
      %s266 = smul.addr %s265, 3
      %s267 = smul.addr %s263, 60
      %s268 = sadd.s32 %s266, %s267
      %s269 = smul.addr %s268, 4
      %s270 = scalar_lea.vmem %s0, %s269
      %p271 = pneg %p52
      %p272 = pneg %p49
      %s273 = sadd.s32 %s22, 1
      %s274 = smul.u32 %s273, 4
      %s275 = smul.u32 4, %s274
      %p276 = scmp.lt.s32.totalorder %s21, 1
      %s277 = scalar_select %p276, %s21, 1
      %p278 = scmp.lt.s32.totalorder %s275, 19
      %s279 = scalar_select %p278, %s275, 19
      %s280 = smul.addr %s279, 3
      %s281 = smul.addr %s277, 60
      %s282 = sadd.s32 %s280, %s281
      %s283 = smul.addr %s282, 4
      %s284 = scalar_lea.vmem %s1, %s283
      %p285 = pneg %p84
      %p286 = pneg %p81
      %p287 = pneg %p105
      %p288 = pneg %p102
      %p289 = pneg %p126
      %p290 = pneg %p123
      %p291 = pneg %p154
      %p292 = pneg %p151
      %s293 = smul.u32 32, %s22
      %p294 = scmp.lt.s32.totalorder %s21, 1
      %s295 = scalar_select %p294, %s21, 1
      %p296 = scmp.lt.s32.totalorder %s293, 31
      %s297 = scalar_select %p296, %s293, 31
      %s298 = smul.addr %s295, 32
      %s299 = sadd.s32 %s297, %s298
      %s300 = smul.addr %s299, 4
      %s301 = scalar_lea.vmem %s4, %s300
      %p302 = pneg %p182
      %p303 = pneg %p179
      %p304 = scmp.lt.s32.totalorder %s21, 1
      %s305 = scalar_select %p304, %s21, 1
      %p306 = scmp.lt.s32.totalorder %s22, 0
      %s307 = scalar_select %p306, %s22, 0
      %s308 = sadd.s32 %s307, %s305
      %s309 = smul.addr %s308, 2
      %s310 = scalar_lea.vmem %s5, %s309
      %s311 = smul.u32 16, %s22
      %s312 = ssub.s32 20, %s311
      %p313 = scmp.lt.s32.totalorder %s312, 16
      %s314 = scalar_select %p313, %s312, 16
      %s315 = smul.u32 64, %s314
      %s316 = smul.u32 %s315, 3
      %p317 = scmp.lt.s32.totalorder %s21, 1
      %s318 = scalar_select %p317, %s21, 1
      %p319 = scmp.lt.s32.totalorder %s311, 19
      %s320 = scalar_select %p319, %s311, 19
      %s321 = smul.addr %s320, 3
      %s322 = smul.addr %s318, 60
      %s323 = sadd.s32 %s321, %s322
      %s324 = smul.addr %s323, 4
      %s325 = scalar_lea.vmem %s0, %s324
      %s326 = smul.u32 16, %s22
      %s327 = ssub.s32 20, %s326
      %p328 = scmp.lt.s32.totalorder %s327, 16
      %s329 = scalar_select %p328, %s327, 16
      %s330 = smul.u32 64, %s329
      %s331 = smul.u32 %s330, 3
      %s332 = sadd.s32 %s22, 1
      %s333 = smul.u32 %s332, 4
      %s334 = smul.u32 4, %s333
      %p335 = scmp.lt.s32.totalorder %s21, 1
      %s336 = scalar_select %p335, %s21, 1
      %p337 = scmp.lt.s32.totalorder %s334, 19
      %s338 = scalar_select %p337, %s334, 19
      %s339 = smul.addr %s338, 3
      %s340 = smul.addr %s336, 60
      %s341 = sadd.s32 %s339, %s340
      %s342 = smul.addr %s341, 4
      %s343 = scalar_lea.vmem %s1, %s342
      %s344 = sadd.s32 %s22, 1
      %s345 = smul.u32 %s344, 4
      %s346 = smul.u32 4, %s345
      %s347 = smul.u32 32, %s22
      %p348 = scmp.lt.s32.totalorder %s21, 1
      %s349 = scalar_select %p348, %s21, 1
      %p350 = scmp.lt.s32.totalorder %s347, 31
      %s351 = scalar_select %p350, %s347, 31
      %s352 = smul.addr %s349, 32
      %s353 = sadd.s32 %s351, %s352
      %s354 = smul.addr %s353, 4
      %s355 = scalar_lea.vmem %s4, %s354
      %s356 = smul.u32 32, %s22
      %p357 = scmp.lt.s32.totalorder %s21, 1
      %s358 = scalar_select %p357, %s21, 1
      %p359 = scmp.lt.s32.totalorder %s22, 0
      %s360 = scalar_select %p359, %s22, 0
      %s361 = sadd.s32 %s360, %s358
      %s362 = smul.addr %s361, 2
      %s363 = scalar_lea.vmem %s5, %s362
      %v365 = vld [vmem:[%s325] sm:$0xf]
      %v366 = vld [vmem:[%s325 + $0x4] sm:$0xf]
      %v367 = vld [vmem:[%s325 + $0x8] sm:$0x3]
      %v368 = vld [vmem:[%s325 + $0xc] sm:$0xf]
      %v369 = vld [vmem:[%s325 + $0x10] sm:$0xf]
      %v370 = vld [vmem:[%s325 + $0x14] sm:$0x3]
      %v371 = vld [vmem:[%s325 + $0x18] sm:$0xf]
      %v372 = vld [vmem:[%s325 + $0x1c] sm:$0xf]
      %v373 = vld [vmem:[%s325 + $0x20] sm:$0x3]
      %v374 = vld [vmem:[%s325 + $0x24] sm:$0xf]
      %v375 = vld [vmem:[%s325 + $0x28] sm:$0xf]
      %v376 = vld [vmem:[%s325 + $0x2c] sm:$0x3]
      %v377 = vld [vmem:[%s325 + $0x30] sm:$0xf]
      %v378 = vld [vmem:[%s325 + $0x34] sm:$0xf]
      %v379 = vld [vmem:[%s325 + $0x38] sm:$0x3]
      %v380 = vld [vmem:[%s325 + $0x3c] sm:$0xf]
      %v381 = vld [vmem:[%s325 + $0x40] sm:$0xf]
      %v382 = vld [vmem:[%s325 + $0x44] sm:$0x3]
      %v383 = vld [vmem:[%s325 + $0x48] sm:$0xf]
      %v384 = vld [vmem:[%s325 + $0x4c] sm:$0xf]
      %v385 = vld [vmem:[%s325 + $0x50] sm:$0x3]
      %v386 = vld [vmem:[%s325 + $0x54] sm:$0xf]
      %v387 = vld [vmem:[%s325 + $0x58] sm:$0xf]
      %v388 = vld [vmem:[%s325 + $0x5c] sm:$0x3]
      %v389 = vld [vmem:[%s325 + $0x60] sm:$0xf]
      %v390 = vld [vmem:[%s325 + $0x64] sm:$0xf]
      %v391 = vld [vmem:[%s325 + $0x68] sm:$0x3]
      %v392 = vld [vmem:[%s325 + $0x6c] sm:$0xf]
      %v393 = vld [vmem:[%s325 + $0x70] sm:$0xf]
      %v394 = vld [vmem:[%s325 + $0x74] sm:$0x3]
      %v395 = vld [vmem:[%s325 + $0x78] sm:$0xf]
      %v396 = vld [vmem:[%s325 + $0x7c] sm:$0xf]
      %v397 = vld [vmem:[%s325 + $0x80] sm:$0x3]
      %v398 = vld [vmem:[%s325 + $0x84] sm:$0xf]
      %v399 = vld [vmem:[%s325 + $0x88] sm:$0xf]
      %v400 = vld [vmem:[%s325 + $0x8c] sm:$0x3]
      %v401 = vld [vmem:[%s325 + $0x90] sm:$0xf]
      %v402 = vld [vmem:[%s325 + $0x94] sm:$0xf]
      %v403 = vld [vmem:[%s325 + $0x98] sm:$0x3]
      %v404 = vld [vmem:[%s325 + $0x9c] sm:$0xf]
      %v405 = vld [vmem:[%s325 + $0xa0] sm:$0xf]
      %v406 = vld [vmem:[%s325 + $0xa4] sm:$0x3]
      %v407 = vld [vmem:[%s325 + $0xa8] sm:$0xf]
      %v408 = vld [vmem:[%s325 + $0xac] sm:$0xf]
      %v409 = vld [vmem:[%s325 + $0xb0] sm:$0x3]
      %v410 = vld [vmem:[%s325 + $0xb4] sm:$0xf]
      %v411 = vld [vmem:[%s325 + $0xb8] sm:$0xf]
      %v412 = vld [vmem:[%s325 + $0xbc] sm:$0x3]
      %v413 = vld [vmem:[%s343] sm:$0xf]
      %v414 = vld [vmem:[%s343 + $0x4] sm:$0xf]
      %v415 = vld [vmem:[%s343 + $0x8] sm:$0x3]
      %v416 = vld [vmem:[%s343 + $0xc] sm:$0xf]
      %v417 = vld [vmem:[%s343 + $0x10] sm:$0xf]
      %v418 = vld [vmem:[%s343 + $0x14] sm:$0x3]
      %v419 = vld [vmem:[%s343 + $0x18] sm:$0xf]
      %v420 = vld [vmem:[%s343 + $0x1c] sm:$0xf]
      %v421 = vld [vmem:[%s343 + $0x20] sm:$0x3]
      %v422 = vld [vmem:[%s343 + $0x24] sm:$0xf]
      %v423 = vld [vmem:[%s343 + $0x28] sm:$0xf]
      %v424 = vld [vmem:[%s343 + $0x2c] sm:$0x3]
      %v425 = vld [vmem:[%s2] sm:$0xf]
      %vm474 = vcmask 1042432
      %vm475 = vcmask 1046532
      %vm476 = vmor %vm474, %vm475
      %v477 = vrot.slane %v365, 5
      %v478 = vrot.slane %v477, 4
      %v479 = vrot.slane %v366, 5
      %v480 = vsel %vm476, %v478, %v479
      %v481 = vrot.slane %v479, 4
      %v482 = vrot.slane %v367, 5
      %v483 = vsel %vm476, %v481, %v482
      %v484 = vrot.slane %v368, 5
      %v485 = vrot.slane %v484, 4
      %v486 = vrot.slane %v369, 5
      %v487 = vsel %vm476, %v485, %v486
      %v488 = vrot.slane %v486, 4
      %v489 = vrot.slane %v370, 5
      %v490 = vsel %vm476, %v488, %v489
      %v491 = vrot.slane %v371, 5
      %v492 = vrot.slane %v491, 4
      %v493 = vrot.slane %v372, 5
      %v494 = vsel %vm476, %v492, %v493
      %v495 = vrot.slane %v493, 4
      %v496 = vrot.slane %v373, 5
      %v497 = vsel %vm476, %v495, %v496
      %v498 = vrot.slane %v374, 5
      %v499 = vrot.slane %v498, 4
      %v500 = vrot.slane %v375, 5
      %v501 = vsel %vm476, %v499, %v500
      %v502 = vrot.slane %v500, 4
      %v503 = vrot.slane %v376, 5
      %v504 = vsel %vm476, %v502, %v503
      %v505 = vrot.slane %v377, 5
      %v506 = vrot.slane %v505, 4
      %v507 = vrot.slane %v378, 5
      %v508 = vsel %vm476, %v506, %v507
      %v509 = vrot.slane %v507, 4
      %v510 = vrot.slane %v379, 5
      %v511 = vsel %vm476, %v509, %v510
      %v512 = vrot.slane %v380, 5
      %v513 = vrot.slane %v512, 4
      %v514 = vrot.slane %v381, 5
      %v515 = vsel %vm476, %v513, %v514
      %v516 = vrot.slane %v514, 4
      %v517 = vrot.slane %v382, 5
      %v518 = vsel %vm476, %v516, %v517
      %v519 = vrot.slane %v383, 5
      %v520 = vrot.slane %v519, 4
      %v521 = vrot.slane %v384, 5
      %v522 = vsel %vm476, %v520, %v521
      %v523 = vrot.slane %v521, 4
      %v524 = vrot.slane %v385, 5
      %v525 = vsel %vm476, %v523, %v524
      %v526 = vrot.slane %v386, 5
      %v527 = vrot.slane %v526, 4
      %v528 = vrot.slane %v387, 5
      %v529 = vsel %vm476, %v527, %v528
      %v530 = vrot.slane %v528, 4
      %v531 = vrot.slane %v388, 5
      %v532 = vsel %vm476, %v530, %v531
      %v533 = vrot.slane %v389, 5
      %v534 = vrot.slane %v533, 4
      %v535 = vrot.slane %v390, 5
      %v536 = vsel %vm476, %v534, %v535
      %v537 = vrot.slane %v535, 4
      %v538 = vrot.slane %v391, 5
      %v539 = vsel %vm476, %v537, %v538
      %v540 = vrot.slane %v392, 5
      %v541 = vrot.slane %v540, 4
      %v542 = vrot.slane %v393, 5
      %v543 = vsel %vm476, %v541, %v542
      %v544 = vrot.slane %v542, 4
      %v545 = vrot.slane %v394, 5
      %v546 = vsel %vm476, %v544, %v545
      %v547 = vrot.slane %v395, 5
      %v548 = vrot.slane %v547, 4
      %v549 = vrot.slane %v396, 5
      %v550 = vsel %vm476, %v548, %v549
      %v551 = vrot.slane %v549, 4
      %v552 = vrot.slane %v397, 5
      %v553 = vsel %vm476, %v551, %v552
      %v554 = vrot.slane %v398, 5
      %v555 = vrot.slane %v554, 4
      %v556 = vrot.slane %v399, 5
      %v557 = vsel %vm476, %v555, %v556
      %v558 = vrot.slane %v556, 4
      %v559 = vrot.slane %v400, 5
      %v560 = vsel %vm476, %v558, %v559
      %v561 = vrot.slane %v401, 5
      %v562 = vrot.slane %v561, 4
      %v563 = vrot.slane %v402, 5
      %v564 = vsel %vm476, %v562, %v563
      %v565 = vrot.slane %v563, 4
      %v566 = vrot.slane %v403, 5
      %v567 = vsel %vm476, %v565, %v566
      %v568 = vrot.slane %v404, 5
      %v569 = vrot.slane %v568, 4
      %v570 = vrot.slane %v405, 5
      %v571 = vsel %vm476, %v569, %v570
      %v572 = vrot.slane %v570, 4
      %v573 = vrot.slane %v406, 5
      %v574 = vsel %vm476, %v572, %v573
      %v575 = vrot.slane %v407, 5
      %v576 = vrot.slane %v575, 4
      %v577 = vrot.slane %v408, 5
      %v578 = vsel %vm476, %v576, %v577
      %v579 = vrot.slane %v577, 4
      %v580 = vrot.slane %v409, 5
      %v581 = vsel %vm476, %v579, %v580
      %v582 = vrot.slane %v410, 5
      %v583 = vrot.slane %v582, 4
      %v584 = vrot.slane %v411, 5
      %v585 = vsel %vm476, %v583, %v584
      %v586 = vrot.slane %v584, 4
      %v587 = vrot.slane %v412, 5
      %v588 = vsel %vm476, %v586, %v587
      %s589 = scalar_lea.vmem %s2, 4
      %v590 = vld [vmem:[%s589] sm:$0xf]
      %v591 = vunpack.c.l.b16 %v480
      %v592 = vunpack.c.l.b16 %v483
      %v593 = vunpack.c.l.b16 %v487
      %v594 = vunpack.c.l.b16 %v490
      %v595 = vunpack.c.l.b16 %v494
      %v596 = vunpack.c.l.b16 %v497
      %v597 = vunpack.c.l.b16 %v501
      %v598 = vunpack.c.l.b16 %v504
      %v599 = vunpack.c.l.b16 %v508
      %v600 = vunpack.c.l.b16 %v511
      %v601 = vunpack.c.l.b16 %v515
      %v602 = vunpack.c.l.b16 %v518
      %v603 = vunpack.c.l.b16 %v522
      %v604 = vunpack.c.l.b16 %v525
      %v605 = vunpack.c.l.b16 %v529
      %v606 = vunpack.c.l.b16 %v532
      %v607 = vunpack.c.l.b16 %v536
      %v608 = vunpack.c.l.b16 %v539
      %v609 = vunpack.c.l.b16 %v543
      %v610 = vunpack.c.l.b16 %v546
      %v611 = vunpack.c.l.b16 %v550
      %v612 = vunpack.c.l.b16 %v553
      %v613 = vunpack.c.l.b16 %v557
      %v614 = vunpack.c.l.b16 %v560
      %v615 = vunpack.c.l.b16 %v564
      %v616 = vunpack.c.l.b16 %v567
      %v617 = vunpack.c.l.b16 %v571
      %v618 = vunpack.c.l.b16 %v574
      %v619 = vunpack.c.l.b16 %v578
      %v620 = vunpack.c.l.b16 %v581
      %v621 = vunpack.c.l.b16 %v585
      %v622 = vunpack.c.l.b16 %v588
      %v623 = vpack.c.b16 %v592, %v591
      %v624 = vpack.c.b16 %v594, %v593
      %v625 = vpack.c.b16 %v596, %v595
      %v626 = vpack.c.b16 %v598, %v597
      %v627 = vpack.c.b16 %v600, %v599
      %v628 = vpack.c.b16 %v602, %v601
      %v629 = vpack.c.b16 %v604, %v603
      %v630 = vpack.c.b16 %v606, %v605
      %v631 = vpack.c.b16 %v608, %v607
      %v632 = vpack.c.b16 %v610, %v609
      %v633 = vpack.c.b16 %v612, %v611
      %v634 = vpack.c.b16 %v614, %v613
      %v635 = vpack.c.b16 %v616, %v615
      %v636 = vpack.c.b16 %v618, %v617
      %v637 = vpack.c.b16 %v620, %v619
      %v638 = vpack.c.b16 %v622, %v621
      %vm639 = vcmask 64512
      %v641 = vsel %vm639, %v623, 0
      %v644 = vsel %vm639, %v624, 0
      %v647 = vsel %vm639, %v625, 0
      %v650 = vsel %vm639, %v626, 0
      %v653 = vsel %vm639, %v627, 0
      %v656 = vsel %vm639, %v628, 0
      %v659 = vsel %vm639, %v629, 0
      %v662 = vsel %vm639, %v630, 0
      %v665 = vsel %vm639, %v631, 0
      %v668 = vsel %vm639, %v632, 0
      %v671 = vsel %vm639, %v633, 0
      %v674 = vsel %vm639, %v634, 0
      %v677 = vsel %vm639, %v635, 0
      %v680 = vsel %vm639, %v636, 0
      %v683 = vsel %vm639, %v637, 0
      %v686 = vsel %vm639, %v638, 0
      %vm688 = vcmask 1043456
      %v690 = vsel %vm688, %v590, 0
      %692 = vmatprep.subr.bf16.mxu0 0
      %693 = vmatpush1.bf16.msra.mxu0 %v690
      %694 = vmatprep.subr.bf16.mxu0 0
      %695 = vmatpush1.bf16.msra.mxu0 0
      %696 = vmatprep.subr.bf16.mxu0 0
      %697 = vmatpush1.bf16.msra.mxu0 0
      %698 = vmatprep.subr.bf16.mxu0 0
      %699 = vmatpush1.bf16.msra.mxu0 0
      %700 = vmatprep.subr.bf16.mxu0 0
      %701 = vmatpush1.bf16.msra.mxu0 0
      %702 = vmatprep.subr.bf16.mxu0 0
      %703 = vmatpush1.bf16.msra.mxu0 0
      %704 = vmatprep.subr.bf16.mxu0 0
      %705 = vmatpush1.bf16.msra.mxu0 0
      %706 = vmatprep.subr.bf16.mxu0 0
      %707 = vmatpush1.bf16.msra.mxu0 0
      %708 = vmatprep.subr.bf16.mxu0 0
      %709 = vmatpush1.bf16.msra.mxu0 0
      %710 = vmatprep.subr.bf16.mxu0 0
      %711 = vmatpush1.bf16.msra.mxu0 0
      %712 = vmatprep.subr.bf16.mxu0 0
      %713 = vmatpush1.bf16.msra.mxu0 0
      %714 = vmatprep.subr.bf16.mxu0 0
      %715 = vmatpush1.bf16.msra.mxu0 0
      %716 = vmatprep.subr.bf16.mxu0 0
      %717 = vmatpush1.bf16.msra.mxu0 0
      %718 = vmatprep.subr.bf16.mxu0 0
      %719 = vmatpush1.bf16.msra.mxu0 0
      %720 = vmatprep.subr.bf16.mxu0 0
      %721 = vmatpush1.bf16.msra.mxu0 0
      %722 = vmatprep.subr.bf16.mxu0 0
      %723 = vmatpush1.bf16.msra.mxu0 0
      %724 = vmatprep.mubr.bf16.mxu0 0
      %725 = vmatmul.mubr.bf16.gmra.mrb[0].mxu0 %v641
      %v726 = vpop.f32.mrb[0].mxu0
      %v727 = vadd.f32 0.0, %v726
      %v728 = vpop.f32.mrb[0].mxu0
      %v729 = vpop.f32.mrb[0].mxu0
      %v730 = vadd.f32 0.0, %v729
      %v731 = vpop.f32.mrb[0].mxu0
      %732 = vmatprep.mubr.bf16.mxu0 0
      %733 = vmatmul.mubr.bf16.gmra.mrb[0].mxu0 %v644
      %v734 = vpop.f32.mrb[0].mxu0
      %v735 = vadd.f32 0.0, %v734
      %v736 = vpop.f32.mrb[0].mxu0
      %v737 = vpop.f32.mrb[0].mxu0
      %v738 = vadd.f32 0.0, %v737
      %v739 = vpop.f32.mrb[0].mxu0
      %740 = vmatprep.mubr.bf16.mxu0 0
      %741 = vmatmul.mubr.bf16.gmra.mrb[0].mxu0 %v647
      %v742 = vpop.f32.mrb[0].mxu0
      %v743 = vadd.f32 0.0, %v742
      %v744 = vpop.f32.mrb[0].mxu0
      %v745 = vpop.f32.mrb[0].mxu0
      %v746 = vadd.f32 0.0, %v745
      %v747 = vpop.f32.mrb[0].mxu0
      %748 = vmatprep.mubr.bf16.mxu0 0
      %749 = vmatmul.mubr.bf16.gmra.mrb[0].mxu0 %v650
      %v750 = vpop.f32.mrb[0].mxu0
      %v751 = vadd.f32 0.0, %v750
      %v752 = vpop.f32.mrb[0].mxu0
      %v753 = vpop.f32.mrb[0].mxu0
      %v754 = vadd.f32 0.0, %v753
      %v755 = vpop.f32.mrb[0].mxu0
      %756 = vmatprep.mubr.bf16.mxu0 0
      %757 = vmatmul.mubr.bf16.gmra.mrb[0].mxu0 %v653
      %v758 = vpop.f32.mrb[0].mxu0
      %v759 = vadd.f32 0.0, %v758
      %v760 = vpop.f32.mrb[0].mxu0
      %v761 = vpop.f32.mrb[0].mxu0
      %v762 = vadd.f32 0.0, %v761
      %v763 = vpop.f32.mrb[0].mxu0
      %764 = vmatprep.mubr.bf16.mxu0 0
      %765 = vmatmul.mubr.bf16.gmra.mrb[0].mxu0 %v656
      %v766 = vpop.f32.mrb[0].mxu0
      %v767 = vadd.f32 0.0, %v766
      %v768 = vpop.f32.mrb[0].mxu0
      %v769 = vpop.f32.mrb[0].mxu0
      %v770 = vadd.f32 0.0, %v769
      %v771 = vpop.f32.mrb[0].mxu0
      %772 = vmatprep.mubr.bf16.mxu0 0
      %773 = vmatmul.mubr.bf16.gmra.mrb[0].mxu0 %v659
      %v774 = vpop.f32.mrb[0].mxu0
      %v775 = vadd.f32 0.0, %v774
      %v776 = vpop.f32.mrb[0].mxu0
      %v777 = vpop.f32.mrb[0].mxu0
      %v778 = vadd.f32 0.0, %v777
      %v779 = vpop.f32.mrb[0].mxu0
      %780 = vmatprep.mubr.bf16.mxu0 0
      %781 = vmatmul.mubr.bf16.gmra.mrb[0].mxu0 %v662
      %v782 = vpop.f32.mrb[0].mxu0
      %v783 = vadd.f32 0.0, %v782
      %v784 = vpop.f32.mrb[0].mxu0
      %v785 = vpop.f32.mrb[0].mxu0
      %v786 = vadd.f32 0.0, %v785
      %v787 = vpop.f32.mrb[0].mxu0
      %788 = vmatprep.mubr.bf16.mxu0 0
      %789 = vmatmul.mubr.bf16.gmra.mrb[0].mxu0 %v665
      %v790 = vpop.f32.mrb[0].mxu0
      %v791 = vadd.f32 0.0, %v790
      %v792 = vpop.f32.mrb[0].mxu0
      %v793 = vpop.f32.mrb[0].mxu0
      %v794 = vadd.f32 0.0, %v793
      %v795 = vpop.f32.mrb[0].mxu0
      %796 = vmatprep.mubr.bf16.mxu0 0
      %797 = vmatmul.mubr.bf16.gmra.mrb[0].mxu0 %v668
      %v798 = vpop.f32.mrb[0].mxu0
      %v799 = vadd.f32 0.0, %v798
      %v800 = vpop.f32.mrb[0].mxu0
      %v801 = vpop.f32.mrb[0].mxu0
      %v802 = vadd.f32 0.0, %v801
      %v803 = vpop.f32.mrb[0].mxu0
      %804 = vmatprep.mubr.bf16.mxu0 0
      %805 = vmatmul.mubr.bf16.gmra.mrb[0].mxu0 %v671
      %v806 = vpop.f32.mrb[0].mxu0
      %v807 = vadd.f32 0.0, %v806
      %v808 = vpop.f32.mrb[0].mxu0
      %v809 = vpop.f32.mrb[0].mxu0
      %v810 = vadd.f32 0.0, %v809
      %v811 = vpop.f32.mrb[0].mxu0
      %812 = vmatprep.mubr.bf16.mxu0 0
      %813 = vmatmul.mubr.bf16.gmra.mrb[0].mxu0 %v674
      %v814 = vpop.f32.mrb[0].mxu0
      %v815 = vadd.f32 0.0, %v814
      %v816 = vpop.f32.mrb[0].mxu0
      %v817 = vpop.f32.mrb[0].mxu0
      %v818 = vadd.f32 0.0, %v817
      %v819 = vpop.f32.mrb[0].mxu0
      %820 = vmatprep.mubr.bf16.mxu0 0
      %821 = vmatmul.mubr.bf16.gmra.mrb[0].mxu0 %v677
      %v822 = vpop.f32.mrb[0].mxu0
      %v823 = vadd.f32 0.0, %v822
      %v824 = vpop.f32.mrb[0].mxu0
      %v825 = vpop.f32.mrb[0].mxu0
      %v826 = vadd.f32 0.0, %v825
      %v827 = vpop.f32.mrb[0].mxu0
      %828 = vmatprep.mubr.bf16.mxu0 0
      %829 = vmatmul.mubr.bf16.gmra.mrb[0].mxu0 %v680
      %v830 = vpop.f32.mrb[0].mxu0
      %v831 = vadd.f32 0.0, %v830
      %v832 = vpop.f32.mrb[0].mxu0
      %v833 = vpop.f32.mrb[0].mxu0
      %v834 = vadd.f32 0.0, %v833
      %v835 = vpop.f32.mrb[0].mxu0
      %836 = vmatprep.mubr.bf16.mxu0 0
      %837 = vmatmul.mubr.bf16.gmra.mrb[0].mxu0 %v683
      %v838 = vpop.f32.mrb[0].mxu0
      %v839 = vadd.f32 0.0, %v838
      %v840 = vpop.f32.mrb[0].mxu0
      %v841 = vpop.f32.mrb[0].mxu0
      %v842 = vadd.f32 0.0, %v841
      %v843 = vpop.f32.mrb[0].mxu0
      %844 = vmatprep.mubr.bf16.mxu0 0
      %845 = vmatmul.mubr.bf16.gmra.mrb[0].mxu0 %v686
      %v846 = vpop.f32.mrb[0].mxu0
      %v847 = vadd.f32 0.0, %v846
      %v848 = vpop.f32.mrb[0].mxu0
      %v849 = vpop.f32.mrb[0].mxu0
      %v850 = vadd.f32 0.0, %v849
      %v851 = vpop.f32.mrb[0].mxu0
      %852 = vdwg.mxu0
      %v853 = vunpack.c.l.b16 %v365
      %v854 = vunpack.c.l.b16 %v366
      %v855 = vunpack.c.l.b16 %v368
      %v856 = vunpack.c.l.b16 %v369
      %v857 = vunpack.c.l.b16 %v371
      %v858 = vunpack.c.l.b16 %v372
      %v859 = vunpack.c.l.b16 %v374
      %v860 = vunpack.c.l.b16 %v375
      %v861 = vunpack.c.l.b16 %v377
      %v862 = vunpack.c.l.b16 %v378
      %v863 = vunpack.c.l.b16 %v380
      %v864 = vunpack.c.l.b16 %v381
      %v865 = vunpack.c.l.b16 %v383
      %v866 = vunpack.c.l.b16 %v384
      %v867 = vunpack.c.l.b16 %v386
      %v868 = vunpack.c.l.b16 %v387
      %v869 = vunpack.c.l.b16 %v389
      %v870 = vunpack.c.l.b16 %v390
      %v871 = vunpack.c.l.b16 %v392
      %v872 = vunpack.c.l.b16 %v393
      %v873 = vunpack.c.l.b16 %v395
      %v874 = vunpack.c.l.b16 %v396
      %v875 = vunpack.c.l.b16 %v398
      %v876 = vunpack.c.l.b16 %v399
      %v877 = vunpack.c.l.b16 %v401
      %v878 = vunpack.c.l.b16 %v402
      %v879 = vunpack.c.l.b16 %v404
      %v880 = vunpack.c.l.b16 %v405
      %v881 = vunpack.c.l.b16 %v407
      %v882 = vunpack.c.l.b16 %v408
      %v883 = vunpack.c.l.b16 %v410
      %v884 = vunpack.c.l.b16 %v411
      %v885 = vpack.c.b16 %v854, %v853
      %v886 = vpack.c.b16 %v856, %v855
      %v887 = vpack.c.b16 %v858, %v857
      %v888 = vpack.c.b16 %v860, %v859
      %v889 = vpack.c.b16 %v862, %v861
      %v890 = vpack.c.b16 %v864, %v863
      %v891 = vpack.c.b16 %v866, %v865
      %v892 = vpack.c.b16 %v868, %v867
      %v893 = vpack.c.b16 %v870, %v869
      %v894 = vpack.c.b16 %v872, %v871
      %v895 = vpack.c.b16 %v874, %v873
      %v896 = vpack.c.b16 %v876, %v875
      %v897 = vpack.c.b16 %v878, %v877
      %v898 = vpack.c.b16 %v880, %v879
      %v899 = vpack.c.b16 %v882, %v881
      %v900 = vpack.c.b16 %v884, %v883
      %v902 = vsel %vm639, %v885, 0
      %v905 = vsel %vm639, %v886, 0
      %v908 = vsel %vm639, %v887, 0
      %v911 = vsel %vm639, %v888, 0
      %v914 = vsel %vm639, %v889, 0
      %v917 = vsel %vm639, %v890, 0
      %v920 = vsel %vm639, %v891, 0
      %v923 = vsel %vm639, %v892, 0
      %v926 = vsel %vm639, %v893, 0
      %v929 = vsel %vm639, %v894, 0
      %v932 = vsel %vm639, %v895, 0
      %v935 = vsel %vm639, %v896, 0
      %v938 = vsel %vm639, %v897, 0
      %v941 = vsel %vm639, %v898, 0
      %v944 = vsel %vm639, %v899, 0
      %v947 = vsel %vm639, %v900, 0
      %v950 = vsel %vm688, %v425, 0
      %952 = vmatprep.subr.bf16.mxu0 0
      %953 = vmatpush1.bf16.msra.mxu0 %v950
      %954 = vmatprep.subr.bf16.mxu0 0
      %955 = vmatpush1.bf16.msra.mxu0 0
      %956 = vmatprep.subr.bf16.mxu0 0
      %957 = vmatpush1.bf16.msra.mxu0 0
      %958 = vmatprep.subr.bf16.mxu0 0
      %959 = vmatpush1.bf16.msra.mxu0 0
      %960 = vmatprep.subr.bf16.mxu0 0
      %961 = vmatpush1.bf16.msra.mxu0 0
      %962 = vmatprep.subr.bf16.mxu0 0
      %963 = vmatpush1.bf16.msra.mxu0 0
      %964 = vmatprep.subr.bf16.mxu0 0
      %965 = vmatpush1.bf16.msra.mxu0 0
      %966 = vmatprep.subr.bf16.mxu0 0
      %967 = vmatpush1.bf16.msra.mxu0 0
      %968 = vmatprep.subr.bf16.mxu0 0
      %969 = vmatpush1.bf16.msra.mxu0 0
      %970 = vmatprep.subr.bf16.mxu0 0
      %971 = vmatpush1.bf16.msra.mxu0 0
      %972 = vmatprep.subr.bf16.mxu0 0
      %973 = vmatpush1.bf16.msra.mxu0 0
      %974 = vmatprep.subr.bf16.mxu0 0
      %975 = vmatpush1.bf16.msra.mxu0 0
      %976 = vmatprep.subr.bf16.mxu0 0
      %977 = vmatpush1.bf16.msra.mxu0 0
      %978 = vmatprep.subr.bf16.mxu0 0
      %979 = vmatpush1.bf16.msra.mxu0 0
      %980 = vmatprep.subr.bf16.mxu0 0
      %981 = vmatpush1.bf16.msra.mxu0 0
      %982 = vmatprep.subr.bf16.mxu0 0
      %983 = vmatpush1.bf16.msra.mxu0 0
      %984 = vmatprep.mubr.bf16.mxu0 0
      %985 = vmatmul.mubr.bf16.gmra.mrb[0].mxu0 %v902
      %v986 = vpop.f32.mrb[0].mxu0
      %v987 = vadd.f32 %v727, %v986
      %v988 = vpop.f32.mrb[0].mxu0
      %v989 = vpop.f32.mrb[0].mxu0
      %v990 = vadd.f32 %v730, %v989
      %v991 = vpop.f32.mrb[0].mxu0
      %992 = vmatprep.mubr.bf16.mxu0 0
      %993 = vmatmul.mubr.bf16.gmra.mrb[0].mxu0 %v905
      %v994 = vpop.f32.mrb[0].mxu0
      %v995 = vadd.f32 %v735, %v994
      %v996 = vpop.f32.mrb[0].mxu0
      %v997 = vpop.f32.mrb[0].mxu0
      %v998 = vadd.f32 %v738, %v997
      %v999 = vpop.f32.mrb[0].mxu0
      %1000 = vmatprep.mubr.bf16.mxu0 0
      %1001 = vmatmul.mubr.bf16.gmra.mrb[0].mxu0 %v908
      %v1002 = vpop.f32.mrb[0].mxu0
      %v1003 = vadd.f32 %v743, %v1002
      %v1004 = vpop.f32.mrb[0].mxu0
      %v1005 = vpop.f32.mrb[0].mxu0
      %v1006 = vadd.f32 %v746, %v1005
      %v1007 = vpop.f32.mrb[0].mxu0
      %1008 = vmatprep.mubr.bf16.mxu0 0
      %1009 = vmatmul.mubr.bf16.gmra.mrb[0].mxu0 %v911
      %v1010 = vpop.f32.mrb[0].mxu0
      %v1011 = vadd.f32 %v751, %v1010
      %v1012 = vpop.f32.mrb[0].mxu0
      %v1013 = vpop.f32.mrb[0].mxu0
      %v1014 = vadd.f32 %v754, %v1013
      %v1015 = vpop.f32.mrb[0].mxu0
      %1016 = vmatprep.mubr.bf16.mxu0 0
      %1017 = vmatmul.mubr.bf16.gmra.mrb[0].mxu0 %v914
      %v1018 = vpop.f32.mrb[0].mxu0
      %v1019 = vadd.f32 %v759, %v1018
      %v1020 = vpop.f32.mrb[0].mxu0
      %v1021 = vpop.f32.mrb[0].mxu0
      %v1022 = vadd.f32 %v762, %v1021
      %v1023 = vpop.f32.mrb[0].mxu0
      %1024 = vmatprep.mubr.bf16.mxu0 0
      %1025 = vmatmul.mubr.bf16.gmra.mrb[0].mxu0 %v917
      %v1026 = vpop.f32.mrb[0].mxu0
      %v1027 = vadd.f32 %v767, %v1026
      %v1028 = vpop.f32.mrb[0].mxu0
      %v1029 = vpop.f32.mrb[0].mxu0
      %v1030 = vadd.f32 %v770, %v1029
      %v1031 = vpop.f32.mrb[0].mxu0
      %1032 = vmatprep.mubr.bf16.mxu0 0
      %1033 = vmatmul.mubr.bf16.gmra.mrb[0].mxu0 %v920
      %v1034 = vpop.f32.mrb[0].mxu0
      %v1035 = vadd.f32 %v775, %v1034
      %v1036 = vpop.f32.mrb[0].mxu0
      %v1037 = vpop.f32.mrb[0].mxu0
      %v1038 = vadd.f32 %v778, %v1037
      %v1039 = vpop.f32.mrb[0].mxu0
      %1040 = vmatprep.mubr.bf16.mxu0 0
      %1041 = vmatmul.mubr.bf16.gmra.mrb[0].mxu0 %v923
      %v1042 = vpop.f32.mrb[0].mxu0
      %v1043 = vadd.f32 %v783, %v1042
      %v1044 = vpop.f32.mrb[0].mxu0
      %v1045 = vpop.f32.mrb[0].mxu0
      %v1046 = vadd.f32 %v786, %v1045
      %v1047 = vpop.f32.mrb[0].mxu0
      %1048 = vmatprep.mubr.bf16.mxu0 0
      %1049 = vmatmul.mubr.bf16.gmra.mrb[0].mxu0 %v926
      %v1050 = vpop.f32.mrb[0].mxu0
      %v1051 = vadd.f32 %v791, %v1050
      %v1052 = vpop.f32.mrb[0].mxu0
      %v1053 = vpop.f32.mrb[0].mxu0
      %v1054 = vadd.f32 %v794, %v1053
      %v1055 = vpop.f32.mrb[0].mxu0
      %1056 = vmatprep.mubr.bf16.mxu0 0
      %1057 = vmatmul.mubr.bf16.gmra.mrb[0].mxu0 %v929
      %v1058 = vpop.f32.mrb[0].mxu0
      %v1059 = vadd.f32 %v799, %v1058
      %v1060 = vpop.f32.mrb[0].mxu0
      %v1061 = vpop.f32.mrb[0].mxu0
      %v1062 = vadd.f32 %v802, %v1061
      %v1063 = vpop.f32.mrb[0].mxu0
      %1064 = vmatprep.mubr.bf16.mxu0 0
      %1065 = vmatmul.mubr.bf16.gmra.mrb[0].mxu0 %v932
      %v1066 = vpop.f32.mrb[0].mxu0
      %v1067 = vadd.f32 %v807, %v1066
      %v1068 = vpop.f32.mrb[0].mxu0
      %v1069 = vpop.f32.mrb[0].mxu0
      %v1070 = vadd.f32 %v810, %v1069
      %v1071 = vpop.f32.mrb[0].mxu0
      %1072 = vmatprep.mubr.bf16.mxu0 0
      %1073 = vmatmul.mubr.bf16.gmra.mrb[0].mxu0 %v935
      %v1074 = vpop.f32.mrb[0].mxu0
      %v1075 = vadd.f32 %v815, %v1074
      %v1076 = vpop.f32.mrb[0].mxu0
      %v1077 = vpop.f32.mrb[0].mxu0
      %v1078 = vadd.f32 %v818, %v1077
      %v1079 = vpop.f32.mrb[0].mxu0
      %1080 = vmatprep.mubr.bf16.mxu0 0
      %1081 = vmatmul.mubr.bf16.gmra.mrb[0].mxu0 %v938
      %v1082 = vpop.f32.mrb[0].mxu0
      %v1083 = vadd.f32 %v823, %v1082
      %v1084 = vpop.f32.mrb[0].mxu0
      %v1085 = vpop.f32.mrb[0].mxu0
      %v1086 = vadd.f32 %v826, %v1085
      %v1087 = vpop.f32.mrb[0].mxu0
      %1088 = vmatprep.mubr.bf16.mxu0 0
      %1089 = vmatmul.mubr.bf16.gmra.mrb[0].mxu0 %v941
      %v1090 = vpop.f32.mrb[0].mxu0
      %v1091 = vadd.f32 %v831, %v1090
      %v1092 = vpop.f32.mrb[0].mxu0
      %v1093 = vpop.f32.mrb[0].mxu0
      %v1094 = vadd.f32 %v834, %v1093
      %v1095 = vpop.f32.mrb[0].mxu0
      %1096 = vmatprep.mubr.bf16.mxu0 0
      %1097 = vmatmul.mubr.bf16.gmra.mrb[0].mxu0 %v944
      %v1098 = vpop.f32.mrb[0].mxu0
      %v1099 = vadd.f32 %v839, %v1098
      %v1100 = vpop.f32.mrb[0].mxu0
      %v1101 = vpop.f32.mrb[0].mxu0
      %v1102 = vadd.f32 %v842, %v1101
      %v1103 = vpop.f32.mrb[0].mxu0
      %1104 = vmatprep.mubr.bf16.mxu0 0
      %1105 = vmatmul.mubr.bf16.gmra.mrb[0].mxu0 %v947
      %v1106 = vpop.f32.mrb[0].mxu0
      %v1107 = vadd.f32 %v847, %v1106
      %v1108 = vpop.f32.mrb[0].mxu0
      %v1109 = vpop.f32.mrb[0].mxu0
      %v1110 = vadd.f32 %v850, %v1109
      %v1111 = vpop.f32.mrb[0].mxu0
      %1112 = vdwg.mxu0
      %vm1113 = vcmask 1041408
      %vm1114 = vcmask 1045508
      %vm1115 = vmor %vm1113, %vm1114
      %v1116 = vrot.slane %v365, 6
      %v1117 = vrot.slane %v1116, 4
      %v1118 = vrot.slane %v366, 6
      %v1119 = vsel %vm1115, %v1117, %v1118
      %v1120 = vrot.slane %v1118, 4
      %v1121 = vrot.slane %v367, 6
      %v1122 = vsel %vm1115, %v1120, %v1121
      %v1123 = vrot.slane %v368, 6
      %v1124 = vrot.slane %v1123, 4
      %v1125 = vrot.slane %v369, 6
      %v1126 = vsel %vm1115, %v1124, %v1125
      %v1127 = vrot.slane %v1125, 4
      %v1128 = vrot.slane %v370, 6
      %v1129 = vsel %vm1115, %v1127, %v1128
      %v1130 = vrot.slane %v371, 6
      %v1131 = vrot.slane %v1130, 4
      %v1132 = vrot.slane %v372, 6
      %v1133 = vsel %vm1115, %v1131, %v1132
      %v1134 = vrot.slane %v1132, 4
      %v1135 = vrot.slane %v373, 6
      %v1136 = vsel %vm1115, %v1134, %v1135
      %v1137 = vrot.slane %v374, 6
      %v1138 = vrot.slane %v1137, 4
      %v1139 = vrot.slane %v375, 6
      %v1140 = vsel %vm1115, %v1138, %v1139
      %v1141 = vrot.slane %v1139, 4
      %v1142 = vrot.slane %v376, 6
      %v1143 = vsel %vm1115, %v1141, %v1142
      %v1144 = vrot.slane %v377, 6
      %v1145 = vrot.slane %v1144, 4
      %v1146 = vrot.slane %v378, 6
      %v1147 = vsel %vm1115, %v1145, %v1146
      %v1148 = vrot.slane %v1146, 4
      %v1149 = vrot.slane %v379, 6
      %v1150 = vsel %vm1115, %v1148, %v1149
      %v1151 = vrot.slane %v380, 6
      %v1152 = vrot.slane %v1151, 4
      %v1153 = vrot.slane %v381, 6
      %v1154 = vsel %vm1115, %v1152, %v1153
      %v1155 = vrot.slane %v1153, 4
      %v1156 = vrot.slane %v382, 6
      %v1157 = vsel %vm1115, %v1155, %v1156
      %v1158 = vrot.slane %v383, 6
      %v1159 = vrot.slane %v1158, 4
      %v1160 = vrot.slane %v384, 6
      %v1161 = vsel %vm1115, %v1159, %v1160
      %v1162 = vrot.slane %v1160, 4
      %v1163 = vrot.slane %v385, 6
      %v1164 = vsel %vm1115, %v1162, %v1163
      %v1165 = vrot.slane %v386, 6
      %v1166 = vrot.slane %v1165, 4
      %v1167 = vrot.slane %v387, 6
      %v1168 = vsel %vm1115, %v1166, %v1167
      %v1169 = vrot.slane %v1167, 4
      %v1170 = vrot.slane %v388, 6
      %v1171 = vsel %vm1115, %v1169, %v1170
      %v1172 = vrot.slane %v389, 6
      %v1173 = vrot.slane %v1172, 4
      %v1174 = vrot.slane %v390, 6
      %v1175 = vsel %vm1115, %v1173, %v1174
      %v1176 = vrot.slane %v1174, 4
      %v1177 = vrot.slane %v391, 6
      %v1178 = vsel %vm1115, %v1176, %v1177
      %v1179 = vrot.slane %v392, 6
      %v1180 = vrot.slane %v1179, 4
      %v1181 = vrot.slane %v393, 6
      %v1182 = vsel %vm1115, %v1180, %v1181
      %v1183 = vrot.slane %v1181, 4
      %v1184 = vrot.slane %v394, 6
      %v1185 = vsel %vm1115, %v1183, %v1184
      %v1186 = vrot.slane %v395, 6
      %v1187 = vrot.slane %v1186, 4
      %v1188 = vrot.slane %v396, 6
      %v1189 = vsel %vm1115, %v1187, %v1188
      %v1190 = vrot.slane %v1188, 4
      %v1191 = vrot.slane %v397, 6
      %v1192 = vsel %vm1115, %v1190, %v1191
      %v1193 = vrot.slane %v398, 6
      %v1194 = vrot.slane %v1193, 4
      %v1195 = vrot.slane %v399, 6
      %v1196 = vsel %vm1115, %v1194, %v1195
      %v1197 = vrot.slane %v1195, 4
      %v1198 = vrot.slane %v400, 6
      %v1199 = vsel %vm1115, %v1197, %v1198
      %v1200 = vrot.slane %v401, 6
      %v1201 = vrot.slane %v1200, 4
      %v1202 = vrot.slane %v402, 6
      %v1203 = vsel %vm1115, %v1201, %v1202
      %v1204 = vrot.slane %v1202, 4
      %v1205 = vrot.slane %v403, 6
      %v1206 = vsel %vm1115, %v1204, %v1205
      %v1207 = vrot.slane %v404, 6
      %v1208 = vrot.slane %v1207, 4
      %v1209 = vrot.slane %v405, 6
      %v1210 = vsel %vm1115, %v1208, %v1209
      %v1211 = vrot.slane %v1209, 4
      %v1212 = vrot.slane %v406, 6
      %v1213 = vsel %vm1115, %v1211, %v1212
      %v1214 = vrot.slane %v407, 6
      %v1215 = vrot.slane %v1214, 4
      %v1216 = vrot.slane %v408, 6
      %v1217 = vsel %vm1115, %v1215, %v1216
      %v1218 = vrot.slane %v1216, 4
      %v1219 = vrot.slane %v409, 6
      %v1220 = vsel %vm1115, %v1218, %v1219
      %v1221 = vrot.slane %v410, 6
      %v1222 = vrot.slane %v1221, 4
      %v1223 = vrot.slane %v411, 6
      %v1224 = vsel %vm1115, %v1222, %v1223
      %v1225 = vrot.slane %v1223, 4
      %v1226 = vrot.slane %v412, 6
      %v1227 = vsel %vm1115, %v1225, %v1226
      %s1228 = scalar_lea.vmem %s2, 8
      %v1229 = vld [vmem:[%s1228] sm:$0xf]
      %v1230 = vunpack.c.l.b16 %v1119
      %v1231 = vunpack.c.l.b16 %v1122
      %v1232 = vunpack.c.l.b16 %v1126
      %v1233 = vunpack.c.l.b16 %v1129
      %v1234 = vunpack.c.l.b16 %v1133
      %v1235 = vunpack.c.l.b16 %v1136
      %v1236 = vunpack.c.l.b16 %v1140
      %v1237 = vunpack.c.l.b16 %v1143
      %v1238 = vunpack.c.l.b16 %v1147
      %v1239 = vunpack.c.l.b16 %v1150
      %v1240 = vunpack.c.l.b16 %v1154
      %v1241 = vunpack.c.l.b16 %v1157
      %v1242 = vunpack.c.l.b16 %v1161
      %v1243 = vunpack.c.l.b16 %v1164
      %v1244 = vunpack.c.l.b16 %v1168
      %v1245 = vunpack.c.l.b16 %v1171
      %v1246 = vunpack.c.l.b16 %v1175
      %v1247 = vunpack.c.l.b16 %v1178
      %v1248 = vunpack.c.l.b16 %v1182
      %v1249 = vunpack.c.l.b16 %v1185
      %v1250 = vunpack.c.l.b16 %v1189
      %v1251 = vunpack.c.l.b16 %v1192
      %v1252 = vunpack.c.l.b16 %v1196
      %v1253 = vunpack.c.l.b16 %v1199
      %v1254 = vunpack.c.l.b16 %v1203
      %v1255 = vunpack.c.l.b16 %v1206
      %v1256 = vunpack.c.l.b16 %v1210
      %v1257 = vunpack.c.l.b16 %v1213
      %v1258 = vunpack.c.l.b16 %v1217
      %v1259 = vunpack.c.l.b16 %v1220
      %v1260 = vunpack.c.l.b16 %v1224
      %v1261 = vunpack.c.l.b16 %v1227
      %v1262 = vpack.c.b16 %v1231, %v1230
      %v1263 = vpack.c.b16 %v1233, %v1232
      %v1264 = vpack.c.b16 %v1235, %v1234
      %v1265 = vpack.c.b16 %v1237, %v1236
      %v1266 = vpack.c.b16 %v1239, %v1238
      %v1267 = vpack.c.b16 %v1241, %v1240
      %v1268 = vpack.c.b16 %v1243, %v1242
      %v1269 = vpack.c.b16 %v1245, %v1244
      %v1270 = vpack.c.b16 %v1247, %v1246
      %v1271 = vpack.c.b16 %v1249, %v1248
      %v1272 = vpack.c.b16 %v1251, %v1250
      %v1273 = vpack.c.b16 %v1253, %v1252
      %v1274 = vpack.c.b16 %v1255, %v1254
      %v1275 = vpack.c.b16 %v1257, %v1256
      %v1276 = vpack.c.b16 %v1259, %v1258
      %v1277 = vpack.c.b16 %v1261, %v1260
      %v1279 = vsel %vm639, %v1262, 0
      %v1282 = vsel %vm639, %v1263, 0
      %v1285 = vsel %vm639, %v1264, 0
      %v1288 = vsel %vm639, %v1265, 0
      %v1291 = vsel %vm639, %v1266, 0
      %v1294 = vsel %vm639, %v1267, 0
      %v1297 = vsel %vm639, %v1268, 0
      %v1300 = vsel %vm639, %v1269, 0
      %v1303 = vsel %vm639, %v1270, 0
      %v1306 = vsel %vm639, %v1271, 0
      %v1309 = vsel %vm639, %v1272, 0
      %v1312 = vsel %vm639, %v1273, 0
      %v1315 = vsel %vm639, %v1274, 0
      %v1318 = vsel %vm639, %v1275, 0
      %v1321 = vsel %vm639, %v1276, 0
      %v1324 = vsel %vm639, %v1277, 0
      %v1327 = vsel %vm688, %v1229, 0
      %1329 = vmatprep.subr.bf16.mxu0 0
      %1330 = vmatpush1.bf16.msra.mxu0 %v1327
      %1331 = vmatprep.subr.bf16.mxu0 0
      %1332 = vmatpush1.bf16.msra.mxu0 0
      %1333 = vmatprep.subr.bf16.mxu0 0
      %1334 = vmatpush1.bf16.msra.mxu0 0
      %1335 = vmatprep.subr.bf16.mxu0 0
      %1336 = vmatpush1.bf16.msra.mxu0 0
      %1337 = vmatprep.subr.bf16.mxu0 0
      %1338 = vmatpush1.bf16.msra.mxu0 0
      %1339 = vmatprep.subr.bf16.mxu0 0
      %1340 = vmatpush1.bf16.msra.mxu0 0
      %1341 = vmatprep.subr.bf16.mxu0 0
      %1342 = vmatpush1.bf16.msra.mxu0 0
      %1343 = vmatprep.subr.bf16.mxu0 0
      %1344 = vmatpush1.bf16.msra.mxu0 0
      %1345 = vmatprep.subr.bf16.mxu0 0
      %1346 = vmatpush1.bf16.msra.mxu0 0
      %1347 = vmatprep.subr.bf16.mxu0 0
      %1348 = vmatpush1.bf16.msra.mxu0 0
      %1349 = vmatprep.subr.bf16.mxu0 0
      %1350 = vmatpush1.bf16.msra.mxu0 0
      %1351 = vmatprep.subr.bf16.mxu0 0
      %1352 = vmatpush1.bf16.msra.mxu0 0
      %1353 = vmatprep.subr.bf16.mxu0 0
      %1354 = vmatpush1.bf16.msra.mxu0 0
      %1355 = vmatprep.subr.bf16.mxu0 0
      %1356 = vmatpush1.bf16.msra.mxu0 0
      %1357 = vmatprep.subr.bf16.mxu0 0
      %1358 = vmatpush1.bf16.msra.mxu0 0
      %1359 = vmatprep.subr.bf16.mxu0 0
      %1360 = vmatpush1.bf16.msra.mxu0 0
      %1361 = vmatprep.mubr.bf16.mxu0 0
      %1362 = vmatmul.mubr.bf16.gmra.mrb[0].mxu0 %v1279
      %v1363 = vpop.f32.mrb[0].mxu0
      %v1364 = vadd.f32 0.0, %v1363
      %v1365 = vpop.f32.mrb[0].mxu0
      %v1366 = vpop.f32.mrb[0].mxu0
      %v1367 = vadd.f32 0.0, %v1366
      %v1368 = vpop.f32.mrb[0].mxu0
      %1369 = vmatprep.mubr.bf16.mxu0 0
      %1370 = vmatmul.mubr.bf16.gmra.mrb[0].mxu0 %v1282
      %v1371 = vpop.f32.mrb[0].mxu0
      %v1372 = vadd.f32 0.0, %v1371
      %v1373 = vpop.f32.mrb[0].mxu0
      %v1374 = vpop.f32.mrb[0].mxu0
      %v1375 = vadd.f32 0.0, %v1374
      %v1376 = vpop.f32.mrb[0].mxu0
      %1377 = vmatprep.mubr.bf16.mxu0 0
      %1378 = vmatmul.mubr.bf16.gmra.mrb[0].mxu0 %v1285
      %v1379 = vpop.f32.mrb[0].mxu0
      %v1380 = vadd.f32 0.0, %v1379
      %v1381 = vpop.f32.mrb[0].mxu0
      %v1382 = vpop.f32.mrb[0].mxu0
      %v1383 = vadd.f32 0.0, %v1382
      %v1384 = vpop.f32.mrb[0].mxu0
      %1385 = vmatprep.mubr.bf16.mxu0 0
      %1386 = vmatmul.mubr.bf16.gmra.mrb[0].mxu0 %v1288
      %v1387 = vpop.f32.mrb[0].mxu0
      %v1388 = vadd.f32 0.0, %v1387
      %v1389 = vpop.f32.mrb[0].mxu0
      %v1390 = vpop.f32.mrb[0].mxu0
      %v1391 = vadd.f32 0.0, %v1390
      %v1392 = vpop.f32.mrb[0].mxu0
      %1393 = vmatprep.mubr.bf16.mxu0 0
      %1394 = vmatmul.mubr.bf16.gmra.mrb[0].mxu0 %v1291
      %v1395 = vpop.f32.mrb[0].mxu0
      %v1396 = vadd.f32 0.0, %v1395
      %v1397 = vpop.f32.mrb[0].mxu0
      %v1398 = vpop.f32.mrb[0].mxu0
      %v1399 = vadd.f32 0.0, %v1398
      %v1400 = vpop.f32.mrb[0].mxu0
      %1401 = vmatprep.mubr.bf16.mxu0 0
      %1402 = vmatmul.mubr.bf16.gmra.mrb[0].mxu0 %v1294
      %v1403 = vpop.f32.mrb[0].mxu0
      %v1404 = vadd.f32 0.0, %v1403
      %v1405 = vpop.f32.mrb[0].mxu0
      %v1406 = vpop.f32.mrb[0].mxu0
      %v1407 = vadd.f32 0.0, %v1406
      %v1408 = vpop.f32.mrb[0].mxu0
      %1409 = vmatprep.mubr.bf16.mxu0 0
      %1410 = vmatmul.mubr.bf16.gmra.mrb[0].mxu0 %v1297
      %v1411 = vpop.f32.mrb[0].mxu0
      %v1412 = vadd.f32 0.0, %v1411
      %v1413 = vpop.f32.mrb[0].mxu0
      %v1414 = vpop.f32.mrb[0].mxu0
      %v1415 = vadd.f32 0.0, %v1414
      %v1416 = vpop.f32.mrb[0].mxu0
      %1417 = vmatprep.mubr.bf16.mxu0 0
      %1418 = vmatmul.mubr.bf16.gmra.mrb[0].mxu0 %v1300
      %v1419 = vpop.f32.mrb[0].mxu0
      %v1420 = vadd.f32 0.0, %v1419
      %v1421 = vpop.f32.mrb[0].mxu0
      %v1422 = vpop.f32.mrb[0].mxu0
      %v1423 = vadd.f32 0.0, %v1422
      %v1424 = vpop.f32.mrb[0].mxu0
      %1425 = vmatprep.mubr.bf16.mxu0 0
      %1426 = vmatmul.mubr.bf16.gmra.mrb[0].mxu0 %v1303
      %v1427 = vpop.f32.mrb[0].mxu0
      %v1428 = vadd.f32 0.0, %v1427
      %v1429 = vpop.f32.mrb[0].mxu0
      %v1430 = vpop.f32.mrb[0].mxu0
      %v1431 = vadd.f32 0.0, %v1430
      %v1432 = vpop.f32.mrb[0].mxu0
      %1433 = vmatprep.mubr.bf16.mxu0 0
      %1434 = vmatmul.mubr.bf16.gmra.mrb[0].mxu0 %v1306
      %v1435 = vpop.f32.mrb[0].mxu0
      %v1436 = vadd.f32 0.0, %v1435
      %v1437 = vpop.f32.mrb[0].mxu0
      %v1438 = vpop.f32.mrb[0].mxu0
      %v1439 = vadd.f32 0.0, %v1438
      %v1440 = vpop.f32.mrb[0].mxu0
      %1441 = vmatprep.mubr.bf16.mxu0 0
      %1442 = vmatmul.mubr.bf16.gmra.mrb[0].mxu0 %v1309
      %v1443 = vpop.f32.mrb[0].mxu0
      %v1444 = vadd.f32 0.0, %v1443
      %v1445 = vpop.f32.mrb[0].mxu0
      %v1446 = vpop.f32.mrb[0].mxu0
      %v1447 = vadd.f32 0.0, %v1446
      %v1448 = vpop.f32.mrb[0].mxu0
      %1449 = vmatprep.mubr.bf16.mxu0 0
      %1450 = vmatmul.mubr.bf16.gmra.mrb[0].mxu0 %v1312
      %v1451 = vpop.f32.mrb[0].mxu0
      %v1452 = vadd.f32 0.0, %v1451
      %v1453 = vpop.f32.mrb[0].mxu0
      %v1454 = vpop.f32.mrb[0].mxu0
      %v1455 = vadd.f32 0.0, %v1454
      %v1456 = vpop.f32.mrb[0].mxu0
      %1457 = vmatprep.mubr.bf16.mxu0 0
      %1458 = vmatmul.mubr.bf16.gmra.mrb[0].mxu0 %v1315
      %v1459 = vpop.f32.mrb[0].mxu0
      %v1460 = vadd.f32 0.0, %v1459
      %v1461 = vpop.f32.mrb[0].mxu0
      %v1462 = vpop.f32.mrb[0].mxu0
      %v1463 = vadd.f32 0.0, %v1462
      %v1464 = vpop.f32.mrb[0].mxu0
      %1465 = vmatprep.mubr.bf16.mxu0 0
      %1466 = vmatmul.mubr.bf16.gmra.mrb[0].mxu0 %v1318
      %v1467 = vpop.f32.mrb[0].mxu0
      %v1468 = vadd.f32 0.0, %v1467
      %v1469 = vpop.f32.mrb[0].mxu0
      %v1470 = vpop.f32.mrb[0].mxu0
      %v1471 = vadd.f32 0.0, %v1470
      %v1472 = vpop.f32.mrb[0].mxu0
      %1473 = vmatprep.mubr.bf16.mxu0 0
      %1474 = vmatmul.mubr.bf16.gmra.mrb[0].mxu0 %v1321
      %v1475 = vpop.f32.mrb[0].mxu0
      %v1476 = vadd.f32 0.0, %v1475
      %v1477 = vpop.f32.mrb[0].mxu0
      %v1478 = vpop.f32.mrb[0].mxu0
      %v1479 = vadd.f32 0.0, %v1478
      %v1480 = vpop.f32.mrb[0].mxu0
      %1481 = vmatprep.mubr.bf16.mxu0 0
      %1482 = vmatmul.mubr.bf16.gmra.mrb[0].mxu0 %v1324
      %v1483 = vpop.f32.mrb[0].mxu0
      %v1484 = vadd.f32 0.0, %v1483
      %v1485 = vpop.f32.mrb[0].mxu0
      %v1486 = vpop.f32.mrb[0].mxu0
      %v1487 = vadd.f32 0.0, %v1486
      %v1488 = vpop.f32.mrb[0].mxu0
      %1489 = vdwg.mxu0
      %v1490 = vadd.f32 %v987, %v1364
      %v1491 = vadd.f32 %v990, %v1367
      %v1492 = vadd.f32 %v995, %v1372
      %v1493 = vadd.f32 %v998, %v1375
      %v1494 = vadd.f32 %v1003, %v1380
      %v1495 = vadd.f32 %v1006, %v1383
      %v1496 = vadd.f32 %v1011, %v1388
      %v1497 = vadd.f32 %v1014, %v1391
      %v1498 = vadd.f32 %v1019, %v1396
      %v1499 = vadd.f32 %v1022, %v1399
      %v1500 = vadd.f32 %v1027, %v1404
      %v1501 = vadd.f32 %v1030, %v1407
      %v1502 = vadd.f32 %v1035, %v1412
      %v1503 = vadd.f32 %v1038, %v1415
      %v1504 = vadd.f32 %v1043, %v1420
      %v1505 = vadd.f32 %v1046, %v1423
      %v1506 = vadd.f32 %v1051, %v1428
      %v1507 = vadd.f32 %v1054, %v1431
      %v1508 = vadd.f32 %v1059, %v1436
      %v1509 = vadd.f32 %v1062, %v1439
      %v1510 = vadd.f32 %v1067, %v1444
      %v1511 = vadd.f32 %v1070, %v1447
      %v1512 = vadd.f32 %v1075, %v1452
      %v1513 = vadd.f32 %v1078, %v1455
      %v1514 = vadd.f32 %v1083, %v1460
      %v1515 = vadd.f32 %v1086, %v1463
      %v1516 = vadd.f32 %v1091, %v1468
      %v1517 = vadd.f32 %v1094, %v1471
      %v1518 = vadd.f32 %v1099, %v1476
      %v1519 = vadd.f32 %v1102, %v1479
      %v1520 = vadd.f32 %v1107, %v1484
      %v1521 = vadd.f32 %v1110, %v1487
      %s1522 = scalar_lea.vmem %s2, 12
      %v1523 = vld [vmem:[%s1522] sm:$0xf]
      %v1528 = vunpack.c.l.b16 %v413
      %v1529 = vunpack.c.l.b16 %v414
      %v1530 = vunpack.c.l.b16 %v416
      %v1531 = vunpack.c.l.b16 %v417
      %v1532 = vpack.c.b16 %v1529, %v1528
      %v1533 = vpack.c.b16 %v1531, %v1530
      %v1535 = vsel %vm639, %v1532, 0
      %v1538 = vsel %vm639, %v1533, 0
      %v1541 = vsel %vm688, %v1523, 0
      %1543 = vmatprep.subr.bf16.mxu0 0
      %1544 = vmatpush1.bf16.msra.mxu0 %v1541
      %1545 = vmatprep.subr.bf16.mxu0 0
      %1546 = vmatpush1.bf16.msra.mxu0 0
      %1547 = vmatprep.subr.bf16.mxu0 0
      %1548 = vmatpush1.bf16.msra.mxu0 0
      %1549 = vmatprep.subr.bf16.mxu0 0
      %1550 = vmatpush1.bf16.msra.mxu0 0
      %1551 = vmatprep.subr.bf16.mxu0 0
      %1552 = vmatpush1.bf16.msra.mxu0 0
      %1553 = vmatprep.subr.bf16.mxu0 0
      %1554 = vmatpush1.bf16.msra.mxu0 0
      %1555 = vmatprep.subr.bf16.mxu0 0
      %1556 = vmatpush1.bf16.msra.mxu0 0
      %1557 = vmatprep.subr.bf16.mxu0 0
      %1558 = vmatpush1.bf16.msra.mxu0 0
      %1559 = vmatprep.subr.bf16.mxu0 0
      %1560 = vmatpush1.bf16.msra.mxu0 0
      %1561 = vmatprep.subr.bf16.mxu0 0
      %1562 = vmatpush1.bf16.msra.mxu0 0
      %1563 = vmatprep.subr.bf16.mxu0 0
      %1564 = vmatpush1.bf16.msra.mxu0 0
      %1565 = vmatprep.subr.bf16.mxu0 0
      %1566 = vmatpush1.bf16.msra.mxu0 0
      %1567 = vmatprep.subr.bf16.mxu0 0
      %1568 = vmatpush1.bf16.msra.mxu0 0
      %1569 = vmatprep.subr.bf16.mxu0 0
      %1570 = vmatpush1.bf16.msra.mxu0 0
      %1571 = vmatprep.subr.bf16.mxu0 0
      %1572 = vmatpush1.bf16.msra.mxu0 0
      %1573 = vmatprep.subr.bf16.mxu0 0
      %1574 = vmatpush1.bf16.msra.mxu0 0
      %1575 = vmatprep.mubr.bf16.mxu0 0
      %1576 = vmatmul.mubr.bf16.gmra.mrb[0].mxu0 %v908
      %v1577 = vpop.f32.mrb[0].mxu0
      %v1578 = vadd.f32 0.0, %v1577
      %v1579 = vpop.f32.mrb[0].mxu0
      %v1580 = vpop.f32.mrb[0].mxu0
      %v1581 = vadd.f32 0.0, %v1580
      %v1582 = vpop.f32.mrb[0].mxu0
      %1583 = vmatprep.mubr.bf16.mxu0 0
      %1584 = vmatmul.mubr.bf16.gmra.mrb[0].mxu0 %v911
      %v1585 = vpop.f32.mrb[0].mxu0
      %v1586 = vadd.f32 0.0, %v1585
      %v1587 = vpop.f32.mrb[0].mxu0
      %v1588 = vpop.f32.mrb[0].mxu0
      %v1589 = vadd.f32 0.0, %v1588
      %v1590 = vpop.f32.mrb[0].mxu0
      %1591 = vmatprep.mubr.bf16.mxu0 0
      %1592 = vmatmul.mubr.bf16.gmra.mrb[0].mxu0 %v914
      %v1593 = vpop.f32.mrb[0].mxu0
      %v1594 = vadd.f32 0.0, %v1593
      %v1595 = vpop.f32.mrb[0].mxu0
      %v1596 = vpop.f32.mrb[0].mxu0
      %v1597 = vadd.f32 0.0, %v1596
      %v1598 = vpop.f32.mrb[0].mxu0
      %1599 = vmatprep.mubr.bf16.mxu0 0
      %1600 = vmatmul.mubr.bf16.gmra.mrb[0].mxu0 %v917
      %v1601 = vpop.f32.mrb[0].mxu0
      %v1602 = vadd.f32 0.0, %v1601
      %v1603 = vpop.f32.mrb[0].mxu0
      %v1604 = vpop.f32.mrb[0].mxu0
      %v1605 = vadd.f32 0.0, %v1604
      %v1606 = vpop.f32.mrb[0].mxu0
      %1607 = vmatprep.mubr.bf16.mxu0 0
      %1608 = vmatmul.mubr.bf16.gmra.mrb[0].mxu0 %v920
      %v1609 = vpop.f32.mrb[0].mxu0
      %v1610 = vadd.f32 0.0, %v1609
      %v1611 = vpop.f32.mrb[0].mxu0
      %v1612 = vpop.f32.mrb[0].mxu0
      %v1613 = vadd.f32 0.0, %v1612
      %v1614 = vpop.f32.mrb[0].mxu0
      %1615 = vmatprep.mubr.bf16.mxu0 0
      %1616 = vmatmul.mubr.bf16.gmra.mrb[0].mxu0 %v923
      %v1617 = vpop.f32.mrb[0].mxu0
      %v1618 = vadd.f32 0.0, %v1617
      %v1619 = vpop.f32.mrb[0].mxu0
      %v1620 = vpop.f32.mrb[0].mxu0
      %v1621 = vadd.f32 0.0, %v1620
      %v1622 = vpop.f32.mrb[0].mxu0
      %1623 = vmatprep.mubr.bf16.mxu0 0
      %1624 = vmatmul.mubr.bf16.gmra.mrb[0].mxu0 %v926
      %v1625 = vpop.f32.mrb[0].mxu0
      %v1626 = vadd.f32 0.0, %v1625
      %v1627 = vpop.f32.mrb[0].mxu0
      %v1628 = vpop.f32.mrb[0].mxu0
      %v1629 = vadd.f32 0.0, %v1628
      %v1630 = vpop.f32.mrb[0].mxu0
      %1631 = vmatprep.mubr.bf16.mxu0 0
      %1632 = vmatmul.mubr.bf16.gmra.mrb[0].mxu0 %v929
      %v1633 = vpop.f32.mrb[0].mxu0
      %v1634 = vadd.f32 0.0, %v1633
      %v1635 = vpop.f32.mrb[0].mxu0
      %v1636 = vpop.f32.mrb[0].mxu0
      %v1637 = vadd.f32 0.0, %v1636
      %v1638 = vpop.f32.mrb[0].mxu0
      %1639 = vmatprep.mubr.bf16.mxu0 0
      %1640 = vmatmul.mubr.bf16.gmra.mrb[0].mxu0 %v932
      %v1641 = vpop.f32.mrb[0].mxu0
      %v1642 = vadd.f32 0.0, %v1641
      %v1643 = vpop.f32.mrb[0].mxu0
      %v1644 = vpop.f32.mrb[0].mxu0
      %v1645 = vadd.f32 0.0, %v1644
      %v1646 = vpop.f32.mrb[0].mxu0
      %1647 = vmatprep.mubr.bf16.mxu0 0
      %1648 = vmatmul.mubr.bf16.gmra.mrb[0].mxu0 %v935
      %v1649 = vpop.f32.mrb[0].mxu0
      %v1650 = vadd.f32 0.0, %v1649
      %v1651 = vpop.f32.mrb[0].mxu0
      %v1652 = vpop.f32.mrb[0].mxu0
      %v1653 = vadd.f32 0.0, %v1652
      %v1654 = vpop.f32.mrb[0].mxu0
      %1655 = vmatprep.mubr.bf16.mxu0 0
      %1656 = vmatmul.mubr.bf16.gmra.mrb[0].mxu0 %v938
      %v1657 = vpop.f32.mrb[0].mxu0
      %v1658 = vadd.f32 0.0, %v1657
      %v1659 = vpop.f32.mrb[0].mxu0
      %v1660 = vpop.f32.mrb[0].mxu0
      %v1661 = vadd.f32 0.0, %v1660
      %v1662 = vpop.f32.mrb[0].mxu0
      %1663 = vmatprep.mubr.bf16.mxu0 0
      %1664 = vmatmul.mubr.bf16.gmra.mrb[0].mxu0 %v941
      %v1665 = vpop.f32.mrb[0].mxu0
      %v1666 = vadd.f32 0.0, %v1665
      %v1667 = vpop.f32.mrb[0].mxu0
      %v1668 = vpop.f32.mrb[0].mxu0
      %v1669 = vadd.f32 0.0, %v1668
      %v1670 = vpop.f32.mrb[0].mxu0
      %1671 = vmatprep.mubr.bf16.mxu0 0
      %1672 = vmatmul.mubr.bf16.gmra.mrb[0].mxu0 %v944
      %v1673 = vpop.f32.mrb[0].mxu0
      %v1674 = vadd.f32 0.0, %v1673
      %v1675 = vpop.f32.mrb[0].mxu0
      %v1676 = vpop.f32.mrb[0].mxu0
      %v1677 = vadd.f32 0.0, %v1676
      %v1678 = vpop.f32.mrb[0].mxu0
      %1679 = vmatprep.mubr.bf16.mxu0 0
      %1680 = vmatmul.mubr.bf16.gmra.mrb[0].mxu0 %v947
      %v1681 = vpop.f32.mrb[0].mxu0
      %v1682 = vadd.f32 0.0, %v1681
      %v1683 = vpop.f32.mrb[0].mxu0
      %v1684 = vpop.f32.mrb[0].mxu0
      %v1685 = vadd.f32 0.0, %v1684
      %v1686 = vpop.f32.mrb[0].mxu0
      %1687 = vmatprep.mubr.bf16.mxu0 0
      %1688 = vmatmul.mubr.bf16.gmra.mrb[0].mxu0 %v1535
      %v1689 = vpop.f32.mrb[0].mxu0
      %v1690 = vadd.f32 0.0, %v1689
      %v1691 = vpop.f32.mrb[0].mxu0
      %v1692 = vpop.f32.mrb[0].mxu0
      %v1693 = vadd.f32 0.0, %v1692
      %v1694 = vpop.f32.mrb[0].mxu0
      %1695 = vmatprep.mubr.bf16.mxu0 0
      %1696 = vmatmul.mubr.bf16.gmra.mrb[0].mxu0 %v1538
      %v1697 = vpop.f32.mrb[0].mxu0
      %v1698 = vadd.f32 0.0, %v1697
      %v1699 = vpop.f32.mrb[0].mxu0
      %v1700 = vpop.f32.mrb[0].mxu0
      %v1701 = vadd.f32 0.0, %v1700
      %v1702 = vpop.f32.mrb[0].mxu0
      %1703 = vdwg.mxu0
      %v1704 = vadd.f32 %v1490, %v1578
      %v1705 = vadd.f32 %v1491, %v1581
      %v1706 = vadd.f32 %v1492, %v1586
      %v1707 = vadd.f32 %v1493, %v1589
      %v1708 = vadd.f32 %v1494, %v1594
      %v1709 = vadd.f32 %v1495, %v1597
      %v1710 = vadd.f32 %v1496, %v1602
      %v1711 = vadd.f32 %v1497, %v1605
      %v1712 = vadd.f32 %v1498, %v1610
      %v1713 = vadd.f32 %v1499, %v1613
      %v1714 = vadd.f32 %v1500, %v1618
      %v1715 = vadd.f32 %v1501, %v1621
      %v1716 = vadd.f32 %v1502, %v1626
      %v1717 = vadd.f32 %v1503, %v1629
      %v1718 = vadd.f32 %v1504, %v1634
      %v1719 = vadd.f32 %v1505, %v1637
      %v1720 = vadd.f32 %v1506, %v1642
      %v1721 = vadd.f32 %v1507, %v1645
      %v1722 = vadd.f32 %v1508, %v1650
      %v1723 = vadd.f32 %v1509, %v1653
      %v1724 = vadd.f32 %v1510, %v1658
      %v1725 = vadd.f32 %v1511, %v1661
      %v1726 = vadd.f32 %v1512, %v1666
      %v1727 = vadd.f32 %v1513, %v1669
      %v1728 = vadd.f32 %v1514, %v1674
      %v1729 = vadd.f32 %v1515, %v1677
      %v1730 = vadd.f32 %v1516, %v1682
      %v1731 = vadd.f32 %v1517, %v1685
      %v1732 = vadd.f32 %v1518, %v1690
      %v1733 = vadd.f32 %v1519, %v1693
      %v1734 = vadd.f32 %v1520, %v1698
      %v1735 = vadd.f32 %v1521, %v1701
      %v1738 = vrot.slane %v413, 5
      %v1739 = vrot.slane %v1738, 4
      %v1740 = vrot.slane %v414, 5
      %v1741 = vsel %vm476, %v1739, %v1740
      %v1742 = vrot.slane %v1740, 4
      %v1743 = vrot.slane %v415, 5
      %v1744 = vsel %vm476, %v1742, %v1743
      %v1745 = vrot.slane %v416, 5
      %v1746 = vrot.slane %v1745, 4
      %v1747 = vrot.slane %v417, 5
      %v1748 = vsel %vm476, %v1746, %v1747
      %v1749 = vrot.slane %v1747, 4
      %v1750 = vrot.slane %v418, 5
      %v1751 = vsel %vm476, %v1749, %v1750
      %s1752 = scalar_lea.vmem %s2, 16
      %v1753 = vld [vmem:[%s1752] sm:$0xf]
      %v1754 = vunpack.c.l.b16 %v1741
      %v1755 = vunpack.c.l.b16 %v1744
      %v1756 = vunpack.c.l.b16 %v1748
      %v1757 = vunpack.c.l.b16 %v1751
      %v1758 = vpack.c.b16 %v1755, %v1754
      %v1759 = vpack.c.b16 %v1757, %v1756
      %v1761 = vsel %vm639, %v1758, 0
      %v1764 = vsel %vm639, %v1759, 0
      %v1767 = vsel %vm688, %v1753, 0
      %1769 = vmatprep.subr.bf16.mxu0 0
      %1770 = vmatpush1.bf16.msra.mxu0 %v1767
      %1771 = vmatprep.subr.bf16.mxu0 0
      %1772 = vmatpush1.bf16.msra.mxu0 0
      %1773 = vmatprep.subr.bf16.mxu0 0
      %1774 = vmatpush1.bf16.msra.mxu0 0
      %1775 = vmatprep.subr.bf16.mxu0 0
      %1776 = vmatpush1.bf16.msra.mxu0 0
      %1777 = vmatprep.subr.bf16.mxu0 0
      %1778 = vmatpush1.bf16.msra.mxu0 0
      %1779 = vmatprep.subr.bf16.mxu0 0
      %1780 = vmatpush1.bf16.msra.mxu0 0
      %1781 = vmatprep.subr.bf16.mxu0 0
      %1782 = vmatpush1.bf16.msra.mxu0 0
      %1783 = vmatprep.subr.bf16.mxu0 0
      %1784 = vmatpush1.bf16.msra.mxu0 0
      %1785 = vmatprep.subr.bf16.mxu0 0
      %1786 = vmatpush1.bf16.msra.mxu0 0
      %1787 = vmatprep.subr.bf16.mxu0 0
      %1788 = vmatpush1.bf16.msra.mxu0 0
      %1789 = vmatprep.subr.bf16.mxu0 0
      %1790 = vmatpush1.bf16.msra.mxu0 0
      %1791 = vmatprep.subr.bf16.mxu0 0
      %1792 = vmatpush1.bf16.msra.mxu0 0
      %1793 = vmatprep.subr.bf16.mxu0 0
      %1794 = vmatpush1.bf16.msra.mxu0 0
      %1795 = vmatprep.subr.bf16.mxu0 0
      %1796 = vmatpush1.bf16.msra.mxu0 0
      %1797 = vmatprep.subr.bf16.mxu0 0
      %1798 = vmatpush1.bf16.msra.mxu0 0
      %1799 = vmatprep.subr.bf16.mxu0 0
      %1800 = vmatpush1.bf16.msra.mxu0 0
      %1801 = vmatprep.mubr.bf16.mxu0 0
      %1802 = vmatmul.mubr.bf16.gmra.mrb[0].mxu0 %v647
      %v1803 = vpop.f32.mrb[0].mxu0
      %v1804 = vadd.f32 0.0, %v1803
      %v1805 = vpop.f32.mrb[0].mxu0
      %v1806 = vpop.f32.mrb[0].mxu0
      %v1807 = vadd.f32 0.0, %v1806
      %v1808 = vpop.f32.mrb[0].mxu0
      %1809 = vmatprep.mubr.bf16.mxu0 0
      %1810 = vmatmul.mubr.bf16.gmra.mrb[0].mxu0 %v650
      %v1811 = vpop.f32.mrb[0].mxu0
      %v1812 = vadd.f32 0.0, %v1811
      %v1813 = vpop.f32.mrb[0].mxu0
      %v1814 = vpop.f32.mrb[0].mxu0
      %v1815 = vadd.f32 0.0, %v1814
      %v1816 = vpop.f32.mrb[0].mxu0
      %1817 = vmatprep.mubr.bf16.mxu0 0
      %1818 = vmatmul.mubr.bf16.gmra.mrb[0].mxu0 %v653
      %v1819 = vpop.f32.mrb[0].mxu0
      %v1820 = vadd.f32 0.0, %v1819
      %v1821 = vpop.f32.mrb[0].mxu0
      %v1822 = vpop.f32.mrb[0].mxu0
      %v1823 = vadd.f32 0.0, %v1822
      %v1824 = vpop.f32.mrb[0].mxu0
      %1825 = vmatprep.mubr.bf16.mxu0 0
      %1826 = vmatmul.mubr.bf16.gmra.mrb[0].mxu0 %v656
      %v1827 = vpop.f32.mrb[0].mxu0
      %v1828 = vadd.f32 0.0, %v1827
      %v1829 = vpop.f32.mrb[0].mxu0
      %v1830 = vpop.f32.mrb[0].mxu0
      %v1831 = vadd.f32 0.0, %v1830
      %v1832 = vpop.f32.mrb[0].mxu0
      %1833 = vmatprep.mubr.bf16.mxu0 0
      %1834 = vmatmul.mubr.bf16.gmra.mrb[0].mxu0 %v659
      %v1835 = vpop.f32.mrb[0].mxu0
      %v1836 = vadd.f32 0.0, %v1835
      %v1837 = vpop.f32.mrb[0].mxu0
      %v1838 = vpop.f32.mrb[0].mxu0
      %v1839 = vadd.f32 0.0, %v1838
      %v1840 = vpop.f32.mrb[0].mxu0
      %1841 = vmatprep.mubr.bf16.mxu0 0
      %1842 = vmatmul.mubr.bf16.gmra.mrb[0].mxu0 %v662
      %v1843 = vpop.f32.mrb[0].mxu0
      %v1844 = vadd.f32 0.0, %v1843
      %v1845 = vpop.f32.mrb[0].mxu0
      %v1846 = vpop.f32.mrb[0].mxu0
      %v1847 = vadd.f32 0.0, %v1846
      %v1848 = vpop.f32.mrb[0].mxu0
      %1849 = vmatprep.mubr.bf16.mxu0 0
      %1850 = vmatmul.mubr.bf16.gmra.mrb[0].mxu0 %v665
      %v1851 = vpop.f32.mrb[0].mxu0
      %v1852 = vadd.f32 0.0, %v1851
      %v1853 = vpop.f32.mrb[0].mxu0
      %v1854 = vpop.f32.mrb[0].mxu0
      %v1855 = vadd.f32 0.0, %v1854
      %v1856 = vpop.f32.mrb[0].mxu0
      %1857 = vmatprep.mubr.bf16.mxu0 0
      %1858 = vmatmul.mubr.bf16.gmra.mrb[0].mxu0 %v668
      %v1859 = vpop.f32.mrb[0].mxu0
      %v1860 = vadd.f32 0.0, %v1859
      %v1861 = vpop.f32.mrb[0].mxu0
      %v1862 = vpop.f32.mrb[0].mxu0
      %v1863 = vadd.f32 0.0, %v1862
      %v1864 = vpop.f32.mrb[0].mxu0
      %1865 = vmatprep.mubr.bf16.mxu0 0
      %1866 = vmatmul.mubr.bf16.gmra.mrb[0].mxu0 %v671
      %v1867 = vpop.f32.mrb[0].mxu0
      %v1868 = vadd.f32 0.0, %v1867
      %v1869 = vpop.f32.mrb[0].mxu0
      %v1870 = vpop.f32.mrb[0].mxu0
      %v1871 = vadd.f32 0.0, %v1870
      %v1872 = vpop.f32.mrb[0].mxu0
      %1873 = vmatprep.mubr.bf16.mxu0 0
      %1874 = vmatmul.mubr.bf16.gmra.mrb[0].mxu0 %v674
      %v1875 = vpop.f32.mrb[0].mxu0
      %v1876 = vadd.f32 0.0, %v1875
      %v1877 = vpop.f32.mrb[0].mxu0
      %v1878 = vpop.f32.mrb[0].mxu0
      %v1879 = vadd.f32 0.0, %v1878
      %v1880 = vpop.f32.mrb[0].mxu0
      %1881 = vmatprep.mubr.bf16.mxu0 0
      %1882 = vmatmul.mubr.bf16.gmra.mrb[0].mxu0 %v677
      %v1883 = vpop.f32.mrb[0].mxu0
      %v1884 = vadd.f32 0.0, %v1883
      %v1885 = vpop.f32.mrb[0].mxu0
      %v1886 = vpop.f32.mrb[0].mxu0
      %v1887 = vadd.f32 0.0, %v1886
      %v1888 = vpop.f32.mrb[0].mxu0
      %1889 = vmatprep.mubr.bf16.mxu0 0
      %1890 = vmatmul.mubr.bf16.gmra.mrb[0].mxu0 %v680
      %v1891 = vpop.f32.mrb[0].mxu0
      %v1892 = vadd.f32 0.0, %v1891
      %v1893 = vpop.f32.mrb[0].mxu0
      %v1894 = vpop.f32.mrb[0].mxu0
      %v1895 = vadd.f32 0.0, %v1894
      %v1896 = vpop.f32.mrb[0].mxu0
      %1897 = vmatprep.mubr.bf16.mxu0 0
      %1898 = vmatmul.mubr.bf16.gmra.mrb[0].mxu0 %v683
      %v1899 = vpop.f32.mrb[0].mxu0
      %v1900 = vadd.f32 0.0, %v1899
      %v1901 = vpop.f32.mrb[0].mxu0
      %v1902 = vpop.f32.mrb[0].mxu0
      %v1903 = vadd.f32 0.0, %v1902
      %v1904 = vpop.f32.mrb[0].mxu0
      %1905 = vmatprep.mubr.bf16.mxu0 0
      %1906 = vmatmul.mubr.bf16.gmra.mrb[0].mxu0 %v686
      %v1907 = vpop.f32.mrb[0].mxu0
      %v1908 = vadd.f32 0.0, %v1907
      %v1909 = vpop.f32.mrb[0].mxu0
      %v1910 = vpop.f32.mrb[0].mxu0
      %v1911 = vadd.f32 0.0, %v1910
      %v1912 = vpop.f32.mrb[0].mxu0
      %1913 = vmatprep.mubr.bf16.mxu0 0
      %1914 = vmatmul.mubr.bf16.gmra.mrb[0].mxu0 %v1761
      %v1915 = vpop.f32.mrb[0].mxu0
      %v1916 = vadd.f32 0.0, %v1915
      %v1917 = vpop.f32.mrb[0].mxu0
      %v1918 = vpop.f32.mrb[0].mxu0
      %v1919 = vadd.f32 0.0, %v1918
      %v1920 = vpop.f32.mrb[0].mxu0
      %1921 = vmatprep.mubr.bf16.mxu0 0
      %1922 = vmatmul.mubr.bf16.gmra.mrb[0].mxu0 %v1764
      %v1923 = vpop.f32.mrb[0].mxu0
      %v1924 = vadd.f32 0.0, %v1923
      %v1925 = vpop.f32.mrb[0].mxu0
      %v1926 = vpop.f32.mrb[0].mxu0
      %v1927 = vadd.f32 0.0, %v1926
      %v1928 = vpop.f32.mrb[0].mxu0
      %1929 = vdwg.mxu0
      %v1930 = vadd.f32 %v1704, %v1804
      %v1931 = vadd.f32 %v1705, %v1807
      %v1932 = vadd.f32 %v1706, %v1812
      %v1933 = vadd.f32 %v1707, %v1815
      %v1934 = vadd.f32 %v1708, %v1820
      %v1935 = vadd.f32 %v1709, %v1823
      %v1936 = vadd.f32 %v1710, %v1828
      %v1937 = vadd.f32 %v1711, %v1831
      %v1938 = vadd.f32 %v1712, %v1836
      %v1939 = vadd.f32 %v1713, %v1839
      %v1940 = vadd.f32 %v1714, %v1844
      %v1941 = vadd.f32 %v1715, %v1847
      %v1942 = vadd.f32 %v1716, %v1852
      %v1943 = vadd.f32 %v1717, %v1855
      %v1944 = vadd.f32 %v1718, %v1860
      %v1945 = vadd.f32 %v1719, %v1863
      %v1946 = vadd.f32 %v1720, %v1868
      %v1947 = vadd.f32 %v1721, %v1871
      %v1948 = vadd.f32 %v1722, %v1876
      %v1949 = vadd.f32 %v1723, %v1879
      %v1950 = vadd.f32 %v1724, %v1884
      %v1951 = vadd.f32 %v1725, %v1887
      %v1952 = vadd.f32 %v1726, %v1892
      %v1953 = vadd.f32 %v1727, %v1895
      %v1954 = vadd.f32 %v1728, %v1900
      %v1955 = vadd.f32 %v1729, %v1903
      %v1956 = vadd.f32 %v1730, %v1908
      %v1957 = vadd.f32 %v1731, %v1911
      %v1958 = vadd.f32 %v1732, %v1916
      %v1959 = vadd.f32 %v1733, %v1919
      %v1960 = vadd.f32 %v1734, %v1924
      %v1961 = vadd.f32 %v1735, %v1927
      %v1962 = vrot.slane %v413, 6
      %v1963 = vrot.slane %v1962, 4
      %v1964 = vrot.slane %v414, 6
      %v1965 = vsel %vm1115, %v1963, %v1964
      %v1966 = vrot.slane %v1964, 4
      %v1967 = vrot.slane %v415, 6
      %v1968 = vsel %vm1115, %v1966, %v1967
      %v1969 = vrot.slane %v416, 6
      %v1970 = vrot.slane %v1969, 4
      %v1971 = vrot.slane %v417, 6
      %v1972 = vsel %vm1115, %v1970, %v1971
      %v1973 = vrot.slane %v1971, 4
      %v1974 = vrot.slane %v418, 6
      %v1975 = vsel %vm1115, %v1973, %v1974
      %s1976 = scalar_lea.vmem %s2, 20
      %v1977 = vld [vmem:[%s1976] sm:$0xf]
      %v1978 = vunpack.c.l.b16 %v1965
      %v1979 = vunpack.c.l.b16 %v1968
      %v1980 = vunpack.c.l.b16 %v1972
      %v1981 = vunpack.c.l.b16 %v1975
      %v1982 = vpack.c.b16 %v1979, %v1978
      %v1983 = vpack.c.b16 %v1981, %v1980
      %v1985 = vsel %vm639, %v1982, 0
      %v1988 = vsel %vm639, %v1983, 0
      %v1991 = vsel %vm688, %v1977, 0
      %1993 = vmatprep.subr.bf16.mxu0 0
      %1994 = vmatpush1.bf16.msra.mxu0 %v1991
      %1995 = vmatprep.subr.bf16.mxu0 0
      %1996 = vmatpush1.bf16.msra.mxu0 0
      %1997 = vmatprep.subr.bf16.mxu0 0
      %1998 = vmatpush1.bf16.msra.mxu0 0
      %1999 = vmatprep.subr.bf16.mxu0 0
      %2000 = vmatpush1.bf16.msra.mxu0 0
      %2001 = vmatprep.subr.bf16.mxu0 0
      %2002 = vmatpush1.bf16.msra.mxu0 0
      %2003 = vmatprep.subr.bf16.mxu0 0
      %2004 = vmatpush1.bf16.msra.mxu0 0
      %2005 = vmatprep.subr.bf16.mxu0 0
      %2006 = vmatpush1.bf16.msra.mxu0 0
      %2007 = vmatprep.subr.bf16.mxu0 0
      %2008 = vmatpush1.bf16.msra.mxu0 0
      %2009 = vmatprep.subr.bf16.mxu0 0
      %2010 = vmatpush1.bf16.msra.mxu0 0
      %2011 = vmatprep.subr.bf16.mxu0 0
      %2012 = vmatpush1.bf16.msra.mxu0 0
      %2013 = vmatprep.subr.bf16.mxu0 0
      %2014 = vmatpush1.bf16.msra.mxu0 0
      %2015 = vmatprep.subr.bf16.mxu0 0
      %2016 = vmatpush1.bf16.msra.mxu0 0
      %2017 = vmatprep.subr.bf16.mxu0 0
      %2018 = vmatpush1.bf16.msra.mxu0 0
      %2019 = vmatprep.subr.bf16.mxu0 0
      %2020 = vmatpush1.bf16.msra.mxu0 0
      %2021 = vmatprep.subr.bf16.mxu0 0
      %2022 = vmatpush1.bf16.msra.mxu0 0
      %2023 = vmatprep.subr.bf16.mxu0 0
      %2024 = vmatpush1.bf16.msra.mxu0 0
      %2025 = vmatprep.mubr.bf16.mxu0 0
      %2026 = vmatmul.mubr.bf16.gmra.mrb[0].mxu0 %v1285
      %v2027 = vpop.f32.mrb[0].mxu0
      %v2028 = vadd.f32 0.0, %v2027
      %v2029 = vpop.f32.mrb[0].mxu0
      %v2030 = vpop.f32.mrb[0].mxu0
      %v2031 = vadd.f32 0.0, %v2030
      %v2032 = vpop.f32.mrb[0].mxu0
      %2033 = vmatprep.mubr.bf16.mxu0 0
      %2034 = vmatmul.mubr.bf16.gmra.mrb[0].mxu0 %v1288
      %v2035 = vpop.f32.mrb[0].mxu0
      %v2036 = vadd.f32 0.0, %v2035
      %v2037 = vpop.f32.mrb[0].mxu0
      %v2038 = vpop.f32.mrb[0].mxu0
      %v2039 = vadd.f32 0.0, %v2038
      %v2040 = vpop.f32.mrb[0].mxu0
      %2041 = vmatprep.mubr.bf16.mxu0 0
      %2042 = vmatmul.mubr.bf16.gmra.mrb[0].mxu0 %v1291
      %v2043 = vpop.f32.mrb[0].mxu0
      %v2044 = vadd.f32 0.0, %v2043
      %v2045 = vpop.f32.mrb[0].mxu0
      %v2046 = vpop.f32.mrb[0].mxu0
      %v2047 = vadd.f32 0.0, %v2046
      %v2048 = vpop.f32.mrb[0].mxu0
      %2049 = vmatprep.mubr.bf16.mxu0 0
      %2050 = vmatmul.mubr.bf16.gmra.mrb[0].mxu0 %v1294
      %v2051 = vpop.f32.mrb[0].mxu0
      %v2052 = vadd.f32 0.0, %v2051
      %v2053 = vpop.f32.mrb[0].mxu0
      %v2054 = vpop.f32.mrb[0].mxu0
      %v2055 = vadd.f32 0.0, %v2054
      %v2056 = vpop.f32.mrb[0].mxu0
      %2057 = vmatprep.mubr.bf16.mxu0 0
      %2058 = vmatmul.mubr.bf16.gmra.mrb[0].mxu0 %v1297
      %v2059 = vpop.f32.mrb[0].mxu0
      %v2060 = vadd.f32 0.0, %v2059
      %v2061 = vpop.f32.mrb[0].mxu0
      %v2062 = vpop.f32.mrb[0].mxu0
      %v2063 = vadd.f32 0.0, %v2062
      %v2064 = vpop.f32.mrb[0].mxu0
      %2065 = vmatprep.mubr.bf16.mxu0 0
      %2066 = vmatmul.mubr.bf16.gmra.mrb[0].mxu0 %v1300
      %v2067 = vpop.f32.mrb[0].mxu0
      %v2068 = vadd.f32 0.0, %v2067
      %v2069 = vpop.f32.mrb[0].mxu0
      %v2070 = vpop.f32.mrb[0].mxu0
      %v2071 = vadd.f32 0.0, %v2070
      %v2072 = vpop.f32.mrb[0].mxu0
      %2073 = vmatprep.mubr.bf16.mxu0 0
      %2074 = vmatmul.mubr.bf16.gmra.mrb[0].mxu0 %v1303
      %v2075 = vpop.f32.mrb[0].mxu0
      %v2076 = vadd.f32 0.0, %v2075
      %v2077 = vpop.f32.mrb[0].mxu0
      %v2078 = vpop.f32.mrb[0].mxu0
      %v2079 = vadd.f32 0.0, %v2078
      %v2080 = vpop.f32.mrb[0].mxu0
      %2081 = vmatprep.mubr.bf16.mxu0 0
      %2082 = vmatmul.mubr.bf16.gmra.mrb[0].mxu0 %v1306
      %v2083 = vpop.f32.mrb[0].mxu0
      %v2084 = vadd.f32 0.0, %v2083
      %v2085 = vpop.f32.mrb[0].mxu0
      %v2086 = vpop.f32.mrb[0].mxu0
      %v2087 = vadd.f32 0.0, %v2086
      %v2088 = vpop.f32.mrb[0].mxu0
      %2089 = vmatprep.mubr.bf16.mxu0 0
      %2090 = vmatmul.mubr.bf16.gmra.mrb[0].mxu0 %v1309
      %v2091 = vpop.f32.mrb[0].mxu0
      %v2092 = vadd.f32 0.0, %v2091
      %v2093 = vpop.f32.mrb[0].mxu0
      %v2094 = vpop.f32.mrb[0].mxu0
      %v2095 = vadd.f32 0.0, %v2094
      %v2096 = vpop.f32.mrb[0].mxu0
      %2097 = vmatprep.mubr.bf16.mxu0 0
      %2098 = vmatmul.mubr.bf16.gmra.mrb[0].mxu0 %v1312
      %v2099 = vpop.f32.mrb[0].mxu0
      %v2100 = vadd.f32 0.0, %v2099
      %v2101 = vpop.f32.mrb[0].mxu0
      %v2102 = vpop.f32.mrb[0].mxu0
      %v2103 = vadd.f32 0.0, %v2102
      %v2104 = vpop.f32.mrb[0].mxu0
      %2105 = vmatprep.mubr.bf16.mxu0 0
      %2106 = vmatmul.mubr.bf16.gmra.mrb[0].mxu0 %v1315
      %v2107 = vpop.f32.mrb[0].mxu0
      %v2108 = vadd.f32 0.0, %v2107
      %v2109 = vpop.f32.mrb[0].mxu0
      %v2110 = vpop.f32.mrb[0].mxu0
      %v2111 = vadd.f32 0.0, %v2110
      %v2112 = vpop.f32.mrb[0].mxu0
      %2113 = vmatprep.mubr.bf16.mxu0 0
      %2114 = vmatmul.mubr.bf16.gmra.mrb[0].mxu0 %v1318
      %v2115 = vpop.f32.mrb[0].mxu0
      %v2116 = vadd.f32 0.0, %v2115
      %v2117 = vpop.f32.mrb[0].mxu0
      %v2118 = vpop.f32.mrb[0].mxu0
      %v2119 = vadd.f32 0.0, %v2118
      %v2120 = vpop.f32.mrb[0].mxu0
      %2121 = vmatprep.mubr.bf16.mxu0 0
      %2122 = vmatmul.mubr.bf16.gmra.mrb[0].mxu0 %v1321
      %v2123 = vpop.f32.mrb[0].mxu0
      %v2124 = vadd.f32 0.0, %v2123
      %v2125 = vpop.f32.mrb[0].mxu0
      %v2126 = vpop.f32.mrb[0].mxu0
      %v2127 = vadd.f32 0.0, %v2126
      %v2128 = vpop.f32.mrb[0].mxu0
      %2129 = vmatprep.mubr.bf16.mxu0 0
      %2130 = vmatmul.mubr.bf16.gmra.mrb[0].mxu0 %v1324
      %v2131 = vpop.f32.mrb[0].mxu0
      %v2132 = vadd.f32 0.0, %v2131
      %v2133 = vpop.f32.mrb[0].mxu0
      %v2134 = vpop.f32.mrb[0].mxu0
      %v2135 = vadd.f32 0.0, %v2134
      %v2136 = vpop.f32.mrb[0].mxu0
      %2137 = vmatprep.mubr.bf16.mxu0 0
      %2138 = vmatmul.mubr.bf16.gmra.mrb[0].mxu0 %v1985
      %v2139 = vpop.f32.mrb[0].mxu0
      %v2140 = vadd.f32 0.0, %v2139
      %v2141 = vpop.f32.mrb[0].mxu0
      %v2142 = vpop.f32.mrb[0].mxu0
      %v2143 = vadd.f32 0.0, %v2142
      %v2144 = vpop.f32.mrb[0].mxu0
      %2145 = vmatprep.mubr.bf16.mxu0 0
      %2146 = vmatmul.mubr.bf16.gmra.mrb[0].mxu0 %v1988
      %v2147 = vpop.f32.mrb[0].mxu0
      %v2148 = vadd.f32 0.0, %v2147
      %v2149 = vpop.f32.mrb[0].mxu0
      %v2150 = vpop.f32.mrb[0].mxu0
      %v2151 = vadd.f32 0.0, %v2150
      %v2152 = vpop.f32.mrb[0].mxu0
      %2153 = vdwg.mxu0
      %v2154 = vadd.f32 %v1930, %v2028
      %v2155 = vadd.f32 %v1931, %v2031
      %v2156 = vadd.f32 %v1932, %v2036
      %v2157 = vadd.f32 %v1933, %v2039
      %v2158 = vadd.f32 %v1934, %v2044
      %v2159 = vadd.f32 %v1935, %v2047
      %v2160 = vadd.f32 %v1936, %v2052
      %v2161 = vadd.f32 %v1937, %v2055
      %v2162 = vadd.f32 %v1938, %v2060
      %v2163 = vadd.f32 %v1939, %v2063
      %v2164 = vadd.f32 %v1940, %v2068
      %v2165 = vadd.f32 %v1941, %v2071
      %v2166 = vadd.f32 %v1942, %v2076
      %v2167 = vadd.f32 %v1943, %v2079
      %v2168 = vadd.f32 %v1944, %v2084
      %v2169 = vadd.f32 %v1945, %v2087
      %v2170 = vadd.f32 %v1946, %v2092
      %v2171 = vadd.f32 %v1947, %v2095
      %v2172 = vadd.f32 %v1948, %v2100
      %v2173 = vadd.f32 %v1949, %v2103
      %v2174 = vadd.f32 %v1950, %v2108
      %v2175 = vadd.f32 %v1951, %v2111
      %v2176 = vadd.f32 %v1952, %v2116
      %v2177 = vadd.f32 %v1953, %v2119
      %v2178 = vadd.f32 %v1954, %v2124
      %v2179 = vadd.f32 %v1955, %v2127
      %v2180 = vadd.f32 %v1956, %v2132
      %v2181 = vadd.f32 %v1957, %v2135
      %v2182 = vadd.f32 %v1958, %v2140
      %v2183 = vadd.f32 %v1959, %v2143
      %v2184 = vadd.f32 %v1960, %v2148
      %v2185 = vadd.f32 %v1961, %v2151
      %s2186 = scalar_lea.vmem %s2, 24
      %v2187 = vld [vmem:[%s2186] sm:$0xf]
      %v2192 = vunpack.c.l.b16 %v419
      %v2193 = vunpack.c.l.b16 %v420
      %v2194 = vunpack.c.l.b16 %v422
      %v2195 = vunpack.c.l.b16 %v423
      %v2196 = vpack.c.b16 %v2193, %v2192
      %v2197 = vpack.c.b16 %v2195, %v2194
      %v2199 = vsel %vm639, %v2196, 0
      %v2202 = vsel %vm639, %v2197, 0
      %v2205 = vsel %vm688, %v2187, 0
      %2207 = vmatprep.subr.bf16.mxu0 0
      %2208 = vmatpush1.bf16.msra.mxu0 %v2205
      %2209 = vmatprep.subr.bf16.mxu0 0
      %2210 = vmatpush1.bf16.msra.mxu0 0
      %2211 = vmatprep.subr.bf16.mxu0 0
      %2212 = vmatpush1.bf16.msra.mxu0 0
      %2213 = vmatprep.subr.bf16.mxu0 0
      %2214 = vmatpush1.bf16.msra.mxu0 0
      %2215 = vmatprep.subr.bf16.mxu0 0
      %2216 = vmatpush1.bf16.msra.mxu0 0
      %2217 = vmatprep.subr.bf16.mxu0 0
      %2218 = vmatpush1.bf16.msra.mxu0 0
      %2219 = vmatprep.subr.bf16.mxu0 0
      %2220 = vmatpush1.bf16.msra.mxu0 0
      %2221 = vmatprep.subr.bf16.mxu0 0
      %2222 = vmatpush1.bf16.msra.mxu0 0
      %2223 = vmatprep.subr.bf16.mxu0 0
      %2224 = vmatpush1.bf16.msra.mxu0 0
      %2225 = vmatprep.subr.bf16.mxu0 0
      %2226 = vmatpush1.bf16.msra.mxu0 0
      %2227 = vmatprep.subr.bf16.mxu0 0
      %2228 = vmatpush1.bf16.msra.mxu0 0
      %2229 = vmatprep.subr.bf16.mxu0 0
      %2230 = vmatpush1.bf16.msra.mxu0 0
      %2231 = vmatprep.subr.bf16.mxu0 0
      %2232 = vmatpush1.bf16.msra.mxu0 0
      %2233 = vmatprep.subr.bf16.mxu0 0
      %2234 = vmatpush1.bf16.msra.mxu0 0
      %2235 = vmatprep.subr.bf16.mxu0 0
      %2236 = vmatpush1.bf16.msra.mxu0 0
      %2237 = vmatprep.subr.bf16.mxu0 0
      %2238 = vmatpush1.bf16.msra.mxu0 0
      %2239 = vmatprep.mubr.bf16.mxu0 0
      %2240 = vmatmul.mubr.bf16.gmra.mrb[0].mxu0 %v914
      %v2241 = vpop.f32.mrb[0].mxu0
      %v2242 = vadd.f32 0.0, %v2241
      %v2243 = vpop.f32.mrb[0].mxu0
      %v2244 = vpop.f32.mrb[0].mxu0
      %v2245 = vadd.f32 0.0, %v2244
      %v2246 = vpop.f32.mrb[0].mxu0
      %2247 = vmatprep.mubr.bf16.mxu0 0
      %2248 = vmatmul.mubr.bf16.gmra.mrb[0].mxu0 %v917
      %v2249 = vpop.f32.mrb[0].mxu0
      %v2250 = vadd.f32 0.0, %v2249
      %v2251 = vpop.f32.mrb[0].mxu0
      %v2252 = vpop.f32.mrb[0].mxu0
      %v2253 = vadd.f32 0.0, %v2252
      %v2254 = vpop.f32.mrb[0].mxu0
      %2255 = vmatprep.mubr.bf16.mxu0 0
      %2256 = vmatmul.mubr.bf16.gmra.mrb[0].mxu0 %v920
      %v2257 = vpop.f32.mrb[0].mxu0
      %v2258 = vadd.f32 0.0, %v2257
      %v2259 = vpop.f32.mrb[0].mxu0
      %v2260 = vpop.f32.mrb[0].mxu0
      %v2261 = vadd.f32 0.0, %v2260
      %v2262 = vpop.f32.mrb[0].mxu0
      %2263 = vmatprep.mubr.bf16.mxu0 0
      %2264 = vmatmul.mubr.bf16.gmra.mrb[0].mxu0 %v923
      %v2265 = vpop.f32.mrb[0].mxu0
      %v2266 = vadd.f32 0.0, %v2265
      %v2267 = vpop.f32.mrb[0].mxu0
      %v2268 = vpop.f32.mrb[0].mxu0
      %v2269 = vadd.f32 0.0, %v2268
      %v2270 = vpop.f32.mrb[0].mxu0
      %2271 = vmatprep.mubr.bf16.mxu0 0
      %2272 = vmatmul.mubr.bf16.gmra.mrb[0].mxu0 %v926
      %v2273 = vpop.f32.mrb[0].mxu0
      %v2274 = vadd.f32 0.0, %v2273
      %v2275 = vpop.f32.mrb[0].mxu0
      %v2276 = vpop.f32.mrb[0].mxu0
      %v2277 = vadd.f32 0.0, %v2276
      %v2278 = vpop.f32.mrb[0].mxu0
      %2279 = vmatprep.mubr.bf16.mxu0 0
      %2280 = vmatmul.mubr.bf16.gmra.mrb[0].mxu0 %v929
      %v2281 = vpop.f32.mrb[0].mxu0
      %v2282 = vadd.f32 0.0, %v2281
      %v2283 = vpop.f32.mrb[0].mxu0
      %v2284 = vpop.f32.mrb[0].mxu0
      %v2285 = vadd.f32 0.0, %v2284
      %v2286 = vpop.f32.mrb[0].mxu0
      %2287 = vmatprep.mubr.bf16.mxu0 0
      %2288 = vmatmul.mubr.bf16.gmra.mrb[0].mxu0 %v932
      %v2289 = vpop.f32.mrb[0].mxu0
      %v2290 = vadd.f32 0.0, %v2289
      %v2291 = vpop.f32.mrb[0].mxu0
      %v2292 = vpop.f32.mrb[0].mxu0
      %v2293 = vadd.f32 0.0, %v2292
      %v2294 = vpop.f32.mrb[0].mxu0
      %2295 = vmatprep.mubr.bf16.mxu0 0
      %2296 = vmatmul.mubr.bf16.gmra.mrb[0].mxu0 %v935
      %v2297 = vpop.f32.mrb[0].mxu0
      %v2298 = vadd.f32 0.0, %v2297
      %v2299 = vpop.f32.mrb[0].mxu0
      %v2300 = vpop.f32.mrb[0].mxu0
      %v2301 = vadd.f32 0.0, %v2300
      %v2302 = vpop.f32.mrb[0].mxu0
      %2303 = vmatprep.mubr.bf16.mxu0 0
      %2304 = vmatmul.mubr.bf16.gmra.mrb[0].mxu0 %v938
      %v2305 = vpop.f32.mrb[0].mxu0
      %v2306 = vadd.f32 0.0, %v2305
      %v2307 = vpop.f32.mrb[0].mxu0
      %v2308 = vpop.f32.mrb[0].mxu0
      %v2309 = vadd.f32 0.0, %v2308
      %v2310 = vpop.f32.mrb[0].mxu0
      %2311 = vmatprep.mubr.bf16.mxu0 0
      %2312 = vmatmul.mubr.bf16.gmra.mrb[0].mxu0 %v941
      %v2313 = vpop.f32.mrb[0].mxu0
      %v2314 = vadd.f32 0.0, %v2313
      %v2315 = vpop.f32.mrb[0].mxu0
      %v2316 = vpop.f32.mrb[0].mxu0
      %v2317 = vadd.f32 0.0, %v2316
      %v2318 = vpop.f32.mrb[0].mxu0
      %2319 = vmatprep.mubr.bf16.mxu0 0
      %2320 = vmatmul.mubr.bf16.gmra.mrb[0].mxu0 %v944
      %v2321 = vpop.f32.mrb[0].mxu0
      %v2322 = vadd.f32 0.0, %v2321
      %v2323 = vpop.f32.mrb[0].mxu0
      %v2324 = vpop.f32.mrb[0].mxu0
      %v2325 = vadd.f32 0.0, %v2324
      %v2326 = vpop.f32.mrb[0].mxu0
      %2327 = vmatprep.mubr.bf16.mxu0 0
      %2328 = vmatmul.mubr.bf16.gmra.mrb[0].mxu0 %v947
      %v2329 = vpop.f32.mrb[0].mxu0
      %v2330 = vadd.f32 0.0, %v2329
      %v2331 = vpop.f32.mrb[0].mxu0
      %v2332 = vpop.f32.mrb[0].mxu0
      %v2333 = vadd.f32 0.0, %v2332
      %v2334 = vpop.f32.mrb[0].mxu0
      %2335 = vmatprep.mubr.bf16.mxu0 0
      %2336 = vmatmul.mubr.bf16.gmra.mrb[0].mxu0 %v1535
      %v2337 = vpop.f32.mrb[0].mxu0
      %v2338 = vadd.f32 0.0, %v2337
      %v2339 = vpop.f32.mrb[0].mxu0
      %v2340 = vpop.f32.mrb[0].mxu0
      %v2341 = vadd.f32 0.0, %v2340
      %v2342 = vpop.f32.mrb[0].mxu0
      %2343 = vmatprep.mubr.bf16.mxu0 0
      %2344 = vmatmul.mubr.bf16.gmra.mrb[0].mxu0 %v1538
      %v2345 = vpop.f32.mrb[0].mxu0
      %v2346 = vadd.f32 0.0, %v2345
      %v2347 = vpop.f32.mrb[0].mxu0
      %v2348 = vpop.f32.mrb[0].mxu0
      %v2349 = vadd.f32 0.0, %v2348
      %v2350 = vpop.f32.mrb[0].mxu0
      %2351 = vmatprep.mubr.bf16.mxu0 0
      %2352 = vmatmul.mubr.bf16.gmra.mrb[0].mxu0 %v2199
      %v2353 = vpop.f32.mrb[0].mxu0
      %v2354 = vadd.f32 0.0, %v2353
      %v2355 = vpop.f32.mrb[0].mxu0
      %v2356 = vpop.f32.mrb[0].mxu0
      %v2357 = vadd.f32 0.0, %v2356
      %v2358 = vpop.f32.mrb[0].mxu0
      %2359 = vmatprep.mubr.bf16.mxu0 0
      %2360 = vmatmul.mubr.bf16.gmra.mrb[0].mxu0 %v2202
      %v2361 = vpop.f32.mrb[0].mxu0
      %v2362 = vadd.f32 0.0, %v2361
      %v2363 = vpop.f32.mrb[0].mxu0
      %v2364 = vpop.f32.mrb[0].mxu0
      %v2365 = vadd.f32 0.0, %v2364
      %v2366 = vpop.f32.mrb[0].mxu0
      %2367 = vdwg.mxu0
      %v2368 = vadd.f32 %v2154, %v2242
      %v2369 = vadd.f32 %v2155, %v2245
      %v2370 = vadd.f32 %v2156, %v2250
      %v2371 = vadd.f32 %v2157, %v2253
      %v2372 = vadd.f32 %v2158, %v2258
      %v2373 = vadd.f32 %v2159, %v2261
      %v2374 = vadd.f32 %v2160, %v2266
      %v2375 = vadd.f32 %v2161, %v2269
      %v2376 = vadd.f32 %v2162, %v2274
      %v2377 = vadd.f32 %v2163, %v2277
      %v2378 = vadd.f32 %v2164, %v2282
      %v2379 = vadd.f32 %v2165, %v2285
      %v2380 = vadd.f32 %v2166, %v2290
      %v2381 = vadd.f32 %v2167, %v2293
      %v2382 = vadd.f32 %v2168, %v2298
      %v2383 = vadd.f32 %v2169, %v2301
      %v2384 = vadd.f32 %v2170, %v2306
      %v2385 = vadd.f32 %v2171, %v2309
      %v2386 = vadd.f32 %v2172, %v2314
      %v2387 = vadd.f32 %v2173, %v2317
      %v2388 = vadd.f32 %v2174, %v2322
      %v2389 = vadd.f32 %v2175, %v2325
      %v2390 = vadd.f32 %v2176, %v2330
      %v2391 = vadd.f32 %v2177, %v2333
      %v2392 = vadd.f32 %v2178, %v2338
      %v2393 = vadd.f32 %v2179, %v2341
      %v2394 = vadd.f32 %v2180, %v2346
      %v2395 = vadd.f32 %v2181, %v2349
      %v2396 = vadd.f32 %v2182, %v2354
      %v2397 = vadd.f32 %v2183, %v2357
      %v2398 = vadd.f32 %v2184, %v2362
      %v2399 = vadd.f32 %v2185, %v2365
      %v2402 = vrot.slane %v419, 5
      %v2403 = vrot.slane %v2402, 4
      %v2404 = vrot.slane %v420, 5
      %v2405 = vsel %vm476, %v2403, %v2404
      %v2406 = vrot.slane %v2404, 4
      %v2407 = vrot.slane %v421, 5
      %v2408 = vsel %vm476, %v2406, %v2407
      %v2409 = vrot.slane %v422, 5
      %v2410 = vrot.slane %v2409, 4
      %v2411 = vrot.slane %v423, 5
      %v2412 = vsel %vm476, %v2410, %v2411
      %v2413 = vrot.slane %v2411, 4
      %v2414 = vrot.slane %v424, 5
      %v2415 = vsel %vm476, %v2413, %v2414
      %s2416 = scalar_lea.vmem %s2, 28
      %v2417 = vld [vmem:[%s2416] sm:$0xf]
      %v2418 = vunpack.c.l.b16 %v2405
      %v2419 = vunpack.c.l.b16 %v2408
      %v2420 = vunpack.c.l.b16 %v2412
      %v2421 = vunpack.c.l.b16 %v2415
      %v2422 = vpack.c.b16 %v2419, %v2418
      %v2423 = vpack.c.b16 %v2421, %v2420
      %v2425 = vsel %vm639, %v2422, 0
      %v2428 = vsel %vm639, %v2423, 0
      %v2431 = vsel %vm688, %v2417, 0
      %2433 = vmatprep.subr.bf16.mxu0 0
      %2434 = vmatpush1.bf16.msra.mxu0 %v2431
      %2435 = vmatprep.subr.bf16.mxu0 0
      %2436 = vmatpush1.bf16.msra.mxu0 0
      %2437 = vmatprep.subr.bf16.mxu0 0
      %2438 = vmatpush1.bf16.msra.mxu0 0
      %2439 = vmatprep.subr.bf16.mxu0 0
      %2440 = vmatpush1.bf16.msra.mxu0 0
      %2441 = vmatprep.subr.bf16.mxu0 0
      %2442 = vmatpush1.bf16.msra.mxu0 0
      %2443 = vmatprep.subr.bf16.mxu0 0
      %2444 = vmatpush1.bf16.msra.mxu0 0
      %2445 = vmatprep.subr.bf16.mxu0 0
      %2446 = vmatpush1.bf16.msra.mxu0 0
      %2447 = vmatprep.subr.bf16.mxu0 0
      %2448 = vmatpush1.bf16.msra.mxu0 0
      %2449 = vmatprep.subr.bf16.mxu0 0
      %2450 = vmatpush1.bf16.msra.mxu0 0
      %2451 = vmatprep.subr.bf16.mxu0 0
      %2452 = vmatpush1.bf16.msra.mxu0 0
      %2453 = vmatprep.subr.bf16.mxu0 0
      %2454 = vmatpush1.bf16.msra.mxu0 0
      %2455 = vmatprep.subr.bf16.mxu0 0
      %2456 = vmatpush1.bf16.msra.mxu0 0
      %2457 = vmatprep.subr.bf16.mxu0 0
      %2458 = vmatpush1.bf16.msra.mxu0 0
      %2459 = vmatprep.subr.bf16.mxu0 0
      %2460 = vmatpush1.bf16.msra.mxu0 0
      %2461 = vmatprep.subr.bf16.mxu0 0
      %2462 = vmatpush1.bf16.msra.mxu0 0
      %2463 = vmatprep.subr.bf16.mxu0 0
      %2464 = vmatpush1.bf16.msra.mxu0 0
      %2465 = vmatprep.mubr.bf16.mxu0 0
      %2466 = vmatmul.mubr.bf16.gmra.mrb[0].mxu0 %v653
      %v2467 = vpop.f32.mrb[0].mxu0
      %v2468 = vadd.f32 0.0, %v2467
      %v2469 = vpop.f32.mrb[0].mxu0
      %v2470 = vpop.f32.mrb[0].mxu0
      %v2471 = vadd.f32 0.0, %v2470
      %v2472 = vpop.f32.mrb[0].mxu0
      %2473 = vmatprep.mubr.bf16.mxu0 0
      %2474 = vmatmul.mubr.bf16.gmra.mrb[0].mxu0 %v656
      %v2475 = vpop.f32.mrb[0].mxu0
      %v2476 = vadd.f32 0.0, %v2475
      %v2477 = vpop.f32.mrb[0].mxu0
      %v2478 = vpop.f32.mrb[0].mxu0
      %v2479 = vadd.f32 0.0, %v2478
      %v2480 = vpop.f32.mrb[0].mxu0
      %2481 = vmatprep.mubr.bf16.mxu0 0
      %2482 = vmatmul.mubr.bf16.gmra.mrb[0].mxu0 %v659
      %v2483 = vpop.f32.mrb[0].mxu0
      %v2484 = vadd.f32 0.0, %v2483
      %v2485 = vpop.f32.mrb[0].mxu0
      %v2486 = vpop.f32.mrb[0].mxu0
      %v2487 = vadd.f32 0.0, %v2486
      %v2488 = vpop.f32.mrb[0].mxu0
      %2489 = vmatprep.mubr.bf16.mxu0 0
      %2490 = vmatmul.mubr.bf16.gmra.mrb[0].mxu0 %v662
      %v2491 = vpop.f32.mrb[0].mxu0
      %v2492 = vadd.f32 0.0, %v2491
      %v2493 = vpop.f32.mrb[0].mxu0
      %v2494 = vpop.f32.mrb[0].mxu0
      %v2495 = vadd.f32 0.0, %v2494
      %v2496 = vpop.f32.mrb[0].mxu0
      %2497 = vmatprep.mubr.bf16.mxu0 0
      %2498 = vmatmul.mubr.bf16.gmra.mrb[0].mxu0 %v665
      %v2499 = vpop.f32.mrb[0].mxu0
      %v2500 = vadd.f32 0.0, %v2499
      %v2501 = vpop.f32.mrb[0].mxu0
      %v2502 = vpop.f32.mrb[0].mxu0
      %v2503 = vadd.f32 0.0, %v2502
      %v2504 = vpop.f32.mrb[0].mxu0
      %2505 = vmatprep.mubr.bf16.mxu0 0
      %2506 = vmatmul.mubr.bf16.gmra.mrb[0].mxu0 %v668
      %v2507 = vpop.f32.mrb[0].mxu0
      %v2508 = vadd.f32 0.0, %v2507
      %v2509 = vpop.f32.mrb[0].mxu0
      %v2510 = vpop.f32.mrb[0].mxu0
      %v2511 = vadd.f32 0.0, %v2510
      %v2512 = vpop.f32.mrb[0].mxu0
      %2513 = vmatprep.mubr.bf16.mxu0 0
      %2514 = vmatmul.mubr.bf16.gmra.mrb[0].mxu0 %v671
      %v2515 = vpop.f32.mrb[0].mxu0
      %v2516 = vadd.f32 0.0, %v2515
      %v2517 = vpop.f32.mrb[0].mxu0
      %v2518 = vpop.f32.mrb[0].mxu0
      %v2519 = vadd.f32 0.0, %v2518
      %v2520 = vpop.f32.mrb[0].mxu0
      %2521 = vmatprep.mubr.bf16.mxu0 0
      %2522 = vmatmul.mubr.bf16.gmra.mrb[0].mxu0 %v674
      %v2523 = vpop.f32.mrb[0].mxu0
      %v2524 = vadd.f32 0.0, %v2523
      %v2525 = vpop.f32.mrb[0].mxu0
      %v2526 = vpop.f32.mrb[0].mxu0
      %v2527 = vadd.f32 0.0, %v2526
      %v2528 = vpop.f32.mrb[0].mxu0
      %2529 = vmatprep.mubr.bf16.mxu0 0
      %2530 = vmatmul.mubr.bf16.gmra.mrb[0].mxu0 %v677
      %v2531 = vpop.f32.mrb[0].mxu0
      %v2532 = vadd.f32 0.0, %v2531
      %v2533 = vpop.f32.mrb[0].mxu0
      %v2534 = vpop.f32.mrb[0].mxu0
      %v2535 = vadd.f32 0.0, %v2534
      %v2536 = vpop.f32.mrb[0].mxu0
      %2537 = vmatprep.mubr.bf16.mxu0 0
      %2538 = vmatmul.mubr.bf16.gmra.mrb[0].mxu0 %v680
      %v2539 = vpop.f32.mrb[0].mxu0
      %v2540 = vadd.f32 0.0, %v2539
      %v2541 = vpop.f32.mrb[0].mxu0
      %v2542 = vpop.f32.mrb[0].mxu0
      %v2543 = vadd.f32 0.0, %v2542
      %v2544 = vpop.f32.mrb[0].mxu0
      %2545 = vmatprep.mubr.bf16.mxu0 0
      %2546 = vmatmul.mubr.bf16.gmra.mrb[0].mxu0 %v683
      %v2547 = vpop.f32.mrb[0].mxu0
      %v2548 = vadd.f32 0.0, %v2547
      %v2549 = vpop.f32.mrb[0].mxu0
      %v2550 = vpop.f32.mrb[0].mxu0
      %v2551 = vadd.f32 0.0, %v2550
      %v2552 = vpop.f32.mrb[0].mxu0
      %2553 = vmatprep.mubr.bf16.mxu0 0
      %2554 = vmatmul.mubr.bf16.gmra.mrb[0].mxu0 %v686
      %v2555 = vpop.f32.mrb[0].mxu0
      %v2556 = vadd.f32 0.0, %v2555
      %v2557 = vpop.f32.mrb[0].mxu0
      %v2558 = vpop.f32.mrb[0].mxu0
      %v2559 = vadd.f32 0.0, %v2558
      %v2560 = vpop.f32.mrb[0].mxu0
      %2561 = vmatprep.mubr.bf16.mxu0 0
      %2562 = vmatmul.mubr.bf16.gmra.mrb[0].mxu0 %v1761
      %v2563 = vpop.f32.mrb[0].mxu0
      %v2564 = vadd.f32 0.0, %v2563
      %v2565 = vpop.f32.mrb[0].mxu0
      %v2566 = vpop.f32.mrb[0].mxu0
      %v2567 = vadd.f32 0.0, %v2566
      %v2568 = vpop.f32.mrb[0].mxu0
      %2569 = vmatprep.mubr.bf16.mxu0 0
      %2570 = vmatmul.mubr.bf16.gmra.mrb[0].mxu0 %v1764
      %v2571 = vpop.f32.mrb[0].mxu0
      %v2572 = vadd.f32 0.0, %v2571
      %v2573 = vpop.f32.mrb[0].mxu0
      %v2574 = vpop.f32.mrb[0].mxu0
      %v2575 = vadd.f32 0.0, %v2574
      %v2576 = vpop.f32.mrb[0].mxu0
      %2577 = vmatprep.mubr.bf16.mxu0 0
      %2578 = vmatmul.mubr.bf16.gmra.mrb[0].mxu0 %v2425
      %v2579 = vpop.f32.mrb[0].mxu0
      %v2580 = vadd.f32 0.0, %v2579
      %v2581 = vpop.f32.mrb[0].mxu0
      %v2582 = vpop.f32.mrb[0].mxu0
      %v2583 = vadd.f32 0.0, %v2582
      %v2584 = vpop.f32.mrb[0].mxu0
      %2585 = vmatprep.mubr.bf16.mxu0 0
      %2586 = vmatmul.mubr.bf16.gmra.mrb[0].mxu0 %v2428
      %v2587 = vpop.f32.mrb[0].mxu0
      %v2588 = vadd.f32 0.0, %v2587
      %v2589 = vpop.f32.mrb[0].mxu0
      %v2590 = vpop.f32.mrb[0].mxu0
      %v2591 = vadd.f32 0.0, %v2590
      %v2592 = vpop.f32.mrb[0].mxu0
      %2593 = vdwg.mxu0
      %v2594 = vadd.f32 %v2368, %v2468
      %v2595 = vadd.f32 %v2369, %v2471
      %v2596 = vadd.f32 %v2370, %v2476
      %v2597 = vadd.f32 %v2371, %v2479
      %v2598 = vadd.f32 %v2372, %v2484
      %v2599 = vadd.f32 %v2373, %v2487
      %v2600 = vadd.f32 %v2374, %v2492
      %v2601 = vadd.f32 %v2375, %v2495
      %v2602 = vadd.f32 %v2376, %v2500
      %v2603 = vadd.f32 %v2377, %v2503
      %v2604 = vadd.f32 %v2378, %v2508
      %v2605 = vadd.f32 %v2379, %v2511
      %v2606 = vadd.f32 %v2380, %v2516
      %v2607 = vadd.f32 %v2381, %v2519
      %v2608 = vadd.f32 %v2382, %v2524
      %v2609 = vadd.f32 %v2383, %v2527
      %v2610 = vadd.f32 %v2384, %v2532
      %v2611 = vadd.f32 %v2385, %v2535
      %v2612 = vadd.f32 %v2386, %v2540
      %v2613 = vadd.f32 %v2387, %v2543
      %v2614 = vadd.f32 %v2388, %v2548
      %v2615 = vadd.f32 %v2389, %v2551
      %v2616 = vadd.f32 %v2390, %v2556
      %v2617 = vadd.f32 %v2391, %v2559
      %v2618 = vadd.f32 %v2392, %v2564
      %v2619 = vadd.f32 %v2393, %v2567
      %v2620 = vadd.f32 %v2394, %v2572
      %v2621 = vadd.f32 %v2395, %v2575
      %v2622 = vadd.f32 %v2396, %v2580
      %v2623 = vadd.f32 %v2397, %v2583
      %v2624 = vadd.f32 %v2398, %v2588
      %v2625 = vadd.f32 %v2399, %v2591
      %v2626 = vrot.slane %v419, 6
      %v2627 = vrot.slane %v2626, 4
      %v2628 = vrot.slane %v420, 6
      %v2629 = vsel %vm1115, %v2627, %v2628
      %v2630 = vrot.slane %v2628, 4
      %v2631 = vrot.slane %v421, 6
      %v2632 = vsel %vm1115, %v2630, %v2631
      %v2633 = vrot.slane %v422, 6
      %v2634 = vrot.slane %v2633, 4
      %v2635 = vrot.slane %v423, 6
      %v2636 = vsel %vm1115, %v2634, %v2635
      %v2637 = vrot.slane %v2635, 4
      %v2638 = vrot.slane %v424, 6
      %v2639 = vsel %vm1115, %v2637, %v2638
      %s2640 = scalar_lea.vmem %s2, 32
      %v2641 = vld [vmem:[%s2640] sm:$0xf]
      %v2642 = vunpack.c.l.b16 %v2629
      %v2643 = vunpack.c.l.b16 %v2632
      %v2644 = vunpack.c.l.b16 %v2636
      %v2645 = vunpack.c.l.b16 %v2639
      %v2646 = vpack.c.b16 %v2643, %v2642
      %v2647 = vpack.c.b16 %v2645, %v2644
      %v2649 = vsel %vm639, %v2646, 0
      %v2652 = vsel %vm639, %v2647, 0
      %v2655 = vsel %vm688, %v2641, 0
      %2657 = vmatprep.subr.bf16.mxu0 0
      %2658 = vmatpush1.bf16.msra.mxu0 %v2655
      %2659 = vmatprep.subr.bf16.mxu0 0
      %2660 = vmatpush1.bf16.msra.mxu0 0
      %2661 = vmatprep.subr.bf16.mxu0 0
      %2662 = vmatpush1.bf16.msra.mxu0 0
      %2663 = vmatprep.subr.bf16.mxu0 0
      %2664 = vmatpush1.bf16.msra.mxu0 0
      %2665 = vmatprep.subr.bf16.mxu0 0
      %2666 = vmatpush1.bf16.msra.mxu0 0
      %2667 = vmatprep.subr.bf16.mxu0 0
      %2668 = vmatpush1.bf16.msra.mxu0 0
      %2669 = vmatprep.subr.bf16.mxu0 0
      %2670 = vmatpush1.bf16.msra.mxu0 0
      %2671 = vmatprep.subr.bf16.mxu0 0
      %2672 = vmatpush1.bf16.msra.mxu0 0
      %2673 = vmatprep.subr.bf16.mxu0 0
      %2674 = vmatpush1.bf16.msra.mxu0 0
      %2675 = vmatprep.subr.bf16.mxu0 0
      %2676 = vmatpush1.bf16.msra.mxu0 0
      %2677 = vmatprep.subr.bf16.mxu0 0
      %2678 = vmatpush1.bf16.msra.mxu0 0
      %2679 = vmatprep.subr.bf16.mxu0 0
      %2680 = vmatpush1.bf16.msra.mxu0 0
      %2681 = vmatprep.subr.bf16.mxu0 0
      %2682 = vmatpush1.bf16.msra.mxu0 0
      %2683 = vmatprep.subr.bf16.mxu0 0
      %2684 = vmatpush1.bf16.msra.mxu0 0
      %2685 = vmatprep.subr.bf16.mxu0 0
      %2686 = vmatpush1.bf16.msra.mxu0 0
      %2687 = vmatprep.subr.bf16.mxu0 0
      %2688 = vmatpush1.bf16.msra.mxu0 0
      %2689 = vmatprep.mubr.bf16.mxu0 0
      %2690 = vmatmul.mubr.bf16.gmra.mrb[0].mxu0 %v1291
      %v2691 = vpop.f32.mrb[0].mxu0
      %v2692 = vadd.f32 0.0, %v2691
      %v2693 = vpop.f32.mrb[0].mxu0
      %v2694 = vpop.f32.mrb[0].mxu0
      %v2695 = vadd.f32 0.0, %v2694
      %v2696 = vpop.f32.mrb[0].mxu0
      %2697 = vmatprep.mubr.bf16.mxu0 0
      %2698 = vmatmul.mubr.bf16.gmra.mrb[0].mxu0 %v1294
      %v2699 = vpop.f32.mrb[0].mxu0
      %v2700 = vadd.f32 0.0, %v2699
      %v2701 = vpop.f32.mrb[0].mxu0
      %v2702 = vpop.f32.mrb[0].mxu0
      %v2703 = vadd.f32 0.0, %v2702
      %v2704 = vpop.f32.mrb[0].mxu0
      %2705 = vmatprep.mubr.bf16.mxu0 0
      %2706 = vmatmul.mubr.bf16.gmra.mrb[0].mxu0 %v1297
      %v2707 = vpop.f32.mrb[0].mxu0
      %v2708 = vadd.f32 0.0, %v2707
      %v2709 = vpop.f32.mrb[0].mxu0
      %v2710 = vpop.f32.mrb[0].mxu0
      %v2711 = vadd.f32 0.0, %v2710
      %v2712 = vpop.f32.mrb[0].mxu0
      %2713 = vmatprep.mubr.bf16.mxu0 0
      %2714 = vmatmul.mubr.bf16.gmra.mrb[0].mxu0 %v1300
      %v2715 = vpop.f32.mrb[0].mxu0
      %v2716 = vadd.f32 0.0, %v2715
      %v2717 = vpop.f32.mrb[0].mxu0
      %v2718 = vpop.f32.mrb[0].mxu0
      %v2719 = vadd.f32 0.0, %v2718
      %v2720 = vpop.f32.mrb[0].mxu0
      %2721 = vmatprep.mubr.bf16.mxu0 0
      %2722 = vmatmul.mubr.bf16.gmra.mrb[0].mxu0 %v1303
      %v2723 = vpop.f32.mrb[0].mxu0
      %v2724 = vadd.f32 0.0, %v2723
      %v2725 = vpop.f32.mrb[0].mxu0
      %v2726 = vpop.f32.mrb[0].mxu0
      %v2727 = vadd.f32 0.0, %v2726
      %v2728 = vpop.f32.mrb[0].mxu0
      %2729 = vmatprep.mubr.bf16.mxu0 0
      %2730 = vmatmul.mubr.bf16.gmra.mrb[0].mxu0 %v1306
      %v2731 = vpop.f32.mrb[0].mxu0
      %v2732 = vadd.f32 0.0, %v2731
      %v2733 = vpop.f32.mrb[0].mxu0
      %v2734 = vpop.f32.mrb[0].mxu0
      %v2735 = vadd.f32 0.0, %v2734
      %v2736 = vpop.f32.mrb[0].mxu0
      %2737 = vmatprep.mubr.bf16.mxu0 0
      %2738 = vmatmul.mubr.bf16.gmra.mrb[0].mxu0 %v1309
      %v2739 = vpop.f32.mrb[0].mxu0
      %v2740 = vadd.f32 0.0, %v2739
      %v2741 = vpop.f32.mrb[0].mxu0
      %v2742 = vpop.f32.mrb[0].mxu0
      %v2743 = vadd.f32 0.0, %v2742
      %v2744 = vpop.f32.mrb[0].mxu0
      %2745 = vmatprep.mubr.bf16.mxu0 0
      %2746 = vmatmul.mubr.bf16.gmra.mrb[0].mxu0 %v1312
      %v2747 = vpop.f32.mrb[0].mxu0
      %v2748 = vadd.f32 0.0, %v2747
      %v2749 = vpop.f32.mrb[0].mxu0
      %v2750 = vpop.f32.mrb[0].mxu0
      %v2751 = vadd.f32 0.0, %v2750
      %v2752 = vpop.f32.mrb[0].mxu0
      %2753 = vmatprep.mubr.bf16.mxu0 0
      %2754 = vmatmul.mubr.bf16.gmra.mrb[0].mxu0 %v1315
      %v2755 = vpop.f32.mrb[0].mxu0
      %v2756 = vadd.f32 0.0, %v2755
      %v2757 = vpop.f32.mrb[0].mxu0
      %v2758 = vpop.f32.mrb[0].mxu0
      %v2759 = vadd.f32 0.0, %v2758
      %v2760 = vpop.f32.mrb[0].mxu0
      %2761 = vmatprep.mubr.bf16.mxu0 0
      %2762 = vmatmul.mubr.bf16.gmra.mrb[0].mxu0 %v1318
      %v2763 = vpop.f32.mrb[0].mxu0
      %v2764 = vadd.f32 0.0, %v2763
      %v2765 = vpop.f32.mrb[0].mxu0
      %v2766 = vpop.f32.mrb[0].mxu0
      %v2767 = vadd.f32 0.0, %v2766
      %v2768 = vpop.f32.mrb[0].mxu0
      %2769 = vmatprep.mubr.bf16.mxu0 0
      %2770 = vmatmul.mubr.bf16.gmra.mrb[0].mxu0 %v1321
      %v2771 = vpop.f32.mrb[0].mxu0
      %v2772 = vadd.f32 0.0, %v2771
      %v2773 = vpop.f32.mrb[0].mxu0
      %v2774 = vpop.f32.mrb[0].mxu0
      %v2775 = vadd.f32 0.0, %v2774
      %v2776 = vpop.f32.mrb[0].mxu0
      %2777 = vmatprep.mubr.bf16.mxu0 0
      %2778 = vmatmul.mubr.bf16.gmra.mrb[0].mxu0 %v1324
      %v2779 = vpop.f32.mrb[0].mxu0
      %v2780 = vadd.f32 0.0, %v2779
      %v2781 = vpop.f32.mrb[0].mxu0
      %v2782 = vpop.f32.mrb[0].mxu0
      %v2783 = vadd.f32 0.0, %v2782
      %v2784 = vpop.f32.mrb[0].mxu0
      %2785 = vmatprep.mubr.bf16.mxu0 0
      %2786 = vmatmul.mubr.bf16.gmra.mrb[0].mxu0 %v1985
      %v2787 = vpop.f32.mrb[0].mxu0
      %v2788 = vadd.f32 0.0, %v2787
      %v2789 = vpop.f32.mrb[0].mxu0
      %v2790 = vpop.f32.mrb[0].mxu0
      %v2791 = vadd.f32 0.0, %v2790
      %v2792 = vpop.f32.mrb[0].mxu0
      %2793 = vmatprep.mubr.bf16.mxu0 0
      %2794 = vmatmul.mubr.bf16.gmra.mrb[0].mxu0 %v1988
      %v2795 = vpop.f32.mrb[0].mxu0
      %v2796 = vadd.f32 0.0, %v2795
      %v2797 = vpop.f32.mrb[0].mxu0
      %v2798 = vpop.f32.mrb[0].mxu0
      %v2799 = vadd.f32 0.0, %v2798
      %v2800 = vpop.f32.mrb[0].mxu0
      %2801 = vmatprep.mubr.bf16.mxu0 0
      %2802 = vmatmul.mubr.bf16.gmra.mrb[0].mxu0 %v2649
      %v2803 = vpop.f32.mrb[0].mxu0
      %v2804 = vadd.f32 0.0, %v2803
      %v2805 = vpop.f32.mrb[0].mxu0
      %v2806 = vpop.f32.mrb[0].mxu0
      %v2807 = vadd.f32 0.0, %v2806
      %v2808 = vpop.f32.mrb[0].mxu0
      %2809 = vmatprep.mubr.bf16.mxu0 0
      %2810 = vmatmul.mubr.bf16.gmra.mrb[0].mxu0 %v2652
      %v2811 = vpop.f32.mrb[0].mxu0
      %v2812 = vadd.f32 0.0, %v2811
      %v2813 = vpop.f32.mrb[0].mxu0
      %v2814 = vpop.f32.mrb[0].mxu0
      %v2815 = vadd.f32 0.0, %v2814
      %v2816 = vpop.f32.mrb[0].mxu0
      %2817 = vdwg.mxu0
      %v2818 = vadd.f32 %v2594, %v2692
      %v2819 = vadd.f32 %v2595, %v2695
      %v2820 = vadd.f32 %v2596, %v2700
      %v2821 = vadd.f32 %v2597, %v2703
      %v2822 = vadd.f32 %v2598, %v2708
      %v2823 = vadd.f32 %v2599, %v2711
      %v2824 = vadd.f32 %v2600, %v2716
      %v2825 = vadd.f32 %v2601, %v2719
      %v2826 = vadd.f32 %v2602, %v2724
      %v2827 = vadd.f32 %v2603, %v2727
      %v2828 = vadd.f32 %v2604, %v2732
      %v2829 = vadd.f32 %v2605, %v2735
      %v2830 = vadd.f32 %v2606, %v2740
      %v2831 = vadd.f32 %v2607, %v2743
      %v2832 = vadd.f32 %v2608, %v2748
      %v2833 = vadd.f32 %v2609, %v2751
      %v2834 = vadd.f32 %v2610, %v2756
      %v2835 = vadd.f32 %v2611, %v2759
      %v2836 = vadd.f32 %v2612, %v2764
      %v2837 = vadd.f32 %v2613, %v2767
      %v2838 = vadd.f32 %v2614, %v2772
      %v2839 = vadd.f32 %v2615, %v2775
      %v2840 = vadd.f32 %v2616, %v2780
      %v2841 = vadd.f32 %v2617, %v2783
      %v2842 = vadd.f32 %v2618, %v2788
      %v2843 = vadd.f32 %v2619, %v2791
      %v2844 = vadd.f32 %v2620, %v2796
      %v2845 = vadd.f32 %v2621, %v2799
      %v2846 = vadd.f32 %v2622, %v2804
      %v2847 = vadd.f32 %v2623, %v2807
      %v2848 = vadd.f32 %v2624, %v2812
      %v2849 = vadd.f32 %v2625, %v2815
      %v2850 = vld [vmem:[%s3] sm:$0x1]
      %v2852 = vlaneseq
      %v2853 = vshrl.u32 %v2852, 7
      %v2854 = vsub.s32 0, %v2853
      %v2855 = vrot.slane %v2850, %v2854
      %v2857 = vadd.f32 %v2818, %v2855
      %v2858 = vadd.f32 %v2819, %v2855
      %v2859 = vadd.f32 %v2820, %v2855
      %v2860 = vadd.f32 %v2821, %v2855
      %v2861 = vadd.f32 %v2822, %v2855
      %v2862 = vadd.f32 %v2823, %v2855
      %v2863 = vadd.f32 %v2824, %v2855
      %v2864 = vadd.f32 %v2825, %v2855
      %v2865 = vadd.f32 %v2826, %v2855
      %v2866 = vadd.f32 %v2827, %v2855
      %v2867 = vadd.f32 %v2828, %v2855
      %v2868 = vadd.f32 %v2829, %v2855
      %v2869 = vadd.f32 %v2830, %v2855
      %v2870 = vadd.f32 %v2831, %v2855
      %v2871 = vadd.f32 %v2832, %v2855
      %v2872 = vadd.f32 %v2833, %v2855
      %v2873 = vadd.f32 %v2834, %v2855
      %v2874 = vadd.f32 %v2835, %v2855
      %v2875 = vadd.f32 %v2836, %v2855
      %v2876 = vadd.f32 %v2837, %v2855
      %v2877 = vadd.f32 %v2838, %v2855
      %v2878 = vadd.f32 %v2839, %v2855
      %v2879 = vadd.f32 %v2840, %v2855
      %v2880 = vadd.f32 %v2841, %v2855
      %v2881 = vadd.f32 %v2842, %v2855
      %v2882 = vadd.f32 %v2843, %v2855
      %v2883 = vadd.f32 %v2844, %v2855
      %v2884 = vadd.f32 %v2845, %v2855
      %v2885 = vadd.f32 %v2846, %v2855
      %v2886 = vadd.f32 %v2847, %v2855
      %v2887 = vadd.f32 %v2848, %v2855
      %v2888 = vadd.f32 %v2849, %v2855
      %vm2889 = vcmp.gt.f32.partialorder %v2857, 0.0
      %vm2890 = vcmp.gt.f32.partialorder %v2858, 0.0
      %vm2891 = vcmp.gt.f32.partialorder %v2859, 0.0
      %vm2892 = vcmp.gt.f32.partialorder %v2860, 0.0
      %vm2893 = vcmp.gt.f32.partialorder %v2861, 0.0
      %vm2894 = vcmp.gt.f32.partialorder %v2862, 0.0
      %vm2895 = vcmp.gt.f32.partialorder %v2863, 0.0
      %vm2896 = vcmp.gt.f32.partialorder %v2864, 0.0
      %vm2897 = vcmp.gt.f32.partialorder %v2865, 0.0
      %vm2898 = vcmp.gt.f32.partialorder %v2866, 0.0
      %vm2899 = vcmp.gt.f32.partialorder %v2867, 0.0
      %vm2900 = vcmp.gt.f32.partialorder %v2868, 0.0
      %vm2901 = vcmp.gt.f32.partialorder %v2869, 0.0
      %vm2902 = vcmp.gt.f32.partialorder %v2870, 0.0
      %vm2903 = vcmp.gt.f32.partialorder %v2871, 0.0
      %vm2904 = vcmp.gt.f32.partialorder %v2872, 0.0
      %vm2905 = vcmp.gt.f32.partialorder %v2873, 0.0
      %vm2906 = vcmp.gt.f32.partialorder %v2874, 0.0
      %vm2907 = vcmp.gt.f32.partialorder %v2875, 0.0
      %vm2908 = vcmp.gt.f32.partialorder %v2876, 0.0
      %vm2909 = vcmp.gt.f32.partialorder %v2877, 0.0
      %vm2910 = vcmp.gt.f32.partialorder %v2878, 0.0
      %vm2911 = vcmp.gt.f32.partialorder %v2879, 0.0
      %vm2912 = vcmp.gt.f32.partialorder %v2880, 0.0
      %vm2913 = vcmp.gt.f32.partialorder %v2881, 0.0
      %vm2914 = vcmp.gt.f32.partialorder %v2882, 0.0
      %vm2915 = vcmp.gt.f32.partialorder %v2883, 0.0
      %vm2916 = vcmp.gt.f32.partialorder %v2884, 0.0
      %vm2917 = vcmp.gt.f32.partialorder %v2885, 0.0
      %vm2918 = vcmp.gt.f32.partialorder %v2886, 0.0
      %vm2919 = vcmp.gt.f32.partialorder %v2887, 0.0
      %vm2920 = vcmp.gt.f32.partialorder %v2888, 0.0
      %v2921 = vmul.f32 %v2857, 0.01
      %v2922 = vmul.f32 %v2858, 0.01
      %v2923 = vmul.f32 %v2859, 0.01
      %v2924 = vmul.f32 %v2860, 0.01
      %v2925 = vmul.f32 %v2861, 0.01
      %v2926 = vmul.f32 %v2862, 0.01
      %v2927 = vmul.f32 %v2863, 0.01
      %v2928 = vmul.f32 %v2864, 0.01
      %v2929 = vmul.f32 %v2865, 0.01
      %v2930 = vmul.f32 %v2866, 0.01
      %v2931 = vmul.f32 %v2867, 0.01
      %v2932 = vmul.f32 %v2868, 0.01
      %v2933 = vmul.f32 %v2869, 0.01
      %v2934 = vmul.f32 %v2870, 0.01
      %v2935 = vmul.f32 %v2871, 0.01
      %v2936 = vmul.f32 %v2872, 0.01
      %v2937 = vmul.f32 %v2873, 0.01
      %v2938 = vmul.f32 %v2874, 0.01
      %v2939 = vmul.f32 %v2875, 0.01
      %v2940 = vmul.f32 %v2876, 0.01
      %v2941 = vmul.f32 %v2877, 0.01
      %v2942 = vmul.f32 %v2878, 0.01
      %v2943 = vmul.f32 %v2879, 0.01
      %v2944 = vmul.f32 %v2880, 0.01
      %v2945 = vmul.f32 %v2881, 0.01
      %v2946 = vmul.f32 %v2882, 0.01
      %v2947 = vmul.f32 %v2883, 0.01
      %v2948 = vmul.f32 %v2884, 0.01
      %v2949 = vmul.f32 %v2885, 0.01
      %v2950 = vmul.f32 %v2886, 0.01
      %v2951 = vmul.f32 %v2887, 0.01
      %v2952 = vmul.f32 %v2888, 0.01
      %v2953 = vsel %vm2889, %v2857, %v2921
      %v2954 = vsel %vm2890, %v2858, %v2922
      %v2955 = vsel %vm2891, %v2859, %v2923
      %v2956 = vsel %vm2892, %v2860, %v2924
      %v2957 = vsel %vm2893, %v2861, %v2925
      %v2958 = vsel %vm2894, %v2862, %v2926
      %v2959 = vsel %vm2895, %v2863, %v2927
      %v2960 = vsel %vm2896, %v2864, %v2928
      %v2961 = vsel %vm2897, %v2865, %v2929
      %v2962 = vsel %vm2898, %v2866, %v2930
      %v2963 = vsel %vm2899, %v2867, %v2931
      %v2964 = vsel %vm2900, %v2868, %v2932
      %v2965 = vsel %vm2901, %v2869, %v2933
      %v2966 = vsel %vm2902, %v2870, %v2934
      %v2967 = vsel %vm2903, %v2871, %v2935
      %v2968 = vsel %vm2904, %v2872, %v2936
      %v2969 = vsel %vm2905, %v2873, %v2937
      %v2970 = vsel %vm2906, %v2874, %v2938
      %v2971 = vsel %vm2907, %v2875, %v2939
      %v2972 = vsel %vm2908, %v2876, %v2940
      %v2973 = vsel %vm2909, %v2877, %v2941
      %v2974 = vsel %vm2910, %v2878, %v2942
      %v2975 = vsel %vm2911, %v2879, %v2943
      %v2976 = vsel %vm2912, %v2880, %v2944
      %v2977 = vsel %vm2913, %v2881, %v2945
      %v2978 = vsel %vm2914, %v2882, %v2946
      %v2979 = vsel %vm2915, %v2883, %v2947
      %v2980 = vsel %vm2916, %v2884, %v2948
      %v2981 = vsel %vm2917, %v2885, %v2949
      %v2982 = vsel %vm2918, %v2886, %v2950
      %v2983 = vsel %vm2919, %v2887, %v2951
      %v2984 = vsel %vm2920, %v2888, %v2952
      %v2985 = vsel %vm639, %v2953, 0.0
      %v2986 = vsel %vm639, %v2954, 0.0
      %v2987 = vadd.f32 %v2985, %v2986
      %v2988 = vsel %vm639, %v2955, 0.0
      %v2989 = vadd.f32 %v2987, %v2988
      %v2990 = vsel %vm639, %v2956, 0.0
      %v2991 = vadd.f32 %v2989, %v2990
      %v2992 = vsel %vm639, %v2957, 0.0
      %v2993 = vadd.f32 %v2991, %v2992
      %v2994 = vsel %vm639, %v2958, 0.0
      %v2995 = vadd.f32 %v2993, %v2994
      %v2996 = vsel %vm639, %v2959, 0.0
      %v2997 = vadd.f32 %v2995, %v2996
      %v2998 = vsel %vm639, %v2960, 0.0
      %v2999 = vadd.f32 %v2997, %v2998
      %v3000 = vsel %vm639, %v2961, 0.0
      %v3001 = vadd.f32 %v2999, %v3000
      %v3002 = vsel %vm639, %v2962, 0.0
      %v3003 = vadd.f32 %v3001, %v3002
      %v3004 = vsel %vm639, %v2963, 0.0
      %v3005 = vadd.f32 %v3003, %v3004
      %v3006 = vsel %vm639, %v2964, 0.0
      %v3007 = vadd.f32 %v3005, %v3006
      %v3008 = vsel %vm639, %v2965, 0.0
      %v3009 = vadd.f32 %v3007, %v3008
      %v3010 = vsel %vm639, %v2966, 0.0
      %v3011 = vadd.f32 %v3009, %v3010
      %v3012 = vsel %vm639, %v2967, 0.0
      %v3013 = vadd.f32 %v3011, %v3012
      %v3014 = vsel %vm639, %v2968, 0.0
      %v3015 = vadd.f32 %v3013, %v3014
      %v3016 = vsel %vm639, %v2969, 0.0
      %v3017 = vadd.f32 %v3015, %v3016
      %v3018 = vsel %vm639, %v2970, 0.0
      %v3019 = vadd.f32 %v3017, %v3018
      %v3020 = vsel %vm639, %v2971, 0.0
      %v3021 = vadd.f32 %v3019, %v3020
      %v3022 = vsel %vm639, %v2972, 0.0
      %v3023 = vadd.f32 %v3021, %v3022
      %v3024 = vsel %vm639, %v2973, 0.0
      %v3025 = vadd.f32 %v3023, %v3024
      %v3026 = vsel %vm639, %v2974, 0.0
      %v3027 = vadd.f32 %v3025, %v3026
      %v3028 = vsel %vm639, %v2975, 0.0
      %v3029 = vadd.f32 %v3027, %v3028
      %v3030 = vsel %vm639, %v2976, 0.0
      %v3031 = vadd.f32 %v3029, %v3030
      %v3032 = vsel %vm639, %v2977, 0.0
      %v3033 = vadd.f32 %v3031, %v3032
      %v3034 = vsel %vm639, %v2978, 0.0
      %v3035 = vadd.f32 %v3033, %v3034
      %v3036 = vsel %vm639, %v2979, 0.0
      %v3037 = vadd.f32 %v3035, %v3036
      %v3038 = vsel %vm639, %v2980, 0.0
      %v3039 = vadd.f32 %v3037, %v3038
      %v3040 = vsel %vm639, %v2981, 0.0
      %v3041 = vadd.f32 %v3039, %v3040
      %v3042 = vsel %vm639, %v2982, 0.0
      %v3043 = vadd.f32 %v3041, %v3042
      %v3044 = vsel %vm639, %v2983, 0.0
      %v3045 = vadd.f32 %v3043, %v3044
      %v3046 = vsel %vm639, %v2984, 0.0
      %v3047 = vadd.f32 %v3045, %v3046
      %v3048 = vrot.slane %v3047, 4
      %v3049 = vadd.f32 %v3047, %v3048
      %v3050 = vrot.slane %v3049, 2
      %v3051 = vadd.f32 %v3049, %v3050
      %v3052 = vrot.slane %v3051, 1
      %v3053 = vadd.f32 %v3051, %v3052
      %v3054 = vmul.f32 %v2953, %v2953
      %v3055 = vmul.f32 %v2954, %v2954
      %v3056 = vmul.f32 %v2955, %v2955
      %v3057 = vmul.f32 %v2956, %v2956
      %v3058 = vmul.f32 %v2957, %v2957
      %v3059 = vmul.f32 %v2958, %v2958
      %v3060 = vmul.f32 %v2959, %v2959
      %v3061 = vmul.f32 %v2960, %v2960
      %v3062 = vmul.f32 %v2961, %v2961
      %v3063 = vmul.f32 %v2962, %v2962
      %v3064 = vmul.f32 %v2963, %v2963
      %v3065 = vmul.f32 %v2964, %v2964
      %v3066 = vmul.f32 %v2965, %v2965
      %v3067 = vmul.f32 %v2966, %v2966
      %v3068 = vmul.f32 %v2967, %v2967
      %v3069 = vmul.f32 %v2968, %v2968
      %v3070 = vmul.f32 %v2969, %v2969
      %v3071 = vmul.f32 %v2970, %v2970
      %v3072 = vmul.f32 %v2971, %v2971
      %v3073 = vmul.f32 %v2972, %v2972
      %v3074 = vmul.f32 %v2973, %v2973
      %v3075 = vmul.f32 %v2974, %v2974
      %v3076 = vmul.f32 %v2975, %v2975
      %v3077 = vmul.f32 %v2976, %v2976
      %v3078 = vmul.f32 %v2977, %v2977
      %v3079 = vmul.f32 %v2978, %v2978
      %v3080 = vmul.f32 %v2979, %v2979
      %v3081 = vmul.f32 %v2980, %v2980
      %v3082 = vmul.f32 %v2981, %v2981
      %v3083 = vmul.f32 %v2982, %v2982
      %v3084 = vmul.f32 %v2983, %v2983
      %v3085 = vmul.f32 %v2984, %v2984
      %v3086 = vsel %vm639, %v3054, 0.0
      %v3087 = vsel %vm639, %v3055, 0.0
      %v3088 = vadd.f32 %v3086, %v3087
      %v3089 = vsel %vm639, %v3056, 0.0
      %v3090 = vadd.f32 %v3088, %v3089
      %v3091 = vsel %vm639, %v3057, 0.0
      %v3092 = vadd.f32 %v3090, %v3091
      %v3093 = vsel %vm639, %v3058, 0.0
      %v3094 = vadd.f32 %v3092, %v3093
      %v3095 = vsel %vm639, %v3059, 0.0
      %v3096 = vadd.f32 %v3094, %v3095
      %v3097 = vsel %vm639, %v3060, 0.0
      %v3098 = vadd.f32 %v3096, %v3097
      %v3099 = vsel %vm639, %v3061, 0.0
      %v3100 = vadd.f32 %v3098, %v3099
      %v3101 = vsel %vm639, %v3062, 0.0
      %v3102 = vadd.f32 %v3100, %v3101
      %v3103 = vsel %vm639, %v3063, 0.0
      %v3104 = vadd.f32 %v3102, %v3103
      %v3105 = vsel %vm639, %v3064, 0.0
      %v3106 = vadd.f32 %v3104, %v3105
      %v3107 = vsel %vm639, %v3065, 0.0
      %v3108 = vadd.f32 %v3106, %v3107
      %v3109 = vsel %vm639, %v3066, 0.0
      %v3110 = vadd.f32 %v3108, %v3109
      %v3111 = vsel %vm639, %v3067, 0.0
      %v3112 = vadd.f32 %v3110, %v3111
      %v3113 = vsel %vm639, %v3068, 0.0
      %v3114 = vadd.f32 %v3112, %v3113
      %v3115 = vsel %vm639, %v3069, 0.0
      %v3116 = vadd.f32 %v3114, %v3115
      %v3117 = vsel %vm639, %v3070, 0.0
      %v3118 = vadd.f32 %v3116, %v3117
      %v3119 = vsel %vm639, %v3071, 0.0
      %v3120 = vadd.f32 %v3118, %v3119
      %v3121 = vsel %vm639, %v3072, 0.0
      %v3122 = vadd.f32 %v3120, %v3121
      %v3123 = vsel %vm639, %v3073, 0.0
      %v3124 = vadd.f32 %v3122, %v3123
      %v3125 = vsel %vm639, %v3074, 0.0
      %v3126 = vadd.f32 %v3124, %v3125
      %v3127 = vsel %vm639, %v3075, 0.0
      %v3128 = vadd.f32 %v3126, %v3127
      %v3129 = vsel %vm639, %v3076, 0.0
      %v3130 = vadd.f32 %v3128, %v3129
      %v3131 = vsel %vm639, %v3077, 0.0
      %v3132 = vadd.f32 %v3130, %v3131
      %v3133 = vsel %vm639, %v3078, 0.0
      %v3134 = vadd.f32 %v3132, %v3133
      %v3135 = vsel %vm639, %v3079, 0.0
      %v3136 = vadd.f32 %v3134, %v3135
      %v3137 = vsel %vm639, %v3080, 0.0
      %v3138 = vadd.f32 %v3136, %v3137
      %v3139 = vsel %vm639, %v3081, 0.0
      %v3140 = vadd.f32 %v3138, %v3139
      %v3141 = vsel %vm639, %v3082, 0.0
      %v3142 = vadd.f32 %v3140, %v3141
      %v3143 = vsel %vm639, %v3083, 0.0
      %v3144 = vadd.f32 %v3142, %v3143
      %v3145 = vsel %vm639, %v3084, 0.0
      %v3146 = vadd.f32 %v3144, %v3145
      %v3147 = vsel %vm639, %v3085, 0.0
      %v3148 = vadd.f32 %v3146, %v3147
      %v3149 = vrot.slane %v3148, 4
      %v3150 = vadd.f32 %v3148, %v3149
      %v3151 = vrot.slane %v3150, 2
      %v3152 = vadd.f32 %v3150, %v3151
      %v3153 = vrot.slane %v3152, 1
      %v3154 = vadd.f32 %v3152, %v3153
      %vm3155 = vcmask 1040384
      %v3156 = vsel %vm3155, %v3053, %v3154
      %vm3157 = vcmask 58368
      %3158 = vst.msk [vmem:[%s363] sm:$0x3] %vm3157, %v3156
      %v3159 = vpack.c.bf16 %v2954, %v2953
      %v3160 = vpack.c.bf16 %v2956, %v2955
      %v3161 = vpack.c.bf16 %v2958, %v2957
      %v3162 = vpack.c.bf16 %v2960, %v2959
      %v3163 = vpack.c.bf16 %v2962, %v2961
      %v3164 = vpack.c.bf16 %v2964, %v2963
      %v3165 = vpack.c.bf16 %v2966, %v2965
      %v3166 = vpack.c.bf16 %v2968, %v2967
      %v3167 = vpack.c.bf16 %v2970, %v2969
      %v3168 = vpack.c.bf16 %v2972, %v2971
      %v3169 = vpack.c.bf16 %v2974, %v2973
      %v3170 = vpack.c.bf16 %v2976, %v2975
      %v3171 = vpack.c.bf16 %v2978, %v2977
      %v3172 = vpack.c.bf16 %v2980, %v2979
      %v3173 = vpack.c.bf16 %v2982, %v2981
      %v3174 = vpack.c.bf16 %v2984, %v2983
      %v3191 = vunpack.c.l.b16 %v3159
      %v3192 = vunpack.c.h.b16 %v3159
      %v3193 = vunpack.c.l.b16 %v3160
      %v3194 = vunpack.c.h.b16 %v3160
      %v3195 = vunpack.c.l.b16 %v3161
      %v3196 = vunpack.c.h.b16 %v3161
      %v3197 = vunpack.c.l.b16 %v3162
      %v3198 = vunpack.c.h.b16 %v3162
      %v3199 = vunpack.c.l.b16 %v3163
      %v3200 = vunpack.c.h.b16 %v3163
      %v3201 = vunpack.c.l.b16 %v3164
      %v3202 = vunpack.c.h.b16 %v3164
      %v3203 = vunpack.c.l.b16 %v3165
      %v3204 = vunpack.c.h.b16 %v3165
      %v3205 = vunpack.c.l.b16 %v3166
      %v3206 = vunpack.c.h.b16 %v3166
      %v3207 = vunpack.c.l.b16 %v3167
      %v3208 = vunpack.c.h.b16 %v3167
      %v3209 = vunpack.c.l.b16 %v3168
      %v3210 = vunpack.c.h.b16 %v3168
      %v3211 = vunpack.c.l.b16 %v3169
      %v3212 = vunpack.c.h.b16 %v3169
      %v3213 = vunpack.c.l.b16 %v3170
      %v3214 = vunpack.c.h.b16 %v3170
      %v3215 = vunpack.c.l.b16 %v3171
      %v3216 = vunpack.c.h.b16 %v3171
      %v3217 = vunpack.c.l.b16 %v3172
      %v3218 = vunpack.c.h.b16 %v3172
      %v3219 = vunpack.c.l.b16 %v3173
      %v3220 = vunpack.c.h.b16 %v3173
      %v3221 = vunpack.c.l.b16 %v3174
      %v3222 = vunpack.c.h.b16 %v3174
      %v3223 = vpack.c.b16 %v3191, %v3191
      %v3224 = vpack.c.b16 %v3192, %v3192
      %v3225 = vpack.c.b16 %v3193, %v3193
      %v3226 = vpack.c.b16 %v3194, %v3194
      %v3227 = vpack.c.b16 %v3195, %v3195
      %v3228 = vpack.c.b16 %v3196, %v3196
      %v3229 = vpack.c.b16 %v3197, %v3197
      %v3230 = vpack.c.b16 %v3198, %v3198
      %v3231 = vpack.c.b16 %v3199, %v3199
      %v3232 = vpack.c.b16 %v3200, %v3200
      %v3233 = vpack.c.b16 %v3201, %v3201
      %v3234 = vpack.c.b16 %v3202, %v3202
      %v3235 = vpack.c.b16 %v3203, %v3203
      %v3236 = vpack.c.b16 %v3204, %v3204
      %v3237 = vpack.c.b16 %v3205, %v3205
      %v3238 = vpack.c.b16 %v3206, %v3206
      %v3239 = vpack.c.b16 %v3207, %v3207
      %v3240 = vpack.c.b16 %v3208, %v3208
      %v3241 = vpack.c.b16 %v3209, %v3209
      %v3242 = vpack.c.b16 %v3210, %v3210
      %v3243 = vpack.c.b16 %v3211, %v3211
      %v3244 = vpack.c.b16 %v3212, %v3212
      %v3245 = vpack.c.b16 %v3213, %v3213
      %v3246 = vpack.c.b16 %v3214, %v3214
      %v3247 = vpack.c.b16 %v3215, %v3215
      %v3248 = vpack.c.b16 %v3216, %v3216
      %v3249 = vpack.c.b16 %v3217, %v3217
      %v3250 = vpack.c.b16 %v3218, %v3218
      %v3251 = vpack.c.b16 %v3219, %v3219
      %v3252 = vpack.c.b16 %v3220, %v3220
      %v3253 = vpack.c.b16 %v3221, %v3221
      %v3254 = vpack.c.b16 %v3222, %v3222
      %vm3287 = vcmask 60416
      %3288 = vst.msk [vmem:[%s355] sm:$0xf] %vm3287, %v3223
      %3289 = vst.msk [vmem:[%s355 + $0x4] sm:$0xf] %vm3287, %v3224
      %3290 = vst.msk [vmem:[%s355 + $0x8] sm:$0xf] %vm3287, %v3225
      %3291 = vst.msk [vmem:[%s355 + $0xc] sm:$0xf] %vm3287, %v3226
      %3292 = vst.msk [vmem:[%s355 + $0x10] sm:$0xf] %vm3287, %v3227
      %3293 = vst.msk [vmem:[%s355 + $0x14] sm:$0xf] %vm3287, %v3228
      %3294 = vst.msk [vmem:[%s355 + $0x18] sm:$0xf] %vm3287, %v3229
      %3295 = vst.msk [vmem:[%s355 + $0x1c] sm:$0xf] %vm3287, %v3230
      %3296 = vst.msk [vmem:[%s355 + $0x20] sm:$0xf] %vm3287, %v3231
      %3297 = vst.msk [vmem:[%s355 + $0x24] sm:$0xf] %vm3287, %v3232
      %3298 = vst.msk [vmem:[%s355 + $0x28] sm:$0xf] %vm3287, %v3233
      %3299 = vst.msk [vmem:[%s355 + $0x2c] sm:$0xf] %vm3287, %v3234
      %3300 = vst.msk [vmem:[%s355 + $0x30] sm:$0xf] %vm3287, %v3235
      %3301 = vst.msk [vmem:[%s355 + $0x34] sm:$0xf] %vm3287, %v3236
      %3302 = vst.msk [vmem:[%s355 + $0x38] sm:$0xf] %vm3287, %v3237
      %3303 = vst.msk [vmem:[%s355 + $0x3c] sm:$0xf] %vm3287, %v3238
      %3304 = vst.msk [vmem:[%s355 + $0x40] sm:$0xf] %vm3287, %v3239
      %3305 = vst.msk [vmem:[%s355 + $0x44] sm:$0xf] %vm3287, %v3240
      %3306 = vst.msk [vmem:[%s355 + $0x48] sm:$0xf] %vm3287, %v3241
      %3307 = vst.msk [vmem:[%s355 + $0x4c] sm:$0xf] %vm3287, %v3242
      %3308 = vst.msk [vmem:[%s355 + $0x50] sm:$0xf] %vm3287, %v3243
      %3309 = vst.msk [vmem:[%s355 + $0x54] sm:$0xf] %vm3287, %v3244
      %3310 = vst.msk [vmem:[%s355 + $0x58] sm:$0xf] %vm3287, %v3245
      %3311 = vst.msk [vmem:[%s355 + $0x5c] sm:$0xf] %vm3287, %v3246
      %3312 = vst.msk [vmem:[%s355 + $0x60] sm:$0xf] %vm3287, %v3247
      %3313 = vst.msk [vmem:[%s355 + $0x64] sm:$0xf] %vm3287, %v3248
      %3314 = vst.msk [vmem:[%s355 + $0x68] sm:$0xf] %vm3287, %v3249
      %3315 = vst.msk [vmem:[%s355 + $0x6c] sm:$0xf] %vm3287, %v3250
      %3316 = vst.msk [vmem:[%s355 + $0x70] sm:$0xf] %vm3287, %v3251
      %3317 = vst.msk [vmem:[%s355 + $0x74] sm:$0xf] %vm3287, %v3252
      %3318 = vst.msk [vmem:[%s355 + $0x78] sm:$0xf] %vm3287, %v3253
      %3319 = vst.msk [vmem:[%s355 + $0x7c] sm:$0xf] %vm3287, %v3254
      %s3320 = smul.u32 32, %s22
      %p3321 = scmp.lt.s32.totalorder %s21, 1
      %s3322 = scalar_select %p3321, %s21, 1
      %p3323 = scmp.lt.s32.totalorder %s3320, 31
      %s3324 = scalar_select %p3323, %s3320, 31
      %s3325 = smul.addr %s3322, 32
      %s3326 = sadd.s32 %s3324, %s3325
      %s3327 = smul.addr %s3326, 4
      %s3328 = scalar_lea.vmem %s4, %s3327
      %p3329 = scmp.lt.s32.totalorder %s21, 1
      %s3330 = scalar_select %p3329, %s21, 1
      %p3331 = scmp.lt.s32.totalorder %s22, 0
      %s3332 = scalar_select %p3331, %s22, 0
      %s3333 = sadd.s32 %s3332, %s3330
      %s3334 = smul.addr %s3333, 2
      %s3335 = scalar_lea.vmem %s5, %s3334
      // Predicated region
      $region37: #{upblock_forward.7} parent=35 // pred_check
        %p3336 = pneg %p151
      $region38: #{upblock_forward.7} parent=35 // pred_check_branch
        %3338 = sbr.rel (%p3336) target = $region40
      $region39: #{upblock_forward.7} parent=35 // pred_region
        %s3339 = smul.u32 32, %s22
      $region40: #{upblock_forward.7} parent=35 // pred_fallthru
        _
      // Predicated region
      $region41: #{upblock_forward.7} parent=35 // pred_check
        %p3340 = pneg %p179
      $region42: #{upblock_forward.7} parent=35 // pred_check_branch
        %3342 = sbr.rel (%p3340) target = $region44
      $region43: #{upblock_forward.7} parent=35 // pred_region
        _
      $region44: #{upblock_forward.7} parent=35 // pred_fallthru
        _
    $region36: #{upblock_forward.7} parent=5 // pred_fallthru
      _
    %p3343 = scmp.le.s32.totalorder 2, %s12
    // Predicated region
    $region45: #{upblock_forward.7} parent=5 // pred_check
      %p3344 = pneg %p3343
    $region46: #{upblock_forward.7} parent=5 // pred_check_branch
      %3346 = sbr.rel (%p3344) target = $region48
    $region47: #{upblock_forward.7} parent=5 // pred_region
      %s3347 = ssub.s32 %s12, 2
      // Predicated region
      $region49: #{upblock_forward.7} parent=47 // pred_check
        %p3348 = pneg %p157
      $region50: #{upblock_forward.7} parent=47 // pred_check_branch
        %3350 = sbr.rel (%p3348) target = $region52
      $region51: #{upblock_forward.7} parent=47 // pred_region
        %s3351 = smul.u32 32, %s24
        %p3352 = scmp.lt.s32.totalorder %s23, 1
        %s3353 = scalar_select %p3352, %s23, 1
        %p3354 = scmp.lt.s32.totalorder %s3351, 31
        %s3355 = scalar_select %p3354, %s3351, 31
        %s3356 = smul.addr %s3353, 32
        %s3357 = sadd.s32 %s3355, %s3356
        %s3358 = smul.addr %s3357, 4
        %s3359 = scalar_lea.vmem %s4, %s3358
      $region52: #{upblock_forward.7} parent=47 // pred_fallthru
        _
      // Predicated region
      $region53: #{upblock_forward.7} parent=47 // pred_check
        %p3360 = pneg %p185
      $region54: #{upblock_forward.7} parent=47 // pred_check_branch
        %3362 = sbr.rel (%p3360) target = $region56
      $region55: #{upblock_forward.7} parent=47 // pred_region
        %p3363 = scmp.lt.s32.totalorder %s23, 1
        %s3364 = scalar_select %p3363, %s23, 1
        %p3365 = scmp.lt.s32.totalorder %s24, 0
        %s3366 = scalar_select %p3365, %s24, 0
        %s3367 = sadd.s32 %s3366, %s3364
        %s3368 = smul.addr %s3367, 2
        %s3369 = scalar_lea.vmem %s5, %s3368
      $region56: #{upblock_forward.7} parent=47 // pred_fallthru
        _
    $region48: #{upblock_forward.7} parent=5 // pred_fallthru
      _
  $region6: #{upblock_forward.7} parent=0 // loop_footer
    %s16 = sadd.s32 1, %s12
  $region7: #{upblock_forward.7} parent=0 // loop_footer_branch
    %11 = sbr.rel target = $region3
  $region8: #{upblock_forward.7} parent=0 // loop_exit
    _

// kernel: upblock_forward.9
$region0: #{upblock_forward.9}
  #allocation0 [shape = 'u32[]', space=smem, size = 0x4, offset = 0x4, fixed_abs, tag = 'smem constant byte address 0x4 - core index']
  #allocation1 [shape = 'u32[144,128]{1,0:T(1,128)}', space=vmem, size = 0x12000, scoped, tag = 'internal scratch']
  %s0 = inlined_call_operand.vmem [shape: bf16[2,256,8], index: 0, kind: input, shape index: {}]
  %s1 = inlined_call_operand.vmem [shape: bf16[2,256,8], index: 1, kind: input, shape index: {}]
  %s2 = inlined_call_operand.vmem [shape: bf16[2,256,8], index: 2, kind: input, shape index: {}]
  %s3 = inlined_call_operand.vmem [shape: f32[2,3,8], index: 3, kind: input, shape index: {}]
  %s4 = inlined_call_operand.vmem [shape: f32[2,3,8], index: 4, kind: input, shape index: {}]
  %s5 = inlined_call_operand.vmem [shape: bf16[3,8,8], index: 5, kind: input, shape index: {}]
  %s6 = inlined_call_operand.vmem [shape: f32[1,8], index: 6, kind: input, shape index: {}]
  %s7 = inlined_call_operand.vmem [shape: f32[2,256,8], index: 7, kind: output, shape index: {0}]
  %s8 = inlined_call_operand.vmem [shape: f32[2,1,2,8], index: 8, kind: output, shape index: {1}]
  %9 = xla_tuple %s7, %s8
  %s10 = sld [smem:[#allocation0]]
  $region69: #{upblock_forward.9} parent=0
    _
  %s12 = ssub.s32 1, %s10
  %s13 = scalar_select 0, %s12, %s10
  loop: start=0, step=1, limit=4
  $region2: #{upblock_forward.9} parent=0 // loop_pre_header
    _
  $region3: #{upblock_forward.9} parent=0 // loop_header
    %s15 = sphi 0, %s19
    %p16 = scmp.ge.s32.totalorder %s15, 4
    %s22 = sphi 0, %s34
    %s23 = sphi 0, %s30
    %s24 = sphi 0, %s22
    %s25 = sphi 0, %s23
    %s26 = sphi 0, %s24
    %s27 = sphi 0, %s25
    %s39 = sphi 0, %s41
    %s42 = sphi 0, %s39
    %s43 = sphi 0, %s42
    %s59 = sphi 0, %s43
    %s67 = sphi 0, %s69
    %s70 = sphi 0, %s67
    %s71 = sphi 0, %s70
    %s87 = sphi 0, %s71
    %s95 = sphi 0, %s97
    %s98 = sphi 0, %s95
    %s99 = sphi 0, %s98
    %s115 = sphi 0, %s99
    %s121 = sphi 0, %s123
    %s124 = sphi 0, %s121
    %s125 = sphi 0, %s124
    %s141 = sphi 0, %s125
    %s147 = sphi 0, %s149
    %s150 = sphi 0, %s147
    %s151 = sphi 0, %s150
    %s167 = sphi 0, %s151
    %s171 = sphi 0, %s171
    %s173 = sphi 0, %s171
    %s174 = sphi 0, %s173
    %s188 = sphi 0, %s174
    %s192 = sphi 0, %s192
    %s194 = sphi 0, %s192
    %s195 = sphi 0, %s194
    %s209 = sphi 0, %s195
    %s217 = sphi 0, %s219
    %s220 = sphi 0, %s217
    %s221 = sphi 0, %s220
    %s237 = sphi 0, %s221
    %s245 = sphi 0, %s247
    %s248 = sphi 0, %s245
    %s249 = sphi 0, %s248
    %s265 = sphi 0, %s249
  $region4: #{upblock_forward.9} parent=0 // loop_header_branch
    %18 = sbr.rel (%p16) target = $region8
  $region5: #{upblock_forward.9} parent=0 // loop_body
    %s20 = ssub.s32 %s15, 1
    %s21 = ssub.s32 %s15, 2
    %s28 = sadd.s32 1, %s23
    %p29 = scmp.ge.s32.totalorder %s28, 1
    %s30 = scalar_select %p29, 0, %s28
    %s31 = sadd.s32 1, %s22
    %s32 = scalar_select %p29, %s31, %s22
    %p33 = scmp.ge.s32.totalorder %s32, 2
    %s34 = scalar_select %p33, 0, %s32
    %s35 = ssub.s32 %s22, %s34
    %s36 = ssub.s32 %s23, %s30
    %s37 = sor.u32 %s35, %s36
    %p38 = scmp.eq.s32.totalorder %s37, 0
    %s40 = sadd.s32 %s39, 1
    %s41 = scalar_select %p38, %s39, %s40
    %p44 = pneg %p38
    %p45 = scmp.eq.s32.totalorder %s15, 1
    %p46 = por %p44, %p45
    %p47 = scmp.ne.s32.totalorder %s39, %s42
    %p48 = scmp.eq.s32.totalorder %s15, 0
    %p49 = por %p47, %p48
    %p50 = scmp.ne.s32.totalorder %s39, %s42
    %p51 = scmp.eq.s32.totalorder %s20, 1
    %p52 = por %p50, %p51
    %p53 = scmp.ne.s32.totalorder %s42, %s43
    %p54 = scmp.eq.s32.totalorder %s20, 0
    %p55 = por %p53, %p54
    %p56 = scmp.ne.s32.totalorder %s42, %s43
    %p57 = scmp.eq.s32.totalorder %s21, 1
    %p58 = por %p56, %p57
    %p60 = scmp.ne.s32.totalorder %s43, %s59
    %p61 = scmp.eq.s32.totalorder %s21, 0
    %p62 = por %p60, %p61
    %s63 = ssub.s32 %s22, %s34
    %s64 = ssub.s32 %s23, %s30
    %s65 = sor.u32 %s63, %s64
    %p66 = scmp.eq.s32.totalorder %s65, 0
    %s68 = sadd.s32 %s67, 1
    %s69 = scalar_select %p66, %s67, %s68
    %p72 = pneg %p66
    %p73 = scmp.eq.s32.totalorder %s15, 1
    %p74 = por %p72, %p73
    %p75 = scmp.ne.s32.totalorder %s67, %s70
    %p76 = scmp.eq.s32.totalorder %s15, 0
    %p77 = por %p75, %p76
    %p78 = scmp.ne.s32.totalorder %s67, %s70
    %p79 = scmp.eq.s32.totalorder %s20, 1
    %p80 = por %p78, %p79
    %p81 = scmp.ne.s32.totalorder %s70, %s71
    %p82 = scmp.eq.s32.totalorder %s20, 0
    %p83 = por %p81, %p82
    %p84 = scmp.ne.s32.totalorder %s70, %s71
    %p85 = scmp.eq.s32.totalorder %s21, 1
    %p86 = por %p84, %p85
    %p88 = scmp.ne.s32.totalorder %s71, %s87
    %p89 = scmp.eq.s32.totalorder %s21, 0
    %p90 = por %p88, %p89
    %s91 = ssub.s32 %s22, %s34
    %s92 = ssub.s32 %s23, %s30
    %s93 = sor.u32 %s91, %s92
    %p94 = scmp.eq.s32.totalorder %s93, 0
    %s96 = sadd.s32 %s95, 1
    %s97 = scalar_select %p94, %s95, %s96
    %p100 = pneg %p94
    %p101 = scmp.eq.s32.totalorder %s15, 1
    %p102 = por %p100, %p101
    %p103 = scmp.ne.s32.totalorder %s95, %s98
    %p104 = scmp.eq.s32.totalorder %s15, 0
    %p105 = por %p103, %p104
    %p106 = scmp.ne.s32.totalorder %s95, %s98
    %p107 = scmp.eq.s32.totalorder %s20, 1
    %p108 = por %p106, %p107
    %p109 = scmp.ne.s32.totalorder %s98, %s99
    %p110 = scmp.eq.s32.totalorder %s20, 0
    %p111 = por %p109, %p110
    %p112 = scmp.ne.s32.totalorder %s98, %s99
    %p113 = scmp.eq.s32.totalorder %s21, 1
    %p114 = por %p112, %p113
    %p116 = scmp.ne.s32.totalorder %s99, %s115
    %p117 = scmp.eq.s32.totalorder %s21, 0
    %p118 = por %p116, %p117
    %s119 = ssub.s32 %s22, %s34
    %p120 = scmp.eq.s32.totalorder %s119, 0
    %s122 = sadd.s32 %s121, 1
    %s123 = scalar_select %p120, %s121, %s122
    %p126 = pneg %p120
    %p127 = scmp.eq.s32.totalorder %s15, 1
    %p128 = por %p126, %p127
    %p129 = scmp.ne.s32.totalorder %s121, %s124
    %p130 = scmp.eq.s32.totalorder %s15, 0
    %p131 = por %p129, %p130
    %p132 = scmp.ne.s32.totalorder %s121, %s124
    %p133 = scmp.eq.s32.totalorder %s20, 1
    %p134 = por %p132, %p133
    %p135 = scmp.ne.s32.totalorder %s124, %s125
    %p136 = scmp.eq.s32.totalorder %s20, 0
    %p137 = por %p135, %p136
    %p138 = scmp.ne.s32.totalorder %s124, %s125
    %p139 = scmp.eq.s32.totalorder %s21, 1
    %p140 = por %p138, %p139
    %p142 = scmp.ne.s32.totalorder %s125, %s141
    %p143 = scmp.eq.s32.totalorder %s21, 0
    %p144 = por %p142, %p143
    %s145 = ssub.s32 %s22, %s34
    %p146 = scmp.eq.s32.totalorder %s145, 0
    %s148 = sadd.s32 %s147, 1
    %s149 = scalar_select %p146, %s147, %s148
    %p152 = pneg %p146
    %p153 = scmp.eq.s32.totalorder %s15, 1
    %p154 = por %p152, %p153
    %p155 = scmp.ne.s32.totalorder %s147, %s150
    %p156 = scmp.eq.s32.totalorder %s15, 0
    %p157 = por %p155, %p156
    %p158 = scmp.ne.s32.totalorder %s147, %s150
    %p159 = scmp.eq.s32.totalorder %s20, 1
    %p160 = por %p158, %p159
    %p161 = scmp.ne.s32.totalorder %s150, %s151
    %p162 = scmp.eq.s32.totalorder %s20, 0
    %p163 = por %p161, %p162
    %p164 = scmp.ne.s32.totalorder %s150, %s151
    %p165 = scmp.eq.s32.totalorder %s21, 1
    %p166 = por %p164, %p165
    %p168 = scmp.ne.s32.totalorder %s151, %s167
    %p169 = scmp.eq.s32.totalorder %s21, 0
    %p170 = por %p168, %p169
    %s172 = sadd.s32 %s171, 1
    %p175 = scmp.eq.s32.totalorder %s15, 1
    %p176 = scmp.ne.s32.totalorder %s171, %s173
    %p177 = scmp.eq.s32.totalorder %s15, 0
    %p178 = por %p176, %p177
    %p179 = scmp.ne.s32.totalorder %s171, %s173
    %p180 = scmp.eq.s32.totalorder %s20, 1
    %p181 = por %p179, %p180
    %p182 = scmp.ne.s32.totalorder %s173, %s174
    %p183 = scmp.eq.s32.totalorder %s20, 0
    %p184 = por %p182, %p183
    %p185 = scmp.ne.s32.totalorder %s173, %s174
    %p186 = scmp.eq.s32.totalorder %s21, 1
    %p187 = por %p185, %p186
    %p189 = scmp.ne.s32.totalorder %s174, %s188
    %p190 = scmp.eq.s32.totalorder %s21, 0
    %p191 = por %p189, %p190
    %s193 = sadd.s32 %s192, 1
    %p196 = scmp.eq.s32.totalorder %s15, 1
    %p197 = scmp.ne.s32.totalorder %s192, %s194
    %p198 = scmp.eq.s32.totalorder %s15, 0
    %p199 = por %p197, %p198
    %p200 = scmp.ne.s32.totalorder %s192, %s194
    %p201 = scmp.eq.s32.totalorder %s20, 1
    %p202 = por %p200, %p201
    %p203 = scmp.ne.s32.totalorder %s194, %s195
    %p204 = scmp.eq.s32.totalorder %s20, 0
    %p205 = por %p203, %p204
    %p206 = scmp.ne.s32.totalorder %s194, %s195
    %p207 = scmp.eq.s32.totalorder %s21, 1
    %p208 = por %p206, %p207
    %p210 = scmp.ne.s32.totalorder %s195, %s209
    %p211 = scmp.eq.s32.totalorder %s21, 0
    %p212 = por %p210, %p211
    %s213 = ssub.s32 %s22, %s34
    %s214 = ssub.s32 %s23, %s30
    %s215 = sor.u32 %s213, %s214
    %p216 = scmp.eq.s32.totalorder %s215, 0
    %s218 = sadd.s32 %s217, 1
    %s219 = scalar_select %p216, %s217, %s218
    %p222 = pneg %p216
    %p223 = scmp.eq.s32.totalorder %s15, 1
    %p224 = por %p222, %p223
    %p225 = scmp.ne.s32.totalorder %s217, %s220
    %p226 = scmp.eq.s32.totalorder %s15, 0
    %p227 = por %p225, %p226
    %p228 = scmp.ne.s32.totalorder %s217, %s220
    %p229 = scmp.eq.s32.totalorder %s20, 1
    %p230 = por %p228, %p229
    %p231 = scmp.ne.s32.totalorder %s220, %s221
    %p232 = scmp.eq.s32.totalorder %s20, 0
    %p233 = por %p231, %p232
    %p234 = scmp.ne.s32.totalorder %s220, %s221
    %p235 = scmp.eq.s32.totalorder %s21, 1
    %p236 = por %p234, %p235
    %p238 = scmp.ne.s32.totalorder %s221, %s237
    %p239 = scmp.eq.s32.totalorder %s21, 0
    %p240 = por %p238, %p239
    %s241 = ssub.s32 %s22, %s34
    %s242 = ssub.s32 %s23, %s30
    %s243 = sor.u32 %s241, %s242
    %p244 = scmp.eq.s32.totalorder %s243, 0
    %s246 = sadd.s32 %s245, 1
    %s247 = scalar_select %p244, %s245, %s246
    %p250 = pneg %p244
    %p251 = scmp.eq.s32.totalorder %s15, 1
    %p252 = por %p250, %p251
    %p253 = scmp.ne.s32.totalorder %s245, %s248
    %p254 = scmp.eq.s32.totalorder %s15, 0
    %p255 = por %p253, %p254
    %p256 = scmp.ne.s32.totalorder %s245, %s248
    %p257 = scmp.eq.s32.totalorder %s20, 1
    %p258 = por %p256, %p257
    %p259 = scmp.ne.s32.totalorder %s248, %s249
    %p260 = scmp.eq.s32.totalorder %s20, 0
    %p261 = por %p259, %p260
    %p262 = scmp.ne.s32.totalorder %s248, %s249
    %p263 = scmp.eq.s32.totalorder %s21, 1
    %p264 = por %p262, %p263
    %p266 = scmp.ne.s32.totalorder %s249, %s265
    %p267 = scmp.eq.s32.totalorder %s21, 0
    %p268 = por %p266, %p267
    %p269 = scmp.le.s32.totalorder 1, %s15
    %p270 = scmp.lt.s32.totalorder %s15, 3
    %p271 = pnand %p269, %p270
    %p272 = pneg %p271
    // Predicated region
    $region9: #{upblock_forward.9} parent=5 // pred_check
      _
    $region10: #{upblock_forward.9} parent=5 // pred_check_branch
      %274 = sbr.rel (%p271) target = $region12
    $region11: #{upblock_forward.9} parent=5 // pred_region
      %s275 = ssub.s32 %s15, 1
      // Predicated region
      $region13: #{upblock_forward.9} parent=11 // pred_check
        %p276 = pneg %p184
      $region14: #{upblock_forward.9} parent=11 // pred_check_branch
        %278 = sbr.rel (%p276) target = $region16
      $region15: #{upblock_forward.9} parent=11 // pred_region
        _
      $region16: #{upblock_forward.9} parent=11 // pred_fallthru
        _
      // Predicated region
      $region17: #{upblock_forward.9} parent=11 // pred_check
        %p279 = pneg %p205
      $region18: #{upblock_forward.9} parent=11 // pred_check_branch
        %281 = sbr.rel (%p279) target = $region20
      $region19: #{upblock_forward.9} parent=11 // pred_region
        _
      $region20: #{upblock_forward.9} parent=11 // pred_fallthru
        _
    $region12: #{upblock_forward.9} parent=5 // pred_fallthru
      _
    %p282 = scmp.lt.s32.totalorder %s15, 2
    // Predicated region
    $region21: #{upblock_forward.9} parent=5 // pred_check
      %p283 = pneg %p282
    $region22: #{upblock_forward.9} parent=5 // pred_check_branch
      %285 = sbr.rel (%p283) target = $region24
    $region23: #{upblock_forward.9} parent=5 // pred_region
      // Predicated region
      $region25: #{upblock_forward.9} parent=23 // pred_check
        %p286 = pneg %p49
      $region26: #{upblock_forward.9} parent=23 // pred_check_branch
        %288 = sbr.rel (%p286) target = $region28
      $region27: #{upblock_forward.9} parent=23 // pred_region
        %s289 = smul.u32 32, %s23
        %p290 = scmp.lt.s32.totalorder %s22, 1
        %s291 = scalar_select %p290, %s22, 1
        %p292 = scmp.lt.s32.totalorder %s289, 31
        %s293 = scalar_select %p292, %s289, 31
        %s294 = smul.addr %s291, 32
        %s295 = sadd.s32 %s293, %s294
        %s296 = smul.addr %s295, 4
        %s297 = scalar_lea.vmem %s0, %s296
        %s298 = smul.u32 32, %s23
      $region28: #{upblock_forward.9} parent=23 // pred_fallthru
        _
      // Predicated region
      $region29: #{upblock_forward.9} parent=23 // pred_check
        %p299 = pneg %p77
      $region30: #{upblock_forward.9} parent=23 // pred_check_branch
        %301 = sbr.rel (%p299) target = $region32
      $region31: #{upblock_forward.9} parent=23 // pred_region
        %s302 = smul.u32 32, %s23
        %p303 = scmp.lt.s32.totalorder %s22, 1
        %s304 = scalar_select %p303, %s22, 1
        %p305 = scmp.lt.s32.totalorder %s302, 31
        %s306 = scalar_select %p305, %s302, 31
        %s307 = smul.addr %s304, 32
        %s308 = sadd.s32 %s306, %s307
        %s309 = smul.addr %s308, 4
        %s310 = scalar_lea.vmem %s1, %s309
        %s311 = smul.u32 32, %s23
      $region32: #{upblock_forward.9} parent=23 // pred_fallthru
        _
      // Predicated region
      $region33: #{upblock_forward.9} parent=23 // pred_check
        %p312 = pneg %p105
      $region34: #{upblock_forward.9} parent=23 // pred_check_branch
        %314 = sbr.rel (%p312) target = $region36
      $region35: #{upblock_forward.9} parent=23 // pred_region
        %s315 = smul.u32 32, %s23
        %p316 = scmp.lt.s32.totalorder %s22, 1
        %s317 = scalar_select %p316, %s22, 1
        %p318 = scmp.lt.s32.totalorder %s315, 31
        %s319 = scalar_select %p318, %s315, 31
        %s320 = smul.addr %s317, 32
        %s321 = sadd.s32 %s319, %s320
        %s322 = smul.addr %s321, 4
        %s323 = scalar_lea.vmem %s2, %s322
        %s324 = smul.u32 32, %s23
      $region36: #{upblock_forward.9} parent=23 // pred_fallthru
        _
      // Predicated region
      $region37: #{upblock_forward.9} parent=23 // pred_check
        %p325 = pneg %p131
      $region38: #{upblock_forward.9} parent=23 // pred_check_branch
        %327 = sbr.rel (%p325) target = $region40
      $region39: #{upblock_forward.9} parent=23 // pred_region
        %p328 = scmp.lt.s32.totalorder %s22, 1
        %s329 = scalar_select %p328, %s22, 1
        %s330 = smul.addr %s329, 4
        %s331 = scalar_lea.vmem %s3, %s330
      $region40: #{upblock_forward.9} parent=23 // pred_fallthru
        _
      // Predicated region
      $region41: #{upblock_forward.9} parent=23 // pred_check
        %p332 = pneg %p157
      $region42: #{upblock_forward.9} parent=23 // pred_check_branch
        %334 = sbr.rel (%p332) target = $region44
      $region43: #{upblock_forward.9} parent=23 // pred_region
        %p335 = scmp.lt.s32.totalorder %s22, 1
        %s336 = scalar_select %p335, %s22, 1
        %s337 = smul.addr %s336, 4
        %s338 = scalar_lea.vmem %s4, %s337
      $region44: #{upblock_forward.9} parent=23 // pred_fallthru
        _
    $region24: #{upblock_forward.9} parent=5 // pred_fallthru
      _
    %p339 = scmp.le.s32.totalorder 1, %s15
    %p340 = scmp.lt.s32.totalorder %s15, 3
    %p341 = pnand %p339, %p340
    %p342 = pneg %p341
    // Predicated region
    $region45: #{upblock_forward.9} parent=5 // pred_check
      _
    $region46: #{upblock_forward.9} parent=5 // pred_check_branch
      %344 = sbr.rel (%p341) target = $region48
    $region47: #{upblock_forward.9} parent=5 // pred_region
      %s345 = ssub.s32 %s15, 1
      %s346 = smul.u32 32, %s25
      %p347 = scmp.lt.s32.totalorder %s24, 1
      %s348 = scalar_select %p347, %s24, 1
      %p349 = scmp.lt.s32.totalorder %s346, 31
      %s350 = scalar_select %p349, %s346, 31
      %s351 = smul.addr %s348, 32
      %s352 = sadd.s32 %s350, %s351
      %s353 = smul.addr %s352, 4
      %s354 = scalar_lea.vmem %s0, %s353
      %p355 = pneg %p55
      %p356 = pneg %p52
      %s357 = smul.u32 32, %s25
      %p358 = scmp.lt.s32.totalorder %s24, 1
      %s359 = scalar_select %p358, %s24, 1
      %p360 = scmp.lt.s32.totalorder %s357, 31
      %s361 = scalar_select %p360, %s357, 31
      %s362 = smul.addr %s359, 32
      %s363 = sadd.s32 %s361, %s362
      %s364 = smul.addr %s363, 4
      %s365 = scalar_lea.vmem %s1, %s364
      %p366 = pneg %p83
      %p367 = pneg %p80
      %s368 = smul.u32 32, %s25
      %p369 = scmp.lt.s32.totalorder %s24, 1
      %s370 = scalar_select %p369, %s24, 1
      %p371 = scmp.lt.s32.totalorder %s368, 31
      %s372 = scalar_select %p371, %s368, 31
      %s373 = smul.addr %s370, 32
      %s374 = sadd.s32 %s372, %s373
      %s375 = smul.addr %s374, 4
      %s376 = scalar_lea.vmem %s2, %s375
      %p377 = pneg %p111
      %p378 = pneg %p108
      %p379 = scmp.lt.s32.totalorder %s24, 1
      %s380 = scalar_select %p379, %s24, 1
      %s381 = smul.addr %s380, 4
      %s382 = scalar_lea.vmem %s3, %s381
      %p383 = pneg %p137
      %p384 = pneg %p134
      %p385 = scmp.lt.s32.totalorder %s24, 1
      %s386 = scalar_select %p385, %s24, 1
      %s387 = smul.addr %s386, 4
      %s388 = scalar_lea.vmem %s4, %s387
      %p389 = pneg %p163
      %p390 = pneg %p160
      %p391 = pneg %p184
      %p392 = pneg %p181
      %p393 = pneg %p205
      %p394 = pneg %p202
      %p395 = pneg %p233
      %p396 = pneg %p230
      %s397 = smul.u32 32, %s25
      %p398 = scmp.lt.s32.totalorder %s24, 1
      %s399 = scalar_select %p398, %s24, 1
      %p400 = scmp.lt.s32.totalorder %s397, 31
      %s401 = scalar_select %p400, %s397, 31
      %s402 = smul.addr %s399, 32
      %s403 = sadd.s32 %s401, %s402
      %s404 = smul.addr %s403, 8
      %s405 = scalar_lea.vmem %s7, %s404
      %p406 = pneg %p261
      %p407 = pneg %p258
      %p408 = scmp.lt.s32.totalorder %s24, 1
      %s409 = scalar_select %p408, %s24, 1
      %p410 = scmp.lt.s32.totalorder %s25, 0
      %s411 = scalar_select %p410, %s25, 0
      %s412 = sadd.s32 %s411, %s409
      %s413 = smul.addr %s412, 2
      %s414 = scalar_lea.vmem %s8, %s413
      %s415 = smul.u32 32, %s25
      %p416 = scmp.lt.s32.totalorder %s24, 1
      %s417 = scalar_select %p416, %s24, 1
      %p418 = scmp.lt.s32.totalorder %s415, 31
      %s419 = scalar_select %p418, %s415, 31
      %s420 = smul.addr %s417, 32
      %s421 = sadd.s32 %s419, %s420
      %s422 = smul.addr %s421, 4
      %s423 = scalar_lea.vmem %s0, %s422
      %s424 = smul.u32 32, %s25
      %s425 = smul.u32 32, %s25
      %p426 = scmp.lt.s32.totalorder %s24, 1
      %s427 = scalar_select %p426, %s24, 1
      %p428 = scmp.lt.s32.totalorder %s425, 31
      %s429 = scalar_select %p428, %s425, 31
      %s430 = smul.addr %s427, 32
      %s431 = sadd.s32 %s429, %s430
      %s432 = smul.addr %s431, 4
      %s433 = scalar_lea.vmem %s1, %s432
      %s434 = smul.u32 32, %s25
      %s435 = smul.u32 32, %s25
      %p436 = scmp.lt.s32.totalorder %s24, 1
      %s437 = scalar_select %p436, %s24, 1
      %p438 = scmp.lt.s32.totalorder %s435, 31
      %s439 = scalar_select %p438, %s435, 31
      %s440 = smul.addr %s437, 32
      %s441 = sadd.s32 %s439, %s440
      %s442 = smul.addr %s441, 4
      %s443 = scalar_lea.vmem %s2, %s442
      %s444 = smul.u32 32, %s25
      %p445 = scmp.lt.s32.totalorder %s24, 1
      %s446 = scalar_select %p445, %s24, 1
      %s447 = smul.addr %s446, 4
      %s448 = scalar_lea.vmem %s3, %s447
      %p449 = scmp.lt.s32.totalorder %s24, 1
      %s450 = scalar_select %p449, %s24, 1
      %s451 = smul.addr %s450, 4
      %s452 = scalar_lea.vmem %s4, %s451
      %s453 = smul.u32 32, %s25
      %p454 = scmp.lt.s32.totalorder %s24, 1
      %s455 = scalar_select %p454, %s24, 1
      %p456 = scmp.lt.s32.totalorder %s453, 31
      %s457 = scalar_select %p456, %s453, 31
      %s458 = smul.addr %s455, 32
      %s459 = sadd.s32 %s457, %s458
      %s460 = smul.addr %s459, 8
      %s461 = scalar_lea.vmem %s7, %s460
      %s462 = smul.u32 32, %s25
      %p463 = scmp.lt.s32.totalorder %s24, 1
      %s464 = scalar_select %p463, %s24, 1
      %p465 = scmp.lt.s32.totalorder %s25, 0
      %s466 = scalar_select %p465, %s25, 0
      %s467 = sadd.s32 %s466, %s464
      %s468 = smul.addr %s467, 2
      %s469 = scalar_lea.vmem %s8, %s468
      %v471 = vld [vmem:[%s448] sm:$0x7]
      %v472 = vld [vmem:[%s452] sm:$0x7]
      %v473 = vld [vmem:[%s423] sm:$0xf]
      %v474 = vld [vmem:[%s423 + $0x4] sm:$0xf]
      %v475 = vld [vmem:[%s423 + $0x8] sm:$0xf]
      %v476 = vld [vmem:[%s423 + $0xc] sm:$0xf]
      %v477 = vld [vmem:[%s423 + $0x10] sm:$0xf]
      %v478 = vld [vmem:[%s423 + $0x14] sm:$0xf]
      %v479 = vld [vmem:[%s423 + $0x18] sm:$0xf]
      %v480 = vld [vmem:[%s423 + $0x1c] sm:$0xf]
      %v481 = vld [vmem:[%s423 + $0x20] sm:$0xf]
      %v482 = vld [vmem:[%s423 + $0x24] sm:$0xf]
      %v483 = vld [vmem:[%s423 + $0x28] sm:$0xf]
      %v484 = vld [vmem:[%s423 + $0x2c] sm:$0xf]
      %v485 = vld [vmem:[%s423 + $0x30] sm:$0xf]
      %v486 = vld [vmem:[%s423 + $0x34] sm:$0xf]
      %v487 = vld [vmem:[%s423 + $0x38] sm:$0xf]
      %v488 = vld [vmem:[%s423 + $0x3c] sm:$0xf]
      %v489 = vld [vmem:[%s423 + $0x40] sm:$0xf]
      %v490 = vld [vmem:[%s423 + $0x44] sm:$0xf]
      %v491 = vld [vmem:[%s423 + $0x48] sm:$0xf]
      %v492 = vld [vmem:[%s423 + $0x4c] sm:$0xf]
      %v493 = vld [vmem:[%s423 + $0x50] sm:$0xf]
      %v494 = vld [vmem:[%s423 + $0x54] sm:$0xf]
      %v495 = vld [vmem:[%s423 + $0x58] sm:$0xf]
      %v496 = vld [vmem:[%s423 + $0x5c] sm:$0xf]
      %v497 = vld [vmem:[%s423 + $0x60] sm:$0xf]
      %v498 = vld [vmem:[%s423 + $0x64] sm:$0xf]
      %v499 = vld [vmem:[%s423 + $0x68] sm:$0xf]
      %v500 = vld [vmem:[%s423 + $0x6c] sm:$0xf]
      %v501 = vld [vmem:[%s423 + $0x70] sm:$0xf]
      %v502 = vld [vmem:[%s423 + $0x74] sm:$0xf]
      %v503 = vld [vmem:[%s423 + $0x78] sm:$0xf]
      %v504 = vld [vmem:[%s423 + $0x7c] sm:$0xf]
      %v505 = vunpack.c.l.bf16 %v473
      %v506 = vunpack.c.l.bf16 %v474
      %v507 = vunpack.c.l.bf16 %v475
      %v508 = vunpack.c.l.bf16 %v476
      %v509 = vunpack.c.l.bf16 %v477
      %v510 = vunpack.c.l.bf16 %v478
      %v511 = vunpack.c.l.bf16 %v479
      %v512 = vunpack.c.l.bf16 %v480
      %v513 = vunpack.c.l.bf16 %v481
      %v514 = vunpack.c.l.bf16 %v482
      %v515 = vunpack.c.l.bf16 %v483
      %v516 = vunpack.c.l.bf16 %v484
      %v517 = vunpack.c.l.bf16 %v485
      %v518 = vunpack.c.l.bf16 %v486
      %v519 = vunpack.c.l.bf16 %v487
      %v520 = vunpack.c.l.bf16 %v488
      %v521 = vunpack.c.l.bf16 %v489
      %v522 = vunpack.c.l.bf16 %v490
      %v523 = vunpack.c.l.bf16 %v491
      %v524 = vunpack.c.l.bf16 %v492
      %v525 = vunpack.c.l.bf16 %v493
      %v526 = vunpack.c.l.bf16 %v494
      %v527 = vunpack.c.l.bf16 %v495
      %v528 = vunpack.c.l.bf16 %v496
      %v529 = vunpack.c.l.bf16 %v497
      %v530 = vunpack.c.l.bf16 %v498
      %v531 = vunpack.c.l.bf16 %v499
      %v532 = vunpack.c.l.bf16 %v500
      %v533 = vunpack.c.l.bf16 %v501
      %v534 = vunpack.c.l.bf16 %v502
      %v535 = vunpack.c.l.bf16 %v503
      %v536 = vunpack.c.l.bf16 %v504
      %v537 = vlaneseq
      %v538 = vshrl.u32 %v537, 7
      %v539 = vsub.s32 0, %v538
      %v540 = vrot.slane %v471, %v539
      %v541 = vmul.f32 %v505, %v540
      %v542 = vmul.f32 %v506, %v540
      %v543 = vmul.f32 %v507, %v540
      %v544 = vmul.f32 %v508, %v540
      %v545 = vmul.f32 %v509, %v540
      %v546 = vmul.f32 %v510, %v540
      %v547 = vmul.f32 %v511, %v540
      %v548 = vmul.f32 %v512, %v540
      %v549 = vmul.f32 %v513, %v540
      %v550 = vmul.f32 %v514, %v540
      %v551 = vmul.f32 %v515, %v540
      %v552 = vmul.f32 %v516, %v540
      %v553 = vmul.f32 %v517, %v540
      %v554 = vmul.f32 %v518, %v540
      %v555 = vmul.f32 %v519, %v540
      %v556 = vmul.f32 %v520, %v540
      %v557 = vmul.f32 %v521, %v540
      %v558 = vmul.f32 %v522, %v540
      %v559 = vmul.f32 %v523, %v540
      %v560 = vmul.f32 %v524, %v540
      %v561 = vmul.f32 %v525, %v540
      %v562 = vmul.f32 %v526, %v540
      %v563 = vmul.f32 %v527, %v540
      %v564 = vmul.f32 %v528, %v540
      %v565 = vmul.f32 %v529, %v540
      %v566 = vmul.f32 %v530, %v540
      %v567 = vmul.f32 %v531, %v540
      %v568 = vmul.f32 %v532, %v540
      %v569 = vmul.f32 %v533, %v540
      %v570 = vmul.f32 %v534, %v540
      %v571 = vmul.f32 %v535, %v540
      %v572 = vmul.f32 %v536, %v540
      %v573 = vlaneseq
      %v574 = vshrl.u32 %v573, 7
      %v575 = vsub.s32 0, %v574
      %v576 = vrot.slane %v472, %v575
      %v577 = vadd.f32 %v541, %v576
      %v578 = vadd.f32 %v542, %v576
      %v579 = vadd.f32 %v543, %v576
      %v580 = vadd.f32 %v544, %v576
      %v581 = vadd.f32 %v545, %v576
      %v582 = vadd.f32 %v546, %v576
      %v583 = vadd.f32 %v547, %v576
      %v584 = vadd.f32 %v548, %v576
      %v585 = vadd.f32 %v549, %v576
      %v586 = vadd.f32 %v550, %v576
      %v587 = vadd.f32 %v551, %v576
      %v588 = vadd.f32 %v552, %v576
      %v589 = vadd.f32 %v553, %v576
      %v590 = vadd.f32 %v554, %v576
      %v591 = vadd.f32 %v555, %v576
      %v592 = vadd.f32 %v556, %v576
      %v593 = vadd.f32 %v557, %v576
      %v594 = vadd.f32 %v558, %v576
      %v595 = vadd.f32 %v559, %v576
      %v596 = vadd.f32 %v560, %v576
      %v597 = vadd.f32 %v561, %v576
      %v598 = vadd.f32 %v562, %v576
      %v599 = vadd.f32 %v563, %v576
      %v600 = vadd.f32 %v564, %v576
      %v601 = vadd.f32 %v565, %v576
      %v602 = vadd.f32 %v566, %v576
      %v603 = vadd.f32 %v567, %v576
      %v604 = vadd.f32 %v568, %v576
      %v605 = vadd.f32 %v569, %v576
      %v606 = vadd.f32 %v570, %v576
      %v607 = vadd.f32 %v571, %v576
      %v608 = vadd.f32 %v572, %v576
      %v609 = vpack.c.bf16 %v578, %v577
      %v610 = vpack.c.bf16 %v580, %v579
      %v611 = vpack.c.bf16 %v582, %v581
      %v612 = vpack.c.bf16 %v584, %v583
      %v613 = vpack.c.bf16 %v586, %v585
      %v614 = vpack.c.bf16 %v588, %v587
      %v615 = vpack.c.bf16 %v590, %v589
      %v616 = vpack.c.bf16 %v592, %v591
      %v617 = vpack.c.bf16 %v594, %v593
      %v618 = vpack.c.bf16 %v596, %v595
      %v619 = vpack.c.bf16 %v598, %v597
      %v620 = vpack.c.bf16 %v600, %v599
      %v621 = vpack.c.bf16 %v602, %v601
      %v622 = vpack.c.bf16 %v604, %v603
      %v623 = vpack.c.bf16 %v606, %v605
      %v624 = vpack.c.bf16 %v608, %v607
      %v625 = vld [vmem:[%s5] sm:$0xf]
      %v626 = vld [vmem:[%s433] sm:$0xf]
      %v627 = vld [vmem:[%s433 + $0x4] sm:$0xf]
      %v628 = vld [vmem:[%s433 + $0x8] sm:$0xf]
      %v629 = vld [vmem:[%s433 + $0xc] sm:$0xf]
      %v630 = vld [vmem:[%s433 + $0x10] sm:$0xf]
      %v631 = vld [vmem:[%s433 + $0x14] sm:$0xf]
      %v632 = vld [vmem:[%s433 + $0x18] sm:$0xf]
      %v633 = vld [vmem:[%s433 + $0x1c] sm:$0xf]
      %v634 = vld [vmem:[%s433 + $0x20] sm:$0xf]
      %v635 = vld [vmem:[%s433 + $0x24] sm:$0xf]
      %v636 = vld [vmem:[%s433 + $0x28] sm:$0xf]
      %v637 = vld [vmem:[%s433 + $0x2c] sm:$0xf]
      %v638 = vld [vmem:[%s433 + $0x30] sm:$0xf]
      %v639 = vld [vmem:[%s433 + $0x34] sm:$0xf]
      %v640 = vld [vmem:[%s433 + $0x38] sm:$0xf]
      %v641 = vld [vmem:[%s433 + $0x3c] sm:$0xf]
      %v642 = vld [vmem:[%s433 + $0x40] sm:$0xf]
      %v643 = vld [vmem:[%s433 + $0x44] sm:$0xf]
      %v644 = vld [vmem:[%s433 + $0x48] sm:$0xf]
      %v645 = vld [vmem:[%s433 + $0x4c] sm:$0xf]
      %v646 = vld [vmem:[%s433 + $0x50] sm:$0xf]
      %v647 = vld [vmem:[%s433 + $0x54] sm:$0xf]
      %v648 = vld [vmem:[%s433 + $0x58] sm:$0xf]
      %v649 = vld [vmem:[%s433 + $0x5c] sm:$0xf]
      %v650 = vld [vmem:[%s433 + $0x60] sm:$0xf]
      %v651 = vld [vmem:[%s433 + $0x64] sm:$0xf]
      %v652 = vld [vmem:[%s433 + $0x68] sm:$0xf]
      %v653 = vld [vmem:[%s433 + $0x6c] sm:$0xf]
      %v654 = vld [vmem:[%s433 + $0x70] sm:$0xf]
      %v655 = vld [vmem:[%s433 + $0x74] sm:$0xf]
      %v656 = vld [vmem:[%s433 + $0x78] sm:$0xf]
      %v657 = vld [vmem:[%s433 + $0x7c] sm:$0xf]
      %v658 = vunpack.c.l.bf16 %v626
      %v659 = vunpack.c.l.bf16 %v627
      %v660 = vunpack.c.l.bf16 %v628
      %v661 = vunpack.c.l.bf16 %v629
      %v662 = vunpack.c.l.bf16 %v630
      %v663 = vunpack.c.l.bf16 %v631
      %v664 = vunpack.c.l.bf16 %v632
      %v665 = vunpack.c.l.bf16 %v633
      %v666 = vunpack.c.l.bf16 %v634
      %v667 = vunpack.c.l.bf16 %v635
      %v668 = vunpack.c.l.bf16 %v636
      %v669 = vunpack.c.l.bf16 %v637
      %v670 = vunpack.c.l.bf16 %v638
      %v671 = vunpack.c.l.bf16 %v639
      %v672 = vunpack.c.l.bf16 %v640
      %v673 = vunpack.c.l.bf16 %v641
      %v674 = vunpack.c.l.bf16 %v642
      %v675 = vunpack.c.l.bf16 %v643
      %v676 = vunpack.c.l.bf16 %v644
      %v677 = vunpack.c.l.bf16 %v645
      %v678 = vunpack.c.l.bf16 %v646
      %v679 = vunpack.c.l.bf16 %v647
      %v680 = vunpack.c.l.bf16 %v648
      %v681 = vunpack.c.l.bf16 %v649
      %v682 = vunpack.c.l.bf16 %v650
      %v683 = vunpack.c.l.bf16 %v651
      %v684 = vunpack.c.l.bf16 %v652
      %v685 = vunpack.c.l.bf16 %v653
      %v686 = vunpack.c.l.bf16 %v654
      %v687 = vunpack.c.l.bf16 %v655
      %v688 = vunpack.c.l.bf16 %v656
      %v689 = vunpack.c.l.bf16 %v657
      %v690 = vlaneseq
      %v691 = vshrl.u32 %v690, 7
      %v692 = vsub.s32 1, %v691
      %v693 = vrot.slane %v471, %v692
      %v694 = vmul.f32 %v658, %v693
      %v695 = vmul.f32 %v659, %v693
      %v696 = vmul.f32 %v660, %v693
      %v697 = vmul.f32 %v661, %v693
      %v698 = vmul.f32 %v662, %v693
      %v699 = vmul.f32 %v663, %v693
      %v700 = vmul.f32 %v664, %v693
      %v701 = vmul.f32 %v665, %v693
      %v702 = vmul.f32 %v666, %v693
      %v703 = vmul.f32 %v667, %v693
      %v704 = vmul.f32 %v668, %v693
      %v705 = vmul.f32 %v669, %v693
      %v706 = vmul.f32 %v670, %v693
      %v707 = vmul.f32 %v671, %v693
      %v708 = vmul.f32 %v672, %v693
      %v709 = vmul.f32 %v673, %v693
      %v710 = vmul.f32 %v674, %v693
      %v711 = vmul.f32 %v675, %v693
      %v712 = vmul.f32 %v676, %v693
      %v713 = vmul.f32 %v677, %v693
      %v714 = vmul.f32 %v678, %v693
      %v715 = vmul.f32 %v679, %v693
      %v716 = vmul.f32 %v680, %v693
      %v717 = vmul.f32 %v681, %v693
      %v718 = vmul.f32 %v682, %v693
      %v719 = vmul.f32 %v683, %v693
      %v720 = vmul.f32 %v684, %v693
      %v721 = vmul.f32 %v685, %v693
      %v722 = vmul.f32 %v686, %v693
      %v723 = vmul.f32 %v687, %v693
      %v724 = vmul.f32 %v688, %v693
      %v725 = vmul.f32 %v689, %v693
      %v726 = vlaneseq
      %v727 = vshrl.u32 %v726, 7
      %v728 = vsub.s32 1, %v727
      %v729 = vrot.slane %v472, %v728
      %v730 = vadd.f32 %v694, %v729
      %v731 = vadd.f32 %v695, %v729
      %v732 = vadd.f32 %v696, %v729
      %v733 = vadd.f32 %v697, %v729
      %v734 = vadd.f32 %v698, %v729
      %v735 = vadd.f32 %v699, %v729
      %v736 = vadd.f32 %v700, %v729
      %v737 = vadd.f32 %v701, %v729
      %v738 = vadd.f32 %v702, %v729
      %v739 = vadd.f32 %v703, %v729
      %v740 = vadd.f32 %v704, %v729
      %v741 = vadd.f32 %v705, %v729
      %v742 = vadd.f32 %v706, %v729
      %v743 = vadd.f32 %v707, %v729
      %v744 = vadd.f32 %v708, %v729
      %v745 = vadd.f32 %v709, %v729
      %v746 = vadd.f32 %v710, %v729
      %v747 = vadd.f32 %v711, %v729
      %v748 = vadd.f32 %v712, %v729
      %v749 = vadd.f32 %v713, %v729
      %v750 = vadd.f32 %v714, %v729
      %v751 = vadd.f32 %v715, %v729
      %v752 = vadd.f32 %v716, %v729
      %v753 = vadd.f32 %v717, %v729
      %v754 = vadd.f32 %v718, %v729
      %v755 = vadd.f32 %v719, %v729
      %v756 = vadd.f32 %v720, %v729
      %v757 = vadd.f32 %v721, %v729
      %v758 = vadd.f32 %v722, %v729
      %v759 = vadd.f32 %v723, %v729
      %v760 = vadd.f32 %v724, %v729
      %v761 = vadd.f32 %v725, %v729
      %v762 = vpack.c.bf16 %v731, %v730
      %v763 = vpack.c.bf16 %v733, %v732
      %v764 = vpack.c.bf16 %v735, %v734
      %v765 = vpack.c.bf16 %v737, %v736
      %v766 = vpack.c.bf16 %v739, %v738
      %v767 = vpack.c.bf16 %v741, %v740
      %v768 = vpack.c.bf16 %v743, %v742
      %v769 = vpack.c.bf16 %v745, %v744
      %v770 = vpack.c.bf16 %v747, %v746
      %v771 = vpack.c.bf16 %v749, %v748
      %v772 = vpack.c.bf16 %v751, %v750
      %v773 = vpack.c.bf16 %v753, %v752
      %v774 = vpack.c.bf16 %v755, %v754
      %v775 = vpack.c.bf16 %v757, %v756
      %v776 = vpack.c.bf16 %v759, %v758
      %v777 = vpack.c.bf16 %v761, %v760
      %s778 = scalar_lea.vmem %s5, 4
      %v779 = vld [vmem:[%s778] sm:$0xf]
      %vm780 = vcmask 64512
      %v782 = vsel %vm780, %v762, 0
      %v785 = vsel %vm780, %v763, 0
      %v788 = vsel %vm780, %v764, 0
      %v791 = vsel %vm780, %v765, 0
      %v794 = vsel %vm780, %v766, 0
      %v797 = vsel %vm780, %v767, 0
      %v800 = vsel %vm780, %v768, 0
      %v803 = vsel %vm780, %v769, 0
      %v806 = vsel %vm780, %v770, 0
      %v809 = vsel %vm780, %v771, 0
      %v812 = vsel %vm780, %v772, 0
      %v815 = vsel %vm780, %v773, 0
      %v818 = vsel %vm780, %v774, 0
      %v821 = vsel %vm780, %v775, 0
      %v824 = vsel %vm780, %v776, 0
      %v827 = vsel %vm780, %v777, 0
      %vm829 = vcmask 1043456
      %v831 = vsel %vm829, %v779, 0
      %833 = vmatprep.subr.bf16.mxu0 0
      %834 = vmatpush1.bf16.msra.mxu0 %v831
      %835 = vmatprep.subr.bf16.mxu0 0
      %836 = vmatpush1.bf16.msra.mxu0 0
      %837 = vmatprep.subr.bf16.mxu0 0
      %838 = vmatpush1.bf16.msra.mxu0 0
      %839 = vmatprep.subr.bf16.mxu0 0
      %840 = vmatpush1.bf16.msra.mxu0 0
      %841 = vmatprep.subr.bf16.mxu0 0
      %842 = vmatpush1.bf16.msra.mxu0 0
      %843 = vmatprep.subr.bf16.mxu0 0
      %844 = vmatpush1.bf16.msra.mxu0 0
      %845 = vmatprep.subr.bf16.mxu0 0
      %846 = vmatpush1.bf16.msra.mxu0 0
      %847 = vmatprep.subr.bf16.mxu0 0
      %848 = vmatpush1.bf16.msra.mxu0 0
      %849 = vmatprep.subr.bf16.mxu0 0
      %850 = vmatpush1.bf16.msra.mxu0 0
      %851 = vmatprep.subr.bf16.mxu0 0
      %852 = vmatpush1.bf16.msra.mxu0 0
      %853 = vmatprep.subr.bf16.mxu0 0
      %854 = vmatpush1.bf16.msra.mxu0 0
      %855 = vmatprep.subr.bf16.mxu0 0
      %856 = vmatpush1.bf16.msra.mxu0 0
      %857 = vmatprep.subr.bf16.mxu0 0
      %858 = vmatpush1.bf16.msra.mxu0 0
      %859 = vmatprep.subr.bf16.mxu0 0
      %860 = vmatpush1.bf16.msra.mxu0 0
      %861 = vmatprep.subr.bf16.mxu0 0
      %862 = vmatpush1.bf16.msra.mxu0 0
      %863 = vmatprep.subr.bf16.mxu0 0
      %864 = vmatpush1.bf16.msra.mxu0 0
      %865 = vmatprep.mubr.bf16.mxu0 0
      %866 = vmatmul.mubr.bf16.gmra.mrb[0].mxu0 %v782
      %v867 = vpop.f32.mrb[0].mxu0
      %v868 = vadd.f32 0.0, %v867
      %v869 = vpop.f32.mrb[0].mxu0
      %v870 = vpop.f32.mrb[0].mxu0
      %v871 = vadd.f32 0.0, %v870
      %v872 = vpop.f32.mrb[0].mxu0
      %873 = vmatprep.mubr.bf16.mxu0 0
      %874 = vmatmul.mubr.bf16.gmra.mrb[0].mxu0 %v785
      %v875 = vpop.f32.mrb[0].mxu0
      %v876 = vadd.f32 0.0, %v875
      %v877 = vpop.f32.mrb[0].mxu0
      %v878 = vpop.f32.mrb[0].mxu0
      %v879 = vadd.f32 0.0, %v878
      %v880 = vpop.f32.mrb[0].mxu0
      %881 = vmatprep.mubr.bf16.mxu0 0
      %882 = vmatmul.mubr.bf16.gmra.mrb[0].mxu0 %v788
      %v883 = vpop.f32.mrb[0].mxu0
      %v884 = vadd.f32 0.0, %v883
      %v885 = vpop.f32.mrb[0].mxu0
      %v886 = vpop.f32.mrb[0].mxu0
      %v887 = vadd.f32 0.0, %v886
      %v888 = vpop.f32.mrb[0].mxu0
      %889 = vmatprep.mubr.bf16.mxu0 0
      %890 = vmatmul.mubr.bf16.gmra.mrb[0].mxu0 %v791
      %v891 = vpop.f32.mrb[0].mxu0
      %v892 = vadd.f32 0.0, %v891
      %v893 = vpop.f32.mrb[0].mxu0
      %v894 = vpop.f32.mrb[0].mxu0
      %v895 = vadd.f32 0.0, %v894
      %v896 = vpop.f32.mrb[0].mxu0
      %897 = vmatprep.mubr.bf16.mxu0 0
      %898 = vmatmul.mubr.bf16.gmra.mrb[0].mxu0 %v794
      %v899 = vpop.f32.mrb[0].mxu0
      %v900 = vadd.f32 0.0, %v899
      %v901 = vpop.f32.mrb[0].mxu0
      %v902 = vpop.f32.mrb[0].mxu0
      %v903 = vadd.f32 0.0, %v902
      %v904 = vpop.f32.mrb[0].mxu0
      %905 = vmatprep.mubr.bf16.mxu0 0
      %906 = vmatmul.mubr.bf16.gmra.mrb[0].mxu0 %v797
      %v907 = vpop.f32.mrb[0].mxu0
      %v908 = vadd.f32 0.0, %v907
      %v909 = vpop.f32.mrb[0].mxu0
      %v910 = vpop.f32.mrb[0].mxu0
      %v911 = vadd.f32 0.0, %v910
      %v912 = vpop.f32.mrb[0].mxu0
      %913 = vmatprep.mubr.bf16.mxu0 0
      %914 = vmatmul.mubr.bf16.gmra.mrb[0].mxu0 %v800
      %v915 = vpop.f32.mrb[0].mxu0
      %v916 = vadd.f32 0.0, %v915
      %v917 = vpop.f32.mrb[0].mxu0
      %v918 = vpop.f32.mrb[0].mxu0
      %v919 = vadd.f32 0.0, %v918
      %v920 = vpop.f32.mrb[0].mxu0
      %921 = vmatprep.mubr.bf16.mxu0 0
      %922 = vmatmul.mubr.bf16.gmra.mrb[0].mxu0 %v803
      %v923 = vpop.f32.mrb[0].mxu0
      %v924 = vadd.f32 0.0, %v923
      %v925 = vpop.f32.mrb[0].mxu0
      %v926 = vpop.f32.mrb[0].mxu0
      %v927 = vadd.f32 0.0, %v926
      %v928 = vpop.f32.mrb[0].mxu0
      %929 = vmatprep.mubr.bf16.mxu0 0
      %930 = vmatmul.mubr.bf16.gmra.mrb[0].mxu0 %v806
      %v931 = vpop.f32.mrb[0].mxu0
      %v932 = vadd.f32 0.0, %v931
      %v933 = vpop.f32.mrb[0].mxu0
      %v934 = vpop.f32.mrb[0].mxu0
      %v935 = vadd.f32 0.0, %v934
      %v936 = vpop.f32.mrb[0].mxu0
      %937 = vmatprep.mubr.bf16.mxu0 0
      %938 = vmatmul.mubr.bf16.gmra.mrb[0].mxu0 %v809
      %v939 = vpop.f32.mrb[0].mxu0
      %v940 = vadd.f32 0.0, %v939
      %v941 = vpop.f32.mrb[0].mxu0
      %v942 = vpop.f32.mrb[0].mxu0
      %v943 = vadd.f32 0.0, %v942
      %v944 = vpop.f32.mrb[0].mxu0
      %945 = vmatprep.mubr.bf16.mxu0 0
      %946 = vmatmul.mubr.bf16.gmra.mrb[0].mxu0 %v812
      %v947 = vpop.f32.mrb[0].mxu0
      %v948 = vadd.f32 0.0, %v947
      %v949 = vpop.f32.mrb[0].mxu0
      %v950 = vpop.f32.mrb[0].mxu0
      %v951 = vadd.f32 0.0, %v950
      %v952 = vpop.f32.mrb[0].mxu0
      %953 = vmatprep.mubr.bf16.mxu0 0
      %954 = vmatmul.mubr.bf16.gmra.mrb[0].mxu0 %v815
      %v955 = vpop.f32.mrb[0].mxu0
      %v956 = vadd.f32 0.0, %v955
      %v957 = vpop.f32.mrb[0].mxu0
      %v958 = vpop.f32.mrb[0].mxu0
      %v959 = vadd.f32 0.0, %v958
      %v960 = vpop.f32.mrb[0].mxu0
      %961 = vmatprep.mubr.bf16.mxu0 0
      %962 = vmatmul.mubr.bf16.gmra.mrb[0].mxu0 %v818
      %v963 = vpop.f32.mrb[0].mxu0
      %v964 = vadd.f32 0.0, %v963
      %v965 = vpop.f32.mrb[0].mxu0
      %v966 = vpop.f32.mrb[0].mxu0
      %v967 = vadd.f32 0.0, %v966
      %v968 = vpop.f32.mrb[0].mxu0
      %969 = vmatprep.mubr.bf16.mxu0 0
      %970 = vmatmul.mubr.bf16.gmra.mrb[0].mxu0 %v821
      %v971 = vpop.f32.mrb[0].mxu0
      %v972 = vadd.f32 0.0, %v971
      %v973 = vpop.f32.mrb[0].mxu0
      %v974 = vpop.f32.mrb[0].mxu0
      %v975 = vadd.f32 0.0, %v974
      %v976 = vpop.f32.mrb[0].mxu0
      %977 = vmatprep.mubr.bf16.mxu0 0
      %978 = vmatmul.mubr.bf16.gmra.mrb[0].mxu0 %v824
      %v979 = vpop.f32.mrb[0].mxu0
      %v980 = vadd.f32 0.0, %v979
      %v981 = vpop.f32.mrb[0].mxu0
      %v982 = vpop.f32.mrb[0].mxu0
      %v983 = vadd.f32 0.0, %v982
      %v984 = vpop.f32.mrb[0].mxu0
      %985 = vmatprep.mubr.bf16.mxu0 0
      %986 = vmatmul.mubr.bf16.gmra.mrb[0].mxu0 %v827
      %v987 = vpop.f32.mrb[0].mxu0
      %v988 = vadd.f32 0.0, %v987
      %v989 = vpop.f32.mrb[0].mxu0
      %v990 = vpop.f32.mrb[0].mxu0
      %v991 = vadd.f32 0.0, %v990
      %v992 = vpop.f32.mrb[0].mxu0
      %993 = vdwg.mxu0
      %v995 = vsel %vm780, %v609, 0
      %v998 = vsel %vm780, %v610, 0
      %v1001 = vsel %vm780, %v611, 0
      %v1004 = vsel %vm780, %v612, 0
      %v1007 = vsel %vm780, %v613, 0
      %v1010 = vsel %vm780, %v614, 0
      %v1013 = vsel %vm780, %v615, 0
      %v1016 = vsel %vm780, %v616, 0
      %v1019 = vsel %vm780, %v617, 0
      %v1022 = vsel %vm780, %v618, 0
      %v1025 = vsel %vm780, %v619, 0
      %v1028 = vsel %vm780, %v620, 0
      %v1031 = vsel %vm780, %v621, 0
      %v1034 = vsel %vm780, %v622, 0
      %v1037 = vsel %vm780, %v623, 0
      %v1040 = vsel %vm780, %v624, 0
      %v1043 = vsel %vm829, %v625, 0
      %1045 = vmatprep.subr.bf16.mxu0 0
      %1046 = vmatpush1.bf16.msra.mxu0 %v1043
      %1047 = vmatprep.subr.bf16.mxu0 0
      %1048 = vmatpush1.bf16.msra.mxu0 0
      %1049 = vmatprep.subr.bf16.mxu0 0
      %1050 = vmatpush1.bf16.msra.mxu0 0
      %1051 = vmatprep.subr.bf16.mxu0 0
      %1052 = vmatpush1.bf16.msra.mxu0 0
      %1053 = vmatprep.subr.bf16.mxu0 0
      %1054 = vmatpush1.bf16.msra.mxu0 0
      %1055 = vmatprep.subr.bf16.mxu0 0
      %1056 = vmatpush1.bf16.msra.mxu0 0
      %1057 = vmatprep.subr.bf16.mxu0 0
      %1058 = vmatpush1.bf16.msra.mxu0 0
      %1059 = vmatprep.subr.bf16.mxu0 0
      %1060 = vmatpush1.bf16.msra.mxu0 0
      %1061 = vmatprep.subr.bf16.mxu0 0
      %1062 = vmatpush1.bf16.msra.mxu0 0
      %1063 = vmatprep.subr.bf16.mxu0 0
      %1064 = vmatpush1.bf16.msra.mxu0 0
      %1065 = vmatprep.subr.bf16.mxu0 0
      %1066 = vmatpush1.bf16.msra.mxu0 0
      %1067 = vmatprep.subr.bf16.mxu0 0
      %1068 = vmatpush1.bf16.msra.mxu0 0
      %1069 = vmatprep.subr.bf16.mxu0 0
      %1070 = vmatpush1.bf16.msra.mxu0 0
      %1071 = vmatprep.subr.bf16.mxu0 0
      %1072 = vmatpush1.bf16.msra.mxu0 0
      %1073 = vmatprep.subr.bf16.mxu0 0
      %1074 = vmatpush1.bf16.msra.mxu0 0
      %1075 = vmatprep.subr.bf16.mxu0 0
      %1076 = vmatpush1.bf16.msra.mxu0 0
      %1077 = vmatprep.mubr.bf16.mxu0 0
      %1078 = vmatmul.mubr.bf16.gmra.mrb[0].mxu0 %v995
      %v1079 = vpop.f32.mrb[0].mxu0
      %v1080 = vadd.f32 %v868, %v1079
      %v1081 = vpop.f32.mrb[0].mxu0
      %v1082 = vpop.f32.mrb[0].mxu0
      %v1083 = vadd.f32 %v871, %v1082
      %v1084 = vpop.f32.mrb[0].mxu0
      %1085 = vmatprep.mubr.bf16.mxu0 0
      %1086 = vmatmul.mubr.bf16.gmra.mrb[0].mxu0 %v998
      %v1087 = vpop.f32.mrb[0].mxu0
      %v1088 = vadd.f32 %v876, %v1087
      %v1089 = vpop.f32.mrb[0].mxu0
      %v1090 = vpop.f32.mrb[0].mxu0
      %v1091 = vadd.f32 %v879, %v1090
      %v1092 = vpop.f32.mrb[0].mxu0
      %1093 = vmatprep.mubr.bf16.mxu0 0
      %1094 = vmatmul.mubr.bf16.gmra.mrb[0].mxu0 %v1001
      %v1095 = vpop.f32.mrb[0].mxu0
      %v1096 = vadd.f32 %v884, %v1095
      %v1097 = vpop.f32.mrb[0].mxu0
      %v1098 = vpop.f32.mrb[0].mxu0
      %v1099 = vadd.f32 %v887, %v1098
      %v1100 = vpop.f32.mrb[0].mxu0
      %1101 = vmatprep.mubr.bf16.mxu0 0
      %1102 = vmatmul.mubr.bf16.gmra.mrb[0].mxu0 %v1004
      %v1103 = vpop.f32.mrb[0].mxu0
      %v1104 = vadd.f32 %v892, %v1103
      %v1105 = vpop.f32.mrb[0].mxu0
      %v1106 = vpop.f32.mrb[0].mxu0
      %v1107 = vadd.f32 %v895, %v1106
      %v1108 = vpop.f32.mrb[0].mxu0
      %1109 = vmatprep.mubr.bf16.mxu0 0
      %1110 = vmatmul.mubr.bf16.gmra.mrb[0].mxu0 %v1007
      %v1111 = vpop.f32.mrb[0].mxu0
      %v1112 = vadd.f32 %v900, %v1111
      %v1113 = vpop.f32.mrb[0].mxu0
      %v1114 = vpop.f32.mrb[0].mxu0
      %v1115 = vadd.f32 %v903, %v1114
      %v1116 = vpop.f32.mrb[0].mxu0
      %1117 = vmatprep.mubr.bf16.mxu0 0
      %1118 = vmatmul.mubr.bf16.gmra.mrb[0].mxu0 %v1010
      %v1119 = vpop.f32.mrb[0].mxu0
      %v1120 = vadd.f32 %v908, %v1119
      %v1121 = vpop.f32.mrb[0].mxu0
      %v1122 = vpop.f32.mrb[0].mxu0
      %v1123 = vadd.f32 %v911, %v1122
      %v1124 = vpop.f32.mrb[0].mxu0
      %1125 = vmatprep.mubr.bf16.mxu0 0
      %1126 = vmatmul.mubr.bf16.gmra.mrb[0].mxu0 %v1013
      %v1127 = vpop.f32.mrb[0].mxu0
      %v1128 = vadd.f32 %v916, %v1127
      %v1129 = vpop.f32.mrb[0].mxu0
      %v1130 = vpop.f32.mrb[0].mxu0
      %v1131 = vadd.f32 %v919, %v1130
      %v1132 = vpop.f32.mrb[0].mxu0
      %1133 = vmatprep.mubr.bf16.mxu0 0
      %1134 = vmatmul.mubr.bf16.gmra.mrb[0].mxu0 %v1016
      %v1135 = vpop.f32.mrb[0].mxu0
      %v1136 = vadd.f32 %v924, %v1135
      %v1137 = vpop.f32.mrb[0].mxu0
      %v1138 = vpop.f32.mrb[0].mxu0
      %v1139 = vadd.f32 %v927, %v1138
      %v1140 = vpop.f32.mrb[0].mxu0
      %1141 = vmatprep.mubr.bf16.mxu0 0
      %1142 = vmatmul.mubr.bf16.gmra.mrb[0].mxu0 %v1019
      %v1143 = vpop.f32.mrb[0].mxu0
      %v1144 = vadd.f32 %v932, %v1143
      %v1145 = vpop.f32.mrb[0].mxu0
      %v1146 = vpop.f32.mrb[0].mxu0
      %v1147 = vadd.f32 %v935, %v1146
      %v1148 = vpop.f32.mrb[0].mxu0
      %1149 = vmatprep.mubr.bf16.mxu0 0
      %1150 = vmatmul.mubr.bf16.gmra.mrb[0].mxu0 %v1022
      %v1151 = vpop.f32.mrb[0].mxu0
      %v1152 = vadd.f32 %v940, %v1151
      %v1153 = vpop.f32.mrb[0].mxu0
      %v1154 = vpop.f32.mrb[0].mxu0
      %v1155 = vadd.f32 %v943, %v1154
      %v1156 = vpop.f32.mrb[0].mxu0
      %1157 = vmatprep.mubr.bf16.mxu0 0
      %1158 = vmatmul.mubr.bf16.gmra.mrb[0].mxu0 %v1025
      %v1159 = vpop.f32.mrb[0].mxu0
      %v1160 = vadd.f32 %v948, %v1159
      %v1161 = vpop.f32.mrb[0].mxu0
      %v1162 = vpop.f32.mrb[0].mxu0
      %v1163 = vadd.f32 %v951, %v1162
      %v1164 = vpop.f32.mrb[0].mxu0
      %1165 = vmatprep.mubr.bf16.mxu0 0
      %1166 = vmatmul.mubr.bf16.gmra.mrb[0].mxu0 %v1028
      %v1167 = vpop.f32.mrb[0].mxu0
      %v1168 = vadd.f32 %v956, %v1167
      %v1169 = vpop.f32.mrb[0].mxu0
      %v1170 = vpop.f32.mrb[0].mxu0
      %v1171 = vadd.f32 %v959, %v1170
      %v1172 = vpop.f32.mrb[0].mxu0
      %1173 = vmatprep.mubr.bf16.mxu0 0
      %1174 = vmatmul.mubr.bf16.gmra.mrb[0].mxu0 %v1031
      %v1175 = vpop.f32.mrb[0].mxu0
      %v1176 = vadd.f32 %v964, %v1175
      %v1177 = vpop.f32.mrb[0].mxu0
      %v1178 = vpop.f32.mrb[0].mxu0
      %v1179 = vadd.f32 %v967, %v1178
      %v1180 = vpop.f32.mrb[0].mxu0
      %1181 = vmatprep.mubr.bf16.mxu0 0
      %1182 = vmatmul.mubr.bf16.gmra.mrb[0].mxu0 %v1034
      %v1183 = vpop.f32.mrb[0].mxu0
      %v1184 = vadd.f32 %v972, %v1183
      %v1185 = vpop.f32.mrb[0].mxu0
      %v1186 = vpop.f32.mrb[0].mxu0
      %v1187 = vadd.f32 %v975, %v1186
      %v1188 = vpop.f32.mrb[0].mxu0
      %1189 = vmatprep.mubr.bf16.mxu0 0
      %1190 = vmatmul.mubr.bf16.gmra.mrb[0].mxu0 %v1037
      %v1191 = vpop.f32.mrb[0].mxu0
      %v1192 = vadd.f32 %v980, %v1191
      %v1193 = vpop.f32.mrb[0].mxu0
      %v1194 = vpop.f32.mrb[0].mxu0
      %v1195 = vadd.f32 %v983, %v1194
      %v1196 = vpop.f32.mrb[0].mxu0
      %1197 = vmatprep.mubr.bf16.mxu0 0
      %1198 = vmatmul.mubr.bf16.gmra.mrb[0].mxu0 %v1040
      %v1199 = vpop.f32.mrb[0].mxu0
      %v1200 = vadd.f32 %v988, %v1199
      %v1201 = vpop.f32.mrb[0].mxu0
      %v1202 = vpop.f32.mrb[0].mxu0
      %v1203 = vadd.f32 %v991, %v1202
      %v1204 = vpop.f32.mrb[0].mxu0
      %1205 = vdwg.mxu0
      %v1206 = vld [vmem:[%s443] sm:$0xf]
      %v1207 = vld [vmem:[%s443 + $0x4] sm:$0xf]
      %v1208 = vld [vmem:[%s443 + $0x8] sm:$0xf]
      %v1209 = vld [vmem:[%s443 + $0xc] sm:$0xf]
      %v1210 = vld [vmem:[%s443 + $0x10] sm:$0xf]
      %v1211 = vld [vmem:[%s443 + $0x14] sm:$0xf]
      %v1212 = vld [vmem:[%s443 + $0x18] sm:$0xf]
      %v1213 = vld [vmem:[%s443 + $0x1c] sm:$0xf]
      %v1214 = vld [vmem:[%s443 + $0x20] sm:$0xf]
      %v1215 = vld [vmem:[%s443 + $0x24] sm:$0xf]
      %v1216 = vld [vmem:[%s443 + $0x28] sm:$0xf]
      %v1217 = vld [vmem:[%s443 + $0x2c] sm:$0xf]
      %v1218 = vld [vmem:[%s443 + $0x30] sm:$0xf]
      %v1219 = vld [vmem:[%s443 + $0x34] sm:$0xf]
      %v1220 = vld [vmem:[%s443 + $0x38] sm:$0xf]
      %v1221 = vld [vmem:[%s443 + $0x3c] sm:$0xf]
      %v1222 = vld [vmem:[%s443 + $0x40] sm:$0xf]
      %v1223 = vld [vmem:[%s443 + $0x44] sm:$0xf]
      %v1224 = vld [vmem:[%s443 + $0x48] sm:$0xf]
      %v1225 = vld [vmem:[%s443 + $0x4c] sm:$0xf]
      %v1226 = vld [vmem:[%s443 + $0x50] sm:$0xf]
      %v1227 = vld [vmem:[%s443 + $0x54] sm:$0xf]
      %v1228 = vld [vmem:[%s443 + $0x58] sm:$0xf]
      %v1229 = vld [vmem:[%s443 + $0x5c] sm:$0xf]
      %v1230 = vld [vmem:[%s443 + $0x60] sm:$0xf]
      %v1231 = vld [vmem:[%s443 + $0x64] sm:$0xf]
      %v1232 = vld [vmem:[%s443 + $0x68] sm:$0xf]
      %v1233 = vld [vmem:[%s443 + $0x6c] sm:$0xf]
      %v1234 = vld [vmem:[%s443 + $0x70] sm:$0xf]
      %v1235 = vld [vmem:[%s443 + $0x74] sm:$0xf]
      %v1236 = vld [vmem:[%s443 + $0x78] sm:$0xf]
      %v1237 = vld [vmem:[%s443 + $0x7c] sm:$0xf]
      %v1238 = vunpack.c.l.bf16 %v1206
      %v1239 = vunpack.c.l.bf16 %v1207
      %v1240 = vunpack.c.l.bf16 %v1208
      %v1241 = vunpack.c.l.bf16 %v1209
      %v1242 = vunpack.c.l.bf16 %v1210
      %v1243 = vunpack.c.l.bf16 %v1211
      %v1244 = vunpack.c.l.bf16 %v1212
      %v1245 = vunpack.c.l.bf16 %v1213
      %v1246 = vunpack.c.l.bf16 %v1214
      %v1247 = vunpack.c.l.bf16 %v1215
      %v1248 = vunpack.c.l.bf16 %v1216
      %v1249 = vunpack.c.l.bf16 %v1217
      %v1250 = vunpack.c.l.bf16 %v1218
      %v1251 = vunpack.c.l.bf16 %v1219
      %v1252 = vunpack.c.l.bf16 %v1220
      %v1253 = vunpack.c.l.bf16 %v1221
      %v1254 = vunpack.c.l.bf16 %v1222
      %v1255 = vunpack.c.l.bf16 %v1223
      %v1256 = vunpack.c.l.bf16 %v1224
      %v1257 = vunpack.c.l.bf16 %v1225
      %v1258 = vunpack.c.l.bf16 %v1226
      %v1259 = vunpack.c.l.bf16 %v1227
      %v1260 = vunpack.c.l.bf16 %v1228
      %v1261 = vunpack.c.l.bf16 %v1229
      %v1262 = vunpack.c.l.bf16 %v1230
      %v1263 = vunpack.c.l.bf16 %v1231
      %v1264 = vunpack.c.l.bf16 %v1232
      %v1265 = vunpack.c.l.bf16 %v1233
      %v1266 = vunpack.c.l.bf16 %v1234
      %v1267 = vunpack.c.l.bf16 %v1235
      %v1268 = vunpack.c.l.bf16 %v1236
      %v1269 = vunpack.c.l.bf16 %v1237
      %v1270 = vlaneseq
      %v1271 = vshrl.u32 %v1270, 7
      %v1272 = vsub.s32 2, %v1271
      %v1273 = vrot.slane %v471, %v1272
      %v1274 = vmul.f32 %v1238, %v1273
      %v1275 = vmul.f32 %v1239, %v1273
      %v1276 = vmul.f32 %v1240, %v1273
      %v1277 = vmul.f32 %v1241, %v1273
      %v1278 = vmul.f32 %v1242, %v1273
      %v1279 = vmul.f32 %v1243, %v1273
      %v1280 = vmul.f32 %v1244, %v1273
      %v1281 = vmul.f32 %v1245, %v1273
      %v1282 = vmul.f32 %v1246, %v1273
      %v1283 = vmul.f32 %v1247, %v1273
      %v1284 = vmul.f32 %v1248, %v1273
      %v1285 = vmul.f32 %v1249, %v1273
      %v1286 = vmul.f32 %v1250, %v1273
      %v1287 = vmul.f32 %v1251, %v1273
      %v1288 = vmul.f32 %v1252, %v1273
      %v1289 = vmul.f32 %v1253, %v1273
      %v1290 = vmul.f32 %v1254, %v1273
      %v1291 = vmul.f32 %v1255, %v1273
      %v1292 = vmul.f32 %v1256, %v1273
      %v1293 = vmul.f32 %v1257, %v1273
      %v1294 = vmul.f32 %v1258, %v1273
      %v1295 = vmul.f32 %v1259, %v1273
      %v1296 = vmul.f32 %v1260, %v1273
      %v1297 = vmul.f32 %v1261, %v1273
      %v1298 = vmul.f32 %v1262, %v1273
      %v1299 = vmul.f32 %v1263, %v1273
      %v1300 = vmul.f32 %v1264, %v1273
      %v1301 = vmul.f32 %v1265, %v1273
      %v1302 = vmul.f32 %v1266, %v1273
      %v1303 = vmul.f32 %v1267, %v1273
      %v1304 = vmul.f32 %v1268, %v1273
      %v1305 = vmul.f32 %v1269, %v1273
      %v1306 = vlaneseq
      %v1307 = vshrl.u32 %v1306, 7
      %v1308 = vsub.s32 2, %v1307
      %v1309 = vrot.slane %v472, %v1308
      %v1310 = vadd.f32 %v1274, %v1309
      %v1311 = vadd.f32 %v1275, %v1309
      %v1312 = vadd.f32 %v1276, %v1309
      %v1313 = vadd.f32 %v1277, %v1309
      %v1314 = vadd.f32 %v1278, %v1309
      %v1315 = vadd.f32 %v1279, %v1309
      %v1316 = vadd.f32 %v1280, %v1309
      %v1317 = vadd.f32 %v1281, %v1309
      %v1318 = vadd.f32 %v1282, %v1309
      %v1319 = vadd.f32 %v1283, %v1309
      %v1320 = vadd.f32 %v1284, %v1309
      %v1321 = vadd.f32 %v1285, %v1309
      %v1322 = vadd.f32 %v1286, %v1309
      %v1323 = vadd.f32 %v1287, %v1309
      %v1324 = vadd.f32 %v1288, %v1309
      %v1325 = vadd.f32 %v1289, %v1309
      %v1326 = vadd.f32 %v1290, %v1309
      %v1327 = vadd.f32 %v1291, %v1309
      %v1328 = vadd.f32 %v1292, %v1309
      %v1329 = vadd.f32 %v1293, %v1309
      %v1330 = vadd.f32 %v1294, %v1309
      %v1331 = vadd.f32 %v1295, %v1309
      %v1332 = vadd.f32 %v1296, %v1309
      %v1333 = vadd.f32 %v1297, %v1309
      %v1334 = vadd.f32 %v1298, %v1309
      %v1335 = vadd.f32 %v1299, %v1309
      %v1336 = vadd.f32 %v1300, %v1309
      %v1337 = vadd.f32 %v1301, %v1309
      %v1338 = vadd.f32 %v1302, %v1309
      %v1339 = vadd.f32 %v1303, %v1309
      %v1340 = vadd.f32 %v1304, %v1309
      %v1341 = vadd.f32 %v1305, %v1309
      %v1342 = vpack.c.bf16 %v1311, %v1310
      %v1343 = vpack.c.bf16 %v1313, %v1312
      %v1344 = vpack.c.bf16 %v1315, %v1314
      %v1345 = vpack.c.bf16 %v1317, %v1316
      %v1346 = vpack.c.bf16 %v1319, %v1318
      %v1347 = vpack.c.bf16 %v1321, %v1320
      %v1348 = vpack.c.bf16 %v1323, %v1322
      %v1349 = vpack.c.bf16 %v1325, %v1324
      %v1350 = vpack.c.bf16 %v1327, %v1326
      %v1351 = vpack.c.bf16 %v1329, %v1328
      %v1352 = vpack.c.bf16 %v1331, %v1330
      %v1353 = vpack.c.bf16 %v1333, %v1332
      %v1354 = vpack.c.bf16 %v1335, %v1334
      %v1355 = vpack.c.bf16 %v1337, %v1336
      %v1356 = vpack.c.bf16 %v1339, %v1338
      %v1357 = vpack.c.bf16 %v1341, %v1340
      %s1358 = scalar_lea.vmem %s5, 8
      %v1359 = vld [vmem:[%s1358] sm:$0xf]
      %v1361 = vsel %vm780, %v1342, 0
      %v1364 = vsel %vm780, %v1343, 0
      %v1367 = vsel %vm780, %v1344, 0
      %v1370 = vsel %vm780, %v1345, 0
      %v1373 = vsel %vm780, %v1346, 0
      %v1376 = vsel %vm780, %v1347, 0
      %v1379 = vsel %vm780, %v1348, 0
      %v1382 = vsel %vm780, %v1349, 0
      %v1385 = vsel %vm780, %v1350, 0
      %v1388 = vsel %vm780, %v1351, 0
      %v1391 = vsel %vm780, %v1352, 0
      %v1394 = vsel %vm780, %v1353, 0
      %v1397 = vsel %vm780, %v1354, 0
      %v1400 = vsel %vm780, %v1355, 0
      %v1403 = vsel %vm780, %v1356, 0
      %v1406 = vsel %vm780, %v1357, 0
      %v1409 = vsel %vm829, %v1359, 0
      %1411 = vmatprep.subr.bf16.mxu0 0
      %1412 = vmatpush1.bf16.msra.mxu0 %v1409
      %1413 = vmatprep.subr.bf16.mxu0 0
      %1414 = vmatpush1.bf16.msra.mxu0 0
      %1415 = vmatprep.subr.bf16.mxu0 0
      %1416 = vmatpush1.bf16.msra.mxu0 0
      %1417 = vmatprep.subr.bf16.mxu0 0
      %1418 = vmatpush1.bf16.msra.mxu0 0
      %1419 = vmatprep.subr.bf16.mxu0 0
      %1420 = vmatpush1.bf16.msra.mxu0 0
      %1421 = vmatprep.subr.bf16.mxu0 0
      %1422 = vmatpush1.bf16.msra.mxu0 0
      %1423 = vmatprep.subr.bf16.mxu0 0
      %1424 = vmatpush1.bf16.msra.mxu0 0
      %1425 = vmatprep.subr.bf16.mxu0 0
      %1426 = vmatpush1.bf16.msra.mxu0 0
      %1427 = vmatprep.subr.bf16.mxu0 0
      %1428 = vmatpush1.bf16.msra.mxu0 0
      %1429 = vmatprep.subr.bf16.mxu0 0
      %1430 = vmatpush1.bf16.msra.mxu0 0
      %1431 = vmatprep.subr.bf16.mxu0 0
      %1432 = vmatpush1.bf16.msra.mxu0 0
      %1433 = vmatprep.subr.bf16.mxu0 0
      %1434 = vmatpush1.bf16.msra.mxu0 0
      %1435 = vmatprep.subr.bf16.mxu0 0
      %1436 = vmatpush1.bf16.msra.mxu0 0
      %1437 = vmatprep.subr.bf16.mxu0 0
      %1438 = vmatpush1.bf16.msra.mxu0 0
      %1439 = vmatprep.subr.bf16.mxu0 0
      %1440 = vmatpush1.bf16.msra.mxu0 0
      %1441 = vmatprep.subr.bf16.mxu0 0
      %1442 = vmatpush1.bf16.msra.mxu0 0
      %1443 = vmatprep.mubr.bf16.mxu0 0
      %1444 = vmatmul.mubr.bf16.gmra.mrb[0].mxu0 %v1361
      %v1445 = vpop.f32.mrb[0].mxu0
      %v1446 = vadd.f32 0.0, %v1445
      %v1447 = vpop.f32.mrb[0].mxu0
      %v1448 = vpop.f32.mrb[0].mxu0
      %v1449 = vadd.f32 0.0, %v1448
      %v1450 = vpop.f32.mrb[0].mxu0
      %1451 = vmatprep.mubr.bf16.mxu0 0
      %1452 = vmatmul.mubr.bf16.gmra.mrb[0].mxu0 %v1364
      %v1453 = vpop.f32.mrb[0].mxu0
      %v1454 = vadd.f32 0.0, %v1453
      %v1455 = vpop.f32.mrb[0].mxu0
      %v1456 = vpop.f32.mrb[0].mxu0
      %v1457 = vadd.f32 0.0, %v1456
      %v1458 = vpop.f32.mrb[0].mxu0
      %1459 = vmatprep.mubr.bf16.mxu0 0
      %1460 = vmatmul.mubr.bf16.gmra.mrb[0].mxu0 %v1367
      %v1461 = vpop.f32.mrb[0].mxu0
      %v1462 = vadd.f32 0.0, %v1461
      %v1463 = vpop.f32.mrb[0].mxu0
      %v1464 = vpop.f32.mrb[0].mxu0
      %v1465 = vadd.f32 0.0, %v1464
      %v1466 = vpop.f32.mrb[0].mxu0
      %1467 = vmatprep.mubr.bf16.mxu0 0
      %1468 = vmatmul.mubr.bf16.gmra.mrb[0].mxu0 %v1370
      %v1469 = vpop.f32.mrb[0].mxu0
      %v1470 = vadd.f32 0.0, %v1469
      %v1471 = vpop.f32.mrb[0].mxu0
      %v1472 = vpop.f32.mrb[0].mxu0
      %v1473 = vadd.f32 0.0, %v1472
      %v1474 = vpop.f32.mrb[0].mxu0
      %1475 = vmatprep.mubr.bf16.mxu0 0
      %1476 = vmatmul.mubr.bf16.gmra.mrb[0].mxu0 %v1373
      %v1477 = vpop.f32.mrb[0].mxu0
      %v1478 = vadd.f32 0.0, %v1477
      %v1479 = vpop.f32.mrb[0].mxu0
      %v1480 = vpop.f32.mrb[0].mxu0
      %v1481 = vadd.f32 0.0, %v1480
      %v1482 = vpop.f32.mrb[0].mxu0
      %1483 = vmatprep.mubr.bf16.mxu0 0
      %1484 = vmatmul.mubr.bf16.gmra.mrb[0].mxu0 %v1376
      %v1485 = vpop.f32.mrb[0].mxu0
      %v1486 = vadd.f32 0.0, %v1485
      %v1487 = vpop.f32.mrb[0].mxu0
      %v1488 = vpop.f32.mrb[0].mxu0
      %v1489 = vadd.f32 0.0, %v1488
      %v1490 = vpop.f32.mrb[0].mxu0
      %1491 = vmatprep.mubr.bf16.mxu0 0
      %1492 = vmatmul.mubr.bf16.gmra.mrb[0].mxu0 %v1379
      %v1493 = vpop.f32.mrb[0].mxu0
      %v1494 = vadd.f32 0.0, %v1493
      %v1495 = vpop.f32.mrb[0].mxu0
      %v1496 = vpop.f32.mrb[0].mxu0
      %v1497 = vadd.f32 0.0, %v1496
      %v1498 = vpop.f32.mrb[0].mxu0
      %1499 = vmatprep.mubr.bf16.mxu0 0
      %1500 = vmatmul.mubr.bf16.gmra.mrb[0].mxu0 %v1382
      %v1501 = vpop.f32.mrb[0].mxu0
      %v1502 = vadd.f32 0.0, %v1501
      %v1503 = vpop.f32.mrb[0].mxu0
      %v1504 = vpop.f32.mrb[0].mxu0
      %v1505 = vadd.f32 0.0, %v1504
      %v1506 = vpop.f32.mrb[0].mxu0
      %1507 = vmatprep.mubr.bf16.mxu0 0
      %1508 = vmatmul.mubr.bf16.gmra.mrb[0].mxu0 %v1385
      %v1509 = vpop.f32.mrb[0].mxu0
      %v1510 = vadd.f32 0.0, %v1509
      %v1511 = vpop.f32.mrb[0].mxu0
      %v1512 = vpop.f32.mrb[0].mxu0
      %v1513 = vadd.f32 0.0, %v1512
      %v1514 = vpop.f32.mrb[0].mxu0
      %1515 = vmatprep.mubr.bf16.mxu0 0
      %1516 = vmatmul.mubr.bf16.gmra.mrb[0].mxu0 %v1388
      %v1517 = vpop.f32.mrb[0].mxu0
      %v1518 = vadd.f32 0.0, %v1517
      %v1519 = vpop.f32.mrb[0].mxu0
      %v1520 = vpop.f32.mrb[0].mxu0
      %v1521 = vadd.f32 0.0, %v1520
      %v1522 = vpop.f32.mrb[0].mxu0
      %1523 = vmatprep.mubr.bf16.mxu0 0
      %1524 = vmatmul.mubr.bf16.gmra.mrb[0].mxu0 %v1391
      %v1525 = vpop.f32.mrb[0].mxu0
      %v1526 = vadd.f32 0.0, %v1525
      %v1527 = vpop.f32.mrb[0].mxu0
      %v1528 = vpop.f32.mrb[0].mxu0
      %v1529 = vadd.f32 0.0, %v1528
      %v1530 = vpop.f32.mrb[0].mxu0
      %1531 = vmatprep.mubr.bf16.mxu0 0
      %1532 = vmatmul.mubr.bf16.gmra.mrb[0].mxu0 %v1394
      %v1533 = vpop.f32.mrb[0].mxu0
      %v1534 = vadd.f32 0.0, %v1533
      %v1535 = vpop.f32.mrb[0].mxu0
      %v1536 = vpop.f32.mrb[0].mxu0
      %v1537 = vadd.f32 0.0, %v1536
      %v1538 = vpop.f32.mrb[0].mxu0
      %1539 = vmatprep.mubr.bf16.mxu0 0
      %1540 = vmatmul.mubr.bf16.gmra.mrb[0].mxu0 %v1397
      %v1541 = vpop.f32.mrb[0].mxu0
      %v1542 = vadd.f32 0.0, %v1541
      %v1543 = vpop.f32.mrb[0].mxu0
      %v1544 = vpop.f32.mrb[0].mxu0
      %v1545 = vadd.f32 0.0, %v1544
      %v1546 = vpop.f32.mrb[0].mxu0
      %1547 = vmatprep.mubr.bf16.mxu0 0
      %1548 = vmatmul.mubr.bf16.gmra.mrb[0].mxu0 %v1400
      %v1549 = vpop.f32.mrb[0].mxu0
      %v1550 = vadd.f32 0.0, %v1549
      %v1551 = vpop.f32.mrb[0].mxu0
      %v1552 = vpop.f32.mrb[0].mxu0
      %v1553 = vadd.f32 0.0, %v1552
      %v1554 = vpop.f32.mrb[0].mxu0
      %1555 = vmatprep.mubr.bf16.mxu0 0
      %1556 = vmatmul.mubr.bf16.gmra.mrb[0].mxu0 %v1403
      %v1557 = vpop.f32.mrb[0].mxu0
      %v1558 = vadd.f32 0.0, %v1557
      %v1559 = vpop.f32.mrb[0].mxu0
      %v1560 = vpop.f32.mrb[0].mxu0
      %v1561 = vadd.f32 0.0, %v1560
      %v1562 = vpop.f32.mrb[0].mxu0
      %1563 = vmatprep.mubr.bf16.mxu0 0
      %1564 = vmatmul.mubr.bf16.gmra.mrb[0].mxu0 %v1406
      %v1565 = vpop.f32.mrb[0].mxu0
      %v1566 = vadd.f32 0.0, %v1565
      %v1567 = vpop.f32.mrb[0].mxu0
      %v1568 = vpop.f32.mrb[0].mxu0
      %v1569 = vadd.f32 0.0, %v1568
      %v1570 = vpop.f32.mrb[0].mxu0
      %1571 = vdwg.mxu0
      %v1572 = vadd.f32 %v1080, %v1446
      %v1573 = vadd.f32 %v1083, %v1449
      %v1574 = vadd.f32 %v1088, %v1454
      %v1575 = vadd.f32 %v1091, %v1457
      %v1576 = vadd.f32 %v1096, %v1462
      %v1577 = vadd.f32 %v1099, %v1465
      %v1578 = vadd.f32 %v1104, %v1470
      %v1579 = vadd.f32 %v1107, %v1473
      %v1580 = vadd.f32 %v1112, %v1478
      %v1581 = vadd.f32 %v1115, %v1481
      %v1582 = vadd.f32 %v1120, %v1486
      %v1583 = vadd.f32 %v1123, %v1489
      %v1584 = vadd.f32 %v1128, %v1494
      %v1585 = vadd.f32 %v1131, %v1497
      %v1586 = vadd.f32 %v1136, %v1502
      %v1587 = vadd.f32 %v1139, %v1505
      %v1588 = vadd.f32 %v1144, %v1510
      %v1589 = vadd.f32 %v1147, %v1513
      %v1590 = vadd.f32 %v1152, %v1518
      %v1591 = vadd.f32 %v1155, %v1521
      %v1592 = vadd.f32 %v1160, %v1526
      %v1593 = vadd.f32 %v1163, %v1529
      %v1594 = vadd.f32 %v1168, %v1534
      %v1595 = vadd.f32 %v1171, %v1537
      %v1596 = vadd.f32 %v1176, %v1542
      %v1597 = vadd.f32 %v1179, %v1545
      %v1598 = vadd.f32 %v1184, %v1550
      %v1599 = vadd.f32 %v1187, %v1553
      %v1600 = vadd.f32 %v1192, %v1558
      %v1601 = vadd.f32 %v1195, %v1561
      %v1602 = vadd.f32 %v1200, %v1566
      %v1603 = vadd.f32 %v1203, %v1569
      %v1604 = vld [vmem:[%s6] sm:$0x1]
      %v1606 = vlaneseq
      %v1607 = vshrl.u32 %v1606, 7
      %v1608 = vsub.s32 0, %v1607
      %v1609 = vrot.slane %v1604, %v1608
      %v1611 = vadd.f32 %v1572, %v1609
      %v1612 = vadd.f32 %v1573, %v1609
      %v1613 = vadd.f32 %v1574, %v1609
      %v1614 = vadd.f32 %v1575, %v1609
      %v1615 = vadd.f32 %v1576, %v1609
      %v1616 = vadd.f32 %v1577, %v1609
      %v1617 = vadd.f32 %v1578, %v1609
      %v1618 = vadd.f32 %v1579, %v1609
      %v1619 = vadd.f32 %v1580, %v1609
      %v1620 = vadd.f32 %v1581, %v1609
      %v1621 = vadd.f32 %v1582, %v1609
      %v1622 = vadd.f32 %v1583, %v1609
      %v1623 = vadd.f32 %v1584, %v1609
      %v1624 = vadd.f32 %v1585, %v1609
      %v1625 = vadd.f32 %v1586, %v1609
      %v1626 = vadd.f32 %v1587, %v1609
      %v1627 = vadd.f32 %v1588, %v1609
      %v1628 = vadd.f32 %v1589, %v1609
      %v1629 = vadd.f32 %v1590, %v1609
      %v1630 = vadd.f32 %v1591, %v1609
      %v1631 = vadd.f32 %v1592, %v1609
      %v1632 = vadd.f32 %v1593, %v1609
      %v1633 = vadd.f32 %v1594, %v1609
      %v1634 = vadd.f32 %v1595, %v1609
      %v1635 = vadd.f32 %v1596, %v1609
      %v1636 = vadd.f32 %v1597, %v1609
      %v1637 = vadd.f32 %v1598, %v1609
      %v1638 = vadd.f32 %v1599, %v1609
      %v1639 = vadd.f32 %v1600, %v1609
      %v1640 = vadd.f32 %v1601, %v1609
      %v1641 = vadd.f32 %v1602, %v1609
      %v1642 = vadd.f32 %v1603, %v1609
      %vm1643 = vcmp.gt.f32.partialorder %v1611, 0.0
      %vm1644 = vcmp.gt.f32.partialorder %v1612, 0.0
      %vm1645 = vcmp.gt.f32.partialorder %v1613, 0.0
      %vm1646 = vcmp.gt.f32.partialorder %v1614, 0.0
      %vm1647 = vcmp.gt.f32.partialorder %v1615, 0.0
      %vm1648 = vcmp.gt.f32.partialorder %v1616, 0.0
      %vm1649 = vcmp.gt.f32.partialorder %v1617, 0.0
      %vm1650 = vcmp.gt.f32.partialorder %v1618, 0.0
      %vm1651 = vcmp.gt.f32.partialorder %v1619, 0.0
      %vm1652 = vcmp.gt.f32.partialorder %v1620, 0.0
      %vm1653 = vcmp.gt.f32.partialorder %v1621, 0.0
      %vm1654 = vcmp.gt.f32.partialorder %v1622, 0.0
      %vm1655 = vcmp.gt.f32.partialorder %v1623, 0.0
      %vm1656 = vcmp.gt.f32.partialorder %v1624, 0.0
      %vm1657 = vcmp.gt.f32.partialorder %v1625, 0.0
      %vm1658 = vcmp.gt.f32.partialorder %v1626, 0.0
      %vm1659 = vcmp.gt.f32.partialorder %v1627, 0.0
      %vm1660 = vcmp.gt.f32.partialorder %v1628, 0.0
      %vm1661 = vcmp.gt.f32.partialorder %v1629, 0.0
      %vm1662 = vcmp.gt.f32.partialorder %v1630, 0.0
      %vm1663 = vcmp.gt.f32.partialorder %v1631, 0.0
      %vm1664 = vcmp.gt.f32.partialorder %v1632, 0.0
      %vm1665 = vcmp.gt.f32.partialorder %v1633, 0.0
      %vm1666 = vcmp.gt.f32.partialorder %v1634, 0.0
      %vm1667 = vcmp.gt.f32.partialorder %v1635, 0.0
      %vm1668 = vcmp.gt.f32.partialorder %v1636, 0.0
      %vm1669 = vcmp.gt.f32.partialorder %v1637, 0.0
      %vm1670 = vcmp.gt.f32.partialorder %v1638, 0.0
      %vm1671 = vcmp.gt.f32.partialorder %v1639, 0.0
      %vm1672 = vcmp.gt.f32.partialorder %v1640, 0.0
      %vm1673 = vcmp.gt.f32.partialorder %v1641, 0.0
      %vm1674 = vcmp.gt.f32.partialorder %v1642, 0.0
      %v1675 = vmul.f32 %v1611, 0.01
      %v1676 = vmul.f32 %v1612, 0.01
      %v1677 = vmul.f32 %v1613, 0.01
      %v1678 = vmul.f32 %v1614, 0.01
      %v1679 = vmul.f32 %v1615, 0.01
      %v1680 = vmul.f32 %v1616, 0.01
      %v1681 = vmul.f32 %v1617, 0.01
      %v1682 = vmul.f32 %v1618, 0.01
      %v1683 = vmul.f32 %v1619, 0.01
      %v1684 = vmul.f32 %v1620, 0.01
      %v1685 = vmul.f32 %v1621, 0.01
      %v1686 = vmul.f32 %v1622, 0.01
      %v1687 = vmul.f32 %v1623, 0.01
      %v1688 = vmul.f32 %v1624, 0.01
      %v1689 = vmul.f32 %v1625, 0.01
      %v1690 = vmul.f32 %v1626, 0.01
      %v1691 = vmul.f32 %v1627, 0.01
      %v1692 = vmul.f32 %v1628, 0.01
      %v1693 = vmul.f32 %v1629, 0.01
      %v1694 = vmul.f32 %v1630, 0.01
      %v1695 = vmul.f32 %v1631, 0.01
      %v1696 = vmul.f32 %v1632, 0.01
      %v1697 = vmul.f32 %v1633, 0.01
      %v1698 = vmul.f32 %v1634, 0.01
      %v1699 = vmul.f32 %v1635, 0.01
      %v1700 = vmul.f32 %v1636, 0.01
      %v1701 = vmul.f32 %v1637, 0.01
      %v1702 = vmul.f32 %v1638, 0.01
      %v1703 = vmul.f32 %v1639, 0.01
      %v1704 = vmul.f32 %v1640, 0.01
      %v1705 = vmul.f32 %v1641, 0.01
      %v1706 = vmul.f32 %v1642, 0.01
      %v1707 = vsel %vm1643, %v1611, %v1675
      %v1708 = vsel %vm1644, %v1612, %v1676
      %v1709 = vsel %vm1645, %v1613, %v1677
      %v1710 = vsel %vm1646, %v1614, %v1678
      %v1711 = vsel %vm1647, %v1615, %v1679
      %v1712 = vsel %vm1648, %v1616, %v1680
      %v1713 = vsel %vm1649, %v1617, %v1681
      %v1714 = vsel %vm1650, %v1618, %v1682
      %v1715 = vsel %vm1651, %v1619, %v1683
      %v1716 = vsel %vm1652, %v1620, %v1684
      %v1717 = vsel %vm1653, %v1621, %v1685
      %v1718 = vsel %vm1654, %v1622, %v1686
      %v1719 = vsel %vm1655, %v1623, %v1687
      %v1720 = vsel %vm1656, %v1624, %v1688
      %v1721 = vsel %vm1657, %v1625, %v1689
      %v1722 = vsel %vm1658, %v1626, %v1690
      %v1723 = vsel %vm1659, %v1627, %v1691
      %v1724 = vsel %vm1660, %v1628, %v1692
      %v1725 = vsel %vm1661, %v1629, %v1693
      %v1726 = vsel %vm1662, %v1630, %v1694
      %v1727 = vsel %vm1663, %v1631, %v1695
      %v1728 = vsel %vm1664, %v1632, %v1696
      %v1729 = vsel %vm1665, %v1633, %v1697
      %v1730 = vsel %vm1666, %v1634, %v1698
      %v1731 = vsel %vm1667, %v1635, %v1699
      %v1732 = vsel %vm1668, %v1636, %v1700
      %v1733 = vsel %vm1669, %v1637, %v1701
      %v1734 = vsel %vm1670, %v1638, %v1702
      %v1735 = vsel %vm1671, %v1639, %v1703
      %v1736 = vsel %vm1672, %v1640, %v1704
      %v1737 = vsel %vm1673, %v1641, %v1705
      %v1738 = vsel %vm1674, %v1642, %v1706
      %v1739 = vsel %vm780, %v1707, 0.0
      %v1740 = vsel %vm780, %v1708, 0.0
      %v1741 = vadd.f32 %v1739, %v1740
      %v1742 = vsel %vm780, %v1709, 0.0
      %v1743 = vadd.f32 %v1741, %v1742
      %v1744 = vsel %vm780, %v1710, 0.0
      %v1745 = vadd.f32 %v1743, %v1744
      %v1746 = vsel %vm780, %v1711, 0.0
      %v1747 = vadd.f32 %v1745, %v1746
      %v1748 = vsel %vm780, %v1712, 0.0
      %v1749 = vadd.f32 %v1747, %v1748
      %v1750 = vsel %vm780, %v1713, 0.0
      %v1751 = vadd.f32 %v1749, %v1750
      %v1752 = vsel %vm780, %v1714, 0.0
      %v1753 = vadd.f32 %v1751, %v1752
      %v1754 = vsel %vm780, %v1715, 0.0
      %v1755 = vadd.f32 %v1753, %v1754
      %v1756 = vsel %vm780, %v1716, 0.0
      %v1757 = vadd.f32 %v1755, %v1756
      %v1758 = vsel %vm780, %v1717, 0.0
      %v1759 = vadd.f32 %v1757, %v1758
      %v1760 = vsel %vm780, %v1718, 0.0
      %v1761 = vadd.f32 %v1759, %v1760
      %v1762 = vsel %vm780, %v1719, 0.0
      %v1763 = vadd.f32 %v1761, %v1762
      %v1764 = vsel %vm780, %v1720, 0.0
      %v1765 = vadd.f32 %v1763, %v1764
      %v1766 = vsel %vm780, %v1721, 0.0
      %v1767 = vadd.f32 %v1765, %v1766
      %v1768 = vsel %vm780, %v1722, 0.0
      %v1769 = vadd.f32 %v1767, %v1768
      %v1770 = vsel %vm780, %v1723, 0.0
      %v1771 = vadd.f32 %v1769, %v1770
      %v1772 = vsel %vm780, %v1724, 0.0
      %v1773 = vadd.f32 %v1771, %v1772
      %v1774 = vsel %vm780, %v1725, 0.0
      %v1775 = vadd.f32 %v1773, %v1774
      %v1776 = vsel %vm780, %v1726, 0.0
      %v1777 = vadd.f32 %v1775, %v1776
      %v1778 = vsel %vm780, %v1727, 0.0
      %v1779 = vadd.f32 %v1777, %v1778
      %v1780 = vsel %vm780, %v1728, 0.0
      %v1781 = vadd.f32 %v1779, %v1780
      %v1782 = vsel %vm780, %v1729, 0.0
      %v1783 = vadd.f32 %v1781, %v1782
      %v1784 = vsel %vm780, %v1730, 0.0
      %v1785 = vadd.f32 %v1783, %v1784
      %v1786 = vsel %vm780, %v1731, 0.0
      %v1787 = vadd.f32 %v1785, %v1786
      %v1788 = vsel %vm780, %v1732, 0.0
      %v1789 = vadd.f32 %v1787, %v1788
      %v1790 = vsel %vm780, %v1733, 0.0
      %v1791 = vadd.f32 %v1789, %v1790
      %v1792 = vsel %vm780, %v1734, 0.0
      %v1793 = vadd.f32 %v1791, %v1792
      %v1794 = vsel %vm780, %v1735, 0.0
      %v1795 = vadd.f32 %v1793, %v1794
      %v1796 = vsel %vm780, %v1736, 0.0
      %v1797 = vadd.f32 %v1795, %v1796
      %v1798 = vsel %vm780, %v1737, 0.0
      %v1799 = vadd.f32 %v1797, %v1798
      %v1800 = vsel %vm780, %v1738, 0.0
      %v1801 = vadd.f32 %v1799, %v1800
      %v1802 = vrot.slane %v1801, 4
      %v1803 = vadd.f32 %v1801, %v1802
      %v1804 = vrot.slane %v1803, 2
      %v1805 = vadd.f32 %v1803, %v1804
      %v1806 = vrot.slane %v1805, 1
      %v1807 = vadd.f32 %v1805, %v1806
      %v1808 = vmul.f32 %v1707, %v1707
      %v1809 = vmul.f32 %v1708, %v1708
      %v1810 = vmul.f32 %v1709, %v1709
      %v1811 = vmul.f32 %v1710, %v1710
      %v1812 = vmul.f32 %v1711, %v1711
      %v1813 = vmul.f32 %v1712, %v1712
      %v1814 = vmul.f32 %v1713, %v1713
      %v1815 = vmul.f32 %v1714, %v1714
      %v1816 = vmul.f32 %v1715, %v1715
      %v1817 = vmul.f32 %v1716, %v1716
      %v1818 = vmul.f32 %v1717, %v1717
      %v1819 = vmul.f32 %v1718, %v1718
      %v1820 = vmul.f32 %v1719, %v1719
      %v1821 = vmul.f32 %v1720, %v1720
      %v1822 = vmul.f32 %v1721, %v1721
      %v1823 = vmul.f32 %v1722, %v1722
      %v1824 = vmul.f32 %v1723, %v1723
      %v1825 = vmul.f32 %v1724, %v1724
      %v1826 = vmul.f32 %v1725, %v1725
      %v1827 = vmul.f32 %v1726, %v1726
      %v1828 = vmul.f32 %v1727, %v1727
      %v1829 = vmul.f32 %v1728, %v1728
      %v1830 = vmul.f32 %v1729, %v1729
      %v1831 = vmul.f32 %v1730, %v1730
      %v1832 = vmul.f32 %v1731, %v1731
      %v1833 = vmul.f32 %v1732, %v1732
      %v1834 = vmul.f32 %v1733, %v1733
      %v1835 = vmul.f32 %v1734, %v1734
      %v1836 = vmul.f32 %v1735, %v1735
      %v1837 = vmul.f32 %v1736, %v1736
      %v1838 = vmul.f32 %v1737, %v1737
      %v1839 = vmul.f32 %v1738, %v1738
      %v1840 = vsel %vm780, %v1808, 0.0
      %v1841 = vsel %vm780, %v1809, 0.0
      %v1842 = vadd.f32 %v1840, %v1841
      %v1843 = vsel %vm780, %v1810, 0.0
      %v1844 = vadd.f32 %v1842, %v1843
      %v1845 = vsel %vm780, %v1811, 0.0
      %v1846 = vadd.f32 %v1844, %v1845
      %v1847 = vsel %vm780, %v1812, 0.0
      %v1848 = vadd.f32 %v1846, %v1847
      %v1849 = vsel %vm780, %v1813, 0.0
      %v1850 = vadd.f32 %v1848, %v1849
      %v1851 = vsel %vm780, %v1814, 0.0
      %v1852 = vadd.f32 %v1850, %v1851
      %v1853 = vsel %vm780, %v1815, 0.0
      %v1854 = vadd.f32 %v1852, %v1853
      %v1855 = vsel %vm780, %v1816, 0.0
      %v1856 = vadd.f32 %v1854, %v1855
      %v1857 = vsel %vm780, %v1817, 0.0
      %v1858 = vadd.f32 %v1856, %v1857
      %v1859 = vsel %vm780, %v1818, 0.0
      %v1860 = vadd.f32 %v1858, %v1859
      %v1861 = vsel %vm780, %v1819, 0.0
      %v1862 = vadd.f32 %v1860, %v1861
      %v1863 = vsel %vm780, %v1820, 0.0
      %v1864 = vadd.f32 %v1862, %v1863
      %v1865 = vsel %vm780, %v1821, 0.0
      %v1866 = vadd.f32 %v1864, %v1865
      %v1867 = vsel %vm780, %v1822, 0.0
      %v1868 = vadd.f32 %v1866, %v1867
      %v1869 = vsel %vm780, %v1823, 0.0
      %v1870 = vadd.f32 %v1868, %v1869
      %v1871 = vsel %vm780, %v1824, 0.0
      %v1872 = vadd.f32 %v1870, %v1871
      %v1873 = vsel %vm780, %v1825, 0.0
      %v1874 = vadd.f32 %v1872, %v1873
      %v1875 = vsel %vm780, %v1826, 0.0
      %v1876 = vadd.f32 %v1874, %v1875
      %v1877 = vsel %vm780, %v1827, 0.0
      %v1878 = vadd.f32 %v1876, %v1877
      %v1879 = vsel %vm780, %v1828, 0.0
      %v1880 = vadd.f32 %v1878, %v1879
      %v1881 = vsel %vm780, %v1829, 0.0
      %v1882 = vadd.f32 %v1880, %v1881
      %v1883 = vsel %vm780, %v1830, 0.0
      %v1884 = vadd.f32 %v1882, %v1883
      %v1885 = vsel %vm780, %v1831, 0.0
      %v1886 = vadd.f32 %v1884, %v1885
      %v1887 = vsel %vm780, %v1832, 0.0
      %v1888 = vadd.f32 %v1886, %v1887
      %v1889 = vsel %vm780, %v1833, 0.0
      %v1890 = vadd.f32 %v1888, %v1889
      %v1891 = vsel %vm780, %v1834, 0.0
      %v1892 = vadd.f32 %v1890, %v1891
      %v1893 = vsel %vm780, %v1835, 0.0
      %v1894 = vadd.f32 %v1892, %v1893
      %v1895 = vsel %vm780, %v1836, 0.0
      %v1896 = vadd.f32 %v1894, %v1895
      %v1897 = vsel %vm780, %v1837, 0.0
      %v1898 = vadd.f32 %v1896, %v1897
      %v1899 = vsel %vm780, %v1838, 0.0
      %v1900 = vadd.f32 %v1898, %v1899
      %v1901 = vsel %vm780, %v1839, 0.0
      %v1902 = vadd.f32 %v1900, %v1901
      %v1903 = vrot.slane %v1902, 4
      %v1904 = vadd.f32 %v1902, %v1903
      %v1905 = vrot.slane %v1904, 2
      %v1906 = vadd.f32 %v1904, %v1905
      %v1907 = vrot.slane %v1906, 1
      %v1908 = vadd.f32 %v1906, %v1907
      %vm1909 = vcmask 1040384
      %v1910 = vsel %vm1909, %v1807, %v1908
      %vm1911 = vcmask 58368
      %1912 = vst.msk [vmem:[%s469] sm:$0x3] %vm1911, %v1910
      %1913 = vst.msk [vmem:[%s461] sm:$0xff] %vm780, %v1707
      %1914 = vst.msk [vmem:[%s461 + $0x8] sm:$0xff] %vm780, %v1708
      %1915 = vst.msk [vmem:[%s461 + $0x10] sm:$0xff] %vm780, %v1709
      %1916 = vst.msk [vmem:[%s461 + $0x18] sm:$0xff] %vm780, %v1710
      %1917 = vst.msk [vmem:[%s461 + $0x20] sm:$0xff] %vm780, %v1711
      %1918 = vst.msk [vmem:[%s461 + $0x28] sm:$0xff] %vm780, %v1712
      %1919 = vst.msk [vmem:[%s461 + $0x30] sm:$0xff] %vm780, %v1713
      %1920 = vst.msk [vmem:[%s461 + $0x38] sm:$0xff] %vm780, %v1714
      %1921 = vst.msk [vmem:[%s461 + $0x40] sm:$0xff] %vm780, %v1715
      %1922 = vst.msk [vmem:[%s461 + $0x48] sm:$0xff] %vm780, %v1716
      %1923 = vst.msk [vmem:[%s461 + $0x50] sm:$0xff] %vm780, %v1717
      %1924 = vst.msk [vmem:[%s461 + $0x58] sm:$0xff] %vm780, %v1718
      %1925 = vst.msk [vmem:[%s461 + $0x60] sm:$0xff] %vm780, %v1719
      %1926 = vst.msk [vmem:[%s461 + $0x68] sm:$0xff] %vm780, %v1720
      %1927 = vst.msk [vmem:[%s461 + $0x70] sm:$0xff] %vm780, %v1721
      %1928 = vst.msk [vmem:[%s461 + $0x78] sm:$0xff] %vm780, %v1722
      %1929 = vst.msk [vmem:[%s461 + $0x80] sm:$0xff] %vm780, %v1723
      %1930 = vst.msk [vmem:[%s461 + $0x88] sm:$0xff] %vm780, %v1724
      %1931 = vst.msk [vmem:[%s461 + $0x90] sm:$0xff] %vm780, %v1725
      %1932 = vst.msk [vmem:[%s461 + $0x98] sm:$0xff] %vm780, %v1726
      %1933 = vst.msk [vmem:[%s461 + $0xa0] sm:$0xff] %vm780, %v1727
      %1934 = vst.msk [vmem:[%s461 + $0xa8] sm:$0xff] %vm780, %v1728
      %1935 = vst.msk [vmem:[%s461 + $0xb0] sm:$0xff] %vm780, %v1729
      %1936 = vst.msk [vmem:[%s461 + $0xb8] sm:$0xff] %vm780, %v1730
      %1937 = vst.msk [vmem:[%s461 + $0xc0] sm:$0xff] %vm780, %v1731
      %1938 = vst.msk [vmem:[%s461 + $0xc8] sm:$0xff] %vm780, %v1732
      %1939 = vst.msk [vmem:[%s461 + $0xd0] sm:$0xff] %vm780, %v1733
      %1940 = vst.msk [vmem:[%s461 + $0xd8] sm:$0xff] %vm780, %v1734
      %1941 = vst.msk [vmem:[%s461 + $0xe0] sm:$0xff] %vm780, %v1735
      %1942 = vst.msk [vmem:[%s461 + $0xe8] sm:$0xff] %vm780, %v1736
      %1943 = vst.msk [vmem:[%s461 + $0xf0] sm:$0xff] %vm780, %v1737
      %1944 = vst.msk [vmem:[%s461 + $0xf8] sm:$0xff] %vm780, %v1738
      %s1945 = smul.u32 32, %s25
      %p1946 = scmp.lt.s32.totalorder %s24, 1
      %s1947 = scalar_select %p1946, %s24, 1
      %p1948 = scmp.lt.s32.totalorder %s1945, 31
      %s1949 = scalar_select %p1948, %s1945, 31
      %s1950 = smul.addr %s1947, 32
      %s1951 = sadd.s32 %s1949, %s1950
      %s1952 = smul.addr %s1951, 8
      %s1953 = scalar_lea.vmem %s7, %s1952
      %p1954 = scmp.lt.s32.totalorder %s24, 1
      %s1955 = scalar_select %p1954, %s24, 1
      %p1956 = scmp.lt.s32.totalorder %s25, 0
      %s1957 = scalar_select %p1956, %s25, 0
      %s1958 = sadd.s32 %s1957, %s1955
      %s1959 = smul.addr %s1958, 2
      %s1960 = scalar_lea.vmem %s8, %s1959
      // Predicated region
      $region49: #{upblock_forward.9} parent=47 // pred_check
        %p1961 = pneg %p230
      $region50: #{upblock_forward.9} parent=47 // pred_check_branch
        %1963 = sbr.rel (%p1961) target = $region52
      $region51: #{upblock_forward.9} parent=47 // pred_region
        %s1964 = smul.u32 32, %s25
      $region52: #{upblock_forward.9} parent=47 // pred_fallthru
        _
      // Predicated region
      $region53: #{upblock_forward.9} parent=47 // pred_check
        %p1965 = pneg %p258
      $region54: #{upblock_forward.9} parent=47 // pred_check_branch
        %1967 = sbr.rel (%p1965) target = $region56
      $region55: #{upblock_forward.9} parent=47 // pred_region
        _
      $region56: #{upblock_forward.9} parent=47 // pred_fallthru
        _
    $region48: #{upblock_forward.9} parent=5 // pred_fallthru
      _
    %p1968 = scmp.le.s32.totalorder 2, %s15
    // Predicated region
    $region57: #{upblock_forward.9} parent=5 // pred_check
      %p1969 = pneg %p1968
    $region58: #{upblock_forward.9} parent=5 // pred_check_branch
      %1971 = sbr.rel (%p1969) target = $region60
    $region59: #{upblock_forward.9} parent=5 // pred_region
      %s1972 = ssub.s32 %s15, 2
      // Predicated region
      $region61: #{upblock_forward.9} parent=59 // pred_check
        %p1973 = pneg %p236
      $region62: #{upblock_forward.9} parent=59 // pred_check_branch
        %1975 = sbr.rel (%p1973) target = $region64
      $region63: #{upblock_forward.9} parent=59 // pred_region
        %s1976 = smul.u32 32, %s27
        %p1977 = scmp.lt.s32.totalorder %s26, 1
        %s1978 = scalar_select %p1977, %s26, 1
        %p1979 = scmp.lt.s32.totalorder %s1976, 31
        %s1980 = scalar_select %p1979, %s1976, 31
        %s1981 = smul.addr %s1978, 32
        %s1982 = sadd.s32 %s1980, %s1981
        %s1983 = smul.addr %s1982, 8
        %s1984 = scalar_lea.vmem %s7, %s1983
      $region64: #{upblock_forward.9} parent=59 // pred_fallthru
        _
      // Predicated region
      $region65: #{upblock_forward.9} parent=59 // pred_check
        %p1985 = pneg %p264
      $region66: #{upblock_forward.9} parent=59 // pred_check_branch
        %1987 = sbr.rel (%p1985) target = $region68
      $region67: #{upblock_forward.9} parent=59 // pred_region
        %p1988 = scmp.lt.s32.totalorder %s26, 1
        %s1989 = scalar_select %p1988, %s26, 1
        %p1990 = scmp.lt.s32.totalorder %s27, 0
        %s1991 = scalar_select %p1990, %s27, 0
        %s1992 = sadd.s32 %s1991, %s1989
        %s1993 = smul.addr %s1992, 2
        %s1994 = scalar_lea.vmem %s8, %s1993
      $region68: #{upblock_forward.9} parent=59 // pred_fallthru
        _
    $region60: #{upblock_forward.9} parent=5 // pred_fallthru
      _
  $region6: #{upblock_forward.9} parent=0 // loop_footer
    %s19 = sadd.s32 1, %s15
  $region7: #{upblock_forward.9} parent=0 // loop_footer_branch
    %14 = sbr.rel target = $region3
  $region8: #{upblock_forward.9} parent=0 // loop_exit
    _

</llo_original>
